<compile_context>
chip_gen: v5e
topology: v5e:2x2
jax: 0.10.0
libtpu: 0.0.40
codegen_flags: <defaults>
</compile_context>

<pallas_src>
import functools
import math

import jax
import jax.numpy as jnp
from jax.experimental import pallas as pl
from jax.experimental.pallas import tpu as pltpu

NEG_SLOPE = 0.01        # nn.LeakyReLU default
HEAD_W = 128            # lane-dense width of the fused head output (cols 0/1 are real)
TARGET_ROWS = 128       # node rows packed per grid step (one full MXU tile on v5e+)


def _sigmoid(v):
    # sigmoid(v) = 0.5 * tanh(v / 2) + 0.5 : one EUP tanh, no divide, result in [0, 1],
    # numerically stable for large |v| (no exp overflow / approx-reciprocal-of-inf path).
    # NOTE: parity vs torch.sigmoid is ~1 ulp; use exp/div form if bit-matching PyTorch.
    return 0.5 * jnp.tanh(0.5 * v) + 0.5


def _leaky_relu(v):
    return jnp.where(v > 0, v, NEG_SLOPE * v)


def ggnn_kernel(unrolls, G, N, H,
                x_ref, adjn_ref, adjm_ref, w0t_ref, wsq_ref, wrz_ref, wea1_ref,
                whead_ref, pk_ref, out_ref):
    f32 = jnp.float32
    R = G * N
    H2 = 2 * H

    x = x_ref[0]              # (R, F)     G graphs stacked along the sublane dim
    adj_norm = adjn_ref[0]    # (R, R)     block-diagonal adj / max(deg, 1)
    adj_mask = adjm_ref[0]    # (G, N, N)  float(adj == 1), per graph

    # ---- loop-invariant parameter loads (hoisted once, reused by every unroll) ----
    b0   = pk_ref[0:1, 0:H]
    bo1  = pk_ref[5:6, 0:H]
    bo2  = pk_ref[6:7, 0:H]
    bea2 = pk_ref[7:8, 0:1]            # scalar (broadcast against (G, N, N))
    bhd  = pk_ref[8:9, 0:HEAD_W]
    wea2 = pk_ref[9:10, 0:H]           # (1, H) second edge-attention linear weight

    # Pre-broadcast the loop-used biases once: an implicit (1,H)->(R,H) broadcast inside
    # the loop would re-emit broadcast_in_dim every iteration (JAX does not CSE it).
    b_rz_f = jnp.broadcast_to(pk_ref[1:2, 0:H2], (R, H2))   # [b_ir+b_hr | b_iz+b_hz]
    b_in_f = jnp.broadcast_to(pk_ref[2:3, 0:H], (R, H))
    b_hn_f = jnp.broadcast_to(pk_ref[3:4, 0:H], (R, H))
    b_ea_f = jnp.broadcast_to(pk_ref[4:5, 0:H2], (R, H2))   # [bea1 | 0]

    wggc  = wsq_ref[0]                            # PyG stores (H, H): m = h @ wggc
    wih_n = wsq_ref[1]
    whh_n = wsq_ref[2]
    wo1   = wsq_ref[3]
    wo2   = wsq_ref[4]
    wrz   = wrz_ref[...]                          # (2H, 2H) [agg | h] -> [r | z]
    wea1  = wea1_ref[...]                         # (H, 2H)  h -> [a-part | b-part]
    whead = whead_ref[...]                        # (H, HEAD_W) fused, lane-padded heads

    # ---- init_layer: Linear(input_dim, H) + LeakyReLU ----
    h = _leaky_relu(jnp.dot(x, w0t_ref[...], preferred_element_type=f32) + b0)

    def step(h):
        # ---- GatedGraphConv(H, num_layers=1, aggr='mean') ----
        # Block-diagonal adj_norm aggregates all G graphs with one full-tile matmul.
        m = jnp.dot(h, wggc, preferred_element_type=f32)
        agg = jnp.dot(adj_norm, m, preferred_element_type=f32)

        # ---- GRUCell(agg, h), torch gate order [r | z | n] ----
        # r and z from ONE fused (R, 2H) @ (2H, 2H) matmul on [agg | h].
        ah = jnp.concatenate([agg, h], axis=-1)                       # (R, 2H)
        rz = _sigmoid(jnp.dot(ah, wrz, preferred_element_type=f32) + b_rz_f)
        r = rz[:, :H]
        z = rz[:, H:]
        n = jnp.tanh(jnp.dot(agg, wih_n, preferred_element_type=f32) + b_in_f
                     + r * (jnp.dot(h, whh_n, preferred_element_type=f32) + b_hn_f))
        h_new = (1.0 - z) * n + z * h

        # ---- edge attention: concat + Linear(2H->H) fused into ONE matmul ----
        ab = jnp.dot(h_new, wea1, preferred_element_type=f32) + b_ea_f   # (R, 2H)
        a_part = ab[:, :H].reshape(G, N, H)
        b_part = ab[:, H:].reshape(G, N, H)
        # Pairwise work stays per graph: only intra-graph pairs are materialised.
        e1 = _sigmoid(a_part[:, :, None, :] + b_part[:, None, :, :])     # (G, N, N, H)
        coeffs = _sigmoid(jnp.sum(e1 * wea2, axis=-1) + bea2)            # (G, N, N)
        coeffs = coeffs * adj_mask            # == torch.where(adj == 1, coeffs, 0)
        hg = jax.lax.dot_general(coeffs, h_new.reshape(G, N, H),
                                 (((2,), (1,)), ((0,), (0,))),
                                 preferred_element_type=f32)             # (G, N, H)
        return hg.reshape(R, H)

    if unrolls <= 4:
        for _ in range(unrolls):
            h = step(h)
    else:
        # A visible loop bounds live ranges (static Python unrolling does not).
        h = jax.lax.fori_loop(0, unrolls, lambda _, hh: step(hh), h)

    # ---- output MLP + fused sigmoid heads (lane-dense (R, HEAD_W) store) ----
    o = _leaky_relu(jnp.dot(h, wo1, preferred_element_type=f32) + bo1)
    o = _leaky_relu(jnp.dot(o, wo2, preferred_element_type=f32) + bo2)
    out_ref[0] = _sigmoid(jnp.dot(o, whead, preferred_element_type=f32) + bhd)


def ggnn_forward(x_raw, adj, params, *, unrolls, hidden_dim):
    """x_raw: (B, N, input_dim+1), adj: (B, N, N). Returns (out1, out2), each (B, N, 1)."""
    x = x_raw[..., :-1].astype(jnp.float32)       # forward does data.x[:, :-1]
    B, N, F = x.shape
    H = hidden_dim
    H2 = 2 * H

    # ---- pick how many graphs share one grid step (~128 node rows per step) ----
    G = max(1, min(B, TARGET_ROWS // max(N, 1)))
    if math.ceil(B / G) < 2 and B > 1:
        G = max(1, math.ceil(B / 2))      # keep >= 2 grid steps: v7x has two TensorCores
    NB = math.ceil(B / G)
    B_pad = NB * G
    R = G * N

    # ---- wrapper-side plumbing (layout only; computed once, never per unroll) ----
    adj = adj.astype(jnp.float32)
    deg = jnp.sum(adj, axis=-1, keepdims=True)
    adj_norm = adj / jnp.maximum(deg, 1.0)        # mean aggregation; isolated nodes -> 0
    adj_mask = (adj == 1.0).astype(jnp.float32)   # matches torch.where(adj == 1, ...)

    if B_pad != B:
        pad = ((0, B_pad - B), (0, 0), (0, 0))
        x = jnp.pad(x, pad)
        adj_norm = jnp.pad(adj_norm, pad)
        adj_mask = jnp.pad(adj_mask, pad)

    x_blk = x.reshape(NB, R, F)
    # Block-diagonal normalised adjacency: one (R, R) @ (R, H) matmul per unroll.
    eye_g = jnp.eye(G, dtype=jnp.float32)
    adjn_bd = (adj_norm.reshape(NB, G, N, 1, N)
               * eye_g[None, :, None, :, None]).reshape(NB, R, R)
    adjm_blk = adj_mask.reshape(NB, G, N, N)

    # ---- weights: pre-transposed to (in, out); GRU r/z and edge-attn linears fused ----
    wih, whh, wea1 = params["wih"], params["whh"], params["wea1"]
    wrz = jnp.concatenate([
        jnp.concatenate([wih[:H].T, wih[H:H2].T], axis=1),   # ih rows, cols [r | z]
        jnp.concatenate([whh[:H].T, whh[H:H2].T], axis=1),   # hh rows, cols [r | z]
    ], axis=0)                                               # (2H, 2H)
    wsq = jnp.stack([params["wggc"], wih[H2:].T, whh[H2:].T,
                     params["wo1"].T, params["wo2"].T])      # (5, H, H)
    wea1_full = jnp.concatenate([wea1[:, :H].T, wea1[:, H:].T], axis=1)   # (H, 2H)
    w0t = params["w0"].T                                     # (F, H)
    whead = (jnp.zeros((H, HEAD_W), jnp.float32)
             .at[:, 0].set(params["wc1"][0])
             .at[:, 1].set(params["wc2"][0]))                # lane-padded fused heads

    PKW = 128 * math.ceil(max(H2, HEAD_W) / 128)

    def rowp(v):
        v = jnp.asarray(v, jnp.float32).reshape(-1)
        return jnp.pad(v, (0, PKW - v.shape[0]))[None, :]

    bih, bhh = params["bih"][0], params["bhh"][0]
    b_rz = jnp.concatenate([bih[:H] + bhh[:H], bih[H:H2] + bhh[H:H2]])
    bhd = (jnp.zeros((HEAD_W,), jnp.float32)
           .at[0].set(params["bc1"].reshape(()))
           .at[1].set(params["bc2"].reshape(())))
    pk = jnp.concatenate([
        rowp(params["b0"]),    # 0
        rowp(b_rz),            # 1  (2H used): GRU r/z bias, ih+hh folded
        rowp(bih[H2:]),        # 2  b_in
        rowp(bhh[H2:]),        # 3  b_hn
        rowp(params["bea1"]),  # 4  (first H used; b-part bias is 0)
        rowp(params["bo1"]),   # 5
        rowp(params["bo2"]),   # 6
        rowp(params["bea2"]),  # 7  scalar
        rowp(bhd),             # 8  [bc1, bc2, 0, ...]
        rowp(params["wea2"]),  # 9  edge-attention second-linear weight (H,)
    ], axis=0)                 # (10, PKW) bias / small-parameter pack

    kernel = functools.partial(ggnn_kernel, unrolls, G, N, H)
    per_block = lambda *s: pl.BlockSpec((1,) + s, lambda b: (b,) + (0,) * len(s))
    shared = lambda *s: pl.BlockSpec(s, lambda b: (0,) * len(s))  # constant index: DMA'd once

    out = pl.pallas_call(
        kernel,
        out_shape=jax.ShapeDtypeStruct((NB, R, HEAD_W), jnp.float32),
        grid=(NB,),
        in_specs=[
            per_block(R, F),         # x (G graphs stacked along sublanes)
            per_block(R, R),         # block-diagonal adj_norm
            per_block(G, N, N),      # per-graph adj == 1 mask
            shared(F, H),            # w0t
            shared(5, H, H),         # wggc / GRU-n / output-MLP weights
            shared(H2, H2),          # fused GRU r/z weight
            shared(H, H2),           # fused edge-attention first linear
            shared(H, HEAD_W),       # fused, lane-padded sigmoid heads
            shared(10, PKW),         # bias / small-parameter pack
        ],
        out_specs=per_block(R, HEAD_W),
        compiler_params=pltpu.CompilerParams(
            dimension_semantics=("parallel",),     # blocks split across TCs on v7x
        ),
    )(x_blk, adjn_bd, adjm_blk, w0t, wsq, wrz, wea1_full, whead, pk)

    out = out.reshape(B_pad, N, HEAD_W)[:B]        # drop padding graphs / padding lanes
    return out[..., 0:1], out[..., 1:2]


def init_params(key, input_dim, hidden_dim):
    """Deterministic synthetic parameters (shapes follow the PyTorch module)."""
    H = hidden_dim
    ks = jax.random.split(key, 18)

    def w(k, shape, scale=0.1):
        return (scale * jax.random.normal(k, shape)).astype(jnp.float32)

    return dict(
        # init_layer
        w0=w(ks[0], (H, input_dim)), b0=w(ks[1], (1, H)),
        # GatedGraphConv weight[0] (H, H) and its GRUCell
        wggc=w(ks[2], (H, H)),
        wih=w(ks[3], (3 * H, H)), whh=w(ks[4], (3 * H, H)),
        bih=w(ks[5], (1, 3 * H)), bhh=w(ks[6], (1, 3 * H)),
        # edge_attention: Linear(2H,H)+Sigmoid, Linear(H,1)+Sigmoid
        wea1=w(ks[7], (H, 2 * H)), bea1=w(ks[8], (1, H)),
        wea2=w(ks[9], (1, H)), bea2=w(ks[10], (1, 1)),
        # out: Linear(H,H)+LeakyReLU, Linear(H,H)+LeakyReLU
        wo1=w(ks[11], (H, H)), bo1=w(ks[12], (1, H)),
        wo2=w(ks[13], (H, H)), bo2=w(ks[14], (1, H)),
        # out1 / out2 heads: Linear(H,1)+Sigmoid
        wc1=w(ks[15], (1, H)), bc1=w(ks[16], (1, 1)),
        wc2=w(ks[17], (1, H)), bc2=jnp.zeros((1, 1), jnp.float32),
    )


if __name__ == "__main__":
    # 32 graphs of 8 nodes -> 16 graphs (128 node rows) per grid step, 2 grid steps.
    B, N, INPUT_DIM, HIDDEN, UNROLLS = 32, 8, 9, 32, 2

    key = jax.random.PRNGKey(0)
    k_x, k_adj, k_params = jax.random.split(key, 3)

    # data.x has input_dim + 1 columns; forward drops the last one.
    x_raw = jax.random.normal(k_x, (B, N, INPUT_DIM + 1), dtype=jnp.float32)
    # adj[b, i, j] == 1  <=>  edge j -> i (node i aggregates from node j)
    adj = (jax.random.uniform(k_adj, (B, N, N)) < 0.4).astype(jnp.float32)

    params = init_params(k_params, INPUT_DIM, HIDDEN)

    fwd = jax.jit(functools.partial(ggnn_forward, unrolls=UNROLLS, hidden_dim=HIDDEN))
    out1, out2 = fwd(x_raw, adj, params)
    jax.block_until_ready((out1, out2))

    assert out1.shape == (B, N, 1) and out2.shape == (B, N, 1)
    assert bool(jnp.all(jnp.isfinite(out1))) and bool(jnp.all(jnp.isfinite(out2)))
    assert bool(jnp.all((out1 >= 0) & (out1 <= 1)))
    assert bool(jnp.all((out2 >= 0) & (out2 <= 1)))
    print("KERNEL_OK")
</pallas_src>

<mosaic_0001>
module attributes {stable_mosaic.version = 11 : i64} {
  func.func @ggnn_kernel(%arg0: i32, %arg1: memref<1x128x9xf32, #tpu.memory_space<vmem>>, %arg2: memref<1x128x128xf32, #tpu.memory_space<vmem>>, %arg3: memref<1x16x8x8xf32, #tpu.memory_space<vmem>>, %arg4: memref<9x32xf32, #tpu.memory_space<vmem>>, %arg5: memref<5x32x32xf32, #tpu.memory_space<vmem>>, %arg6: memref<64x64xf32, #tpu.memory_space<vmem>>, %arg7: memref<32x64xf32, #tpu.memory_space<vmem>>, %arg8: memref<32x128xf32, #tpu.memory_space<vmem>>, %arg9: memref<10x128xf32, #tpu.memory_space<vmem>>, %arg10: memref<1x128x128xf32, #tpu.memory_space<vmem>>) attributes {dimension_semantics = [#tpu.dimension_semantics<parallel>], iteration_bounds = array<i64: 2>, scalar_prefetch = 0 : i64, scratch_operands = 0 : i64, tpu.core_type = #tpu.core_type<tc>, window_params = [{transform_indices = @transform_0, window_bounds = array<i64: 1, 128, 9>}, {transform_indices = @transform_1, window_bounds = array<i64: 1, 128, 128>}, {transform_indices = @transform_2, window_bounds = array<i64: 1, 16, 8, 8>}, {pipeline_mode = #tpu.pipeline_mode<synchronous>, transform_indices = @transform_3, window_bounds = array<i64: 9, 32>}, {pipeline_mode = #tpu.pipeline_mode<synchronous>, transform_indices = @transform_4, window_bounds = array<i64: 5, 32, 32>}, {pipeline_mode = #tpu.pipeline_mode<synchronous>, transform_indices = @transform_5, window_bounds = array<i64: 64, 64>}, {pipeline_mode = #tpu.pipeline_mode<synchronous>, transform_indices = @transform_6, window_bounds = array<i64: 32, 64>}, {pipeline_mode = #tpu.pipeline_mode<synchronous>, transform_indices = @transform_7, window_bounds = array<i64: 32, 128>}, {pipeline_mode = #tpu.pipeline_mode<synchronous>, transform_indices = @transform_8, window_bounds = array<i64: 10, 128>}, {transform_indices = @transform_9, window_bounds = array<i64: 1, 128, 128>}]} {
    %c0 = arith.constant 0 : index
    %c0_0 = arith.constant 0 : index
    %c0_1 = arith.constant 0 : index
    %0 = vector.load %arg1[%c0, %c0_0, %c0_1] : memref<1x128x9xf32, #tpu.memory_space<vmem>>, vector<1x128x9xf32>
    %1 = vector.shape_cast %0 : vector<1x128x9xf32> to vector<128x9xf32>
    %c0_2 = arith.constant 0 : index
    %c0_3 = arith.constant 0 : index
    %c0_4 = arith.constant 0 : index
    %2 = vector.load %arg2[%c0_2, %c0_3, %c0_4] : memref<1x128x128xf32, #tpu.memory_space<vmem>>, vector<1x128x128xf32>
    %3 = vector.shape_cast %2 : vector<1x128x128xf32> to vector<128x128xf32>
    %c0_5 = arith.constant 0 : index
    %c0_6 = arith.constant 0 : index
    %c0_7 = arith.constant 0 : index
    %c0_8 = arith.constant 0 : index
    %4 = vector.load %arg3[%c0_5, %c0_6, %c0_7, %c0_8] : memref<1x16x8x8xf32, #tpu.memory_space<vmem>>, vector<1x16x8x8xf32>
    %5 = vector.shape_cast %4 : vector<1x16x8x8xf32> to vector<16x8x8xf32>
    %c0_9 = arith.constant 0 : index
    %c0_10 = arith.constant 0 : index
    %6 = vector.load %arg9[%c0_9, %c0_10] : memref<10x128xf32, #tpu.memory_space<vmem>>, vector<1x32xf32>
    %c5 = arith.constant 5 : index
    %c0_11 = arith.constant 0 : index
    %7 = vector.load %arg9[%c5, %c0_11] : memref<10x128xf32, #tpu.memory_space<vmem>>, vector<1x32xf32>
    %c6 = arith.constant 6 : index
    %c0_12 = arith.constant 0 : index
    %8 = vector.load %arg9[%c6, %c0_12] : memref<10x128xf32, #tpu.memory_space<vmem>>, vector<1x32xf32>
    %c7 = arith.constant 7 : index
    %c0_13 = arith.constant 0 : index
    %9 = vector.load %arg9[%c7, %c0_13] : memref<10x128xf32, #tpu.memory_space<vmem>>, vector<1x1xf32>
    %c8 = arith.constant 8 : index
    %c0_14 = arith.constant 0 : index
    %10 = vector.load %arg9[%c8, %c0_14] : memref<10x128xf32, #tpu.memory_space<vmem>>, vector<1x128xf32>
    %c9 = arith.constant 9 : index
    %c0_15 = arith.constant 0 : index
    %11 = vector.load %arg9[%c9, %c0_15] : memref<10x128xf32, #tpu.memory_space<vmem>>, vector<1x32xf32>
    %c1 = arith.constant 1 : index
    %c0_16 = arith.constant 0 : index
    %12 = vector.load %arg9[%c1, %c0_16] : memref<10x128xf32, #tpu.memory_space<vmem>>, vector<1x64xf32>
    %13 = vector.shape_cast %12 : vector<1x64xf32> to vector<1x64xf32>
    %14 = vector.broadcast %13 : vector<1x64xf32> to vector<128x64xf32>
    %c2 = arith.constant 2 : index
    %c0_17 = arith.constant 0 : index
    %15 = vector.load %arg9[%c2, %c0_17] : memref<10x128xf32, #tpu.memory_space<vmem>>, vector<1x32xf32>
    %16 = vector.shape_cast %15 : vector<1x32xf32> to vector<1x32xf32>
    %17 = vector.broadcast %16 : vector<1x32xf32> to vector<128x32xf32>
    %c3 = arith.constant 3 : index
    %c0_18 = arith.constant 0 : index
    %18 = vector.load %arg9[%c3, %c0_18] : memref<10x128xf32, #tpu.memory_space<vmem>>, vector<1x32xf32>
    %19 = vector.shape_cast %18 : vector<1x32xf32> to vector<1x32xf32>
    %20 = vector.broadcast %19 : vector<1x32xf32> to vector<128x32xf32>
    %c4 = arith.constant 4 : index
    %c0_19 = arith.constant 0 : index
    %21 = vector.load %arg9[%c4, %c0_19] : memref<10x128xf32, #tpu.memory_space<vmem>>, vector<1x64xf32>
    %22 = vector.shape_cast %21 : vector<1x64xf32> to vector<1x64xf32>
    %23 = vector.broadcast %22 : vector<1x64xf32> to vector<128x64xf32>
    %c0_20 = arith.constant 0 : index
    %c0_21 = arith.constant 0 : index
    %c0_22 = arith.constant 0 : index
    %24 = vector.load %arg5[%c0_20, %c0_21, %c0_22] : memref<5x32x32xf32, #tpu.memory_space<vmem>>, vector<1x32x32xf32>
    %25 = vector.shape_cast %24 : vector<1x32x32xf32> to vector<32x32xf32>
    %c1_23 = arith.constant 1 : index
    %c0_24 = arith.constant 0 : index
    %c0_25 = arith.constant 0 : index
    %26 = vector.load %arg5[%c1_23, %c0_24, %c0_25] : memref<5x32x32xf32, #tpu.memory_space<vmem>>, vector<1x32x32xf32>
    %27 = vector.shape_cast %26 : vector<1x32x32xf32> to vector<32x32xf32>
    %c2_26 = arith.constant 2 : index
    %c0_27 = arith.constant 0 : index
    %c0_28 = arith.constant 0 : index
    %28 = vector.load %arg5[%c2_26, %c0_27, %c0_28] : memref<5x32x32xf32, #tpu.memory_space<vmem>>, vector<1x32x32xf32>
    %29 = vector.shape_cast %28 : vector<1x32x32xf32> to vector<32x32xf32>
    %c3_29 = arith.constant 3 : index
    %c0_30 = arith.constant 0 : index
    %c0_31 = arith.constant 0 : index
    %30 = vector.load %arg5[%c3_29, %c0_30, %c0_31] : memref<5x32x32xf32, #tpu.memory_space<vmem>>, vector<1x32x32xf32>
    %31 = vector.shape_cast %30 : vector<1x32x32xf32> to vector<32x32xf32>
    %c4_32 = arith.constant 4 : index
    %c0_33 = arith.constant 0 : index
    %c0_34 = arith.constant 0 : index
    %32 = vector.load %arg5[%c4_32, %c0_33, %c0_34] : memref<5x32x32xf32, #tpu.memory_space<vmem>>, vector<1x32x32xf32>
    %33 = vector.shape_cast %32 : vector<1x32x32xf32> to vector<32x32xf32>
    %c0_35 = arith.constant 0 : index
    %c0_36 = arith.constant 0 : index
    %34 = vector.load %arg6[%c0_35, %c0_36] : memref<64x64xf32, #tpu.memory_space<vmem>>, vector<64x64xf32>
    %c0_37 = arith.constant 0 : index
    %c0_38 = arith.constant 0 : index
    %35 = vector.load %arg7[%c0_37, %c0_38] : memref<32x64xf32, #tpu.memory_space<vmem>>, vector<32x64xf32>
    %c0_39 = arith.constant 0 : index
    %c0_40 = arith.constant 0 : index
    %36 = vector.load %arg8[%c0_39, %c0_40] : memref<32x128xf32, #tpu.memory_space<vmem>>, vector<32x128xf32>
    %c0_41 = arith.constant 0 : index
    %c0_42 = arith.constant 0 : index
    %37 = vector.load %arg4[%c0_41, %c0_42] : memref<9x32xf32, #tpu.memory_space<vmem>>, vector<9x32xf32>
    %cst = arith.constant dense<0.000000e+00> : vector<128x32xf32>
    %38 = tpu.matmul %1, %37, %cst {dimension_numbers = #tpu.dot_dimension_numbers<[1], [0], [0], [1], [0, 0, 1, 1], [], []>} : vector<128x9xf32>, vector<9x32xf32>, vector<128x32xf32> -> vector<128x32xf32>
    %39 = vector.broadcast %6 : vector<1x32xf32> to vector<128x32xf32>
    %40 = arith.addf %38, %39 : vector<128x32xf32>
    %cst_43 = arith.constant 0.000000e+00 : f32
    %41 = vector.broadcast %cst_43 : f32 to vector<128x32xf32>
    %42 = arith.cmpf ogt, %40, %41 : vector<128x32xf32>
    %cst_44 = arith.constant 0.00999999977 : f32
    %43 = vector.broadcast %cst_44 : f32 to vector<128x32xf32>
    %44 = arith.mulf %43, %40 : vector<128x32xf32>
    %45 = arith.select %42, %40, %44 : vector<128x32xi1>, vector<128x32xf32>
    %cst_45 = arith.constant dense<0.000000e+00> : vector<128x32xf32>
    %46 = tpu.matmul %45, %25, %cst_45 {dimension_numbers = #tpu.dot_dimension_numbers<[1], [0], [0], [1], [0, 0, 1, 1], [], []>} : vector<128x32xf32>, vector<32x32xf32>, vector<128x32xf32> -> vector<128x32xf32>
    %cst_46 = arith.constant dense<0.000000e+00> : vector<128x32xf32>
    %47 = tpu.matmul %3, %46, %cst_46 {dimension_numbers = #tpu.dot_dimension_numbers<[1], [0], [0], [1], [0, 0, 1, 1], [], []>} : vector<128x128xf32>, vector<128x32xf32>, vector<128x32xf32> -> vector<128x32xf32>
    %48 = tpu.concatenate %47, %45 in 1 : vector<128x32xf32>, vector<128x32xf32> -> vector<128x64xf32>
    %cst_47 = arith.constant dense<0.000000e+00> : vector<128x64xf32>
    %49 = tpu.matmul %48, %34, %cst_47 {dimension_numbers = #tpu.dot_dimension_numbers<[1], [0], [0], [1], [0, 0, 1, 1], [], []>} : vector<128x64xf32>, vector<64x64xf32>, vector<128x64xf32> -> vector<128x64xf32>
    %50 = arith.addf %49, %14 : vector<128x64xf32>
    %cst_48 = arith.constant 5.000000e-01 : f32
    %51 = vector.broadcast %cst_48 : f32 to vector<128x64xf32>
    %52 = arith.mulf %51, %50 : vector<128x64xf32>
    %53 = math.tanh %52 : vector<128x64xf32>
    %cst_49 = arith.constant 5.000000e-01 : f32
    %54 = vector.broadcast %cst_49 : f32 to vector<128x64xf32>
    %55 = arith.mulf %54, %53 : vector<128x64xf32>
    %cst_50 = arith.constant 5.000000e-01 : f32
    %56 = vector.broadcast %cst_50 : f32 to vector<128x64xf32>
    %57 = arith.addf %55, %56 : vector<128x64xf32>
    %58 = vector.extract_strided_slice %57 {offsets = [0, 0], sizes = [128, 32], strides = [1, 1]} : vector<128x64xf32> to vector<128x32xf32>
    %59 = vector.extract_strided_slice %57 {offsets = [0, 32], sizes = [128, 32], strides = [1, 1]} : vector<128x64xf32> to vector<128x32xf32>
    %cst_51 = arith.constant dense<0.000000e+00> : vector<128x32xf32>
    %60 = tpu.matmul %47, %27, %cst_51 {dimension_numbers = #tpu.dot_dimension_numbers<[1], [0], [0], [1], [0, 0, 1, 1], [], []>} : vector<128x32xf32>, vector<32x32xf32>, vector<128x32xf32> -> vector<128x32xf32>
    %61 = arith.addf %60, %17 : vector<128x32xf32>
    %cst_52 = arith.constant dense<0.000000e+00> : vector<128x32xf32>
    %62 = tpu.matmul %45, %29, %cst_52 {dimension_numbers = #tpu.dot_dimension_numbers<[1], [0], [0], [1], [0, 0, 1, 1], [], []>} : vector<128x32xf32>, vector<32x32xf32>, vector<128x32xf32> -> vector<128x32xf32>
    %63 = arith.addf %62, %20 : vector<128x32xf32>
    %64 = arith.mulf %58, %63 : vector<128x32xf32>
    %65 = arith.addf %61, %64 : vector<128x32xf32>
    %66 = math.tanh %65 : vector<128x32xf32>
    %cst_53 = arith.constant 1.000000e+00 : f32
    %67 = vector.broadcast %cst_53 : f32 to vector<128x32xf32>
    %68 = arith.subf %67, %59 : vector<128x32xf32>
    %69 = arith.mulf %68, %66 : vector<128x32xf32>
    %70 = arith.mulf %59, %45 : vector<128x32xf32>
    %71 = arith.addf %69, %70 : vector<128x32xf32>
    %cst_54 = arith.constant dense<0.000000e+00> : vector<128x64xf32>
    %72 = tpu.matmul %71, %35, %cst_54 {dimension_numbers = #tpu.dot_dimension_numbers<[1], [0], [0], [1], [0, 0, 1, 1], [], []>} : vector<128x32xf32>, vector<32x64xf32>, vector<128x64xf32> -> vector<128x64xf32>
    %73 = arith.addf %72, %23 : vector<128x64xf32>
    %74 = vector.extract_strided_slice %73 {offsets = [0, 0], sizes = [128, 32], strides = [1, 1]} : vector<128x64xf32> to vector<128x32xf32>
    %75 = vector.shape_cast %74 : vector<128x32xf32> to vector<16x8x32xf32>
    %76 = vector.extract_strided_slice %73 {offsets = [0, 32], sizes = [128, 32], strides = [1, 1]} : vector<128x64xf32> to vector<128x32xf32>
    %77 = vector.shape_cast %76 : vector<128x32xf32> to vector<16x8x32xf32>
    %78 = vector.shape_cast %75 : vector<16x8x32xf32> to vector<16x8x1x32xf32>
    %79 = vector.shape_cast %77 : vector<16x8x32xf32> to vector<16x1x8x32xf32>
    %80 = vector.broadcast %78 : vector<16x8x1x32xf32> to vector<16x8x8x32xf32>
    %81 = vector.broadcast %79 : vector<16x1x8x32xf32> to vector<16x8x8x32xf32>
    %82 = arith.addf %80, %81 : vector<16x8x8x32xf32>
    %cst_55 = arith.constant 5.000000e-01 : f32
    %83 = vector.broadcast %cst_55 : f32 to vector<16x8x8x32xf32>
    %84 = arith.mulf %83, %82 : vector<16x8x8x32xf32>
    %85 = math.tanh %84 : vector<16x8x8x32xf32>
    %cst_56 = arith.constant 5.000000e-01 : f32
    %86 = vector.broadcast %cst_56 : f32 to vector<16x8x8x32xf32>
    %87 = arith.mulf %86, %85 : vector<16x8x8x32xf32>
    %cst_57 = arith.constant 5.000000e-01 : f32
    %88 = vector.broadcast %cst_57 : f32 to vector<16x8x8x32xf32>
    %89 = arith.addf %87, %88 : vector<16x8x8x32xf32>
    %90 = vector.shape_cast %11 : vector<1x32xf32> to vector<1x1x1x32xf32>
    %91 = vector.broadcast %90 : vector<1x1x1x32xf32> to vector<16x8x8x32xf32>
    %92 = arith.mulf %89, %91 : vector<16x8x8x32xf32>
    %cst_58 = arith.constant dense<0.000000e+00> : vector<16x8x8xf32>
    %93 = vector.multi_reduction <add>, %92, %cst_58 [3] : vector<16x8x8x32xf32> to vector<16x8x8xf32>
    %94 = vector.shape_cast %9 : vector<1x1xf32> to vector<1x1x1xf32>
    %95 = vector.broadcast %94 : vector<1x1x1xf32> to vector<16x8x8xf32>
    %96 = arith.addf %93, %95 : vector<16x8x8xf32>
    %cst_59 = arith.constant 5.000000e-01 : f32
    %97 = vector.broadcast %cst_59 : f32 to vector<16x8x8xf32>
    %98 = arith.mulf %97, %96 : vector<16x8x8xf32>
    %99 = math.tanh %98 : vector<16x8x8xf32>
    %cst_60 = arith.constant 5.000000e-01 : f32
    %100 = vector.broadcast %cst_60 : f32 to vector<16x8x8xf32>
    %101 = arith.mulf %100, %99 : vector<16x8x8xf32>
    %cst_61 = arith.constant 5.000000e-01 : f32
    %102 = vector.broadcast %cst_61 : f32 to vector<16x8x8xf32>
    %103 = arith.addf %101, %102 : vector<16x8x8xf32>
    %104 = arith.mulf %103, %5 : vector<16x8x8xf32>
    %105 = vector.shape_cast %71 : vector<128x32xf32> to vector<16x8x32xf32>
    %cst_62 = arith.constant dense<0.000000e+00> : vector<16x8x32xf32>
    %106 = tpu.matmul %104, %105, %cst_62 {dimension_numbers = #tpu.dot_dimension_numbers<[2], [1], [1], [2], [0, 0, 0, 1, 1, 2], [0], [0]>} : vector<16x8x8xf32>, vector<16x8x32xf32>, vector<16x8x32xf32> -> vector<16x8x32xf32>
    %107 = vector.shape_cast %106 : vector<16x8x32xf32> to vector<128x32xf32>
    %cst_63 = arith.constant dense<0.000000e+00> : vector<128x32xf32>
    %108 = tpu.matmul %107, %25, %cst_63 {dimension_numbers = #tpu.dot_dimension_numbers<[1], [0], [0], [1], [0, 0, 1, 1], [], []>} : vector<128x32xf32>, vector<32x32xf32>, vector<128x32xf32> -> vector<128x32xf32>
    %cst_64 = arith.constant dense<0.000000e+00> : vector<128x32xf32>
    %109 = tpu.matmul %3, %108, %cst_64 {dimension_numbers = #tpu.dot_dimension_numbers<[1], [0], [0], [1], [0, 0, 1, 1], [], []>} : vector<128x128xf32>, vector<128x32xf32>, vector<128x32xf32> -> vector<128x32xf32>
    %110 = tpu.concatenate %109, %107 in 1 : vector<128x32xf32>, vector<128x32xf32> -> vector<128x64xf32>
    %cst_65 = arith.constant dense<0.000000e+00> : vector<128x64xf32>
    %111 = tpu.matmul %110, %34, %cst_65 {dimension_numbers = #tpu.dot_dimension_numbers<[1], [0], [0], [1], [0, 0, 1, 1], [], []>} : vector<128x64xf32>, vector<64x64xf32>, vector<128x64xf32> -> vector<128x64xf32>
    %112 = arith.addf %111, %14 : vector<128x64xf32>
    %cst_66 = arith.constant 5.000000e-01 : f32
    %113 = vector.broadcast %cst_66 : f32 to vector<128x64xf32>
    %114 = arith.mulf %113, %112 : vector<128x64xf32>
    %115 = math.tanh %114 : vector<128x64xf32>
    %cst_67 = arith.constant 5.000000e-01 : f32
    %116 = vector.broadcast %cst_67 : f32 to vector<128x64xf32>
    %117 = arith.mulf %116, %115 : vector<128x64xf32>
    %cst_68 = arith.constant 5.000000e-01 : f32
    %118 = vector.broadcast %cst_68 : f32 to vector<128x64xf32>
    %119 = arith.addf %117, %118 : vector<128x64xf32>
    %120 = vector.extract_strided_slice %119 {offsets = [0, 0], sizes = [128, 32], strides = [1, 1]} : vector<128x64xf32> to vector<128x32xf32>
    %121 = vector.extract_strided_slice %119 {offsets = [0, 32], sizes = [128, 32], strides = [1, 1]} : vector<128x64xf32> to vector<128x32xf32>
    %cst_69 = arith.constant dense<0.000000e+00> : vector<128x32xf32>
    %122 = tpu.matmul %109, %27, %cst_69 {dimension_numbers = #tpu.dot_dimension_numbers<[1], [0], [0], [1], [0, 0, 1, 1], [], []>} : vector<128x32xf32>, vector<32x32xf32>, vector<128x32xf32> -> vector<128x32xf32>
    %123 = arith.addf %122, %17 : vector<128x32xf32>
    %cst_70 = arith.constant dense<0.000000e+00> : vector<128x32xf32>
    %124 = tpu.matmul %107, %29, %cst_70 {dimension_numbers = #tpu.dot_dimension_numbers<[1], [0], [0], [1], [0, 0, 1, 1], [], []>} : vector<128x32xf32>, vector<32x32xf32>, vector<128x32xf32> -> vector<128x32xf32>
    %125 = arith.addf %124, %20 : vector<128x32xf32>
    %126 = arith.mulf %120, %125 : vector<128x32xf32>
    %127 = arith.addf %123, %126 : vector<128x32xf32>
    %128 = math.tanh %127 : vector<128x32xf32>
    %cst_71 = arith.constant 1.000000e+00 : f32
    %129 = vector.broadcast %cst_71 : f32 to vector<128x32xf32>
    %130 = arith.subf %129, %121 : vector<128x32xf32>
    %131 = arith.mulf %130, %128 : vector<128x32xf32>
    %132 = arith.mulf %121, %107 : vector<128x32xf32>
    %133 = arith.addf %131, %132 : vector<128x32xf32>
    %cst_72 = arith.constant dense<0.000000e+00> : vector<128x64xf32>
    %134 = tpu.matmul %133, %35, %cst_72 {dimension_numbers = #tpu.dot_dimension_numbers<[1], [0], [0], [1], [0, 0, 1, 1], [], []>} : vector<128x32xf32>, vector<32x64xf32>, vector<128x64xf32> -> vector<128x64xf32>
    %135 = arith.addf %134, %23 : vector<128x64xf32>
    %136 = vector.extract_strided_slice %135 {offsets = [0, 0], sizes = [128, 32], strides = [1, 1]} : vector<128x64xf32> to vector<128x32xf32>
    %137 = vector.shape_cast %136 : vector<128x32xf32> to vector<16x8x32xf32>
    %138 = vector.extract_strided_slice %135 {offsets = [0, 32], sizes = [128, 32], strides = [1, 1]} : vector<128x64xf32> to vector<128x32xf32>
    %139 = vector.shape_cast %138 : vector<128x32xf32> to vector<16x8x32xf32>
    %140 = vector.shape_cast %137 : vector<16x8x32xf32> to vector<16x8x1x32xf32>
    %141 = vector.shape_cast %139 : vector<16x8x32xf32> to vector<16x1x8x32xf32>
    %142 = vector.broadcast %140 : vector<16x8x1x32xf32> to vector<16x8x8x32xf32>
    %143 = vector.broadcast %141 : vector<16x1x8x32xf32> to vector<16x8x8x32xf32>
    %144 = arith.addf %142, %143 : vector<16x8x8x32xf32>
    %cst_73 = arith.constant 5.000000e-01 : f32
    %145 = vector.broadcast %cst_73 : f32 to vector<16x8x8x32xf32>
    %146 = arith.mulf %145, %144 : vector<16x8x8x32xf32>
    %147 = math.tanh %146 : vector<16x8x8x32xf32>
    %cst_74 = arith.constant 5.000000e-01 : f32
    %148 = vector.broadcast %cst_74 : f32 to vector<16x8x8x32xf32>
    %149 = arith.mulf %148, %147 : vector<16x8x8x32xf32>
    %cst_75 = arith.constant 5.000000e-01 : f32
    %150 = vector.broadcast %cst_75 : f32 to vector<16x8x8x32xf32>
    %151 = arith.addf %149, %150 : vector<16x8x8x32xf32>
    %152 = vector.shape_cast %11 : vector<1x32xf32> to vector<1x1x1x32xf32>
    %153 = vector.broadcast %152 : vector<1x1x1x32xf32> to vector<16x8x8x32xf32>
    %154 = arith.mulf %151, %153 : vector<16x8x8x32xf32>
    %cst_76 = arith.constant dense<0.000000e+00> : vector<16x8x8xf32>
    %155 = vector.multi_reduction <add>, %154, %cst_76 [3] : vector<16x8x8x32xf32> to vector<16x8x8xf32>
    %156 = vector.shape_cast %9 : vector<1x1xf32> to vector<1x1x1xf32>
    %157 = vector.broadcast %156 : vector<1x1x1xf32> to vector<16x8x8xf32>
    %158 = arith.addf %155, %157 : vector<16x8x8xf32>
    %cst_77 = arith.constant 5.000000e-01 : f32
    %159 = vector.broadcast %cst_77 : f32 to vector<16x8x8xf32>
    %160 = arith.mulf %159, %158 : vector<16x8x8xf32>
    %161 = math.tanh %160 : vector<16x8x8xf32>
    %cst_78 = arith.constant 5.000000e-01 : f32
    %162 = vector.broadcast %cst_78 : f32 to vector<16x8x8xf32>
    %163 = arith.mulf %162, %161 : vector<16x8x8xf32>
    %cst_79 = arith.constant 5.000000e-01 : f32
    %164 = vector.broadcast %cst_79 : f32 to vector<16x8x8xf32>
    %165 = arith.addf %163, %164 : vector<16x8x8xf32>
    %166 = arith.mulf %165, %5 : vector<16x8x8xf32>
    %167 = vector.shape_cast %133 : vector<128x32xf32> to vector<16x8x32xf32>
    %cst_80 = arith.constant dense<0.000000e+00> : vector<16x8x32xf32>
    %168 = tpu.matmul %166, %167, %cst_80 {dimension_numbers = #tpu.dot_dimension_numbers<[2], [1], [1], [2], [0, 0, 0, 1, 1, 2], [0], [0]>} : vector<16x8x8xf32>, vector<16x8x32xf32>, vector<16x8x32xf32> -> vector<16x8x32xf32>
    %169 = vector.shape_cast %168 : vector<16x8x32xf32> to vector<128x32xf32>
    %cst_81 = arith.constant dense<0.000000e+00> : vector<128x32xf32>
    %170 = tpu.matmul %169, %31, %cst_81 {dimension_numbers = #tpu.dot_dimension_numbers<[1], [0], [0], [1], [0, 0, 1, 1], [], []>} : vector<128x32xf32>, vector<32x32xf32>, vector<128x32xf32> -> vector<128x32xf32>
    %171 = vector.broadcast %7 : vector<1x32xf32> to vector<128x32xf32>
    %172 = arith.addf %170, %171 : vector<128x32xf32>
    %cst_82 = arith.constant 0.000000e+00 : f32
    %173 = vector.broadcast %cst_82 : f32 to vector<128x32xf32>
    %174 = arith.cmpf ogt, %172, %173 : vector<128x32xf32>
    %cst_83 = arith.constant 0.00999999977 : f32
    %175 = vector.broadcast %cst_83 : f32 to vector<128x32xf32>
    %176 = arith.mulf %175, %172 : vector<128x32xf32>
    %177 = arith.select %174, %172, %176 : vector<128x32xi1>, vector<128x32xf32>
    %cst_84 = arith.constant dense<0.000000e+00> : vector<128x32xf32>
    %178 = tpu.matmul %177, %33, %cst_84 {dimension_numbers = #tpu.dot_dimension_numbers<[1], [0], [0], [1], [0, 0, 1, 1], [], []>} : vector<128x32xf32>, vector<32x32xf32>, vector<128x32xf32> -> vector<128x32xf32>
    %179 = vector.broadcast %8 : vector<1x32xf32> to vector<128x32xf32>
    %180 = arith.addf %178, %179 : vector<128x32xf32>
    %cst_85 = arith.constant 0.000000e+00 : f32
    %181 = vector.broadcast %cst_85 : f32 to vector<128x32xf32>
    %182 = arith.cmpf ogt, %180, %181 : vector<128x32xf32>
    %cst_86 = arith.constant 0.00999999977 : f32
    %183 = vector.broadcast %cst_86 : f32 to vector<128x32xf32>
    %184 = arith.mulf %183, %180 : vector<128x32xf32>
    %185 = arith.select %182, %180, %184 : vector<128x32xi1>, vector<128x32xf32>
    %cst_87 = arith.constant dense<0.000000e+00> : vector<128x128xf32>
    %186 = tpu.matmul %185, %36, %cst_87 {dimension_numbers = #tpu.dot_dimension_numbers<[1], [0], [0], [1], [0, 0, 1, 1], [], []>} : vector<128x32xf32>, vector<32x128xf32>, vector<128x128xf32> -> vector<128x128xf32>
    %187 = vector.broadcast %10 : vector<1x128xf32> to vector<128x128xf32>
    %188 = arith.addf %186, %187 : vector<128x128xf32>
    %cst_88 = arith.constant 5.000000e-01 : f32
    %189 = vector.broadcast %cst_88 : f32 to vector<128x128xf32>
    %190 = arith.mulf %189, %188 : vector<128x128xf32>
    %191 = math.tanh %190 : vector<128x128xf32>
    %cst_89 = arith.constant 5.000000e-01 : f32
    %192 = vector.broadcast %cst_89 : f32 to vector<128x128xf32>
    %193 = arith.mulf %192, %191 : vector<128x128xf32>
    %cst_90 = arith.constant 5.000000e-01 : f32
    %194 = vector.broadcast %cst_90 : f32 to vector<128x128xf32>
    %195 = arith.addf %193, %194 : vector<128x128xf32>
    %c0_91 = arith.constant 0 : index
    %c0_92 = arith.constant 0 : index
    %c0_93 = arith.constant 0 : index
    %196 = vector.load %arg10[%c0_91, %c0_92, %c0_93] : memref<1x128x128xf32, #tpu.memory_space<vmem>>, vector<1x128x128xf32>
    %197 = vector.shape_cast %196 : vector<1x128x128xf32> to vector<128x128xf32>
    %198 = vector.shape_cast %195 : vector<128x128xf32> to vector<1x128x128xf32>
    tpu.vector_store %arg10[%c0_91, %c0_92, %c0_93], %198 {strides = array<i32>} : memref<1x128x128xf32, #tpu.memory_space<vmem>>, vector<1x128x128xf32>,
    return
  }
  func.func @transform_0(%arg0: i32) -> (i32, i32, i32) {
    %c0_i32 = arith.constant 0 : i32
    %c0_i32_0 = arith.constant 0 : i32
    %c0_i32_1 = arith.constant 0 : i32
    return %arg0, %c0_i32, %c0_i32_0 : i32, i32, i32
  }
  func.func @transform_1(%arg0: i32) -> (i32, i32, i32) {
    %c0_i32 = arith.constant 0 : i32
    %c0_i32_0 = arith.constant 0 : i32
    %c0_i32_1 = arith.constant 0 : i32
    return %arg0, %c0_i32, %c0_i32_0 : i32, i32, i32
  }
  func.func @transform_2(%arg0: i32) -> (i32, i32, i32, i32) {
    %c0_i32 = arith.constant 0 : i32
    %c0_i32_0 = arith.constant 0 : i32
    %c0_i32_1 = arith.constant 0 : i32
    %c0_i32_2 = arith.constant 0 : i32
    return %arg0, %c0_i32, %c0_i32_0, %c0_i32_1 : i32, i32, i32, i32
  }
  func.func @transform_3(%arg0: i32) -> (i32, i32) {
    %c0_i32 = arith.constant 0 : i32
    %c0_i32_0 = arith.constant 0 : i32
    %c0_i32_1 = arith.constant 0 : i32
    return %c0_i32, %c0_i32_0 : i32, i32
  }
  func.func @transform_4(%arg0: i32) -> (i32, i32, i32) {
    %c0_i32 = arith.constant 0 : i32
    %c0_i32_0 = arith.constant 0 : i32
    %c0_i32_1 = arith.constant 0 : i32
    %c0_i32_2 = arith.constant 0 : i32
    return %c0_i32, %c0_i32_0, %c0_i32_1 : i32, i32, i32
  }
  func.func @transform_5(%arg0: i32) -> (i32, i32) {
    %c0_i32 = arith.constant 0 : i32
    %c0_i32_0 = arith.constant 0 : i32
    %c0_i32_1 = arith.constant 0 : i32
    return %c0_i32, %c0_i32_0 : i32, i32
  }
  func.func @transform_6(%arg0: i32) -> (i32, i32) {
    %c0_i32 = arith.constant 0 : i32
    %c0_i32_0 = arith.constant 0 : i32
    %c0_i32_1 = arith.constant 0 : i32
    return %c0_i32, %c0_i32_0 : i32, i32
  }
  func.func @transform_7(%arg0: i32) -> (i32, i32) {
    %c0_i32 = arith.constant 0 : i32
    %c0_i32_0 = arith.constant 0 : i32
    %c0_i32_1 = arith.constant 0 : i32
    return %c0_i32, %c0_i32_0 : i32, i32
  }
  func.func @transform_8(%arg0: i32) -> (i32, i32) {
    %c0_i32 = arith.constant 0 : i32
    %c0_i32_0 = arith.constant 0 : i32
    %c0_i32_1 = arith.constant 0 : i32
    return %c0_i32, %c0_i32_0 : i32, i32
  }
  func.func @transform_9(%arg0: i32) -> (i32, i32, i32) {
    %c0_i32 = arith.constant 0 : i32
    %c0_i32_0 = arith.constant 0 : i32
    %c0_i32_1 = arith.constant 0 : i32
    return %arg0, %c0_i32, %c0_i32_0 : i32, i32, i32
  }
}

</mosaic_0001>

<llo_original>
// kernel: ggnn_forward.1
$region0: #{ggnn_forward.1}
  #allocation0 [shape = 'u32[]', space=smem, size = 0x4, offset = 0x4, fixed_abs, tag = 'smem constant byte address 0x4 - core index']
  #allocation1 [shape = 'u32[72,128]{1,0:T(1,128)}', space=vmem, size = 0x9000, scoped, tag = 'internal scratch']
  %s0 = inlined_call_operand.vmem [shape: f32[2,128,9], index: 0, kind: input, shape index: {}]
  %s1 = inlined_call_operand.vmem [shape: f32[2,128,128], index: 1, kind: input, shape index: {}]
  %s2 = inlined_call_operand.vmem [shape: f32[2,16,8,8], index: 2, kind: input, shape index: {}]
  %s3 = inlined_call_operand.vmem [shape: f32[9,32], index: 3, kind: input, shape index: {}]
  %s4 = inlined_call_operand.vmem [shape: f32[5,32,32], index: 4, kind: input, shape index: {}]
  %s5 = inlined_call_operand.vmem [shape: f32[64,64], index: 5, kind: input, shape index: {}]
  %s6 = inlined_call_operand.vmem [shape: f32[32,64], index: 6, kind: input, shape index: {}]
  %s7 = inlined_call_operand.vmem [shape: f32[32,128], index: 7, kind: input, shape index: {}]
  %s8 = inlined_call_operand.vmem [shape: f32[10,128], index: 8, kind: input, shape index: {}]
  %s9 = inlined_call_operand.vmem [shape: f32[2,128,128], index: 9, kind: output, shape index: {}]
  %s10 = sld [smem:[#allocation0]]
  $region69: #{ggnn_forward.1} parent=0
    _
  %s12 = ssub.s32 1, %s10
  %s13 = scalar_select 0, %s12, %s10
  loop: start=0, step=1, limit=4
  $region2: #{ggnn_forward.1} parent=0 // loop_pre_header
    _
  $region3: #{ggnn_forward.1} parent=0 // loop_header
    %s15 = sphi 0, %s19
    %p16 = scmp.ge.s32.totalorder %s15, 4
    %s25 = sphi 0, %s27
    %s28 = sphi 0, %s25
    %s29 = sphi 0, %s28
    %s45 = sphi 0, %s29
    %s51 = sphi 0, %s53
    %s54 = sphi 0, %s51
    %s55 = sphi 0, %s54
    %s71 = sphi 0, %s55
    %s77 = sphi 0, %s79
    %s80 = sphi 0, %s77
    %s81 = sphi 0, %s80
    %s97 = sphi 0, %s81
    %s101 = sphi 0, %s101
    %s103 = sphi 0, %s101
    %s104 = sphi 0, %s103
    %s118 = sphi 0, %s104
    %s122 = sphi 0, %s122
    %s124 = sphi 0, %s122
    %s125 = sphi 0, %s124
    %s139 = sphi 0, %s125
    %s143 = sphi 0, %s143
    %s145 = sphi 0, %s143
    %s146 = sphi 0, %s145
    %s160 = sphi 0, %s146
    %s164 = sphi 0, %s164
    %s166 = sphi 0, %s164
    %s167 = sphi 0, %s166
    %s181 = sphi 0, %s167
    %s185 = sphi 0, %s185
    %s187 = sphi 0, %s185
    %s188 = sphi 0, %s187
    %s202 = sphi 0, %s188
    %s206 = sphi 0, %s206
    %s208 = sphi 0, %s206
    %s209 = sphi 0, %s208
    %s223 = sphi 0, %s209
    %s229 = sphi 0, %s231
    %s232 = sphi 0, %s229
    %s233 = sphi 0, %s232
    %s249 = sphi 0, %s233
  $region4: #{ggnn_forward.1} parent=0 // loop_header_branch
    %18 = sbr.rel (%p16) target = $region8
  $region5: #{ggnn_forward.1} parent=0 // loop_body
    %s20 = ssub.s32 %s15, 1
    %s21 = ssub.s32 %s15, 2
    %s22 = sadd.s32 %s15, 1
    %s23 = ssub.s32 %s15, %s22
    %p24 = scmp.eq.s32.totalorder %s23, 0
    %s26 = sadd.s32 %s25, 1
    %s27 = scalar_select %p24, %s25, %s26
    %p30 = pneg %p24
    %p31 = scmp.eq.s32.totalorder %s15, 1
    %p32 = por %p30, %p31
    %p33 = scmp.ne.s32.totalorder %s25, %s28
    %p34 = scmp.eq.s32.totalorder %s15, 0
    %p35 = por %p33, %p34
    %p36 = scmp.ne.s32.totalorder %s25, %s28
    %p37 = scmp.eq.s32.totalorder %s20, 1
    %p38 = por %p36, %p37
    %p39 = scmp.ne.s32.totalorder %s28, %s29
    %p40 = scmp.eq.s32.totalorder %s20, 0
    %p41 = por %p39, %p40
    %p42 = scmp.ne.s32.totalorder %s28, %s29
    %p43 = scmp.eq.s32.totalorder %s21, 1
    %p44 = por %p42, %p43
    %p46 = scmp.ne.s32.totalorder %s29, %s45
    %p47 = scmp.eq.s32.totalorder %s21, 0
    %p48 = por %p46, %p47
    %s49 = ssub.s32 %s15, %s22
    %p50 = scmp.eq.s32.totalorder %s49, 0
    %s52 = sadd.s32 %s51, 1
    %s53 = scalar_select %p50, %s51, %s52
    %p56 = pneg %p50
    %p57 = scmp.eq.s32.totalorder %s15, 1
    %p58 = por %p56, %p57
    %p59 = scmp.ne.s32.totalorder %s51, %s54
    %p60 = scmp.eq.s32.totalorder %s15, 0
    %p61 = por %p59, %p60
    %p62 = scmp.ne.s32.totalorder %s51, %s54
    %p63 = scmp.eq.s32.totalorder %s20, 1
    %p64 = por %p62, %p63
    %p65 = scmp.ne.s32.totalorder %s54, %s55
    %p66 = scmp.eq.s32.totalorder %s20, 0
    %p67 = por %p65, %p66
    %p68 = scmp.ne.s32.totalorder %s54, %s55
    %p69 = scmp.eq.s32.totalorder %s21, 1
    %p70 = por %p68, %p69
    %p72 = scmp.ne.s32.totalorder %s55, %s71
    %p73 = scmp.eq.s32.totalorder %s21, 0
    %p74 = por %p72, %p73
    %s75 = ssub.s32 %s15, %s22
    %p76 = scmp.eq.s32.totalorder %s75, 0
    %s78 = sadd.s32 %s77, 1
    %s79 = scalar_select %p76, %s77, %s78
    %p82 = pneg %p76
    %p83 = scmp.eq.s32.totalorder %s15, 1
    %p84 = por %p82, %p83
    %p85 = scmp.ne.s32.totalorder %s77, %s80
    %p86 = scmp.eq.s32.totalorder %s15, 0
    %p87 = por %p85, %p86
    %p88 = scmp.ne.s32.totalorder %s77, %s80
    %p89 = scmp.eq.s32.totalorder %s20, 1
    %p90 = por %p88, %p89
    %p91 = scmp.ne.s32.totalorder %s80, %s81
    %p92 = scmp.eq.s32.totalorder %s20, 0
    %p93 = por %p91, %p92
    %p94 = scmp.ne.s32.totalorder %s80, %s81
    %p95 = scmp.eq.s32.totalorder %s21, 1
    %p96 = por %p94, %p95
    %p98 = scmp.ne.s32.totalorder %s81, %s97
    %p99 = scmp.eq.s32.totalorder %s21, 0
    %p100 = por %p98, %p99
    %s102 = sadd.s32 %s101, 1
    %p105 = scmp.eq.s32.totalorder %s15, 1
    %p106 = scmp.ne.s32.totalorder %s101, %s103
    %p107 = scmp.eq.s32.totalorder %s15, 0
    %p108 = por %p106, %p107
    %p109 = scmp.ne.s32.totalorder %s101, %s103
    %p110 = scmp.eq.s32.totalorder %s20, 1
    %p111 = por %p109, %p110
    %p112 = scmp.ne.s32.totalorder %s103, %s104
    %p113 = scmp.eq.s32.totalorder %s20, 0
    %p114 = por %p112, %p113
    %p115 = scmp.ne.s32.totalorder %s103, %s104
    %p116 = scmp.eq.s32.totalorder %s21, 1
    %p117 = por %p115, %p116
    %p119 = scmp.ne.s32.totalorder %s104, %s118
    %p120 = scmp.eq.s32.totalorder %s21, 0
    %p121 = por %p119, %p120
    %s123 = sadd.s32 %s122, 1
    %p126 = scmp.eq.s32.totalorder %s15, 1
    %p127 = scmp.ne.s32.totalorder %s122, %s124
    %p128 = scmp.eq.s32.totalorder %s15, 0
    %p129 = por %p127, %p128
    %p130 = scmp.ne.s32.totalorder %s122, %s124
    %p131 = scmp.eq.s32.totalorder %s20, 1
    %p132 = por %p130, %p131
    %p133 = scmp.ne.s32.totalorder %s124, %s125
    %p134 = scmp.eq.s32.totalorder %s20, 0
    %p135 = por %p133, %p134
    %p136 = scmp.ne.s32.totalorder %s124, %s125
    %p137 = scmp.eq.s32.totalorder %s21, 1
    %p138 = por %p136, %p137
    %p140 = scmp.ne.s32.totalorder %s125, %s139
    %p141 = scmp.eq.s32.totalorder %s21, 0
    %p142 = por %p140, %p141
    %s144 = sadd.s32 %s143, 1
    %p147 = scmp.eq.s32.totalorder %s15, 1
    %p148 = scmp.ne.s32.totalorder %s143, %s145
    %p149 = scmp.eq.s32.totalorder %s15, 0
    %p150 = por %p148, %p149
    %p151 = scmp.ne.s32.totalorder %s143, %s145
    %p152 = scmp.eq.s32.totalorder %s20, 1
    %p153 = por %p151, %p152
    %p154 = scmp.ne.s32.totalorder %s145, %s146
    %p155 = scmp.eq.s32.totalorder %s20, 0
    %p156 = por %p154, %p155
    %p157 = scmp.ne.s32.totalorder %s145, %s146
    %p158 = scmp.eq.s32.totalorder %s21, 1
    %p159 = por %p157, %p158
    %p161 = scmp.ne.s32.totalorder %s146, %s160
    %p162 = scmp.eq.s32.totalorder %s21, 0
    %p163 = por %p161, %p162
    %s165 = sadd.s32 %s164, 1
    %p168 = scmp.eq.s32.totalorder %s15, 1
    %p169 = scmp.ne.s32.totalorder %s164, %s166
    %p170 = scmp.eq.s32.totalorder %s15, 0
    %p171 = por %p169, %p170
    %p172 = scmp.ne.s32.totalorder %s164, %s166
    %p173 = scmp.eq.s32.totalorder %s20, 1
    %p174 = por %p172, %p173
    %p175 = scmp.ne.s32.totalorder %s166, %s167
    %p176 = scmp.eq.s32.totalorder %s20, 0
    %p177 = por %p175, %p176
    %p178 = scmp.ne.s32.totalorder %s166, %s167
    %p179 = scmp.eq.s32.totalorder %s21, 1
    %p180 = por %p178, %p179
    %p182 = scmp.ne.s32.totalorder %s167, %s181
    %p183 = scmp.eq.s32.totalorder %s21, 0
    %p184 = por %p182, %p183
    %s186 = sadd.s32 %s185, 1
    %p189 = scmp.eq.s32.totalorder %s15, 1
    %p190 = scmp.ne.s32.totalorder %s185, %s187
    %p191 = scmp.eq.s32.totalorder %s15, 0
    %p192 = por %p190, %p191
    %p193 = scmp.ne.s32.totalorder %s185, %s187
    %p194 = scmp.eq.s32.totalorder %s20, 1
    %p195 = por %p193, %p194
    %p196 = scmp.ne.s32.totalorder %s187, %s188
    %p197 = scmp.eq.s32.totalorder %s20, 0
    %p198 = por %p196, %p197
    %p199 = scmp.ne.s32.totalorder %s187, %s188
    %p200 = scmp.eq.s32.totalorder %s21, 1
    %p201 = por %p199, %p200
    %p203 = scmp.ne.s32.totalorder %s188, %s202
    %p204 = scmp.eq.s32.totalorder %s21, 0
    %p205 = por %p203, %p204
    %s207 = sadd.s32 %s206, 1
    %p210 = scmp.eq.s32.totalorder %s15, 1
    %p211 = scmp.ne.s32.totalorder %s206, %s208
    %p212 = scmp.eq.s32.totalorder %s15, 0
    %p213 = por %p211, %p212
    %p214 = scmp.ne.s32.totalorder %s206, %s208
    %p215 = scmp.eq.s32.totalorder %s20, 1
    %p216 = por %p214, %p215
    %p217 = scmp.ne.s32.totalorder %s208, %s209
    %p218 = scmp.eq.s32.totalorder %s20, 0
    %p219 = por %p217, %p218
    %p220 = scmp.ne.s32.totalorder %s208, %s209
    %p221 = scmp.eq.s32.totalorder %s21, 1
    %p222 = por %p220, %p221
    %p224 = scmp.ne.s32.totalorder %s209, %s223
    %p225 = scmp.eq.s32.totalorder %s21, 0
    %p226 = por %p224, %p225
    %s227 = ssub.s32 %s15, %s22
    %p228 = scmp.eq.s32.totalorder %s227, 0
    %s230 = sadd.s32 %s229, 1
    %s231 = scalar_select %p228, %s229, %s230
    %p234 = pneg %p228
    %p235 = scmp.eq.s32.totalorder %s15, 1
    %p236 = por %p234, %p235
    %p237 = scmp.ne.s32.totalorder %s229, %s232
    %p238 = scmp.eq.s32.totalorder %s15, 0
    %p239 = por %p237, %p238
    %p240 = scmp.ne.s32.totalorder %s229, %s232
    %p241 = scmp.eq.s32.totalorder %s20, 1
    %p242 = por %p240, %p241
    %p243 = scmp.ne.s32.totalorder %s232, %s233
    %p244 = scmp.eq.s32.totalorder %s20, 0
    %p245 = por %p243, %p244
    %p246 = scmp.ne.s32.totalorder %s232, %s233
    %p247 = scmp.eq.s32.totalorder %s21, 1
    %p248 = por %p246, %p247
    %p250 = scmp.ne.s32.totalorder %s233, %s249
    %p251 = scmp.eq.s32.totalorder %s21, 0
    %p252 = por %p250, %p251
    %p253 = scmp.le.s32.totalorder 1, %s15
    %p254 = scmp.lt.s32.totalorder %s15, 3
    %p255 = pnand %p253, %p254
    %p256 = pneg %p255
    // Predicated region
    $region9: #{ggnn_forward.1} parent=5 // pred_check
      _
    $region10: #{ggnn_forward.1} parent=5 // pred_check_branch
      %258 = sbr.rel (%p255) target = $region12
    $region11: #{ggnn_forward.1} parent=5 // pred_region
      %s259 = ssub.s32 %s15, 1
      // Predicated region
      $region13: #{ggnn_forward.1} parent=11 // pred_check
        %p260 = pneg %p114
      $region14: #{ggnn_forward.1} parent=11 // pred_check_branch
        %262 = sbr.rel (%p260) target = $region16
      $region15: #{ggnn_forward.1} parent=11 // pred_region
        _
      $region16: #{ggnn_forward.1} parent=11 // pred_fallthru
        _
      // Predicated region
      $region17: #{ggnn_forward.1} parent=11 // pred_check
        %p263 = pneg %p135
      $region18: #{ggnn_forward.1} parent=11 // pred_check_branch
        %265 = sbr.rel (%p263) target = $region20
      $region19: #{ggnn_forward.1} parent=11 // pred_region
        _
      $region20: #{ggnn_forward.1} parent=11 // pred_fallthru
        _
      // Predicated region
      $region21: #{ggnn_forward.1} parent=11 // pred_check
        %p266 = pneg %p156
      $region22: #{ggnn_forward.1} parent=11 // pred_check_branch
        %268 = sbr.rel (%p266) target = $region24
      $region23: #{ggnn_forward.1} parent=11 // pred_region
        _
      $region24: #{ggnn_forward.1} parent=11 // pred_fallthru
        _
      // Predicated region
      $region25: #{ggnn_forward.1} parent=11 // pred_check
        %p269 = pneg %p177
      $region26: #{ggnn_forward.1} parent=11 // pred_check_branch
        %271 = sbr.rel (%p269) target = $region28
      $region27: #{ggnn_forward.1} parent=11 // pred_region
        _
      $region28: #{ggnn_forward.1} parent=11 // pred_fallthru
        _
      // Predicated region
      $region29: #{ggnn_forward.1} parent=11 // pred_check
        %p272 = pneg %p198
      $region30: #{ggnn_forward.1} parent=11 // pred_check_branch
        %274 = sbr.rel (%p272) target = $region32
      $region31: #{ggnn_forward.1} parent=11 // pred_region
        _
      $region32: #{ggnn_forward.1} parent=11 // pred_fallthru
        _
      // Predicated region
      $region33: #{ggnn_forward.1} parent=11 // pred_check
        %p275 = pneg %p219
      $region34: #{ggnn_forward.1} parent=11 // pred_check_branch
        %277 = sbr.rel (%p275) target = $region36
      $region35: #{ggnn_forward.1} parent=11 // pred_region
        _
      $region36: #{ggnn_forward.1} parent=11 // pred_fallthru
        _
    $region12: #{ggnn_forward.1} parent=5 // pred_fallthru
      _
    %p278 = scmp.lt.s32.totalorder %s15, 2
    // Predicated region
    $region37: #{ggnn_forward.1} parent=5 // pred_check
      %p279 = pneg %p278
    $region38: #{ggnn_forward.1} parent=5 // pred_check_branch
      %281 = sbr.rel (%p279) target = $region40
    $region39: #{ggnn_forward.1} parent=5 // pred_region
      // Predicated region
      $region41: #{ggnn_forward.1} parent=39 // pred_check
        %p282 = pneg %p35
      $region42: #{ggnn_forward.1} parent=39 // pred_check_branch
        %284 = sbr.rel (%p282) target = $region44
      $region43: #{ggnn_forward.1} parent=39 // pred_region
        %p285 = scmp.lt.s32.totalorder %s15, 1
        %s286 = scalar_select %p285, %s15, 1
        %s287 = smul.addr %s286, 16
        %s288 = smul.addr %s287, 8
        %s289 = scalar_lea.vmem %s0, %s288
      $region44: #{ggnn_forward.1} parent=39 // pred_fallthru
        _
      // Predicated region
      $region45: #{ggnn_forward.1} parent=39 // pred_check
        %p290 = pneg %p61
      $region46: #{ggnn_forward.1} parent=39 // pred_check_branch
        %292 = sbr.rel (%p290) target = $region48
      $region47: #{ggnn_forward.1} parent=39 // pred_region
        %p293 = scmp.lt.s32.totalorder %s15, 1
        %s294 = scalar_select %p293, %s15, 1
        %s295 = smul.addr %s294, 16
        %s296 = smul.addr %s295, 8
        %s297 = scalar_lea.vmem %s1, %s296
      $region48: #{ggnn_forward.1} parent=39 // pred_fallthru
        _
      // Predicated region
      $region49: #{ggnn_forward.1} parent=39 // pred_check
        %p298 = pneg %p87
      $region50: #{ggnn_forward.1} parent=39 // pred_check_branch
        %300 = sbr.rel (%p298) target = $region52
      $region51: #{ggnn_forward.1} parent=39 // pred_region
        %p301 = scmp.lt.s32.totalorder %s15, 1
        %s302 = scalar_select %p301, %s15, 1
        %s303 = smul.addr %s302, 16
        %s304 = smul.addr %s303, 8
        %s305 = scalar_lea.vmem %s2, %s304
      $region52: #{ggnn_forward.1} parent=39 // pred_fallthru
        _
    $region40: #{ggnn_forward.1} parent=5 // pred_fallthru
      _
    %p306 = scmp.le.s32.totalorder 1, %s15
    %p307 = scmp.lt.s32.totalorder %s15, 3
    %p308 = pnand %p306, %p307
    %p309 = pneg %p308
    // Predicated region
    $region53: #{ggnn_forward.1} parent=5 // pred_check
      _
    $region54: #{ggnn_forward.1} parent=5 // pred_check_branch
      %311 = sbr.rel (%p308) target = $region56
    $region55: #{ggnn_forward.1} parent=5 // pred_region
      %s312 = ssub.s32 %s15, 1
      %p313 = scmp.lt.s32.totalorder %s20, 1
      %s314 = scalar_select %p313, %s20, 1
      %s315 = smul.addr %s314, 16
      %s316 = smul.addr %s315, 8
      %s317 = scalar_lea.vmem %s0, %s316
      %p318 = pneg %p41
      %p319 = pneg %p38
      %p320 = scmp.lt.s32.totalorder %s20, 1
      %s321 = scalar_select %p320, %s20, 1
      %s322 = smul.addr %s321, 16
      %s323 = smul.addr %s322, 8
      %s324 = scalar_lea.vmem %s1, %s323
      %p325 = pneg %p67
      %p326 = pneg %p64
      %p327 = scmp.lt.s32.totalorder %s20, 1
      %s328 = scalar_select %p327, %s20, 1
      %s329 = smul.addr %s328, 16
      %s330 = smul.addr %s329, 8
      %s331 = scalar_lea.vmem %s2, %s330
      %p332 = pneg %p93
      %p333 = pneg %p90
      %p334 = pneg %p114
      %p335 = pneg %p111
      %p336 = pneg %p135
      %p337 = pneg %p132
      %p338 = pneg %p156
      %p339 = pneg %p153
      %p340 = pneg %p177
      %p341 = pneg %p174
      %p342 = pneg %p198
      %p343 = pneg %p195
      %p344 = pneg %p219
      %p345 = pneg %p216
      %p346 = pneg %p245
      %p347 = pneg %p242
      %p348 = scmp.lt.s32.totalorder %s20, 1
      %s349 = scalar_select %p348, %s20, 1
      %s350 = smul.addr %s349, 16
      %s351 = smul.addr %s350, 8
      %s352 = scalar_lea.vmem %s9, %s351
      %p353 = scmp.lt.s32.totalorder %s20, 1
      %s354 = scalar_select %p353, %s20, 1
      %s355 = smul.addr %s354, 16
      %s356 = smul.addr %s355, 8
      %s357 = scalar_lea.vmem %s0, %s356
      %p358 = scmp.lt.s32.totalorder %s20, 1
      %s359 = scalar_select %p358, %s20, 1
      %s360 = smul.addr %s359, 16
      %s361 = smul.addr %s360, 8
      %s362 = scalar_lea.vmem %s1, %s361
      %p363 = scmp.lt.s32.totalorder %s20, 1
      %s364 = scalar_select %p363, %s20, 1
      %s365 = smul.addr %s364, 16
      %s366 = smul.addr %s365, 8
      %s367 = scalar_lea.vmem %s2, %s366
      %p368 = scmp.lt.s32.totalorder %s20, 1
      %s369 = scalar_select %p368, %s20, 1
      %s370 = smul.addr %s369, 16
      %s371 = smul.addr %s370, 8
      %s372 = scalar_lea.vmem %s9, %s371
      %v373 = vld [vmem:[%s357] sm:$0xff]
      %v374 = vld [vmem:[%s357 + $0x8] sm:$0xff]
      %v375 = vld [vmem:[%s357 + $0x10] sm:$0xff]
      %v376 = vld [vmem:[%s357 + $0x18] sm:$0xff]
      %v377 = vld [vmem:[%s357 + $0x20] sm:$0xff]
      %v378 = vld [vmem:[%s357 + $0x28] sm:$0xff]
      %v379 = vld [vmem:[%s357 + $0x30] sm:$0xff]
      %v380 = vld [vmem:[%s357 + $0x38] sm:$0xff]
      %v381 = vld [vmem:[%s357 + $0x40] sm:$0xff]
      %v382 = vld [vmem:[%s357 + $0x48] sm:$0xff]
      %v383 = vld [vmem:[%s357 + $0x50] sm:$0xff]
      %v384 = vld [vmem:[%s357 + $0x58] sm:$0xff]
      %v385 = vld [vmem:[%s357 + $0x60] sm:$0xff]
      %v386 = vld [vmem:[%s357 + $0x68] sm:$0xff]
      %v387 = vld [vmem:[%s357 + $0x70] sm:$0xff]
      %v388 = vld [vmem:[%s357 + $0x78] sm:$0xff]
      %v389 = vld [vmem:[%s362] sm:$0xff]
      %v390 = vld [vmem:[%s362 + $0x8] sm:$0xff]
      %v391 = vld [vmem:[%s362 + $0x10] sm:$0xff]
      %v392 = vld [vmem:[%s362 + $0x18] sm:$0xff]
      %v393 = vld [vmem:[%s362 + $0x20] sm:$0xff]
      %v394 = vld [vmem:[%s362 + $0x28] sm:$0xff]
      %v395 = vld [vmem:[%s362 + $0x30] sm:$0xff]
      %v396 = vld [vmem:[%s362 + $0x38] sm:$0xff]
      %v397 = vld [vmem:[%s362 + $0x40] sm:$0xff]
      %v398 = vld [vmem:[%s362 + $0x48] sm:$0xff]
      %v399 = vld [vmem:[%s362 + $0x50] sm:$0xff]
      %v400 = vld [vmem:[%s362 + $0x58] sm:$0xff]
      %v401 = vld [vmem:[%s362 + $0x60] sm:$0xff]
      %v402 = vld [vmem:[%s362 + $0x68] sm:$0xff]
      %v403 = vld [vmem:[%s362 + $0x70] sm:$0xff]
      %v404 = vld [vmem:[%s362 + $0x78] sm:$0xff]
      %v405 = vld [vmem:[%s367] sm:$0xff]
      %v406 = vld [vmem:[%s367 + $0x8] sm:$0xff]
      %v407 = vld [vmem:[%s367 + $0x10] sm:$0xff]
      %v408 = vld [vmem:[%s367 + $0x18] sm:$0xff]
      %v409 = vld [vmem:[%s367 + $0x20] sm:$0xff]
      %v410 = vld [vmem:[%s367 + $0x28] sm:$0xff]
      %v411 = vld [vmem:[%s367 + $0x30] sm:$0xff]
      %v412 = vld [vmem:[%s367 + $0x38] sm:$0xff]
      %v413 = vld [vmem:[%s367 + $0x40] sm:$0xff]
      %v414 = vld [vmem:[%s367 + $0x48] sm:$0xff]
      %v415 = vld [vmem:[%s367 + $0x50] sm:$0xff]
      %v416 = vld [vmem:[%s367 + $0x58] sm:$0xff]
      %v417 = vld [vmem:[%s367 + $0x60] sm:$0xff]
      %v418 = vld [vmem:[%s367 + $0x68] sm:$0xff]
      %v419 = vld [vmem:[%s367 + $0x70] sm:$0xff]
      %v420 = vld [vmem:[%s367 + $0x78] sm:$0xff]
      %v421 = vld [vmem:[%s8] sm:$0x1]
      %v422 = vld [vmem:[%s8 + $0x5] sm:$0x1]
      %v423 = vld [vmem:[%s8 + $0x6] sm:$0x1]
      %v424 = vld [vmem:[%s8 + $0x7] sm:$0x1]
      %v425 = vld [vmem:[%s8 + $0x8] sm:$0x1]
      %v426 = vld [vmem:[%s8 + $0x9] sm:$0x1]
      %v427 = vld [vmem:[%s8 + $0x1] sm:$0x1]
      %v428 = vperm.slane %v427, 0
      %v429 = vld [vmem:[%s8 + $0x2] sm:$0x1]
      %v430 = vperm.slane %v429, 0
      %v431 = vld [vmem:[%s8 + $0x3] sm:$0x1]
      %v432 = vperm.slane %v431, 0
      %v433 = vld [vmem:[%s8 + $0x4] sm:$0x1]
      %v434 = vperm.slane %v433, 0
      %v435 = vld [vmem:[%s4] sm:$0xff]
      %v436 = vld [vmem:[%s4 + $0x8] sm:$0xff]
      %v437 = vld [vmem:[%s4 + $0x10] sm:$0xff]
      %v438 = vld [vmem:[%s4 + $0x18] sm:$0xff]
      %s439 = scalar_lea.vmem %s4, 32
      %v440 = vld [vmem:[%s439] sm:$0xff]
      %v441 = vld [vmem:[%s439 + $0x8] sm:$0xff]
      %v442 = vld [vmem:[%s439 + $0x10] sm:$0xff]
      %v443 = vld [vmem:[%s439 + $0x18] sm:$0xff]
      %s444 = scalar_lea.vmem %s4, 64
      %v445 = vld [vmem:[%s444] sm:$0xff]
      %v446 = vld [vmem:[%s444 + $0x8] sm:$0xff]
      %v447 = vld [vmem:[%s444 + $0x10] sm:$0xff]
      %v448 = vld [vmem:[%s444 + $0x18] sm:$0xff]
      %s449 = scalar_lea.vmem %s4, 96
      %v450 = vld [vmem:[%s449] sm:$0xff]
      %v451 = vld [vmem:[%s449 + $0x8] sm:$0xff]
      %v452 = vld [vmem:[%s449 + $0x10] sm:$0xff]
      %v453 = vld [vmem:[%s449 + $0x18] sm:$0xff]
      %s454 = scalar_lea.vmem %s4, 128
      %v455 = vld [vmem:[%s454] sm:$0xff]
      %v456 = vld [vmem:[%s454 + $0x8] sm:$0xff]
      %v457 = vld [vmem:[%s454 + $0x10] sm:$0xff]
      %v458 = vld [vmem:[%s454 + $0x18] sm:$0xff]
      %v459 = vld [vmem:[%s5] sm:$0xff]
      %v460 = vld [vmem:[%s5 + $0x8] sm:$0xff]
      %v461 = vld [vmem:[%s5 + $0x10] sm:$0xff]
      %v462 = vld [vmem:[%s5 + $0x18] sm:$0xff]
      %v463 = vld [vmem:[%s5 + $0x20] sm:$0xff]
      %v464 = vld [vmem:[%s5 + $0x28] sm:$0xff]
      %v465 = vld [vmem:[%s5 + $0x30] sm:$0xff]
      %v466 = vld [vmem:[%s5 + $0x38] sm:$0xff]
      %v467 = vld [vmem:[%s6] sm:$0xff]
      %v468 = vld [vmem:[%s6 + $0x8] sm:$0xff]
      %v469 = vld [vmem:[%s6 + $0x10] sm:$0xff]
      %v470 = vld [vmem:[%s6 + $0x18] sm:$0xff]
      %v471 = vld [vmem:[%s7] sm:$0xff]
      %v472 = vld [vmem:[%s7 + $0x8] sm:$0xff]
      %v473 = vld [vmem:[%s7 + $0x10] sm:$0xff]
      %v474 = vld [vmem:[%s7 + $0x18] sm:$0xff]
      %v475 = vld [vmem:[%s3] sm:$0xff]
      %v476 = vld [vmem:[%s3 + $0x8] sm:$0x1]
      %v477 = vperm.slane %v421, 0
      %vm478 = vcmask 72704
      %v480 = vsel %vm478, %v373, 0
      %v483 = vsel %vm478, %v374, 0
      %v486 = vsel %vm478, %v375, 0
      %v489 = vsel %vm478, %v376, 0
      %v492 = vsel %vm478, %v377, 0
      %v495 = vsel %vm478, %v378, 0
      %v498 = vsel %vm478, %v379, 0
      %v501 = vsel %vm478, %v380, 0
      %v504 = vsel %vm478, %v381, 0
      %v507 = vsel %vm478, %v382, 0
      %v510 = vsel %vm478, %v383, 0
      %v513 = vsel %vm478, %v384, 0
      %v516 = vsel %vm478, %v385, 0
      %v519 = vsel %vm478, %v386, 0
      %v522 = vsel %vm478, %v387, 0
      %v525 = vsel %vm478, %v388, 0
      %vm527 = vcmask 1040384
      %v529 = vsel %vm527, %v476, 0
      %531 = vmatpush.msra.mxu0 0.0
      %532 = vmatpush.msra.mxu0 0.0
      %533 = vmatpush.msra.mxu0 0.0
      %534 = vmatpush.msra.mxu0 0.0
      %535 = vmatpush.msra.mxu0 0.0
      %536 = vmatpush.msra.mxu0 0.0
      %537 = vmatpush.msra.mxu0 0.0
      %538 = vmatpush.msra.mxu0 0.0
      %539 = vmatpush.msra.mxu0 0.0
      %540 = vmatpush.msra.mxu0 0.0
      %541 = vmatpush.msra.mxu0 0.0
      %542 = vmatpush.msra.mxu0 0.0
      %543 = vmatpush.msra.mxu0 0.0
      %544 = vmatpush.msra.mxu0 0.0
      %545 = vmatpush.msra.mxu0 %v529
      %546 = vmatpush.msra.mxu0 %v475
      %547 = vmatmul.f32.gmra.mxu0 %v480
      %v548 = vpop.f32.mrf.mxu0
      %v549 = vadd.f32 %v477, %v548
      %550 = vmatmul.f32.gmra.mxu0 %v483
      %v551 = vpop.f32.mrf.mxu0
      %v552 = vadd.f32 %v477, %v551
      %553 = vmatmul.f32.gmra.mxu0 %v486
      %v554 = vpop.f32.mrf.mxu0
      %v555 = vadd.f32 %v477, %v554
      %556 = vmatmul.f32.gmra.mxu0 %v489
      %v557 = vpop.f32.mrf.mxu0
      %v558 = vadd.f32 %v477, %v557
      %559 = vmatmul.f32.gmra.mxu0 %v492
      %v560 = vpop.f32.mrf.mxu0
      %v561 = vadd.f32 %v477, %v560
      %562 = vmatmul.f32.gmra.mxu0 %v495
      %v563 = vpop.f32.mrf.mxu0
      %v564 = vadd.f32 %v477, %v563
      %565 = vmatmul.f32.gmra.mxu0 %v498
      %v566 = vpop.f32.mrf.mxu0
      %v567 = vadd.f32 %v477, %v566
      %568 = vmatmul.f32.gmra.mxu0 %v501
      %v569 = vpop.f32.mrf.mxu0
      %v570 = vadd.f32 %v477, %v569
      %571 = vmatmul.f32.gmra.mxu0 %v504
      %v572 = vpop.f32.mrf.mxu0
      %v573 = vadd.f32 %v477, %v572
      %574 = vmatmul.f32.gmra.mxu0 %v507
      %v575 = vpop.f32.mrf.mxu0
      %v576 = vadd.f32 %v477, %v575
      %577 = vmatmul.f32.gmra.mxu0 %v510
      %v578 = vpop.f32.mrf.mxu0
      %v579 = vadd.f32 %v477, %v578
      %580 = vmatmul.f32.gmra.mxu0 %v513
      %v581 = vpop.f32.mrf.mxu0
      %v582 = vadd.f32 %v477, %v581
      %583 = vmatmul.f32.gmra.mxu0 %v516
      %v584 = vpop.f32.mrf.mxu0
      %v585 = vadd.f32 %v477, %v584
      %586 = vmatmul.f32.gmra.mxu0 %v519
      %v587 = vpop.f32.mrf.mxu0
      %v588 = vadd.f32 %v477, %v587
      %589 = vmatmul.f32.gmra.mxu0 %v522
      %v590 = vpop.f32.mrf.mxu0
      %v591 = vadd.f32 %v477, %v590
      %592 = vmatmul.f32.gmra.mxu0 %v525
      %v593 = vpop.f32.mrf.mxu0
      %v594 = vadd.f32 %v477, %v593
      %595 = vdwg.mxu0
      %vm596 = vcmp.gt.f32.partialorder %v549, 0.0
      %vm597 = vcmp.gt.f32.partialorder %v552, 0.0
      %vm598 = vcmp.gt.f32.partialorder %v555, 0.0
      %vm599 = vcmp.gt.f32.partialorder %v558, 0.0
      %vm600 = vcmp.gt.f32.partialorder %v561, 0.0
      %vm601 = vcmp.gt.f32.partialorder %v564, 0.0
      %vm602 = vcmp.gt.f32.partialorder %v567, 0.0
      %vm603 = vcmp.gt.f32.partialorder %v570, 0.0
      %vm604 = vcmp.gt.f32.partialorder %v573, 0.0
      %vm605 = vcmp.gt.f32.partialorder %v576, 0.0
      %vm606 = vcmp.gt.f32.partialorder %v579, 0.0
      %vm607 = vcmp.gt.f32.partialorder %v582, 0.0
      %vm608 = vcmp.gt.f32.partialorder %v585, 0.0
      %vm609 = vcmp.gt.f32.partialorder %v588, 0.0
      %vm610 = vcmp.gt.f32.partialorder %v591, 0.0
      %vm611 = vcmp.gt.f32.partialorder %v594, 0.0
      %v612 = vmul.f32 %v549, 0.01
      %v613 = vmul.f32 %v552, 0.01
      %v614 = vmul.f32 %v555, 0.01
      %v615 = vmul.f32 %v558, 0.01
      %v616 = vmul.f32 %v561, 0.01
      %v617 = vmul.f32 %v564, 0.01
      %v618 = vmul.f32 %v567, 0.01
      %v619 = vmul.f32 %v570, 0.01
      %v620 = vmul.f32 %v573, 0.01
      %v621 = vmul.f32 %v576, 0.01
      %v622 = vmul.f32 %v579, 0.01
      %v623 = vmul.f32 %v582, 0.01
      %v624 = vmul.f32 %v585, 0.01
      %v625 = vmul.f32 %v588, 0.01
      %v626 = vmul.f32 %v591, 0.01
      %v627 = vmul.f32 %v594, 0.01
      %v628 = vsel %vm596, %v549, %v612
      %v629 = vsel %vm597, %v552, %v613
      %v630 = vsel %vm598, %v555, %v614
      %v631 = vsel %vm599, %v558, %v615
      %v632 = vsel %vm600, %v561, %v616
      %v633 = vsel %vm601, %v564, %v617
      %v634 = vsel %vm602, %v567, %v618
      %v635 = vsel %vm603, %v570, %v619
      %v636 = vsel %vm604, %v573, %v620
      %v637 = vsel %vm605, %v576, %v621
      %v638 = vsel %vm606, %v579, %v622
      %v639 = vsel %vm607, %v582, %v623
      %v640 = vsel %vm608, %v585, %v624
      %v641 = vsel %vm609, %v588, %v625
      %v642 = vsel %vm610, %v591, %v626
      %v643 = vsel %vm611, %v594, %v627
      %vm644 = vcmask 261120
      %v646 = vsel %vm644, %v628, 0
      %v649 = vsel %vm644, %v629, 0
      %v652 = vsel %vm644, %v630, 0
      %v655 = vsel %vm644, %v631, 0
      %v658 = vsel %vm644, %v632, 0
      %v661 = vsel %vm644, %v633, 0
      %v664 = vsel %vm644, %v634, 0
      %v667 = vsel %vm644, %v635, 0
      %v670 = vsel %vm644, %v636, 0
      %v673 = vsel %vm644, %v637, 0
      %v676 = vsel %vm644, %v638, 0
      %v679 = vsel %vm644, %v639, 0
      %v682 = vsel %vm644, %v640, 0
      %v685 = vsel %vm644, %v641, 0
      %v688 = vsel %vm644, %v642, 0
      %v691 = vsel %vm644, %v643, 0
      %693 = vmatpush.msra.mxu0 0.0
      %694 = vmatpush.msra.mxu0 0.0
      %695 = vmatpush.msra.mxu0 0.0
      %696 = vmatpush.msra.mxu0 0.0
      %697 = vmatpush.msra.mxu0 0.0
      %698 = vmatpush.msra.mxu0 0.0
      %699 = vmatpush.msra.mxu0 0.0
      %700 = vmatpush.msra.mxu0 0.0
      %701 = vmatpush.msra.mxu0 0.0
      %702 = vmatpush.msra.mxu0 0.0
      %703 = vmatpush.msra.mxu0 0.0
      %704 = vmatpush.msra.mxu0 0.0
      %705 = vmatpush.msra.mxu0 %v438
      %706 = vmatpush.msra.mxu0 %v437
      %707 = vmatpush.msra.mxu0 %v436
      %708 = vmatpush.msra.mxu0 %v435
      %709 = vmatmul.f32.gmra.mxu0 %v646
      %v710 = vpop.f32.mrf.mxu0
      %v711 = vadd.f32 0.0, %v710
      %712 = vmatmul.f32.gmra.mxu0 %v649
      %v713 = vpop.f32.mrf.mxu0
      %v714 = vadd.f32 0.0, %v713
      %715 = vmatmul.f32.gmra.mxu0 %v652
      %v716 = vpop.f32.mrf.mxu0
      %v717 = vadd.f32 0.0, %v716
      %718 = vmatmul.f32.gmra.mxu0 %v655
      %v719 = vpop.f32.mrf.mxu0
      %v720 = vadd.f32 0.0, %v719
      %721 = vmatmul.f32.gmra.mxu0 %v658
      %v722 = vpop.f32.mrf.mxu0
      %v723 = vadd.f32 0.0, %v722
      %724 = vmatmul.f32.gmra.mxu0 %v661
      %v725 = vpop.f32.mrf.mxu0
      %v726 = vadd.f32 0.0, %v725
      %727 = vmatmul.f32.gmra.mxu0 %v664
      %v728 = vpop.f32.mrf.mxu0
      %v729 = vadd.f32 0.0, %v728
      %730 = vmatmul.f32.gmra.mxu0 %v667
      %v731 = vpop.f32.mrf.mxu0
      %v732 = vadd.f32 0.0, %v731
      %733 = vmatmul.f32.gmra.mxu0 %v670
      %v734 = vpop.f32.mrf.mxu0
      %v735 = vadd.f32 0.0, %v734
      %736 = vmatmul.f32.gmra.mxu0 %v673
      %v737 = vpop.f32.mrf.mxu0
      %v738 = vadd.f32 0.0, %v737
      %739 = vmatmul.f32.gmra.mxu0 %v676
      %v740 = vpop.f32.mrf.mxu0
      %v741 = vadd.f32 0.0, %v740
      %742 = vmatmul.f32.gmra.mxu0 %v679
      %v743 = vpop.f32.mrf.mxu0
      %v744 = vadd.f32 0.0, %v743
      %745 = vmatmul.f32.gmra.mxu0 %v682
      %v746 = vpop.f32.mrf.mxu0
      %v747 = vadd.f32 0.0, %v746
      %748 = vmatmul.f32.gmra.mxu0 %v685
      %v749 = vpop.f32.mrf.mxu0
      %v750 = vadd.f32 0.0, %v749
      %751 = vmatmul.f32.gmra.mxu0 %v688
      %v752 = vpop.f32.mrf.mxu0
      %v753 = vadd.f32 0.0, %v752
      %754 = vmatmul.f32.gmra.mxu0 %v691
      %v755 = vpop.f32.mrf.mxu0
      %v756 = vadd.f32 0.0, %v755
      %757 = vdwg.mxu0
      %758 = vmatpush.msra.mxu0 %v756
      %759 = vmatpush.msra.mxu0 %v753
      %760 = vmatpush.msra.mxu0 %v750
      %761 = vmatpush.msra.mxu0 %v747
      %762 = vmatpush.msra.mxu0 %v744
      %763 = vmatpush.msra.mxu0 %v741
      %764 = vmatpush.msra.mxu0 %v738
      %765 = vmatpush.msra.mxu0 %v735
      %766 = vmatpush.msra.mxu0 %v732
      %767 = vmatpush.msra.mxu0 %v729
      %768 = vmatpush.msra.mxu0 %v726
      %769 = vmatpush.msra.mxu0 %v723
      %770 = vmatpush.msra.mxu0 %v720
      %771 = vmatpush.msra.mxu0 %v717
      %772 = vmatpush.msra.mxu0 %v714
      %773 = vmatpush.msra.mxu0 %v711
      %774 = vmatmul.f32.gmra.mxu0 %v389
      %v775 = vpop.f32.mrf.mxu0
      %v776 = vadd.f32 0.0, %v775
      %777 = vmatmul.f32.gmra.mxu0 %v390
      %v778 = vpop.f32.mrf.mxu0
      %v779 = vadd.f32 0.0, %v778
      %780 = vmatmul.f32.gmra.mxu0 %v391
      %v781 = vpop.f32.mrf.mxu0
      %v782 = vadd.f32 0.0, %v781
      %783 = vmatmul.f32.gmra.mxu0 %v392
      %v784 = vpop.f32.mrf.mxu0
      %v785 = vadd.f32 0.0, %v784
      %786 = vmatmul.f32.gmra.mxu0 %v393
      %v787 = vpop.f32.mrf.mxu0
      %v788 = vadd.f32 0.0, %v787
      %789 = vmatmul.f32.gmra.mxu0 %v394
      %v790 = vpop.f32.mrf.mxu0
      %v791 = vadd.f32 0.0, %v790
      %792 = vmatmul.f32.gmra.mxu0 %v395
      %v793 = vpop.f32.mrf.mxu0
      %v794 = vadd.f32 0.0, %v793
      %795 = vmatmul.f32.gmra.mxu0 %v396
      %v796 = vpop.f32.mrf.mxu0
      %v797 = vadd.f32 0.0, %v796
      %798 = vmatmul.f32.gmra.mxu0 %v397
      %v799 = vpop.f32.mrf.mxu0
      %v800 = vadd.f32 0.0, %v799
      %801 = vmatmul.f32.gmra.mxu0 %v398
      %v802 = vpop.f32.mrf.mxu0
      %v803 = vadd.f32 0.0, %v802
      %804 = vmatmul.f32.gmra.mxu0 %v399
      %v805 = vpop.f32.mrf.mxu0
      %v806 = vadd.f32 0.0, %v805
      %807 = vmatmul.f32.gmra.mxu0 %v400
      %v808 = vpop.f32.mrf.mxu0
      %v809 = vadd.f32 0.0, %v808
      %810 = vmatmul.f32.gmra.mxu0 %v401
      %v811 = vpop.f32.mrf.mxu0
      %v812 = vadd.f32 0.0, %v811
      %813 = vmatmul.f32.gmra.mxu0 %v402
      %v814 = vpop.f32.mrf.mxu0
      %v815 = vadd.f32 0.0, %v814
      %816 = vmatmul.f32.gmra.mxu0 %v403
      %v817 = vpop.f32.mrf.mxu0
      %v818 = vadd.f32 0.0, %v817
      %819 = vmatmul.f32.gmra.mxu0 %v404
      %v820 = vpop.f32.mrf.mxu0
      %v821 = vadd.f32 0.0, %v820
      %822 = vdwg.mxu0
      %823 = vrot.lane.b32.xlu0 %v628, 32
      %v824 = vpop.permute.xlu0 %823
      %825 = vrot.lane.b32.xlu0 %v629, 32
      %v826 = vpop.permute.xlu0 %825
      %827 = vrot.lane.b32.xlu0 %v630, 32
      %v828 = vpop.permute.xlu0 %827
      %829 = vrot.lane.b32.xlu0 %v631, 32
      %v830 = vpop.permute.xlu0 %829
      %831 = vrot.lane.b32.xlu0 %v632, 32
      %v832 = vpop.permute.xlu0 %831
      %833 = vrot.lane.b32.xlu0 %v633, 32
      %v834 = vpop.permute.xlu0 %833
      %835 = vrot.lane.b32.xlu0 %v634, 32
      %v836 = vpop.permute.xlu0 %835
      %837 = vrot.lane.b32.xlu0 %v635, 32
      %v838 = vpop.permute.xlu0 %837
      %839 = vrot.lane.b32.xlu0 %v636, 32
      %v840 = vpop.permute.xlu0 %839
      %841 = vrot.lane.b32.xlu0 %v637, 32
      %v842 = vpop.permute.xlu0 %841
      %843 = vrot.lane.b32.xlu0 %v638, 32
      %v844 = vpop.permute.xlu0 %843
      %845 = vrot.lane.b32.xlu0 %v639, 32
      %v846 = vpop.permute.xlu0 %845
      %847 = vrot.lane.b32.xlu0 %v640, 32
      %v848 = vpop.permute.xlu0 %847
      %849 = vrot.lane.b32.xlu0 %v641, 32
      %v850 = vpop.permute.xlu0 %849
      %851 = vrot.lane.b32.xlu0 %v642, 32
      %v852 = vpop.permute.xlu0 %851
      %853 = vrot.lane.b32.xlu0 %v643, 32
      %v854 = vpop.permute.xlu0 %853
      %v871 = vsel %vm644, %v776, %v824
      %v872 = vsel %vm644, %v779, %v826
      %v873 = vsel %vm644, %v782, %v828
      %v874 = vsel %vm644, %v785, %v830
      %v875 = vsel %vm644, %v788, %v832
      %v876 = vsel %vm644, %v791, %v834
      %v877 = vsel %vm644, %v794, %v836
      %v878 = vsel %vm644, %v797, %v838
      %v879 = vsel %vm644, %v800, %v840
      %v880 = vsel %vm644, %v803, %v842
      %v881 = vsel %vm644, %v806, %v844
      %v882 = vsel %vm644, %v809, %v846
      %v883 = vsel %vm644, %v812, %v848
      %v884 = vsel %vm644, %v815, %v850
      %v885 = vsel %vm644, %v818, %v852
      %v886 = vsel %vm644, %v821, %v854
      %vm887 = vcmask 523264
      %v889 = vsel %vm887, %v871, 0
      %v892 = vsel %vm887, %v872, 0
      %v895 = vsel %vm887, %v873, 0
      %v898 = vsel %vm887, %v874, 0
      %v901 = vsel %vm887, %v875, 0
      %v904 = vsel %vm887, %v876, 0
      %v907 = vsel %vm887, %v877, 0
      %v910 = vsel %vm887, %v878, 0
      %v913 = vsel %vm887, %v879, 0
      %v916 = vsel %vm887, %v880, 0
      %v919 = vsel %vm887, %v881, 0
      %v922 = vsel %vm887, %v882, 0
      %v925 = vsel %vm887, %v883, 0
      %v928 = vsel %vm887, %v884, 0
      %v931 = vsel %vm887, %v885, 0
      %v934 = vsel %vm887, %v886, 0
      %936 = vmatpush.msra.mxu0 0.0
      %937 = vmatpush.msra.mxu0 0.0
      %938 = vmatpush.msra.mxu0 0.0
      %939 = vmatpush.msra.mxu0 0.0
      %940 = vmatpush.msra.mxu0 0.0
      %941 = vmatpush.msra.mxu0 0.0
      %942 = vmatpush.msra.mxu0 0.0
      %943 = vmatpush.msra.mxu0 0.0
      %944 = vmatpush.msra.mxu0 %v466
      %945 = vmatpush.msra.mxu0 %v465
      %946 = vmatpush.msra.mxu0 %v464
      %947 = vmatpush.msra.mxu0 %v463
      %948 = vmatpush.msra.mxu0 %v462
      %949 = vmatpush.msra.mxu0 %v461
      %950 = vmatpush.msra.mxu0 %v460
      %951 = vmatpush.msra.mxu0 %v459
      %952 = vmatmul.f32.gmra.mxu0 %v889
      %v953 = vpop.f32.mrf.mxu0
      %v954 = vadd.f32 %v428, %v953
      %955 = vmatmul.f32.gmra.mxu0 %v892
      %v956 = vpop.f32.mrf.mxu0
      %v957 = vadd.f32 %v428, %v956
      %958 = vmatmul.f32.gmra.mxu0 %v895
      %v959 = vpop.f32.mrf.mxu0
      %v960 = vadd.f32 %v428, %v959
      %961 = vmatmul.f32.gmra.mxu0 %v898
      %v962 = vpop.f32.mrf.mxu0
      %v963 = vadd.f32 %v428, %v962
      %964 = vmatmul.f32.gmra.mxu0 %v901
      %v965 = vpop.f32.mrf.mxu0
      %v966 = vadd.f32 %v428, %v965
      %967 = vmatmul.f32.gmra.mxu0 %v904
      %v968 = vpop.f32.mrf.mxu0
      %v969 = vadd.f32 %v428, %v968
      %970 = vmatmul.f32.gmra.mxu0 %v907
      %v971 = vpop.f32.mrf.mxu0
      %v972 = vadd.f32 %v428, %v971
      %973 = vmatmul.f32.gmra.mxu0 %v910
      %v974 = vpop.f32.mrf.mxu0
      %v975 = vadd.f32 %v428, %v974
      %976 = vmatmul.f32.gmra.mxu0 %v913
      %v977 = vpop.f32.mrf.mxu0
      %v978 = vadd.f32 %v428, %v977
      %979 = vmatmul.f32.gmra.mxu0 %v916
      %v980 = vpop.f32.mrf.mxu0
      %v981 = vadd.f32 %v428, %v980
      %982 = vmatmul.f32.gmra.mxu0 %v919
      %v983 = vpop.f32.mrf.mxu0
      %v984 = vadd.f32 %v428, %v983
      %985 = vmatmul.f32.gmra.mxu0 %v922
      %v986 = vpop.f32.mrf.mxu0
      %v987 = vadd.f32 %v428, %v986
      %988 = vmatmul.f32.gmra.mxu0 %v925
      %v989 = vpop.f32.mrf.mxu0
      %v990 = vadd.f32 %v428, %v989
      %991 = vmatmul.f32.gmra.mxu0 %v928
      %v992 = vpop.f32.mrf.mxu0
      %v993 = vadd.f32 %v428, %v992
      %994 = vmatmul.f32.gmra.mxu0 %v931
      %v995 = vpop.f32.mrf.mxu0
      %v996 = vadd.f32 %v428, %v995
      %997 = vmatmul.f32.gmra.mxu0 %v934
      %v998 = vpop.f32.mrf.mxu0
      %v999 = vadd.f32 %v428, %v998
      %1000 = vdwg.mxu0
      %v1001 = vmul.f32 %v954, 0.5
      %v1002 = vmul.f32 %v957, 0.5
      %v1003 = vmul.f32 %v960, 0.5
      %v1004 = vmul.f32 %v963, 0.5
      %v1005 = vmul.f32 %v966, 0.5
      %v1006 = vmul.f32 %v969, 0.5
      %v1007 = vmul.f32 %v972, 0.5
      %v1008 = vmul.f32 %v975, 0.5
      %v1009 = vmul.f32 %v978, 0.5
      %v1010 = vmul.f32 %v981, 0.5
      %v1011 = vmul.f32 %v984, 0.5
      %v1012 = vmul.f32 %v987, 0.5
      %v1013 = vmul.f32 %v990, 0.5
      %v1014 = vmul.f32 %v993, 0.5
      %v1015 = vmul.f32 %v996, 0.5
      %v1016 = vmul.f32 %v999, 0.5
      %v1017 = vtanh.pop %v1001
      %v1018 = vtanh.pop %v1002
      %v1019 = vtanh.pop %v1003
      %v1020 = vtanh.pop %v1004
      %v1021 = vtanh.pop %v1005
      %v1022 = vtanh.pop %v1006
      %v1023 = vtanh.pop %v1007
      %v1024 = vtanh.pop %v1008
      %v1025 = vtanh.pop %v1009
      %v1026 = vtanh.pop %v1010
      %v1027 = vtanh.pop %v1011
      %v1028 = vtanh.pop %v1012
      %v1029 = vtanh.pop %v1013
      %v1030 = vtanh.pop %v1014
      %v1031 = vtanh.pop %v1015
      %v1032 = vtanh.pop %v1016
      %v1033 = vmul.f32 %v1017, 0.5
      %v1034 = vmul.f32 %v1018, 0.5
      %v1035 = vmul.f32 %v1019, 0.5
      %v1036 = vmul.f32 %v1020, 0.5
      %v1037 = vmul.f32 %v1021, 0.5
      %v1038 = vmul.f32 %v1022, 0.5
      %v1039 = vmul.f32 %v1023, 0.5
      %v1040 = vmul.f32 %v1024, 0.5
      %v1041 = vmul.f32 %v1025, 0.5
      %v1042 = vmul.f32 %v1026, 0.5
      %v1043 = vmul.f32 %v1027, 0.5
      %v1044 = vmul.f32 %v1028, 0.5
      %v1045 = vmul.f32 %v1029, 0.5
      %v1046 = vmul.f32 %v1030, 0.5
      %v1047 = vmul.f32 %v1031, 0.5
      %v1048 = vmul.f32 %v1032, 0.5
      %v1049 = vadd.f32 %v1033, 0.5
      %v1050 = vadd.f32 %v1034, 0.5
      %v1051 = vadd.f32 %v1035, 0.5
      %v1052 = vadd.f32 %v1036, 0.5
      %v1053 = vadd.f32 %v1037, 0.5
      %v1054 = vadd.f32 %v1038, 0.5
      %v1055 = vadd.f32 %v1039, 0.5
      %v1056 = vadd.f32 %v1040, 0.5
      %v1057 = vadd.f32 %v1041, 0.5
      %v1058 = vadd.f32 %v1042, 0.5
      %v1059 = vadd.f32 %v1043, 0.5
      %v1060 = vadd.f32 %v1044, 0.5
      %v1061 = vadd.f32 %v1045, 0.5
      %v1062 = vadd.f32 %v1046, 0.5
      %v1063 = vadd.f32 %v1047, 0.5
      %v1064 = vadd.f32 %v1048, 0.5
      %v1066 = vsel %vm644, %v776, 0
      %v1069 = vsel %vm644, %v779, 0
      %v1072 = vsel %vm644, %v782, 0
      %v1075 = vsel %vm644, %v785, 0
      %v1078 = vsel %vm644, %v788, 0
      %v1081 = vsel %vm644, %v791, 0
      %v1084 = vsel %vm644, %v794, 0
      %v1087 = vsel %vm644, %v797, 0
      %v1090 = vsel %vm644, %v800, 0
      %v1093 = vsel %vm644, %v803, 0
      %v1096 = vsel %vm644, %v806, 0
      %v1099 = vsel %vm644, %v809, 0
      %v1102 = vsel %vm644, %v812, 0
      %v1105 = vsel %vm644, %v815, 0
      %v1108 = vsel %vm644, %v818, 0
      %v1111 = vsel %vm644, %v821, 0
      %1113 = vmatpush.msra.mxu0 0.0
      %1114 = vmatpush.msra.mxu0 0.0
      %1115 = vmatpush.msra.mxu0 0.0
      %1116 = vmatpush.msra.mxu0 0.0
      %1117 = vmatpush.msra.mxu0 0.0
      %1118 = vmatpush.msra.mxu0 0.0
      %1119 = vmatpush.msra.mxu0 0.0
      %1120 = vmatpush.msra.mxu0 0.0
      %1121 = vmatpush.msra.mxu0 0.0
      %1122 = vmatpush.msra.mxu0 0.0
      %1123 = vmatpush.msra.mxu0 0.0
      %1124 = vmatpush.msra.mxu0 0.0
      %1125 = vmatpush.msra.mxu0 %v443
      %1126 = vmatpush.msra.mxu0 %v442
      %1127 = vmatpush.msra.mxu0 %v441
      %1128 = vmatpush.msra.mxu0 %v440
      %1129 = vmatmul.f32.gmra.mxu0 %v1066
      %v1130 = vpop.f32.mrf.mxu0
      %v1131 = vadd.f32 %v430, %v1130
      %1132 = vmatmul.f32.gmra.mxu0 %v1069
      %v1133 = vpop.f32.mrf.mxu0
      %v1134 = vadd.f32 %v430, %v1133
      %1135 = vmatmul.f32.gmra.mxu0 %v1072
      %v1136 = vpop.f32.mrf.mxu0
      %v1137 = vadd.f32 %v430, %v1136
      %1138 = vmatmul.f32.gmra.mxu0 %v1075
      %v1139 = vpop.f32.mrf.mxu0
      %v1140 = vadd.f32 %v430, %v1139
      %1141 = vmatmul.f32.gmra.mxu0 %v1078
      %v1142 = vpop.f32.mrf.mxu0
      %v1143 = vadd.f32 %v430, %v1142
      %1144 = vmatmul.f32.gmra.mxu0 %v1081
      %v1145 = vpop.f32.mrf.mxu0
      %v1146 = vadd.f32 %v430, %v1145
      %1147 = vmatmul.f32.gmra.mxu0 %v1084
      %v1148 = vpop.f32.mrf.mxu0
      %v1149 = vadd.f32 %v430, %v1148
      %1150 = vmatmul.f32.gmra.mxu0 %v1087
      %v1151 = vpop.f32.mrf.mxu0
      %v1152 = vadd.f32 %v430, %v1151
      %1153 = vmatmul.f32.gmra.mxu0 %v1090
      %v1154 = vpop.f32.mrf.mxu0
      %v1155 = vadd.f32 %v430, %v1154
      %1156 = vmatmul.f32.gmra.mxu0 %v1093
      %v1157 = vpop.f32.mrf.mxu0
      %v1158 = vadd.f32 %v430, %v1157
      %1159 = vmatmul.f32.gmra.mxu0 %v1096
      %v1160 = vpop.f32.mrf.mxu0
      %v1161 = vadd.f32 %v430, %v1160
      %1162 = vmatmul.f32.gmra.mxu0 %v1099
      %v1163 = vpop.f32.mrf.mxu0
      %v1164 = vadd.f32 %v430, %v1163
      %1165 = vmatmul.f32.gmra.mxu0 %v1102
      %v1166 = vpop.f32.mrf.mxu0
      %v1167 = vadd.f32 %v430, %v1166
      %1168 = vmatmul.f32.gmra.mxu0 %v1105
      %v1169 = vpop.f32.mrf.mxu0
      %v1170 = vadd.f32 %v430, %v1169
      %1171 = vmatmul.f32.gmra.mxu0 %v1108
      %v1172 = vpop.f32.mrf.mxu0
      %v1173 = vadd.f32 %v430, %v1172
      %1174 = vmatmul.f32.gmra.mxu0 %v1111
      %v1175 = vpop.f32.mrf.mxu0
      %v1176 = vadd.f32 %v430, %v1175
      %1177 = vdwg.mxu0
      %1178 = vmatpush.msra.mxu0 0.0
      %1179 = vmatpush.msra.mxu0 0.0
      %1180 = vmatpush.msra.mxu0 0.0
      %1181 = vmatpush.msra.mxu0 0.0
      %1182 = vmatpush.msra.mxu0 0.0
      %1183 = vmatpush.msra.mxu0 0.0
      %1184 = vmatpush.msra.mxu0 0.0
      %1185 = vmatpush.msra.mxu0 0.0
      %1186 = vmatpush.msra.mxu0 0.0
      %1187 = vmatpush.msra.mxu0 0.0
      %1188 = vmatpush.msra.mxu0 0.0
      %1189 = vmatpush.msra.mxu0 0.0
      %1190 = vmatpush.msra.mxu0 %v448
      %1191 = vmatpush.msra.mxu0 %v447
      %1192 = vmatpush.msra.mxu0 %v446
      %1193 = vmatpush.msra.mxu0 %v445
      %1194 = vmatmul.f32.gmra.mxu0 %v646
      %v1195 = vpop.f32.mrf.mxu0
      %v1196 = vadd.f32 %v432, %v1195
      %1197 = vmatmul.f32.gmra.mxu0 %v649
      %v1198 = vpop.f32.mrf.mxu0
      %v1199 = vadd.f32 %v432, %v1198
      %1200 = vmatmul.f32.gmra.mxu0 %v652
      %v1201 = vpop.f32.mrf.mxu0
      %v1202 = vadd.f32 %v432, %v1201
      %1203 = vmatmul.f32.gmra.mxu0 %v655
      %v1204 = vpop.f32.mrf.mxu0
      %v1205 = vadd.f32 %v432, %v1204
      %1206 = vmatmul.f32.gmra.mxu0 %v658
      %v1207 = vpop.f32.mrf.mxu0
      %v1208 = vadd.f32 %v432, %v1207
      %1209 = vmatmul.f32.gmra.mxu0 %v661
      %v1210 = vpop.f32.mrf.mxu0
      %v1211 = vadd.f32 %v432, %v1210
      %1212 = vmatmul.f32.gmra.mxu0 %v664
      %v1213 = vpop.f32.mrf.mxu0
      %v1214 = vadd.f32 %v432, %v1213
      %1215 = vmatmul.f32.gmra.mxu0 %v667
      %v1216 = vpop.f32.mrf.mxu0
      %v1217 = vadd.f32 %v432, %v1216
      %1218 = vmatmul.f32.gmra.mxu0 %v670
      %v1219 = vpop.f32.mrf.mxu0
      %v1220 = vadd.f32 %v432, %v1219
      %1221 = vmatmul.f32.gmra.mxu0 %v673
      %v1222 = vpop.f32.mrf.mxu0
      %v1223 = vadd.f32 %v432, %v1222
      %1224 = vmatmul.f32.gmra.mxu0 %v676
      %v1225 = vpop.f32.mrf.mxu0
      %v1226 = vadd.f32 %v432, %v1225
      %1227 = vmatmul.f32.gmra.mxu0 %v679
      %v1228 = vpop.f32.mrf.mxu0
      %v1229 = vadd.f32 %v432, %v1228
      %1230 = vmatmul.f32.gmra.mxu0 %v682
      %v1231 = vpop.f32.mrf.mxu0
      %v1232 = vadd.f32 %v432, %v1231
      %1233 = vmatmul.f32.gmra.mxu0 %v685
      %v1234 = vpop.f32.mrf.mxu0
      %v1235 = vadd.f32 %v432, %v1234
      %1236 = vmatmul.f32.gmra.mxu0 %v688
      %v1237 = vpop.f32.mrf.mxu0
      %v1238 = vadd.f32 %v432, %v1237
      %1239 = vmatmul.f32.gmra.mxu0 %v691
      %v1240 = vpop.f32.mrf.mxu0
      %v1241 = vadd.f32 %v432, %v1240
      %1242 = vdwg.mxu0
      %v1243 = vmul.f32 %v1049, %v1196
      %v1244 = vmul.f32 %v1050, %v1199
      %v1245 = vmul.f32 %v1051, %v1202
      %v1246 = vmul.f32 %v1052, %v1205
      %v1247 = vmul.f32 %v1053, %v1208
      %v1248 = vmul.f32 %v1054, %v1211
      %v1249 = vmul.f32 %v1055, %v1214
      %v1250 = vmul.f32 %v1056, %v1217
      %v1251 = vmul.f32 %v1057, %v1220
      %v1252 = vmul.f32 %v1058, %v1223
      %v1253 = vmul.f32 %v1059, %v1226
      %v1254 = vmul.f32 %v1060, %v1229
      %v1255 = vmul.f32 %v1061, %v1232
      %v1256 = vmul.f32 %v1062, %v1235
      %v1257 = vmul.f32 %v1063, %v1238
      %v1258 = vmul.f32 %v1064, %v1241
      %v1259 = vadd.f32 %v1131, %v1243
      %v1260 = vadd.f32 %v1134, %v1244
      %v1261 = vadd.f32 %v1137, %v1245
      %v1262 = vadd.f32 %v1140, %v1246
      %v1263 = vadd.f32 %v1143, %v1247
      %v1264 = vadd.f32 %v1146, %v1248
      %v1265 = vadd.f32 %v1149, %v1249
      %v1266 = vadd.f32 %v1152, %v1250
      %v1267 = vadd.f32 %v1155, %v1251
      %v1268 = vadd.f32 %v1158, %v1252
      %v1269 = vadd.f32 %v1161, %v1253
      %v1270 = vadd.f32 %v1164, %v1254
      %v1271 = vadd.f32 %v1167, %v1255
      %v1272 = vadd.f32 %v1170, %v1256
      %v1273 = vadd.f32 %v1173, %v1257
      %v1274 = vadd.f32 %v1176, %v1258
      %v1275 = vtanh.pop %v1259
      %v1276 = vtanh.pop %v1260
      %v1277 = vtanh.pop %v1261
      %v1278 = vtanh.pop %v1262
      %v1279 = vtanh.pop %v1263
      %v1280 = vtanh.pop %v1264
      %v1281 = vtanh.pop %v1265
      %v1282 = vtanh.pop %v1266
      %v1283 = vtanh.pop %v1267
      %v1284 = vtanh.pop %v1268
      %v1285 = vtanh.pop %v1269
      %v1286 = vtanh.pop %v1270
      %v1287 = vtanh.pop %v1271
      %v1288 = vtanh.pop %v1272
      %v1289 = vtanh.pop %v1273
      %v1290 = vtanh.pop %v1274
      %v1291 = vsub.f32 1.0, %v1049
      %v1292 = vsub.f32 1.0, %v1050
      %v1293 = vsub.f32 1.0, %v1051
      %v1294 = vsub.f32 1.0, %v1052
      %v1295 = vsub.f32 1.0, %v1053
      %v1296 = vsub.f32 1.0, %v1054
      %v1297 = vsub.f32 1.0, %v1055
      %v1298 = vsub.f32 1.0, %v1056
      %v1299 = vsub.f32 1.0, %v1057
      %v1300 = vsub.f32 1.0, %v1058
      %v1301 = vsub.f32 1.0, %v1059
      %v1302 = vsub.f32 1.0, %v1060
      %v1303 = vsub.f32 1.0, %v1061
      %v1304 = vsub.f32 1.0, %v1062
      %v1305 = vsub.f32 1.0, %v1063
      %v1306 = vsub.f32 1.0, %v1064
      %1323 = vrot.lane.b32.xlu0 %v1275, 32
      %v1324 = vpop.permute.xlu0 %1323
      %1325 = vrot.lane.b32.xlu0 %v1276, 32
      %v1326 = vpop.permute.xlu0 %1325
      %1327 = vrot.lane.b32.xlu0 %v1277, 32
      %v1328 = vpop.permute.xlu0 %1327
      %1329 = vrot.lane.b32.xlu0 %v1278, 32
      %v1330 = vpop.permute.xlu0 %1329
      %1331 = vrot.lane.b32.xlu0 %v1279, 32
      %v1332 = vpop.permute.xlu0 %1331
      %1333 = vrot.lane.b32.xlu0 %v1280, 32
      %v1334 = vpop.permute.xlu0 %1333
      %1335 = vrot.lane.b32.xlu0 %v1281, 32
      %v1336 = vpop.permute.xlu0 %1335
      %1337 = vrot.lane.b32.xlu0 %v1282, 32
      %v1338 = vpop.permute.xlu0 %1337
      %1339 = vrot.lane.b32.xlu0 %v1283, 32
      %v1340 = vpop.permute.xlu0 %1339
      %1341 = vrot.lane.b32.xlu0 %v1284, 32
      %v1342 = vpop.permute.xlu0 %1341
      %1343 = vrot.lane.b32.xlu0 %v1285, 32
      %v1344 = vpop.permute.xlu0 %1343
      %1345 = vrot.lane.b32.xlu0 %v1286, 32
      %v1346 = vpop.permute.xlu0 %1345
      %1347 = vrot.lane.b32.xlu0 %v1287, 32
      %v1348 = vpop.permute.xlu0 %1347
      %1349 = vrot.lane.b32.xlu0 %v1288, 32
      %v1350 = vpop.permute.xlu0 %1349
      %1351 = vrot.lane.b32.xlu0 %v1289, 32
      %v1352 = vpop.permute.xlu0 %1351
      %1353 = vrot.lane.b32.xlu0 %v1290, 32
      %v1354 = vpop.permute.xlu0 %1353
      %v1371 = vmul.f32 %v1291, %v1324
      %v1372 = vmul.f32 %v1292, %v1326
      %v1373 = vmul.f32 %v1293, %v1328
      %v1374 = vmul.f32 %v1294, %v1330
      %v1375 = vmul.f32 %v1295, %v1332
      %v1376 = vmul.f32 %v1296, %v1334
      %v1377 = vmul.f32 %v1297, %v1336
      %v1378 = vmul.f32 %v1298, %v1338
      %v1379 = vmul.f32 %v1299, %v1340
      %v1380 = vmul.f32 %v1300, %v1342
      %v1381 = vmul.f32 %v1301, %v1344
      %v1382 = vmul.f32 %v1302, %v1346
      %v1383 = vmul.f32 %v1303, %v1348
      %v1384 = vmul.f32 %v1304, %v1350
      %v1385 = vmul.f32 %v1305, %v1352
      %v1386 = vmul.f32 %v1306, %v1354
      %v1387 = vmul.f32 %v1049, %v824
      %v1388 = vmul.f32 %v1050, %v826
      %v1389 = vmul.f32 %v1051, %v828
      %v1390 = vmul.f32 %v1052, %v830
      %v1391 = vmul.f32 %v1053, %v832
      %v1392 = vmul.f32 %v1054, %v834
      %v1393 = vmul.f32 %v1055, %v836
      %v1394 = vmul.f32 %v1056, %v838
      %v1395 = vmul.f32 %v1057, %v840
      %v1396 = vmul.f32 %v1058, %v842
      %v1397 = vmul.f32 %v1059, %v844
      %v1398 = vmul.f32 %v1060, %v846
      %v1399 = vmul.f32 %v1061, %v848
      %v1400 = vmul.f32 %v1062, %v850
      %v1401 = vmul.f32 %v1063, %v852
      %v1402 = vmul.f32 %v1064, %v854
      %v1403 = vadd.f32 %v1371, %v1387
      %v1404 = vadd.f32 %v1372, %v1388
      %v1405 = vadd.f32 %v1373, %v1389
      %v1406 = vadd.f32 %v1374, %v1390
      %v1407 = vadd.f32 %v1375, %v1391
      %v1408 = vadd.f32 %v1376, %v1392
      %v1409 = vadd.f32 %v1377, %v1393
      %v1410 = vadd.f32 %v1378, %v1394
      %v1411 = vadd.f32 %v1379, %v1395
      %v1412 = vadd.f32 %v1380, %v1396
      %v1413 = vadd.f32 %v1381, %v1397
      %v1414 = vadd.f32 %v1382, %v1398
      %v1415 = vadd.f32 %v1383, %v1399
      %v1416 = vadd.f32 %v1384, %v1400
      %v1417 = vadd.f32 %v1385, %v1401
      %v1418 = vadd.f32 %v1386, %v1402
      %1435 = vrot.lane.b32.xlu0 %v1403, 96
      %v1436 = vpop.permute.xlu0 %1435
      %1437 = vrot.lane.b32.xlu0 %v1404, 96
      %v1438 = vpop.permute.xlu0 %1437
      %1439 = vrot.lane.b32.xlu0 %v1405, 96
      %v1440 = vpop.permute.xlu0 %1439
      %1441 = vrot.lane.b32.xlu0 %v1406, 96
      %v1442 = vpop.permute.xlu0 %1441
      %1443 = vrot.lane.b32.xlu0 %v1407, 96
      %v1444 = vpop.permute.xlu0 %1443
      %1445 = vrot.lane.b32.xlu0 %v1408, 96
      %v1446 = vpop.permute.xlu0 %1445
      %1447 = vrot.lane.b32.xlu0 %v1409, 96
      %v1448 = vpop.permute.xlu0 %1447
      %1449 = vrot.lane.b32.xlu0 %v1410, 96
      %v1450 = vpop.permute.xlu0 %1449
      %1451 = vrot.lane.b32.xlu0 %v1411, 96
      %v1452 = vpop.permute.xlu0 %1451
      %1453 = vrot.lane.b32.xlu0 %v1412, 96
      %v1454 = vpop.permute.xlu0 %1453
      %1455 = vrot.lane.b32.xlu0 %v1413, 96
      %v1456 = vpop.permute.xlu0 %1455
      %1457 = vrot.lane.b32.xlu0 %v1414, 96
      %v1458 = vpop.permute.xlu0 %1457
      %1459 = vrot.lane.b32.xlu0 %v1415, 96
      %v1460 = vpop.permute.xlu0 %1459
      %1461 = vrot.lane.b32.xlu0 %v1416, 96
      %v1462 = vpop.permute.xlu0 %1461
      %1463 = vrot.lane.b32.xlu0 %v1417, 96
      %v1464 = vpop.permute.xlu0 %1463
      %1465 = vrot.lane.b32.xlu0 %v1418, 96
      %v1466 = vpop.permute.xlu0 %1465
      %v1467 = vsel %vm644, %v1436, 0
      %v1469 = vsel %vm644, %v1438, 0
      %v1471 = vsel %vm644, %v1440, 0
      %v1473 = vsel %vm644, %v1442, 0
      %v1475 = vsel %vm644, %v1444, 0
      %v1477 = vsel %vm644, %v1446, 0
      %v1479 = vsel %vm644, %v1448, 0
      %v1481 = vsel %vm644, %v1450, 0
      %v1483 = vsel %vm644, %v1452, 0
      %v1485 = vsel %vm644, %v1454, 0
      %v1487 = vsel %vm644, %v1456, 0
      %v1489 = vsel %vm644, %v1458, 0
      %v1491 = vsel %vm644, %v1460, 0
      %v1493 = vsel %vm644, %v1462, 0
      %v1495 = vsel %vm644, %v1464, 0
      %v1497 = vsel %vm644, %v1466, 0
      %1499 = vmatpush.msra.mxu0 0.0
      %1500 = vmatpush.msra.mxu0 0.0
      %1501 = vmatpush.msra.mxu0 0.0
      %1502 = vmatpush.msra.mxu0 0.0
      %1503 = vmatpush.msra.mxu0 0.0
      %1504 = vmatpush.msra.mxu0 0.0
      %1505 = vmatpush.msra.mxu0 0.0
      %1506 = vmatpush.msra.mxu0 0.0
      %1507 = vmatpush.msra.mxu0 0.0
      %1508 = vmatpush.msra.mxu0 0.0
      %1509 = vmatpush.msra.mxu0 0.0
      %1510 = vmatpush.msra.mxu0 0.0
      %1511 = vmatpush.msra.mxu0 %v470
      %1512 = vmatpush.msra.mxu0 %v469
      %1513 = vmatpush.msra.mxu0 %v468
      %1514 = vmatpush.msra.mxu0 %v467
      %1515 = vmatmul.f32.gmra.mxu0 %v1467
      %v1516 = vpop.f32.mrf.mxu0
      %v1517 = vadd.f32 %v434, %v1516
      %1518 = vmatmul.f32.gmra.mxu0 %v1469
      %v1519 = vpop.f32.mrf.mxu0
      %v1520 = vadd.f32 %v434, %v1519
      %1521 = vmatmul.f32.gmra.mxu0 %v1471
      %v1522 = vpop.f32.mrf.mxu0
      %v1523 = vadd.f32 %v434, %v1522
      %1524 = vmatmul.f32.gmra.mxu0 %v1473
      %v1525 = vpop.f32.mrf.mxu0
      %v1526 = vadd.f32 %v434, %v1525
      %1527 = vmatmul.f32.gmra.mxu0 %v1475
      %v1528 = vpop.f32.mrf.mxu0
      %v1529 = vadd.f32 %v434, %v1528
      %1530 = vmatmul.f32.gmra.mxu0 %v1477
      %v1531 = vpop.f32.mrf.mxu0
      %v1532 = vadd.f32 %v434, %v1531
      %1533 = vmatmul.f32.gmra.mxu0 %v1479
      %v1534 = vpop.f32.mrf.mxu0
      %v1535 = vadd.f32 %v434, %v1534
      %1536 = vmatmul.f32.gmra.mxu0 %v1481
      %v1537 = vpop.f32.mrf.mxu0
      %v1538 = vadd.f32 %v434, %v1537
      %1539 = vmatmul.f32.gmra.mxu0 %v1483
      %v1540 = vpop.f32.mrf.mxu0
      %v1541 = vadd.f32 %v434, %v1540
      %1542 = vmatmul.f32.gmra.mxu0 %v1485
      %v1543 = vpop.f32.mrf.mxu0
      %v1544 = vadd.f32 %v434, %v1543
      %1545 = vmatmul.f32.gmra.mxu0 %v1487
      %v1546 = vpop.f32.mrf.mxu0
      %v1547 = vadd.f32 %v434, %v1546
      %1548 = vmatmul.f32.gmra.mxu0 %v1489
      %v1549 = vpop.f32.mrf.mxu0
      %v1550 = vadd.f32 %v434, %v1549
      %1551 = vmatmul.f32.gmra.mxu0 %v1491
      %v1552 = vpop.f32.mrf.mxu0
      %v1553 = vadd.f32 %v434, %v1552
      %1554 = vmatmul.f32.gmra.mxu0 %v1493
      %v1555 = vpop.f32.mrf.mxu0
      %v1556 = vadd.f32 %v434, %v1555
      %1557 = vmatmul.f32.gmra.mxu0 %v1495
      %v1558 = vpop.f32.mrf.mxu0
      %v1559 = vadd.f32 %v434, %v1558
      %1560 = vmatmul.f32.gmra.mxu0 %v1497
      %v1561 = vpop.f32.mrf.mxu0
      %v1562 = vadd.f32 %v434, %v1561
      %1563 = vdwg.mxu0
      %v1580 = vrot.slane %v1517, 1
      %v1581 = vrot.slane %v1517, 2
      %v1582 = vrot.slane %v1517, 3
      %v1583 = vrot.slane %v1517, 4
      %v1584 = vrot.slane %v1517, 5
      %v1585 = vrot.slane %v1517, 6
      %v1586 = vrot.slane %v1517, 7
      %v1587 = vrot.slane %v1520, 1
      %v1588 = vrot.slane %v1520, 2
      %v1589 = vrot.slane %v1520, 3
      %v1590 = vrot.slane %v1520, 4
      %v1591 = vrot.slane %v1520, 5
      %v1592 = vrot.slane %v1520, 6
      %v1593 = vrot.slane %v1520, 7
      %v1594 = vrot.slane %v1523, 1
      %v1595 = vrot.slane %v1523, 2
      %v1596 = vrot.slane %v1523, 3
      %v1597 = vrot.slane %v1523, 4
      %v1598 = vrot.slane %v1523, 5
      %v1599 = vrot.slane %v1523, 6
      %v1600 = vrot.slane %v1523, 7
      %v1601 = vrot.slane %v1526, 1
      %v1602 = vrot.slane %v1526, 2
      %v1603 = vrot.slane %v1526, 3
      %v1604 = vrot.slane %v1526, 4
      %v1605 = vrot.slane %v1526, 5
      %v1606 = vrot.slane %v1526, 6
      %v1607 = vrot.slane %v1526, 7
      %v1608 = vrot.slane %v1529, 1
      %v1609 = vrot.slane %v1529, 2
      %v1610 = vrot.slane %v1529, 3
      %v1611 = vrot.slane %v1529, 4
      %v1612 = vrot.slane %v1529, 5
      %v1613 = vrot.slane %v1529, 6
      %v1614 = vrot.slane %v1529, 7
      %v1615 = vrot.slane %v1532, 1
      %v1616 = vrot.slane %v1532, 2
      %v1617 = vrot.slane %v1532, 3
      %v1618 = vrot.slane %v1532, 4
      %v1619 = vrot.slane %v1532, 5
      %v1620 = vrot.slane %v1532, 6
      %v1621 = vrot.slane %v1532, 7
      %v1622 = vrot.slane %v1535, 1
      %v1623 = vrot.slane %v1535, 2
      %v1624 = vrot.slane %v1535, 3
      %v1625 = vrot.slane %v1535, 4
      %v1626 = vrot.slane %v1535, 5
      %v1627 = vrot.slane %v1535, 6
      %v1628 = vrot.slane %v1535, 7
      %v1629 = vrot.slane %v1538, 1
      %v1630 = vrot.slane %v1538, 2
      %v1631 = vrot.slane %v1538, 3
      %v1632 = vrot.slane %v1538, 4
      %v1633 = vrot.slane %v1538, 5
      %v1634 = vrot.slane %v1538, 6
      %v1635 = vrot.slane %v1538, 7
      %v1636 = vrot.slane %v1541, 1
      %v1637 = vrot.slane %v1541, 2
      %v1638 = vrot.slane %v1541, 3
      %v1639 = vrot.slane %v1541, 4
      %v1640 = vrot.slane %v1541, 5
      %v1641 = vrot.slane %v1541, 6
      %v1642 = vrot.slane %v1541, 7
      %v1643 = vrot.slane %v1544, 1
      %v1644 = vrot.slane %v1544, 2
      %v1645 = vrot.slane %v1544, 3
      %v1646 = vrot.slane %v1544, 4
      %v1647 = vrot.slane %v1544, 5
      %v1648 = vrot.slane %v1544, 6
      %v1649 = vrot.slane %v1544, 7
      %v1650 = vrot.slane %v1547, 1
      %v1651 = vrot.slane %v1547, 2
      %v1652 = vrot.slane %v1547, 3
      %v1653 = vrot.slane %v1547, 4
      %v1654 = vrot.slane %v1547, 5
      %v1655 = vrot.slane %v1547, 6
      %v1656 = vrot.slane %v1547, 7
      %v1657 = vrot.slane %v1550, 1
      %v1658 = vrot.slane %v1550, 2
      %v1659 = vrot.slane %v1550, 3
      %v1660 = vrot.slane %v1550, 4
      %v1661 = vrot.slane %v1550, 5
      %v1662 = vrot.slane %v1550, 6
      %v1663 = vrot.slane %v1550, 7
      %v1664 = vrot.slane %v1553, 1
      %v1665 = vrot.slane %v1553, 2
      %v1666 = vrot.slane %v1553, 3
      %v1667 = vrot.slane %v1553, 4
      %v1668 = vrot.slane %v1553, 5
      %v1669 = vrot.slane %v1553, 6
      %v1670 = vrot.slane %v1553, 7
      %v1671 = vrot.slane %v1556, 1
      %v1672 = vrot.slane %v1556, 2
      %v1673 = vrot.slane %v1556, 3
      %v1674 = vrot.slane %v1556, 4
      %v1675 = vrot.slane %v1556, 5
      %v1676 = vrot.slane %v1556, 6
      %v1677 = vrot.slane %v1556, 7
      %v1678 = vrot.slane %v1559, 1
      %v1679 = vrot.slane %v1559, 2
      %v1680 = vrot.slane %v1559, 3
      %v1681 = vrot.slane %v1559, 4
      %v1682 = vrot.slane %v1559, 5
      %v1683 = vrot.slane %v1559, 6
      %v1684 = vrot.slane %v1559, 7
      %v1685 = vrot.slane %v1562, 1
      %v1686 = vrot.slane %v1562, 2
      %v1687 = vrot.slane %v1562, 3
      %v1688 = vrot.slane %v1562, 4
      %v1689 = vrot.slane %v1562, 5
      %v1690 = vrot.slane %v1562, 6
      %v1691 = vrot.slane %v1562, 7
      %v1692 = vperm.slane %v1517, 0
      %v1693 = vperm.slane %v1580, 0
      %v1694 = vperm.slane %v1581, 0
      %v1695 = vperm.slane %v1582, 0
      %v1696 = vperm.slane %v1583, 0
      %v1697 = vperm.slane %v1584, 0
      %v1698 = vperm.slane %v1585, 0
      %v1699 = vperm.slane %v1586, 0
      %v1700 = vperm.slane %v1520, 0
      %v1701 = vperm.slane %v1587, 0
      %v1702 = vperm.slane %v1588, 0
      %v1703 = vperm.slane %v1589, 0
      %v1704 = vperm.slane %v1590, 0
      %v1705 = vperm.slane %v1591, 0
      %v1706 = vperm.slane %v1592, 0
      %v1707 = vperm.slane %v1593, 0
      %v1708 = vperm.slane %v1523, 0
      %v1709 = vperm.slane %v1594, 0
      %v1710 = vperm.slane %v1595, 0
      %v1711 = vperm.slane %v1596, 0
      %v1712 = vperm.slane %v1597, 0
      %v1713 = vperm.slane %v1598, 0
      %v1714 = vperm.slane %v1599, 0
      %v1715 = vperm.slane %v1600, 0
      %v1716 = vperm.slane %v1526, 0
      %v1717 = vperm.slane %v1601, 0
      %v1718 = vperm.slane %v1602, 0
      %v1719 = vperm.slane %v1603, 0
      %v1720 = vperm.slane %v1604, 0
      %v1721 = vperm.slane %v1605, 0
      %v1722 = vperm.slane %v1606, 0
      %v1723 = vperm.slane %v1607, 0
      %v1724 = vperm.slane %v1529, 0
      %v1725 = vperm.slane %v1608, 0
      %v1726 = vperm.slane %v1609, 0
      %v1727 = vperm.slane %v1610, 0
      %v1728 = vperm.slane %v1611, 0
      %v1729 = vperm.slane %v1612, 0
      %v1730 = vperm.slane %v1613, 0
      %v1731 = vperm.slane %v1614, 0
      %v1732 = vperm.slane %v1532, 0
      %v1733 = vperm.slane %v1615, 0
      %v1734 = vperm.slane %v1616, 0
      %v1735 = vperm.slane %v1617, 0
      %v1736 = vperm.slane %v1618, 0
      %v1737 = vperm.slane %v1619, 0
      %v1738 = vperm.slane %v1620, 0
      %v1739 = vperm.slane %v1621, 0
      %v1740 = vperm.slane %v1535, 0
      %v1741 = vperm.slane %v1622, 0
      %v1742 = vperm.slane %v1623, 0
      %v1743 = vperm.slane %v1624, 0
      %v1744 = vperm.slane %v1625, 0
      %v1745 = vperm.slane %v1626, 0
      %v1746 = vperm.slane %v1627, 0
      %v1747 = vperm.slane %v1628, 0
      %v1748 = vperm.slane %v1538, 0
      %v1749 = vperm.slane %v1629, 0
      %v1750 = vperm.slane %v1630, 0
      %v1751 = vperm.slane %v1631, 0
      %v1752 = vperm.slane %v1632, 0
      %v1753 = vperm.slane %v1633, 0
      %v1754 = vperm.slane %v1634, 0
      %v1755 = vperm.slane %v1635, 0
      %v1756 = vperm.slane %v1541, 0
      %v1757 = vperm.slane %v1636, 0
      %v1758 = vperm.slane %v1637, 0
      %v1759 = vperm.slane %v1638, 0
      %v1760 = vperm.slane %v1639, 0
      %v1761 = vperm.slane %v1640, 0
      %v1762 = vperm.slane %v1641, 0
      %v1763 = vperm.slane %v1642, 0
      %v1764 = vperm.slane %v1544, 0
      %v1765 = vperm.slane %v1643, 0
      %v1766 = vperm.slane %v1644, 0
      %v1767 = vperm.slane %v1645, 0
      %v1768 = vperm.slane %v1646, 0
      %v1769 = vperm.slane %v1647, 0
      %v1770 = vperm.slane %v1648, 0
      %v1771 = vperm.slane %v1649, 0
      %v1772 = vperm.slane %v1547, 0
      %v1773 = vperm.slane %v1650, 0
      %v1774 = vperm.slane %v1651, 0
      %v1775 = vperm.slane %v1652, 0
      %v1776 = vperm.slane %v1653, 0
      %v1777 = vperm.slane %v1654, 0
      %v1778 = vperm.slane %v1655, 0
      %v1779 = vperm.slane %v1656, 0
      %v1780 = vperm.slane %v1550, 0
      %v1781 = vperm.slane %v1657, 0
      %v1782 = vperm.slane %v1658, 0
      %v1783 = vperm.slane %v1659, 0
      %v1784 = vperm.slane %v1660, 0
      %v1785 = vperm.slane %v1661, 0
      %v1786 = vperm.slane %v1662, 0
      %v1787 = vperm.slane %v1663, 0
      %v1788 = vperm.slane %v1553, 0
      %v1789 = vperm.slane %v1664, 0
      %v1790 = vperm.slane %v1665, 0
      %v1791 = vperm.slane %v1666, 0
      %v1792 = vperm.slane %v1667, 0
      %v1793 = vperm.slane %v1668, 0
      %v1794 = vperm.slane %v1669, 0
      %v1795 = vperm.slane %v1670, 0
      %v1796 = vperm.slane %v1556, 0
      %v1797 = vperm.slane %v1671, 0
      %v1798 = vperm.slane %v1672, 0
      %v1799 = vperm.slane %v1673, 0
      %v1800 = vperm.slane %v1674, 0
      %v1801 = vperm.slane %v1675, 0
      %v1802 = vperm.slane %v1676, 0
      %v1803 = vperm.slane %v1677, 0
      %v1804 = vperm.slane %v1559, 0
      %v1805 = vperm.slane %v1678, 0
      %v1806 = vperm.slane %v1679, 0
      %v1807 = vperm.slane %v1680, 0
      %v1808 = vperm.slane %v1681, 0
      %v1809 = vperm.slane %v1682, 0
      %v1810 = vperm.slane %v1683, 0
      %v1811 = vperm.slane %v1684, 0
      %v1812 = vperm.slane %v1562, 0
      %v1813 = vperm.slane %v1685, 0
      %v1814 = vperm.slane %v1686, 0
      %v1815 = vperm.slane %v1687, 0
      %v1816 = vperm.slane %v1688, 0
      %v1817 = vperm.slane %v1689, 0
      %v1818 = vperm.slane %v1690, 0
      %v1819 = vperm.slane %v1691, 0
      %1948 = vrot.lane.b32.xlu0 %v1517, 96
      %v1949 = vpop.permute.xlu0 %1948
      %1950 = vrot.lane.b32.xlu0 %v1520, 96
      %v1951 = vpop.permute.xlu0 %1950
      %1952 = vrot.lane.b32.xlu0 %v1523, 96
      %v1953 = vpop.permute.xlu0 %1952
      %1954 = vrot.lane.b32.xlu0 %v1526, 96
      %v1955 = vpop.permute.xlu0 %1954
      %1956 = vrot.lane.b32.xlu0 %v1529, 96
      %v1957 = vpop.permute.xlu0 %1956
      %1958 = vrot.lane.b32.xlu0 %v1532, 96
      %v1959 = vpop.permute.xlu0 %1958
      %1960 = vrot.lane.b32.xlu0 %v1535, 96
      %v1961 = vpop.permute.xlu0 %1960
      %1962 = vrot.lane.b32.xlu0 %v1538, 96
      %v1963 = vpop.permute.xlu0 %1962
      %1964 = vrot.lane.b32.xlu0 %v1541, 96
      %v1965 = vpop.permute.xlu0 %1964
      %1966 = vrot.lane.b32.xlu0 %v1544, 96
      %v1967 = vpop.permute.xlu0 %1966
      %1968 = vrot.lane.b32.xlu0 %v1547, 96
      %v1969 = vpop.permute.xlu0 %1968
      %1970 = vrot.lane.b32.xlu0 %v1550, 96
      %v1971 = vpop.permute.xlu0 %1970
      %1972 = vrot.lane.b32.xlu0 %v1553, 96
      %v1973 = vpop.permute.xlu0 %1972
      %1974 = vrot.lane.b32.xlu0 %v1556, 96
      %v1975 = vpop.permute.xlu0 %1974
      %1976 = vrot.lane.b32.xlu0 %v1559, 96
      %v1977 = vpop.permute.xlu0 %1976
      %1978 = vrot.lane.b32.xlu0 %v1562, 96
      %v1979 = vpop.permute.xlu0 %1978
      %v1996 = vadd.f32 %v1692, %v1949
      %v1997 = vadd.f32 %v1693, %v1949
      %v1998 = vadd.f32 %v1694, %v1949
      %v1999 = vadd.f32 %v1695, %v1949
      %v2000 = vadd.f32 %v1696, %v1949
      %v2001 = vadd.f32 %v1697, %v1949
      %v2002 = vadd.f32 %v1698, %v1949
      %v2003 = vadd.f32 %v1699, %v1949
      %v2004 = vadd.f32 %v1700, %v1951
      %v2005 = vadd.f32 %v1701, %v1951
      %v2006 = vadd.f32 %v1702, %v1951
      %v2007 = vadd.f32 %v1703, %v1951
      %v2008 = vadd.f32 %v1704, %v1951
      %v2009 = vadd.f32 %v1705, %v1951
      %v2010 = vadd.f32 %v1706, %v1951
      %v2011 = vadd.f32 %v1707, %v1951
      %v2012 = vadd.f32 %v1708, %v1953
      %v2013 = vadd.f32 %v1709, %v1953
      %v2014 = vadd.f32 %v1710, %v1953
      %v2015 = vadd.f32 %v1711, %v1953
      %v2016 = vadd.f32 %v1712, %v1953
      %v2017 = vadd.f32 %v1713, %v1953
      %v2018 = vadd.f32 %v1714, %v1953
      %v2019 = vadd.f32 %v1715, %v1953
      %v2020 = vadd.f32 %v1716, %v1955
      %v2021 = vadd.f32 %v1717, %v1955
      %v2022 = vadd.f32 %v1718, %v1955
      %v2023 = vadd.f32 %v1719, %v1955
      %v2024 = vadd.f32 %v1720, %v1955
      %v2025 = vadd.f32 %v1721, %v1955
      %v2026 = vadd.f32 %v1722, %v1955
      %v2027 = vadd.f32 %v1723, %v1955
      %v2028 = vadd.f32 %v1724, %v1957
      %v2029 = vadd.f32 %v1725, %v1957
      %v2030 = vadd.f32 %v1726, %v1957
      %v2031 = vadd.f32 %v1727, %v1957
      %v2032 = vadd.f32 %v1728, %v1957
      %v2033 = vadd.f32 %v1729, %v1957
      %v2034 = vadd.f32 %v1730, %v1957
      %v2035 = vadd.f32 %v1731, %v1957
      %v2036 = vadd.f32 %v1732, %v1959
      %v2037 = vadd.f32 %v1733, %v1959
      %v2038 = vadd.f32 %v1734, %v1959
      %v2039 = vadd.f32 %v1735, %v1959
      %v2040 = vadd.f32 %v1736, %v1959
      %v2041 = vadd.f32 %v1737, %v1959
      %v2042 = vadd.f32 %v1738, %v1959
      %v2043 = vadd.f32 %v1739, %v1959
      %v2044 = vadd.f32 %v1740, %v1961
      %v2045 = vadd.f32 %v1741, %v1961
      %v2046 = vadd.f32 %v1742, %v1961
      %v2047 = vadd.f32 %v1743, %v1961
      %v2048 = vadd.f32 %v1744, %v1961
      %v2049 = vadd.f32 %v1745, %v1961
      %v2050 = vadd.f32 %v1746, %v1961
      %v2051 = vadd.f32 %v1747, %v1961
      %v2052 = vadd.f32 %v1748, %v1963
      %v2053 = vadd.f32 %v1749, %v1963
      %v2054 = vadd.f32 %v1750, %v1963
      %v2055 = vadd.f32 %v1751, %v1963
      %v2056 = vadd.f32 %v1752, %v1963
      %v2057 = vadd.f32 %v1753, %v1963
      %v2058 = vadd.f32 %v1754, %v1963
      %v2059 = vadd.f32 %v1755, %v1963
      %v2060 = vadd.f32 %v1756, %v1965
      %v2061 = vadd.f32 %v1757, %v1965
      %v2062 = vadd.f32 %v1758, %v1965
      %v2063 = vadd.f32 %v1759, %v1965
      %v2064 = vadd.f32 %v1760, %v1965
      %v2065 = vadd.f32 %v1761, %v1965
      %v2066 = vadd.f32 %v1762, %v1965
      %v2067 = vadd.f32 %v1763, %v1965
      %v2068 = vadd.f32 %v1764, %v1967
      %v2069 = vadd.f32 %v1765, %v1967
      %v2070 = vadd.f32 %v1766, %v1967
      %v2071 = vadd.f32 %v1767, %v1967
      %v2072 = vadd.f32 %v1768, %v1967
      %v2073 = vadd.f32 %v1769, %v1967
      %v2074 = vadd.f32 %v1770, %v1967
      %v2075 = vadd.f32 %v1771, %v1967
      %v2076 = vadd.f32 %v1772, %v1969
      %v2077 = vadd.f32 %v1773, %v1969
      %v2078 = vadd.f32 %v1774, %v1969
      %v2079 = vadd.f32 %v1775, %v1969
      %v2080 = vadd.f32 %v1776, %v1969
      %v2081 = vadd.f32 %v1777, %v1969
      %v2082 = vadd.f32 %v1778, %v1969
      %v2083 = vadd.f32 %v1779, %v1969
      %v2084 = vadd.f32 %v1780, %v1971
      %v2085 = vadd.f32 %v1781, %v1971
      %v2086 = vadd.f32 %v1782, %v1971
      %v2087 = vadd.f32 %v1783, %v1971
      %v2088 = vadd.f32 %v1784, %v1971
      %v2089 = vadd.f32 %v1785, %v1971
      %v2090 = vadd.f32 %v1786, %v1971
      %v2091 = vadd.f32 %v1787, %v1971
      %v2092 = vadd.f32 %v1788, %v1973
      %v2093 = vadd.f32 %v1789, %v1973
      %v2094 = vadd.f32 %v1790, %v1973
      %v2095 = vadd.f32 %v1791, %v1973
      %v2096 = vadd.f32 %v1792, %v1973
      %v2097 = vadd.f32 %v1793, %v1973
      %v2098 = vadd.f32 %v1794, %v1973
      %v2099 = vadd.f32 %v1795, %v1973
      %v2100 = vadd.f32 %v1796, %v1975
      %v2101 = vadd.f32 %v1797, %v1975
      %v2102 = vadd.f32 %v1798, %v1975
      %v2103 = vadd.f32 %v1799, %v1975
      %v2104 = vadd.f32 %v1800, %v1975
      %v2105 = vadd.f32 %v1801, %v1975
      %v2106 = vadd.f32 %v1802, %v1975
      %v2107 = vadd.f32 %v1803, %v1975
      %v2108 = vadd.f32 %v1804, %v1977
      %v2109 = vadd.f32 %v1805, %v1977
      %v2110 = vadd.f32 %v1806, %v1977
      %v2111 = vadd.f32 %v1807, %v1977
      %v2112 = vadd.f32 %v1808, %v1977
      %v2113 = vadd.f32 %v1809, %v1977
      %v2114 = vadd.f32 %v1810, %v1977
      %v2115 = vadd.f32 %v1811, %v1977
      %v2116 = vadd.f32 %v1812, %v1979
      %v2117 = vadd.f32 %v1813, %v1979
      %v2118 = vadd.f32 %v1814, %v1979
      %v2119 = vadd.f32 %v1815, %v1979
      %v2120 = vadd.f32 %v1816, %v1979
      %v2121 = vadd.f32 %v1817, %v1979
      %v2122 = vadd.f32 %v1818, %v1979
      %v2123 = vadd.f32 %v1819, %v1979
      %v2124 = vmul.f32 %v1996, 0.5
      %v2125 = vmul.f32 %v1997, 0.5
      %v2126 = vmul.f32 %v1998, 0.5
      %v2127 = vmul.f32 %v1999, 0.5
      %v2128 = vmul.f32 %v2000, 0.5
      %v2129 = vmul.f32 %v2001, 0.5
      %v2130 = vmul.f32 %v2002, 0.5
      %v2131 = vmul.f32 %v2003, 0.5
      %v2132 = vmul.f32 %v2004, 0.5
      %v2133 = vmul.f32 %v2005, 0.5
      %v2134 = vmul.f32 %v2006, 0.5
      %v2135 = vmul.f32 %v2007, 0.5
      %v2136 = vmul.f32 %v2008, 0.5
      %v2137 = vmul.f32 %v2009, 0.5
      %v2138 = vmul.f32 %v2010, 0.5
      %v2139 = vmul.f32 %v2011, 0.5
      %v2140 = vmul.f32 %v2012, 0.5
      %v2141 = vmul.f32 %v2013, 0.5
      %v2142 = vmul.f32 %v2014, 0.5
      %v2143 = vmul.f32 %v2015, 0.5
      %v2144 = vmul.f32 %v2016, 0.5
      %v2145 = vmul.f32 %v2017, 0.5
      %v2146 = vmul.f32 %v2018, 0.5
      %v2147 = vmul.f32 %v2019, 0.5
      %v2148 = vmul.f32 %v2020, 0.5
      %v2149 = vmul.f32 %v2021, 0.5
      %v2150 = vmul.f32 %v2022, 0.5
      %v2151 = vmul.f32 %v2023, 0.5
      %v2152 = vmul.f32 %v2024, 0.5
      %v2153 = vmul.f32 %v2025, 0.5
      %v2154 = vmul.f32 %v2026, 0.5
      %v2155 = vmul.f32 %v2027, 0.5
      %v2156 = vmul.f32 %v2028, 0.5
      %v2157 = vmul.f32 %v2029, 0.5
      %v2158 = vmul.f32 %v2030, 0.5
      %v2159 = vmul.f32 %v2031, 0.5
      %v2160 = vmul.f32 %v2032, 0.5
      %v2161 = vmul.f32 %v2033, 0.5
      %v2162 = vmul.f32 %v2034, 0.5
      %v2163 = vmul.f32 %v2035, 0.5
      %v2164 = vmul.f32 %v2036, 0.5
      %v2165 = vmul.f32 %v2037, 0.5
      %v2166 = vmul.f32 %v2038, 0.5
      %v2167 = vmul.f32 %v2039, 0.5
      %v2168 = vmul.f32 %v2040, 0.5
      %v2169 = vmul.f32 %v2041, 0.5
      %v2170 = vmul.f32 %v2042, 0.5
      %v2171 = vmul.f32 %v2043, 0.5
      %v2172 = vmul.f32 %v2044, 0.5
      %v2173 = vmul.f32 %v2045, 0.5
      %v2174 = vmul.f32 %v2046, 0.5
      %v2175 = vmul.f32 %v2047, 0.5
      %v2176 = vmul.f32 %v2048, 0.5
      %v2177 = vmul.f32 %v2049, 0.5
      %v2178 = vmul.f32 %v2050, 0.5
      %v2179 = vmul.f32 %v2051, 0.5
      %v2180 = vmul.f32 %v2052, 0.5
      %v2181 = vmul.f32 %v2053, 0.5
      %v2182 = vmul.f32 %v2054, 0.5
      %v2183 = vmul.f32 %v2055, 0.5
      %v2184 = vmul.f32 %v2056, 0.5
      %v2185 = vmul.f32 %v2057, 0.5
      %v2186 = vmul.f32 %v2058, 0.5
      %v2187 = vmul.f32 %v2059, 0.5
      %v2188 = vmul.f32 %v2060, 0.5
      %v2189 = vmul.f32 %v2061, 0.5
      %v2190 = vmul.f32 %v2062, 0.5
      %v2191 = vmul.f32 %v2063, 0.5
      %v2192 = vmul.f32 %v2064, 0.5
      %v2193 = vmul.f32 %v2065, 0.5
      %v2194 = vmul.f32 %v2066, 0.5
      %v2195 = vmul.f32 %v2067, 0.5
      %v2196 = vmul.f32 %v2068, 0.5
      %v2197 = vmul.f32 %v2069, 0.5
      %v2198 = vmul.f32 %v2070, 0.5
      %v2199 = vmul.f32 %v2071, 0.5
      %v2200 = vmul.f32 %v2072, 0.5
      %v2201 = vmul.f32 %v2073, 0.5
      %v2202 = vmul.f32 %v2074, 0.5
      %v2203 = vmul.f32 %v2075, 0.5
      %v2204 = vmul.f32 %v2076, 0.5
      %v2205 = vmul.f32 %v2077, 0.5
      %v2206 = vmul.f32 %v2078, 0.5
      %v2207 = vmul.f32 %v2079, 0.5
      %v2208 = vmul.f32 %v2080, 0.5
      %v2209 = vmul.f32 %v2081, 0.5
      %v2210 = vmul.f32 %v2082, 0.5
      %v2211 = vmul.f32 %v2083, 0.5
      %v2212 = vmul.f32 %v2084, 0.5
      %v2213 = vmul.f32 %v2085, 0.5
      %v2214 = vmul.f32 %v2086, 0.5
      %v2215 = vmul.f32 %v2087, 0.5
      %v2216 = vmul.f32 %v2088, 0.5
      %v2217 = vmul.f32 %v2089, 0.5
      %v2218 = vmul.f32 %v2090, 0.5
      %v2219 = vmul.f32 %v2091, 0.5
      %v2220 = vmul.f32 %v2092, 0.5
      %v2221 = vmul.f32 %v2093, 0.5
      %v2222 = vmul.f32 %v2094, 0.5
      %v2223 = vmul.f32 %v2095, 0.5
      %v2224 = vmul.f32 %v2096, 0.5
      %v2225 = vmul.f32 %v2097, 0.5
      %v2226 = vmul.f32 %v2098, 0.5
      %v2227 = vmul.f32 %v2099, 0.5
      %v2228 = vmul.f32 %v2100, 0.5
      %v2229 = vmul.f32 %v2101, 0.5
      %v2230 = vmul.f32 %v2102, 0.5
      %v2231 = vmul.f32 %v2103, 0.5
      %v2232 = vmul.f32 %v2104, 0.5
      %v2233 = vmul.f32 %v2105, 0.5
      %v2234 = vmul.f32 %v2106, 0.5
      %v2235 = vmul.f32 %v2107, 0.5
      %v2236 = vmul.f32 %v2108, 0.5
      %v2237 = vmul.f32 %v2109, 0.5
      %v2238 = vmul.f32 %v2110, 0.5
      %v2239 = vmul.f32 %v2111, 0.5
      %v2240 = vmul.f32 %v2112, 0.5
      %v2241 = vmul.f32 %v2113, 0.5
      %v2242 = vmul.f32 %v2114, 0.5
      %v2243 = vmul.f32 %v2115, 0.5
      %v2244 = vmul.f32 %v2116, 0.5
      %v2245 = vmul.f32 %v2117, 0.5
      %v2246 = vmul.f32 %v2118, 0.5
      %v2247 = vmul.f32 %v2119, 0.5
      %v2248 = vmul.f32 %v2120, 0.5
      %v2249 = vmul.f32 %v2121, 0.5
      %v2250 = vmul.f32 %v2122, 0.5
      %v2251 = vmul.f32 %v2123, 0.5
      %v2252 = vtanh.pop %v2124
      %v2253 = vtanh.pop %v2125
      %v2254 = vtanh.pop %v2126
      %v2255 = vtanh.pop %v2127
      %v2256 = vtanh.pop %v2128
      %v2257 = vtanh.pop %v2129
      %v2258 = vtanh.pop %v2130
      %v2259 = vtanh.pop %v2131
      %v2260 = vtanh.pop %v2132
      %v2261 = vtanh.pop %v2133
      %v2262 = vtanh.pop %v2134
      %v2263 = vtanh.pop %v2135
      %v2264 = vtanh.pop %v2136
      %v2265 = vtanh.pop %v2137
      %v2266 = vtanh.pop %v2138
      %v2267 = vtanh.pop %v2139
      %v2268 = vtanh.pop %v2140
      %v2269 = vtanh.pop %v2141
      %v2270 = vtanh.pop %v2142
      %v2271 = vtanh.pop %v2143
      %v2272 = vtanh.pop %v2144
      %v2273 = vtanh.pop %v2145
      %v2274 = vtanh.pop %v2146
      %v2275 = vtanh.pop %v2147
      %v2276 = vtanh.pop %v2148
      %v2277 = vtanh.pop %v2149
      %v2278 = vtanh.pop %v2150
      %v2279 = vtanh.pop %v2151
      %v2280 = vtanh.pop %v2152
      %v2281 = vtanh.pop %v2153
      %v2282 = vtanh.pop %v2154
      %v2283 = vtanh.pop %v2155
      %v2284 = vtanh.pop %v2156
      %v2285 = vtanh.pop %v2157
      %v2286 = vtanh.pop %v2158
      %v2287 = vtanh.pop %v2159
      %v2288 = vtanh.pop %v2160
      %v2289 = vtanh.pop %v2161
      %v2290 = vtanh.pop %v2162
      %v2291 = vtanh.pop %v2163
      %v2292 = vtanh.pop %v2164
      %v2293 = vtanh.pop %v2165
      %v2294 = vtanh.pop %v2166
      %v2295 = vtanh.pop %v2167
      %v2296 = vtanh.pop %v2168
      %v2297 = vtanh.pop %v2169
      %v2298 = vtanh.pop %v2170
      %v2299 = vtanh.pop %v2171
      %v2300 = vtanh.pop %v2172
      %v2301 = vtanh.pop %v2173
      %v2302 = vtanh.pop %v2174
      %v2303 = vtanh.pop %v2175
      %v2304 = vtanh.pop %v2176
      %v2305 = vtanh.pop %v2177
      %v2306 = vtanh.pop %v2178
      %v2307 = vtanh.pop %v2179
      %v2308 = vtanh.pop %v2180
      %v2309 = vtanh.pop %v2181
      %v2310 = vtanh.pop %v2182
      %v2311 = vtanh.pop %v2183
      %v2312 = vtanh.pop %v2184
      %v2313 = vtanh.pop %v2185
      %v2314 = vtanh.pop %v2186
      %v2315 = vtanh.pop %v2187
      %v2316 = vtanh.pop %v2188
      %v2317 = vtanh.pop %v2189
      %v2318 = vtanh.pop %v2190
      %v2319 = vtanh.pop %v2191
      %v2320 = vtanh.pop %v2192
      %v2321 = vtanh.pop %v2193
      %v2322 = vtanh.pop %v2194
      %v2323 = vtanh.pop %v2195
      %v2324 = vtanh.pop %v2196
      %v2325 = vtanh.pop %v2197
      %v2326 = vtanh.pop %v2198
      %v2327 = vtanh.pop %v2199
      %v2328 = vtanh.pop %v2200
      %v2329 = vtanh.pop %v2201
      %v2330 = vtanh.pop %v2202
      %v2331 = vtanh.pop %v2203
      %v2332 = vtanh.pop %v2204
      %v2333 = vtanh.pop %v2205
      %v2334 = vtanh.pop %v2206
      %v2335 = vtanh.pop %v2207
      %v2336 = vtanh.pop %v2208
      %v2337 = vtanh.pop %v2209
      %v2338 = vtanh.pop %v2210
      %v2339 = vtanh.pop %v2211
      %v2340 = vtanh.pop %v2212
      %v2341 = vtanh.pop %v2213
      %v2342 = vtanh.pop %v2214
      %v2343 = vtanh.pop %v2215
      %v2344 = vtanh.pop %v2216
      %v2345 = vtanh.pop %v2217
      %v2346 = vtanh.pop %v2218
      %v2347 = vtanh.pop %v2219
      %v2348 = vtanh.pop %v2220
      %v2349 = vtanh.pop %v2221
      %v2350 = vtanh.pop %v2222
      %v2351 = vtanh.pop %v2223
      %v2352 = vtanh.pop %v2224
      %v2353 = vtanh.pop %v2225
      %v2354 = vtanh.pop %v2226
      %v2355 = vtanh.pop %v2227
      %v2356 = vtanh.pop %v2228
      %v2357 = vtanh.pop %v2229
      %v2358 = vtanh.pop %v2230
      %v2359 = vtanh.pop %v2231
      %v2360 = vtanh.pop %v2232
      %v2361 = vtanh.pop %v2233
      %v2362 = vtanh.pop %v2234
      %v2363 = vtanh.pop %v2235
      %v2364 = vtanh.pop %v2236
      %v2365 = vtanh.pop %v2237
      %v2366 = vtanh.pop %v2238
      %v2367 = vtanh.pop %v2239
      %v2368 = vtanh.pop %v2240
      %v2369 = vtanh.pop %v2241
      %v2370 = vtanh.pop %v2242
      %v2371 = vtanh.pop %v2243
      %v2372 = vtanh.pop %v2244
      %v2373 = vtanh.pop %v2245
      %v2374 = vtanh.pop %v2246
      %v2375 = vtanh.pop %v2247
      %v2376 = vtanh.pop %v2248
      %v2377 = vtanh.pop %v2249
      %v2378 = vtanh.pop %v2250
      %v2379 = vtanh.pop %v2251
      %v2380 = vmul.f32 %v2252, 0.5
      %v2381 = vmul.f32 %v2253, 0.5
      %v2382 = vmul.f32 %v2254, 0.5
      %v2383 = vmul.f32 %v2255, 0.5
      %v2384 = vmul.f32 %v2256, 0.5
      %v2385 = vmul.f32 %v2257, 0.5
      %v2386 = vmul.f32 %v2258, 0.5
      %v2387 = vmul.f32 %v2259, 0.5
      %v2388 = vmul.f32 %v2260, 0.5
      %v2389 = vmul.f32 %v2261, 0.5
      %v2390 = vmul.f32 %v2262, 0.5
      %v2391 = vmul.f32 %v2263, 0.5
      %v2392 = vmul.f32 %v2264, 0.5
      %v2393 = vmul.f32 %v2265, 0.5
      %v2394 = vmul.f32 %v2266, 0.5
      %v2395 = vmul.f32 %v2267, 0.5
      %v2396 = vmul.f32 %v2268, 0.5
      %v2397 = vmul.f32 %v2269, 0.5
      %v2398 = vmul.f32 %v2270, 0.5
      %v2399 = vmul.f32 %v2271, 0.5
      %v2400 = vmul.f32 %v2272, 0.5
      %v2401 = vmul.f32 %v2273, 0.5
      %v2402 = vmul.f32 %v2274, 0.5
      %v2403 = vmul.f32 %v2275, 0.5
      %v2404 = vmul.f32 %v2276, 0.5
      %v2405 = vmul.f32 %v2277, 0.5
      %v2406 = vmul.f32 %v2278, 0.5
      %v2407 = vmul.f32 %v2279, 0.5
      %v2408 = vmul.f32 %v2280, 0.5
      %v2409 = vmul.f32 %v2281, 0.5
      %v2410 = vmul.f32 %v2282, 0.5
      %v2411 = vmul.f32 %v2283, 0.5
      %v2412 = vmul.f32 %v2284, 0.5
      %v2413 = vmul.f32 %v2285, 0.5
      %v2414 = vmul.f32 %v2286, 0.5
      %v2415 = vmul.f32 %v2287, 0.5
      %v2416 = vmul.f32 %v2288, 0.5
      %v2417 = vmul.f32 %v2289, 0.5
      %v2418 = vmul.f32 %v2290, 0.5
      %v2419 = vmul.f32 %v2291, 0.5
      %v2420 = vmul.f32 %v2292, 0.5
      %v2421 = vmul.f32 %v2293, 0.5
      %v2422 = vmul.f32 %v2294, 0.5
      %v2423 = vmul.f32 %v2295, 0.5
      %v2424 = vmul.f32 %v2296, 0.5
      %v2425 = vmul.f32 %v2297, 0.5
      %v2426 = vmul.f32 %v2298, 0.5
      %v2427 = vmul.f32 %v2299, 0.5
      %v2428 = vmul.f32 %v2300, 0.5
      %v2429 = vmul.f32 %v2301, 0.5
      %v2430 = vmul.f32 %v2302, 0.5
      %v2431 = vmul.f32 %v2303, 0.5
      %v2432 = vmul.f32 %v2304, 0.5
      %v2433 = vmul.f32 %v2305, 0.5
      %v2434 = vmul.f32 %v2306, 0.5
      %v2435 = vmul.f32 %v2307, 0.5
      %v2436 = vmul.f32 %v2308, 0.5
      %v2437 = vmul.f32 %v2309, 0.5
      %v2438 = vmul.f32 %v2310, 0.5
      %v2439 = vmul.f32 %v2311, 0.5
      %v2440 = vmul.f32 %v2312, 0.5
      %v2441 = vmul.f32 %v2313, 0.5
      %v2442 = vmul.f32 %v2314, 0.5
      %v2443 = vmul.f32 %v2315, 0.5
      %v2444 = vmul.f32 %v2316, 0.5
      %v2445 = vmul.f32 %v2317, 0.5
      %v2446 = vmul.f32 %v2318, 0.5
      %v2447 = vmul.f32 %v2319, 0.5
      %v2448 = vmul.f32 %v2320, 0.5
      %v2449 = vmul.f32 %v2321, 0.5
      %v2450 = vmul.f32 %v2322, 0.5
      %v2451 = vmul.f32 %v2323, 0.5
      %v2452 = vmul.f32 %v2324, 0.5
      %v2453 = vmul.f32 %v2325, 0.5
      %v2454 = vmul.f32 %v2326, 0.5
      %v2455 = vmul.f32 %v2327, 0.5
      %v2456 = vmul.f32 %v2328, 0.5
      %v2457 = vmul.f32 %v2329, 0.5
      %v2458 = vmul.f32 %v2330, 0.5
      %v2459 = vmul.f32 %v2331, 0.5
      %v2460 = vmul.f32 %v2332, 0.5
      %v2461 = vmul.f32 %v2333, 0.5
      %v2462 = vmul.f32 %v2334, 0.5
      %v2463 = vmul.f32 %v2335, 0.5
      %v2464 = vmul.f32 %v2336, 0.5
      %v2465 = vmul.f32 %v2337, 0.5
      %v2466 = vmul.f32 %v2338, 0.5
      %v2467 = vmul.f32 %v2339, 0.5
      %v2468 = vmul.f32 %v2340, 0.5
      %v2469 = vmul.f32 %v2341, 0.5
      %v2470 = vmul.f32 %v2342, 0.5
      %v2471 = vmul.f32 %v2343, 0.5
      %v2472 = vmul.f32 %v2344, 0.5
      %v2473 = vmul.f32 %v2345, 0.5
      %v2474 = vmul.f32 %v2346, 0.5
      %v2475 = vmul.f32 %v2347, 0.5
      %v2476 = vmul.f32 %v2348, 0.5
      %v2477 = vmul.f32 %v2349, 0.5
      %v2478 = vmul.f32 %v2350, 0.5
      %v2479 = vmul.f32 %v2351, 0.5
      %v2480 = vmul.f32 %v2352, 0.5
      %v2481 = vmul.f32 %v2353, 0.5
      %v2482 = vmul.f32 %v2354, 0.5
      %v2483 = vmul.f32 %v2355, 0.5
      %v2484 = vmul.f32 %v2356, 0.5
      %v2485 = vmul.f32 %v2357, 0.5
      %v2486 = vmul.f32 %v2358, 0.5
      %v2487 = vmul.f32 %v2359, 0.5
      %v2488 = vmul.f32 %v2360, 0.5
      %v2489 = vmul.f32 %v2361, 0.5
      %v2490 = vmul.f32 %v2362, 0.5
      %v2491 = vmul.f32 %v2363, 0.5
      %v2492 = vmul.f32 %v2364, 0.5
      %v2493 = vmul.f32 %v2365, 0.5
      %v2494 = vmul.f32 %v2366, 0.5
      %v2495 = vmul.f32 %v2367, 0.5
      %v2496 = vmul.f32 %v2368, 0.5
      %v2497 = vmul.f32 %v2369, 0.5
      %v2498 = vmul.f32 %v2370, 0.5
      %v2499 = vmul.f32 %v2371, 0.5
      %v2500 = vmul.f32 %v2372, 0.5
      %v2501 = vmul.f32 %v2373, 0.5
      %v2502 = vmul.f32 %v2374, 0.5
      %v2503 = vmul.f32 %v2375, 0.5
      %v2504 = vmul.f32 %v2376, 0.5
      %v2505 = vmul.f32 %v2377, 0.5
      %v2506 = vmul.f32 %v2378, 0.5
      %v2507 = vmul.f32 %v2379, 0.5
      %v2508 = vadd.f32 %v2380, 0.5
      %v2509 = vadd.f32 %v2381, 0.5
      %v2510 = vadd.f32 %v2382, 0.5
      %v2511 = vadd.f32 %v2383, 0.5
      %v2512 = vadd.f32 %v2384, 0.5
      %v2513 = vadd.f32 %v2385, 0.5
      %v2514 = vadd.f32 %v2386, 0.5
      %v2515 = vadd.f32 %v2387, 0.5
      %v2516 = vadd.f32 %v2388, 0.5
      %v2517 = vadd.f32 %v2389, 0.5
      %v2518 = vadd.f32 %v2390, 0.5
      %v2519 = vadd.f32 %v2391, 0.5
      %v2520 = vadd.f32 %v2392, 0.5
      %v2521 = vadd.f32 %v2393, 0.5
      %v2522 = vadd.f32 %v2394, 0.5
      %v2523 = vadd.f32 %v2395, 0.5
      %v2524 = vadd.f32 %v2396, 0.5
      %v2525 = vadd.f32 %v2397, 0.5
      %v2526 = vadd.f32 %v2398, 0.5
      %v2527 = vadd.f32 %v2399, 0.5
      %v2528 = vadd.f32 %v2400, 0.5
      %v2529 = vadd.f32 %v2401, 0.5
      %v2530 = vadd.f32 %v2402, 0.5
      %v2531 = vadd.f32 %v2403, 0.5
      %v2532 = vadd.f32 %v2404, 0.5
      %v2533 = vadd.f32 %v2405, 0.5
      %v2534 = vadd.f32 %v2406, 0.5
      %v2535 = vadd.f32 %v2407, 0.5
      %v2536 = vadd.f32 %v2408, 0.5
      %v2537 = vadd.f32 %v2409, 0.5
      %v2538 = vadd.f32 %v2410, 0.5
      %v2539 = vadd.f32 %v2411, 0.5
      %v2540 = vadd.f32 %v2412, 0.5
      %v2541 = vadd.f32 %v2413, 0.5
      %v2542 = vadd.f32 %v2414, 0.5
      %v2543 = vadd.f32 %v2415, 0.5
      %v2544 = vadd.f32 %v2416, 0.5
      %v2545 = vadd.f32 %v2417, 0.5
      %v2546 = vadd.f32 %v2418, 0.5
      %v2547 = vadd.f32 %v2419, 0.5
      %v2548 = vadd.f32 %v2420, 0.5
      %v2549 = vadd.f32 %v2421, 0.5
      %v2550 = vadd.f32 %v2422, 0.5
      %v2551 = vadd.f32 %v2423, 0.5
      %v2552 = vadd.f32 %v2424, 0.5
      %v2553 = vadd.f32 %v2425, 0.5
      %v2554 = vadd.f32 %v2426, 0.5
      %v2555 = vadd.f32 %v2427, 0.5
      %v2556 = vadd.f32 %v2428, 0.5
      %v2557 = vadd.f32 %v2429, 0.5
      %v2558 = vadd.f32 %v2430, 0.5
      %v2559 = vadd.f32 %v2431, 0.5
      %v2560 = vadd.f32 %v2432, 0.5
      %v2561 = vadd.f32 %v2433, 0.5
      %v2562 = vadd.f32 %v2434, 0.5
      %v2563 = vadd.f32 %v2435, 0.5
      %v2564 = vadd.f32 %v2436, 0.5
      %v2565 = vadd.f32 %v2437, 0.5
      %v2566 = vadd.f32 %v2438, 0.5
      %v2567 = vadd.f32 %v2439, 0.5
      %v2568 = vadd.f32 %v2440, 0.5
      %v2569 = vadd.f32 %v2441, 0.5
      %v2570 = vadd.f32 %v2442, 0.5
      %v2571 = vadd.f32 %v2443, 0.5
      %v2572 = vadd.f32 %v2444, 0.5
      %v2573 = vadd.f32 %v2445, 0.5
      %v2574 = vadd.f32 %v2446, 0.5
      %v2575 = vadd.f32 %v2447, 0.5
      %v2576 = vadd.f32 %v2448, 0.5
      %v2577 = vadd.f32 %v2449, 0.5
      %v2578 = vadd.f32 %v2450, 0.5
      %v2579 = vadd.f32 %v2451, 0.5
      %v2580 = vadd.f32 %v2452, 0.5
      %v2581 = vadd.f32 %v2453, 0.5
      %v2582 = vadd.f32 %v2454, 0.5
      %v2583 = vadd.f32 %v2455, 0.5
      %v2584 = vadd.f32 %v2456, 0.5
      %v2585 = vadd.f32 %v2457, 0.5
      %v2586 = vadd.f32 %v2458, 0.5
      %v2587 = vadd.f32 %v2459, 0.5
      %v2588 = vadd.f32 %v2460, 0.5
      %v2589 = vadd.f32 %v2461, 0.5
      %v2590 = vadd.f32 %v2462, 0.5
      %v2591 = vadd.f32 %v2463, 0.5
      %v2592 = vadd.f32 %v2464, 0.5
      %v2593 = vadd.f32 %v2465, 0.5
      %v2594 = vadd.f32 %v2466, 0.5
      %v2595 = vadd.f32 %v2467, 0.5
      %v2596 = vadd.f32 %v2468, 0.5
      %v2597 = vadd.f32 %v2469, 0.5
      %v2598 = vadd.f32 %v2470, 0.5
      %v2599 = vadd.f32 %v2471, 0.5
      %v2600 = vadd.f32 %v2472, 0.5
      %v2601 = vadd.f32 %v2473, 0.5
      %v2602 = vadd.f32 %v2474, 0.5
      %v2603 = vadd.f32 %v2475, 0.5
      %v2604 = vadd.f32 %v2476, 0.5
      %v2605 = vadd.f32 %v2477, 0.5
      %v2606 = vadd.f32 %v2478, 0.5
      %v2607 = vadd.f32 %v2479, 0.5
      %v2608 = vadd.f32 %v2480, 0.5
      %v2609 = vadd.f32 %v2481, 0.5
      %v2610 = vadd.f32 %v2482, 0.5
      %v2611 = vadd.f32 %v2483, 0.5
      %v2612 = vadd.f32 %v2484, 0.5
      %v2613 = vadd.f32 %v2485, 0.5
      %v2614 = vadd.f32 %v2486, 0.5
      %v2615 = vadd.f32 %v2487, 0.5
      %v2616 = vadd.f32 %v2488, 0.5
      %v2617 = vadd.f32 %v2489, 0.5
      %v2618 = vadd.f32 %v2490, 0.5
      %v2619 = vadd.f32 %v2491, 0.5
      %v2620 = vadd.f32 %v2492, 0.5
      %v2621 = vadd.f32 %v2493, 0.5
      %v2622 = vadd.f32 %v2494, 0.5
      %v2623 = vadd.f32 %v2495, 0.5
      %v2624 = vadd.f32 %v2496, 0.5
      %v2625 = vadd.f32 %v2497, 0.5
      %v2626 = vadd.f32 %v2498, 0.5
      %v2627 = vadd.f32 %v2499, 0.5
      %v2628 = vadd.f32 %v2500, 0.5
      %v2629 = vadd.f32 %v2501, 0.5
      %v2630 = vadd.f32 %v2502, 0.5
      %v2631 = vadd.f32 %v2503, 0.5
      %v2632 = vadd.f32 %v2504, 0.5
      %v2633 = vadd.f32 %v2505, 0.5
      %v2634 = vadd.f32 %v2506, 0.5
      %v2635 = vadd.f32 %v2507, 0.5
      %v2636 = vperm.slane %v426, 0
      %v2637 = vmul.f32 %v2508, %v2636
      %v2638 = vmul.f32 %v2509, %v2636
      %v2639 = vmul.f32 %v2510, %v2636
      %v2640 = vmul.f32 %v2511, %v2636
      %v2641 = vmul.f32 %v2512, %v2636
      %v2642 = vmul.f32 %v2513, %v2636
      %v2643 = vmul.f32 %v2514, %v2636
      %v2644 = vmul.f32 %v2515, %v2636
      %v2645 = vmul.f32 %v2516, %v2636
      %v2646 = vmul.f32 %v2517, %v2636
      %v2647 = vmul.f32 %v2518, %v2636
      %v2648 = vmul.f32 %v2519, %v2636
      %v2649 = vmul.f32 %v2520, %v2636
      %v2650 = vmul.f32 %v2521, %v2636
      %v2651 = vmul.f32 %v2522, %v2636
      %v2652 = vmul.f32 %v2523, %v2636
      %v2653 = vmul.f32 %v2524, %v2636
      %v2654 = vmul.f32 %v2525, %v2636
      %v2655 = vmul.f32 %v2526, %v2636
      %v2656 = vmul.f32 %v2527, %v2636
      %v2657 = vmul.f32 %v2528, %v2636
      %v2658 = vmul.f32 %v2529, %v2636
      %v2659 = vmul.f32 %v2530, %v2636
      %v2660 = vmul.f32 %v2531, %v2636
      %v2661 = vmul.f32 %v2532, %v2636
      %v2662 = vmul.f32 %v2533, %v2636
      %v2663 = vmul.f32 %v2534, %v2636
      %v2664 = vmul.f32 %v2535, %v2636
      %v2665 = vmul.f32 %v2536, %v2636
      %v2666 = vmul.f32 %v2537, %v2636
      %v2667 = vmul.f32 %v2538, %v2636
      %v2668 = vmul.f32 %v2539, %v2636
      %v2669 = vmul.f32 %v2540, %v2636
      %v2670 = vmul.f32 %v2541, %v2636
      %v2671 = vmul.f32 %v2542, %v2636
      %v2672 = vmul.f32 %v2543, %v2636
      %v2673 = vmul.f32 %v2544, %v2636
      %v2674 = vmul.f32 %v2545, %v2636
      %v2675 = vmul.f32 %v2546, %v2636
      %v2676 = vmul.f32 %v2547, %v2636
      %v2677 = vmul.f32 %v2548, %v2636
      %v2678 = vmul.f32 %v2549, %v2636
      %v2679 = vmul.f32 %v2550, %v2636
      %v2680 = vmul.f32 %v2551, %v2636
      %v2681 = vmul.f32 %v2552, %v2636
      %v2682 = vmul.f32 %v2553, %v2636
      %v2683 = vmul.f32 %v2554, %v2636
      %v2684 = vmul.f32 %v2555, %v2636
      %v2685 = vmul.f32 %v2556, %v2636
      %v2686 = vmul.f32 %v2557, %v2636
      %v2687 = vmul.f32 %v2558, %v2636
      %v2688 = vmul.f32 %v2559, %v2636
      %v2689 = vmul.f32 %v2560, %v2636
      %v2690 = vmul.f32 %v2561, %v2636
      %v2691 = vmul.f32 %v2562, %v2636
      %v2692 = vmul.f32 %v2563, %v2636
      %v2693 = vmul.f32 %v2564, %v2636
      %v2694 = vmul.f32 %v2565, %v2636
      %v2695 = vmul.f32 %v2566, %v2636
      %v2696 = vmul.f32 %v2567, %v2636
      %v2697 = vmul.f32 %v2568, %v2636
      %v2698 = vmul.f32 %v2569, %v2636
      %v2699 = vmul.f32 %v2570, %v2636
      %v2700 = vmul.f32 %v2571, %v2636
      %v2701 = vmul.f32 %v2572, %v2636
      %v2702 = vmul.f32 %v2573, %v2636
      %v2703 = vmul.f32 %v2574, %v2636
      %v2704 = vmul.f32 %v2575, %v2636
      %v2705 = vmul.f32 %v2576, %v2636
      %v2706 = vmul.f32 %v2577, %v2636
      %v2707 = vmul.f32 %v2578, %v2636
      %v2708 = vmul.f32 %v2579, %v2636
      %v2709 = vmul.f32 %v2580, %v2636
      %v2710 = vmul.f32 %v2581, %v2636
      %v2711 = vmul.f32 %v2582, %v2636
      %v2712 = vmul.f32 %v2583, %v2636
      %v2713 = vmul.f32 %v2584, %v2636
      %v2714 = vmul.f32 %v2585, %v2636
      %v2715 = vmul.f32 %v2586, %v2636
      %v2716 = vmul.f32 %v2587, %v2636
      %v2717 = vmul.f32 %v2588, %v2636
      %v2718 = vmul.f32 %v2589, %v2636
      %v2719 = vmul.f32 %v2590, %v2636
      %v2720 = vmul.f32 %v2591, %v2636
      %v2721 = vmul.f32 %v2592, %v2636
      %v2722 = vmul.f32 %v2593, %v2636
      %v2723 = vmul.f32 %v2594, %v2636
      %v2724 = vmul.f32 %v2595, %v2636
      %v2725 = vmul.f32 %v2596, %v2636
      %v2726 = vmul.f32 %v2597, %v2636
      %v2727 = vmul.f32 %v2598, %v2636
      %v2728 = vmul.f32 %v2599, %v2636
      %v2729 = vmul.f32 %v2600, %v2636
      %v2730 = vmul.f32 %v2601, %v2636
      %v2731 = vmul.f32 %v2602, %v2636
      %v2732 = vmul.f32 %v2603, %v2636
      %v2733 = vmul.f32 %v2604, %v2636
      %v2734 = vmul.f32 %v2605, %v2636
      %v2735 = vmul.f32 %v2606, %v2636
      %v2736 = vmul.f32 %v2607, %v2636
      %v2737 = vmul.f32 %v2608, %v2636
      %v2738 = vmul.f32 %v2609, %v2636
      %v2739 = vmul.f32 %v2610, %v2636
      %v2740 = vmul.f32 %v2611, %v2636
      %v2741 = vmul.f32 %v2612, %v2636
      %v2742 = vmul.f32 %v2613, %v2636
      %v2743 = vmul.f32 %v2614, %v2636
      %v2744 = vmul.f32 %v2615, %v2636
      %v2745 = vmul.f32 %v2616, %v2636
      %v2746 = vmul.f32 %v2617, %v2636
      %v2747 = vmul.f32 %v2618, %v2636
      %v2748 = vmul.f32 %v2619, %v2636
      %v2749 = vmul.f32 %v2620, %v2636
      %v2750 = vmul.f32 %v2621, %v2636
      %v2751 = vmul.f32 %v2622, %v2636
      %v2752 = vmul.f32 %v2623, %v2636
      %v2753 = vmul.f32 %v2624, %v2636
      %v2754 = vmul.f32 %v2625, %v2636
      %v2755 = vmul.f32 %v2626, %v2636
      %v2756 = vmul.f32 %v2627, %v2636
      %v2757 = vmul.f32 %v2628, %v2636
      %v2758 = vmul.f32 %v2629, %v2636
      %v2759 = vmul.f32 %v2630, %v2636
      %v2760 = vmul.f32 %v2631, %v2636
      %v2761 = vmul.f32 %v2632, %v2636
      %v2762 = vmul.f32 %v2633, %v2636
      %v2763 = vmul.f32 %v2634, %v2636
      %v2764 = vmul.f32 %v2635, %v2636
      %v2765 = vsel %vm644, %v2637, 0.0
      %2766 = vadd.xlane.f32.xlu0 %v2765
      %v2767 = vpop.xlane.xlu0 %2766
      %v2768 = vsel %vm644, %v2638, 0.0
      %2769 = vadd.xlane.f32.xlu0 %v2768
      %v2770 = vpop.xlane.xlu0 %2769
      %v2771 = vsel %vm644, %v2639, 0.0
      %2772 = vadd.xlane.f32.xlu0 %v2771
      %v2773 = vpop.xlane.xlu0 %2772
      %v2774 = vsel %vm644, %v2640, 0.0
      %2775 = vadd.xlane.f32.xlu0 %v2774
      %v2776 = vpop.xlane.xlu0 %2775
      %v2777 = vsel %vm644, %v2641, 0.0
      %2778 = vadd.xlane.f32.xlu0 %v2777
      %v2779 = vpop.xlane.xlu0 %2778
      %v2780 = vsel %vm644, %v2642, 0.0
      %2781 = vadd.xlane.f32.xlu0 %v2780
      %v2782 = vpop.xlane.xlu0 %2781
      %v2783 = vsel %vm644, %v2643, 0.0
      %2784 = vadd.xlane.f32.xlu0 %v2783
      %v2785 = vpop.xlane.xlu0 %2784
      %v2786 = vsel %vm644, %v2644, 0.0
      %2787 = vadd.xlane.f32.xlu0 %v2786
      %v2788 = vpop.xlane.xlu0 %2787
      %v2789 = vsel %vm644, %v2645, 0.0
      %2790 = vadd.xlane.f32.xlu0 %v2789
      %v2791 = vpop.xlane.xlu0 %2790
      %v2792 = vsel %vm644, %v2646, 0.0
      %2793 = vadd.xlane.f32.xlu0 %v2792
      %v2794 = vpop.xlane.xlu0 %2793
      %v2795 = vsel %vm644, %v2647, 0.0
      %2796 = vadd.xlane.f32.xlu0 %v2795
      %v2797 = vpop.xlane.xlu0 %2796
      %v2798 = vsel %vm644, %v2648, 0.0
      %2799 = vadd.xlane.f32.xlu0 %v2798
      %v2800 = vpop.xlane.xlu0 %2799
      %v2801 = vsel %vm644, %v2649, 0.0
      %2802 = vadd.xlane.f32.xlu0 %v2801
      %v2803 = vpop.xlane.xlu0 %2802
      %v2804 = vsel %vm644, %v2650, 0.0
      %2805 = vadd.xlane.f32.xlu0 %v2804
      %v2806 = vpop.xlane.xlu0 %2805
      %v2807 = vsel %vm644, %v2651, 0.0
      %2808 = vadd.xlane.f32.xlu0 %v2807
      %v2809 = vpop.xlane.xlu0 %2808
      %v2810 = vsel %vm644, %v2652, 0.0
      %2811 = vadd.xlane.f32.xlu0 %v2810
      %v2812 = vpop.xlane.xlu0 %2811
      %v2813 = vsel %vm644, %v2653, 0.0
      %2814 = vadd.xlane.f32.xlu0 %v2813
      %v2815 = vpop.xlane.xlu0 %2814
      %v2816 = vsel %vm644, %v2654, 0.0
      %2817 = vadd.xlane.f32.xlu0 %v2816
      %v2818 = vpop.xlane.xlu0 %2817
      %v2819 = vsel %vm644, %v2655, 0.0
      %2820 = vadd.xlane.f32.xlu0 %v2819
      %v2821 = vpop.xlane.xlu0 %2820
      %v2822 = vsel %vm644, %v2656, 0.0
      %2823 = vadd.xlane.f32.xlu0 %v2822
      %v2824 = vpop.xlane.xlu0 %2823
      %v2825 = vsel %vm644, %v2657, 0.0
      %2826 = vadd.xlane.f32.xlu0 %v2825
      %v2827 = vpop.xlane.xlu0 %2826
      %v2828 = vsel %vm644, %v2658, 0.0
      %2829 = vadd.xlane.f32.xlu0 %v2828
      %v2830 = vpop.xlane.xlu0 %2829
      %v2831 = vsel %vm644, %v2659, 0.0
      %2832 = vadd.xlane.f32.xlu0 %v2831
      %v2833 = vpop.xlane.xlu0 %2832
      %v2834 = vsel %vm644, %v2660, 0.0
      %2835 = vadd.xlane.f32.xlu0 %v2834
      %v2836 = vpop.xlane.xlu0 %2835
      %v2837 = vsel %vm644, %v2661, 0.0
      %2838 = vadd.xlane.f32.xlu0 %v2837
      %v2839 = vpop.xlane.xlu0 %2838
      %v2840 = vsel %vm644, %v2662, 0.0
      %2841 = vadd.xlane.f32.xlu0 %v2840
      %v2842 = vpop.xlane.xlu0 %2841
      %v2843 = vsel %vm644, %v2663, 0.0
      %2844 = vadd.xlane.f32.xlu0 %v2843
      %v2845 = vpop.xlane.xlu0 %2844
      %v2846 = vsel %vm644, %v2664, 0.0
      %2847 = vadd.xlane.f32.xlu0 %v2846
      %v2848 = vpop.xlane.xlu0 %2847
      %v2849 = vsel %vm644, %v2665, 0.0
      %2850 = vadd.xlane.f32.xlu0 %v2849
      %v2851 = vpop.xlane.xlu0 %2850
      %v2852 = vsel %vm644, %v2666, 0.0
      %2853 = vadd.xlane.f32.xlu0 %v2852
      %v2854 = vpop.xlane.xlu0 %2853
      %v2855 = vsel %vm644, %v2667, 0.0
      %2856 = vadd.xlane.f32.xlu0 %v2855
      %v2857 = vpop.xlane.xlu0 %2856
      %v2858 = vsel %vm644, %v2668, 0.0
      %2859 = vadd.xlane.f32.xlu0 %v2858
      %v2860 = vpop.xlane.xlu0 %2859
      %v2861 = vsel %vm644, %v2669, 0.0
      %2862 = vadd.xlane.f32.xlu0 %v2861
      %v2863 = vpop.xlane.xlu0 %2862
      %v2864 = vsel %vm644, %v2670, 0.0
      %2865 = vadd.xlane.f32.xlu0 %v2864
      %v2866 = vpop.xlane.xlu0 %2865
      %v2867 = vsel %vm644, %v2671, 0.0
      %2868 = vadd.xlane.f32.xlu0 %v2867
      %v2869 = vpop.xlane.xlu0 %2868
      %v2870 = vsel %vm644, %v2672, 0.0
      %2871 = vadd.xlane.f32.xlu0 %v2870
      %v2872 = vpop.xlane.xlu0 %2871
      %v2873 = vsel %vm644, %v2673, 0.0
      %2874 = vadd.xlane.f32.xlu0 %v2873
      %v2875 = vpop.xlane.xlu0 %2874
      %v2876 = vsel %vm644, %v2674, 0.0
      %2877 = vadd.xlane.f32.xlu0 %v2876
      %v2878 = vpop.xlane.xlu0 %2877
      %v2879 = vsel %vm644, %v2675, 0.0
      %2880 = vadd.xlane.f32.xlu0 %v2879
      %v2881 = vpop.xlane.xlu0 %2880
      %v2882 = vsel %vm644, %v2676, 0.0
      %2883 = vadd.xlane.f32.xlu0 %v2882
      %v2884 = vpop.xlane.xlu0 %2883
      %v2885 = vsel %vm644, %v2677, 0.0
      %2886 = vadd.xlane.f32.xlu0 %v2885
      %v2887 = vpop.xlane.xlu0 %2886
      %v2888 = vsel %vm644, %v2678, 0.0
      %2889 = vadd.xlane.f32.xlu0 %v2888
      %v2890 = vpop.xlane.xlu0 %2889
      %v2891 = vsel %vm644, %v2679, 0.0
      %2892 = vadd.xlane.f32.xlu0 %v2891
      %v2893 = vpop.xlane.xlu0 %2892
      %v2894 = vsel %vm644, %v2680, 0.0
      %2895 = vadd.xlane.f32.xlu0 %v2894
      %v2896 = vpop.xlane.xlu0 %2895
      %v2897 = vsel %vm644, %v2681, 0.0
      %2898 = vadd.xlane.f32.xlu0 %v2897
      %v2899 = vpop.xlane.xlu0 %2898
      %v2900 = vsel %vm644, %v2682, 0.0
      %2901 = vadd.xlane.f32.xlu0 %v2900
      %v2902 = vpop.xlane.xlu0 %2901
      %v2903 = vsel %vm644, %v2683, 0.0
      %2904 = vadd.xlane.f32.xlu0 %v2903
      %v2905 = vpop.xlane.xlu0 %2904
      %v2906 = vsel %vm644, %v2684, 0.0
      %2907 = vadd.xlane.f32.xlu0 %v2906
      %v2908 = vpop.xlane.xlu0 %2907
      %v2909 = vsel %vm644, %v2685, 0.0
      %2910 = vadd.xlane.f32.xlu0 %v2909
      %v2911 = vpop.xlane.xlu0 %2910
      %v2912 = vsel %vm644, %v2686, 0.0
      %2913 = vadd.xlane.f32.xlu0 %v2912
      %v2914 = vpop.xlane.xlu0 %2913
      %v2915 = vsel %vm644, %v2687, 0.0
      %2916 = vadd.xlane.f32.xlu0 %v2915
      %v2917 = vpop.xlane.xlu0 %2916
      %v2918 = vsel %vm644, %v2688, 0.0
      %2919 = vadd.xlane.f32.xlu0 %v2918
      %v2920 = vpop.xlane.xlu0 %2919
      %v2921 = vsel %vm644, %v2689, 0.0
      %2922 = vadd.xlane.f32.xlu0 %v2921
      %v2923 = vpop.xlane.xlu0 %2922
      %v2924 = vsel %vm644, %v2690, 0.0
      %2925 = vadd.xlane.f32.xlu0 %v2924
      %v2926 = vpop.xlane.xlu0 %2925
      %v2927 = vsel %vm644, %v2691, 0.0
      %2928 = vadd.xlane.f32.xlu0 %v2927
      %v2929 = vpop.xlane.xlu0 %2928
      %v2930 = vsel %vm644, %v2692, 0.0
      %2931 = vadd.xlane.f32.xlu0 %v2930
      %v2932 = vpop.xlane.xlu0 %2931
      %v2933 = vsel %vm644, %v2693, 0.0
      %2934 = vadd.xlane.f32.xlu0 %v2933
      %v2935 = vpop.xlane.xlu0 %2934
      %v2936 = vsel %vm644, %v2694, 0.0
      %2937 = vadd.xlane.f32.xlu0 %v2936
      %v2938 = vpop.xlane.xlu0 %2937
      %v2939 = vsel %vm644, %v2695, 0.0
      %2940 = vadd.xlane.f32.xlu0 %v2939
      %v2941 = vpop.xlane.xlu0 %2940
      %v2942 = vsel %vm644, %v2696, 0.0
      %2943 = vadd.xlane.f32.xlu0 %v2942
      %v2944 = vpop.xlane.xlu0 %2943
      %v2945 = vsel %vm644, %v2697, 0.0
      %2946 = vadd.xlane.f32.xlu0 %v2945
      %v2947 = vpop.xlane.xlu0 %2946
      %v2948 = vsel %vm644, %v2698, 0.0
      %2949 = vadd.xlane.f32.xlu0 %v2948
      %v2950 = vpop.xlane.xlu0 %2949
      %v2951 = vsel %vm644, %v2699, 0.0
      %2952 = vadd.xlane.f32.xlu0 %v2951
      %v2953 = vpop.xlane.xlu0 %2952
      %v2954 = vsel %vm644, %v2700, 0.0
      %2955 = vadd.xlane.f32.xlu0 %v2954
      %v2956 = vpop.xlane.xlu0 %2955
      %v2957 = vsel %vm644, %v2701, 0.0
      %2958 = vadd.xlane.f32.xlu0 %v2957
      %v2959 = vpop.xlane.xlu0 %2958
      %v2960 = vsel %vm644, %v2702, 0.0
      %2961 = vadd.xlane.f32.xlu0 %v2960
      %v2962 = vpop.xlane.xlu0 %2961
      %v2963 = vsel %vm644, %v2703, 0.0
      %2964 = vadd.xlane.f32.xlu0 %v2963
      %v2965 = vpop.xlane.xlu0 %2964
      %v2966 = vsel %vm644, %v2704, 0.0
      %2967 = vadd.xlane.f32.xlu0 %v2966
      %v2968 = vpop.xlane.xlu0 %2967
      %v2969 = vsel %vm644, %v2705, 0.0
      %2970 = vadd.xlane.f32.xlu0 %v2969
      %v2971 = vpop.xlane.xlu0 %2970
      %v2972 = vsel %vm644, %v2706, 0.0
      %2973 = vadd.xlane.f32.xlu0 %v2972
      %v2974 = vpop.xlane.xlu0 %2973
      %v2975 = vsel %vm644, %v2707, 0.0
      %2976 = vadd.xlane.f32.xlu0 %v2975
      %v2977 = vpop.xlane.xlu0 %2976
      %v2978 = vsel %vm644, %v2708, 0.0
      %2979 = vadd.xlane.f32.xlu0 %v2978
      %v2980 = vpop.xlane.xlu0 %2979
      %v2981 = vsel %vm644, %v2709, 0.0
      %2982 = vadd.xlane.f32.xlu0 %v2981
      %v2983 = vpop.xlane.xlu0 %2982
      %v2984 = vsel %vm644, %v2710, 0.0
      %2985 = vadd.xlane.f32.xlu0 %v2984
      %v2986 = vpop.xlane.xlu0 %2985
      %v2987 = vsel %vm644, %v2711, 0.0
      %2988 = vadd.xlane.f32.xlu0 %v2987
      %v2989 = vpop.xlane.xlu0 %2988
      %v2990 = vsel %vm644, %v2712, 0.0
      %2991 = vadd.xlane.f32.xlu0 %v2990
      %v2992 = vpop.xlane.xlu0 %2991
      %v2993 = vsel %vm644, %v2713, 0.0
      %2994 = vadd.xlane.f32.xlu0 %v2993
      %v2995 = vpop.xlane.xlu0 %2994
      %v2996 = vsel %vm644, %v2714, 0.0
      %2997 = vadd.xlane.f32.xlu0 %v2996
      %v2998 = vpop.xlane.xlu0 %2997
      %v2999 = vsel %vm644, %v2715, 0.0
      %3000 = vadd.xlane.f32.xlu0 %v2999
      %v3001 = vpop.xlane.xlu0 %3000
      %v3002 = vsel %vm644, %v2716, 0.0
      %3003 = vadd.xlane.f32.xlu0 %v3002
      %v3004 = vpop.xlane.xlu0 %3003
      %v3005 = vsel %vm644, %v2717, 0.0
      %3006 = vadd.xlane.f32.xlu0 %v3005
      %v3007 = vpop.xlane.xlu0 %3006
      %v3008 = vsel %vm644, %v2718, 0.0
      %3009 = vadd.xlane.f32.xlu0 %v3008
      %v3010 = vpop.xlane.xlu0 %3009
      %v3011 = vsel %vm644, %v2719, 0.0
      %3012 = vadd.xlane.f32.xlu0 %v3011
      %v3013 = vpop.xlane.xlu0 %3012
      %v3014 = vsel %vm644, %v2720, 0.0
      %3015 = vadd.xlane.f32.xlu0 %v3014
      %v3016 = vpop.xlane.xlu0 %3015
      %v3017 = vsel %vm644, %v2721, 0.0
      %3018 = vadd.xlane.f32.xlu0 %v3017
      %v3019 = vpop.xlane.xlu0 %3018
      %v3020 = vsel %vm644, %v2722, 0.0
      %3021 = vadd.xlane.f32.xlu0 %v3020
      %v3022 = vpop.xlane.xlu0 %3021
      %v3023 = vsel %vm644, %v2723, 0.0
      %3024 = vadd.xlane.f32.xlu0 %v3023
      %v3025 = vpop.xlane.xlu0 %3024
      %v3026 = vsel %vm644, %v2724, 0.0
      %3027 = vadd.xlane.f32.xlu0 %v3026
      %v3028 = vpop.xlane.xlu0 %3027
      %v3029 = vsel %vm644, %v2725, 0.0
      %3030 = vadd.xlane.f32.xlu0 %v3029
      %v3031 = vpop.xlane.xlu0 %3030
      %v3032 = vsel %vm644, %v2726, 0.0
      %3033 = vadd.xlane.f32.xlu0 %v3032
      %v3034 = vpop.xlane.xlu0 %3033
      %v3035 = vsel %vm644, %v2727, 0.0
      %3036 = vadd.xlane.f32.xlu0 %v3035
      %v3037 = vpop.xlane.xlu0 %3036
      %v3038 = vsel %vm644, %v2728, 0.0
      %3039 = vadd.xlane.f32.xlu0 %v3038
      %v3040 = vpop.xlane.xlu0 %3039
      %v3041 = vsel %vm644, %v2729, 0.0
      %3042 = vadd.xlane.f32.xlu0 %v3041
      %v3043 = vpop.xlane.xlu0 %3042
      %v3044 = vsel %vm644, %v2730, 0.0
      %3045 = vadd.xlane.f32.xlu0 %v3044
      %v3046 = vpop.xlane.xlu0 %3045
      %v3047 = vsel %vm644, %v2731, 0.0
      %3048 = vadd.xlane.f32.xlu0 %v3047
      %v3049 = vpop.xlane.xlu0 %3048
      %v3050 = vsel %vm644, %v2732, 0.0
      %3051 = vadd.xlane.f32.xlu0 %v3050
      %v3052 = vpop.xlane.xlu0 %3051
      %v3053 = vsel %vm644, %v2733, 0.0
      %3054 = vadd.xlane.f32.xlu0 %v3053
      %v3055 = vpop.xlane.xlu0 %3054
      %v3056 = vsel %vm644, %v2734, 0.0
      %3057 = vadd.xlane.f32.xlu0 %v3056
      %v3058 = vpop.xlane.xlu0 %3057
      %v3059 = vsel %vm644, %v2735, 0.0
      %3060 = vadd.xlane.f32.xlu0 %v3059
      %v3061 = vpop.xlane.xlu0 %3060
      %v3062 = vsel %vm644, %v2736, 0.0
      %3063 = vadd.xlane.f32.xlu0 %v3062
      %v3064 = vpop.xlane.xlu0 %3063
      %v3065 = vsel %vm644, %v2737, 0.0
      %3066 = vadd.xlane.f32.xlu0 %v3065
      %v3067 = vpop.xlane.xlu0 %3066
      %v3068 = vsel %vm644, %v2738, 0.0
      %3069 = vadd.xlane.f32.xlu0 %v3068
      %v3070 = vpop.xlane.xlu0 %3069
      %v3071 = vsel %vm644, %v2739, 0.0
      %3072 = vadd.xlane.f32.xlu0 %v3071
      %v3073 = vpop.xlane.xlu0 %3072
      %v3074 = vsel %vm644, %v2740, 0.0
      %3075 = vadd.xlane.f32.xlu0 %v3074
      %v3076 = vpop.xlane.xlu0 %3075
      %v3077 = vsel %vm644, %v2741, 0.0
      %3078 = vadd.xlane.f32.xlu0 %v3077
      %v3079 = vpop.xlane.xlu0 %3078
      %v3080 = vsel %vm644, %v2742, 0.0
      %3081 = vadd.xlane.f32.xlu0 %v3080
      %v3082 = vpop.xlane.xlu0 %3081
      %v3083 = vsel %vm644, %v2743, 0.0
      %3084 = vadd.xlane.f32.xlu0 %v3083
      %v3085 = vpop.xlane.xlu0 %3084
      %v3086 = vsel %vm644, %v2744, 0.0
      %3087 = vadd.xlane.f32.xlu0 %v3086
      %v3088 = vpop.xlane.xlu0 %3087
      %v3089 = vsel %vm644, %v2745, 0.0
      %3090 = vadd.xlane.f32.xlu0 %v3089
      %v3091 = vpop.xlane.xlu0 %3090
      %v3092 = vsel %vm644, %v2746, 0.0
      %3093 = vadd.xlane.f32.xlu0 %v3092
      %v3094 = vpop.xlane.xlu0 %3093
      %v3095 = vsel %vm644, %v2747, 0.0
      %3096 = vadd.xlane.f32.xlu0 %v3095
      %v3097 = vpop.xlane.xlu0 %3096
      %v3098 = vsel %vm644, %v2748, 0.0
      %3099 = vadd.xlane.f32.xlu0 %v3098
      %v3100 = vpop.xlane.xlu0 %3099
      %v3101 = vsel %vm644, %v2749, 0.0
      %3102 = vadd.xlane.f32.xlu0 %v3101
      %v3103 = vpop.xlane.xlu0 %3102
      %v3104 = vsel %vm644, %v2750, 0.0
      %3105 = vadd.xlane.f32.xlu0 %v3104
      %v3106 = vpop.xlane.xlu0 %3105
      %v3107 = vsel %vm644, %v2751, 0.0
      %3108 = vadd.xlane.f32.xlu0 %v3107
      %v3109 = vpop.xlane.xlu0 %3108
      %v3110 = vsel %vm644, %v2752, 0.0
      %3111 = vadd.xlane.f32.xlu0 %v3110
      %v3112 = vpop.xlane.xlu0 %3111
      %v3113 = vsel %vm644, %v2753, 0.0
      %3114 = vadd.xlane.f32.xlu0 %v3113
      %v3115 = vpop.xlane.xlu0 %3114
      %v3116 = vsel %vm644, %v2754, 0.0
      %3117 = vadd.xlane.f32.xlu0 %v3116
      %v3118 = vpop.xlane.xlu0 %3117
      %v3119 = vsel %vm644, %v2755, 0.0
      %3120 = vadd.xlane.f32.xlu0 %v3119
      %v3121 = vpop.xlane.xlu0 %3120
      %v3122 = vsel %vm644, %v2756, 0.0
      %3123 = vadd.xlane.f32.xlu0 %v3122
      %v3124 = vpop.xlane.xlu0 %3123
      %v3125 = vsel %vm644, %v2757, 0.0
      %3126 = vadd.xlane.f32.xlu0 %v3125
      %v3127 = vpop.xlane.xlu0 %3126
      %v3128 = vsel %vm644, %v2758, 0.0
      %3129 = vadd.xlane.f32.xlu0 %v3128
      %v3130 = vpop.xlane.xlu0 %3129
      %v3131 = vsel %vm644, %v2759, 0.0
      %3132 = vadd.xlane.f32.xlu0 %v3131
      %v3133 = vpop.xlane.xlu0 %3132
      %v3134 = vsel %vm644, %v2760, 0.0
      %3135 = vadd.xlane.f32.xlu0 %v3134
      %v3136 = vpop.xlane.xlu0 %3135
      %v3137 = vsel %vm644, %v2761, 0.0
      %3138 = vadd.xlane.f32.xlu0 %v3137
      %v3139 = vpop.xlane.xlu0 %3138
      %v3140 = vsel %vm644, %v2762, 0.0
      %3141 = vadd.xlane.f32.xlu0 %v3140
      %v3142 = vpop.xlane.xlu0 %3141
      %v3143 = vsel %vm644, %v2763, 0.0
      %3144 = vadd.xlane.f32.xlu0 %v3143
      %v3145 = vpop.xlane.xlu0 %3144
      %v3146 = vsel %vm644, %v2764, 0.0
      %3147 = vadd.xlane.f32.xlu0 %v3146
      %v3148 = vpop.xlane.xlu0 %3147
      %s3150 = vtos %v424
      %v3151 = vstv %s3150
      %v3153 = vadd.f32 %v2767, %v3151
      %v3154 = vadd.f32 %v2770, %v3151
      %v3155 = vadd.f32 %v2773, %v3151
      %v3156 = vadd.f32 %v2776, %v3151
      %v3157 = vadd.f32 %v2779, %v3151
      %v3158 = vadd.f32 %v2782, %v3151
      %v3159 = vadd.f32 %v2785, %v3151
      %v3160 = vadd.f32 %v2788, %v3151
      %v3161 = vadd.f32 %v2791, %v3151
      %v3162 = vadd.f32 %v2794, %v3151
      %v3163 = vadd.f32 %v2797, %v3151
      %v3164 = vadd.f32 %v2800, %v3151
      %v3165 = vadd.f32 %v2803, %v3151
      %v3166 = vadd.f32 %v2806, %v3151
      %v3167 = vadd.f32 %v2809, %v3151
      %v3168 = vadd.f32 %v2812, %v3151
      %v3169 = vadd.f32 %v2815, %v3151
      %v3170 = vadd.f32 %v2818, %v3151
      %v3171 = vadd.f32 %v2821, %v3151
      %v3172 = vadd.f32 %v2824, %v3151
      %v3173 = vadd.f32 %v2827, %v3151
      %v3174 = vadd.f32 %v2830, %v3151
      %v3175 = vadd.f32 %v2833, %v3151
      %v3176 = vadd.f32 %v2836, %v3151
      %v3177 = vadd.f32 %v2839, %v3151
      %v3178 = vadd.f32 %v2842, %v3151
      %v3179 = vadd.f32 %v2845, %v3151
      %v3180 = vadd.f32 %v2848, %v3151
      %v3181 = vadd.f32 %v2851, %v3151
      %v3182 = vadd.f32 %v2854, %v3151
      %v3183 = vadd.f32 %v2857, %v3151
      %v3184 = vadd.f32 %v2860, %v3151
      %v3185 = vadd.f32 %v2863, %v3151
      %v3186 = vadd.f32 %v2866, %v3151
      %v3187 = vadd.f32 %v2869, %v3151
      %v3188 = vadd.f32 %v2872, %v3151
      %v3189 = vadd.f32 %v2875, %v3151
      %v3190 = vadd.f32 %v2878, %v3151
      %v3191 = vadd.f32 %v2881, %v3151
      %v3192 = vadd.f32 %v2884, %v3151
      %v3193 = vadd.f32 %v2887, %v3151
      %v3194 = vadd.f32 %v2890, %v3151
      %v3195 = vadd.f32 %v2893, %v3151
      %v3196 = vadd.f32 %v2896, %v3151
      %v3197 = vadd.f32 %v2899, %v3151
      %v3198 = vadd.f32 %v2902, %v3151
      %v3199 = vadd.f32 %v2905, %v3151
      %v3200 = vadd.f32 %v2908, %v3151
      %v3201 = vadd.f32 %v2911, %v3151
      %v3202 = vadd.f32 %v2914, %v3151
      %v3203 = vadd.f32 %v2917, %v3151
      %v3204 = vadd.f32 %v2920, %v3151
      %v3205 = vadd.f32 %v2923, %v3151
      %v3206 = vadd.f32 %v2926, %v3151
      %v3207 = vadd.f32 %v2929, %v3151
      %v3208 = vadd.f32 %v2932, %v3151
      %v3209 = vadd.f32 %v2935, %v3151
      %v3210 = vadd.f32 %v2938, %v3151
      %v3211 = vadd.f32 %v2941, %v3151
      %v3212 = vadd.f32 %v2944, %v3151
      %v3213 = vadd.f32 %v2947, %v3151
      %v3214 = vadd.f32 %v2950, %v3151
      %v3215 = vadd.f32 %v2953, %v3151
      %v3216 = vadd.f32 %v2956, %v3151
      %v3217 = vadd.f32 %v2959, %v3151
      %v3218 = vadd.f32 %v2962, %v3151
      %v3219 = vadd.f32 %v2965, %v3151
      %v3220 = vadd.f32 %v2968, %v3151
      %v3221 = vadd.f32 %v2971, %v3151
      %v3222 = vadd.f32 %v2974, %v3151
      %v3223 = vadd.f32 %v2977, %v3151
      %v3224 = vadd.f32 %v2980, %v3151
      %v3225 = vadd.f32 %v2983, %v3151
      %v3226 = vadd.f32 %v2986, %v3151
      %v3227 = vadd.f32 %v2989, %v3151
      %v3228 = vadd.f32 %v2992, %v3151
      %v3229 = vadd.f32 %v2995, %v3151
      %v3230 = vadd.f32 %v2998, %v3151
      %v3231 = vadd.f32 %v3001, %v3151
      %v3232 = vadd.f32 %v3004, %v3151
      %v3233 = vadd.f32 %v3007, %v3151
      %v3234 = vadd.f32 %v3010, %v3151
      %v3235 = vadd.f32 %v3013, %v3151
      %v3236 = vadd.f32 %v3016, %v3151
      %v3237 = vadd.f32 %v3019, %v3151
      %v3238 = vadd.f32 %v3022, %v3151
      %v3239 = vadd.f32 %v3025, %v3151
      %v3240 = vadd.f32 %v3028, %v3151
      %v3241 = vadd.f32 %v3031, %v3151
      %v3242 = vadd.f32 %v3034, %v3151
      %v3243 = vadd.f32 %v3037, %v3151
      %v3244 = vadd.f32 %v3040, %v3151
      %v3245 = vadd.f32 %v3043, %v3151
      %v3246 = vadd.f32 %v3046, %v3151
      %v3247 = vadd.f32 %v3049, %v3151
      %v3248 = vadd.f32 %v3052, %v3151
      %v3249 = vadd.f32 %v3055, %v3151
      %v3250 = vadd.f32 %v3058, %v3151
      %v3251 = vadd.f32 %v3061, %v3151
      %v3252 = vadd.f32 %v3064, %v3151
      %v3253 = vadd.f32 %v3067, %v3151
      %v3254 = vadd.f32 %v3070, %v3151
      %v3255 = vadd.f32 %v3073, %v3151
      %v3256 = vadd.f32 %v3076, %v3151
      %v3257 = vadd.f32 %v3079, %v3151
      %v3258 = vadd.f32 %v3082, %v3151
      %v3259 = vadd.f32 %v3085, %v3151
      %v3260 = vadd.f32 %v3088, %v3151
      %v3261 = vadd.f32 %v3091, %v3151
      %v3262 = vadd.f32 %v3094, %v3151
      %v3263 = vadd.f32 %v3097, %v3151
      %v3264 = vadd.f32 %v3100, %v3151
      %v3265 = vadd.f32 %v3103, %v3151
      %v3266 = vadd.f32 %v3106, %v3151
      %v3267 = vadd.f32 %v3109, %v3151
      %v3268 = vadd.f32 %v3112, %v3151
      %v3269 = vadd.f32 %v3115, %v3151
      %v3270 = vadd.f32 %v3118, %v3151
      %v3271 = vadd.f32 %v3121, %v3151
      %v3272 = vadd.f32 %v3124, %v3151
      %v3273 = vadd.f32 %v3127, %v3151
      %v3274 = vadd.f32 %v3130, %v3151
      %v3275 = vadd.f32 %v3133, %v3151
      %v3276 = vadd.f32 %v3136, %v3151
      %v3277 = vadd.f32 %v3139, %v3151
      %v3278 = vadd.f32 %v3142, %v3151
      %v3279 = vadd.f32 %v3145, %v3151
      %v3280 = vadd.f32 %v3148, %v3151
      %v3281 = vmul.f32 %v3153, 0.5
      %v3282 = vmul.f32 %v3154, 0.5
      %v3283 = vmul.f32 %v3155, 0.5
      %v3284 = vmul.f32 %v3156, 0.5
      %v3285 = vmul.f32 %v3157, 0.5
      %v3286 = vmul.f32 %v3158, 0.5
      %v3287 = vmul.f32 %v3159, 0.5
      %v3288 = vmul.f32 %v3160, 0.5
      %v3289 = vmul.f32 %v3161, 0.5
      %v3290 = vmul.f32 %v3162, 0.5
      %v3291 = vmul.f32 %v3163, 0.5
      %v3292 = vmul.f32 %v3164, 0.5
      %v3293 = vmul.f32 %v3165, 0.5
      %v3294 = vmul.f32 %v3166, 0.5
      %v3295 = vmul.f32 %v3167, 0.5
      %v3296 = vmul.f32 %v3168, 0.5
      %v3297 = vmul.f32 %v3169, 0.5
      %v3298 = vmul.f32 %v3170, 0.5
      %v3299 = vmul.f32 %v3171, 0.5
      %v3300 = vmul.f32 %v3172, 0.5
      %v3301 = vmul.f32 %v3173, 0.5
      %v3302 = vmul.f32 %v3174, 0.5
      %v3303 = vmul.f32 %v3175, 0.5
      %v3304 = vmul.f32 %v3176, 0.5
      %v3305 = vmul.f32 %v3177, 0.5
      %v3306 = vmul.f32 %v3178, 0.5
      %v3307 = vmul.f32 %v3179, 0.5
      %v3308 = vmul.f32 %v3180, 0.5
      %v3309 = vmul.f32 %v3181, 0.5
      %v3310 = vmul.f32 %v3182, 0.5
      %v3311 = vmul.f32 %v3183, 0.5
      %v3312 = vmul.f32 %v3184, 0.5
      %v3313 = vmul.f32 %v3185, 0.5
      %v3314 = vmul.f32 %v3186, 0.5
      %v3315 = vmul.f32 %v3187, 0.5
      %v3316 = vmul.f32 %v3188, 0.5
      %v3317 = vmul.f32 %v3189, 0.5
      %v3318 = vmul.f32 %v3190, 0.5
      %v3319 = vmul.f32 %v3191, 0.5
      %v3320 = vmul.f32 %v3192, 0.5
      %v3321 = vmul.f32 %v3193, 0.5
      %v3322 = vmul.f32 %v3194, 0.5
      %v3323 = vmul.f32 %v3195, 0.5
      %v3324 = vmul.f32 %v3196, 0.5
      %v3325 = vmul.f32 %v3197, 0.5
      %v3326 = vmul.f32 %v3198, 0.5
      %v3327 = vmul.f32 %v3199, 0.5
      %v3328 = vmul.f32 %v3200, 0.5
      %v3329 = vmul.f32 %v3201, 0.5
      %v3330 = vmul.f32 %v3202, 0.5
      %v3331 = vmul.f32 %v3203, 0.5
      %v3332 = vmul.f32 %v3204, 0.5
      %v3333 = vmul.f32 %v3205, 0.5
      %v3334 = vmul.f32 %v3206, 0.5
      %v3335 = vmul.f32 %v3207, 0.5
      %v3336 = vmul.f32 %v3208, 0.5
      %v3337 = vmul.f32 %v3209, 0.5
      %v3338 = vmul.f32 %v3210, 0.5
      %v3339 = vmul.f32 %v3211, 0.5
      %v3340 = vmul.f32 %v3212, 0.5
      %v3341 = vmul.f32 %v3213, 0.5
      %v3342 = vmul.f32 %v3214, 0.5
      %v3343 = vmul.f32 %v3215, 0.5
      %v3344 = vmul.f32 %v3216, 0.5
      %v3345 = vmul.f32 %v3217, 0.5
      %v3346 = vmul.f32 %v3218, 0.5
      %v3347 = vmul.f32 %v3219, 0.5
      %v3348 = vmul.f32 %v3220, 0.5
      %v3349 = vmul.f32 %v3221, 0.5
      %v3350 = vmul.f32 %v3222, 0.5
      %v3351 = vmul.f32 %v3223, 0.5
      %v3352 = vmul.f32 %v3224, 0.5
      %v3353 = vmul.f32 %v3225, 0.5
      %v3354 = vmul.f32 %v3226, 0.5
      %v3355 = vmul.f32 %v3227, 0.5
      %v3356 = vmul.f32 %v3228, 0.5
      %v3357 = vmul.f32 %v3229, 0.5
      %v3358 = vmul.f32 %v3230, 0.5
      %v3359 = vmul.f32 %v3231, 0.5
      %v3360 = vmul.f32 %v3232, 0.5
      %v3361 = vmul.f32 %v3233, 0.5
      %v3362 = vmul.f32 %v3234, 0.5
      %v3363 = vmul.f32 %v3235, 0.5
      %v3364 = vmul.f32 %v3236, 0.5
      %v3365 = vmul.f32 %v3237, 0.5
      %v3366 = vmul.f32 %v3238, 0.5
      %v3367 = vmul.f32 %v3239, 0.5
      %v3368 = vmul.f32 %v3240, 0.5
      %v3369 = vmul.f32 %v3241, 0.5
      %v3370 = vmul.f32 %v3242, 0.5
      %v3371 = vmul.f32 %v3243, 0.5
      %v3372 = vmul.f32 %v3244, 0.5
      %v3373 = vmul.f32 %v3245, 0.5
      %v3374 = vmul.f32 %v3246, 0.5
      %v3375 = vmul.f32 %v3247, 0.5
      %v3376 = vmul.f32 %v3248, 0.5
      %v3377 = vmul.f32 %v3249, 0.5
      %v3378 = vmul.f32 %v3250, 0.5
      %v3379 = vmul.f32 %v3251, 0.5
      %v3380 = vmul.f32 %v3252, 0.5
      %v3381 = vmul.f32 %v3253, 0.5
      %v3382 = vmul.f32 %v3254, 0.5
      %v3383 = vmul.f32 %v3255, 0.5
      %v3384 = vmul.f32 %v3256, 0.5
      %v3385 = vmul.f32 %v3257, 0.5
      %v3386 = vmul.f32 %v3258, 0.5
      %v3387 = vmul.f32 %v3259, 0.5
      %v3388 = vmul.f32 %v3260, 0.5
      %v3389 = vmul.f32 %v3261, 0.5
      %v3390 = vmul.f32 %v3262, 0.5
      %v3391 = vmul.f32 %v3263, 0.5
      %v3392 = vmul.f32 %v3264, 0.5
      %v3393 = vmul.f32 %v3265, 0.5
      %v3394 = vmul.f32 %v3266, 0.5
      %v3395 = vmul.f32 %v3267, 0.5
      %v3396 = vmul.f32 %v3268, 0.5
      %v3397 = vmul.f32 %v3269, 0.5
      %v3398 = vmul.f32 %v3270, 0.5
      %v3399 = vmul.f32 %v3271, 0.5
      %v3400 = vmul.f32 %v3272, 0.5
      %v3401 = vmul.f32 %v3273, 0.5
      %v3402 = vmul.f32 %v3274, 0.5
      %v3403 = vmul.f32 %v3275, 0.5
      %v3404 = vmul.f32 %v3276, 0.5
      %v3405 = vmul.f32 %v3277, 0.5
      %v3406 = vmul.f32 %v3278, 0.5
      %v3407 = vmul.f32 %v3279, 0.5
      %v3408 = vmul.f32 %v3280, 0.5
      %v3409 = vtanh.pop %v3281
      %v3410 = vtanh.pop %v3282
      %v3411 = vtanh.pop %v3283
      %v3412 = vtanh.pop %v3284
      %v3413 = vtanh.pop %v3285
      %v3414 = vtanh.pop %v3286
      %v3415 = vtanh.pop %v3287
      %v3416 = vtanh.pop %v3288
      %v3417 = vtanh.pop %v3289
      %v3418 = vtanh.pop %v3290
      %v3419 = vtanh.pop %v3291
      %v3420 = vtanh.pop %v3292
      %v3421 = vtanh.pop %v3293
      %v3422 = vtanh.pop %v3294
      %v3423 = vtanh.pop %v3295
      %v3424 = vtanh.pop %v3296
      %v3425 = vtanh.pop %v3297
      %v3426 = vtanh.pop %v3298
      %v3427 = vtanh.pop %v3299
      %v3428 = vtanh.pop %v3300
      %v3429 = vtanh.pop %v3301
      %v3430 = vtanh.pop %v3302
      %v3431 = vtanh.pop %v3303
      %v3432 = vtanh.pop %v3304
      %v3433 = vtanh.pop %v3305
      %v3434 = vtanh.pop %v3306
      %v3435 = vtanh.pop %v3307
      %v3436 = vtanh.pop %v3308
      %v3437 = vtanh.pop %v3309
      %v3438 = vtanh.pop %v3310
      %v3439 = vtanh.pop %v3311
      %v3440 = vtanh.pop %v3312
      %v3441 = vtanh.pop %v3313
      %v3442 = vtanh.pop %v3314
      %v3443 = vtanh.pop %v3315
      %v3444 = vtanh.pop %v3316
      %v3445 = vtanh.pop %v3317
      %v3446 = vtanh.pop %v3318
      %v3447 = vtanh.pop %v3319
      %v3448 = vtanh.pop %v3320
      %v3449 = vtanh.pop %v3321
      %v3450 = vtanh.pop %v3322
      %v3451 = vtanh.pop %v3323
      %v3452 = vtanh.pop %v3324
      %v3453 = vtanh.pop %v3325
      %v3454 = vtanh.pop %v3326
      %v3455 = vtanh.pop %v3327
      %v3456 = vtanh.pop %v3328
      %v3457 = vtanh.pop %v3329
      %v3458 = vtanh.pop %v3330
      %v3459 = vtanh.pop %v3331
      %v3460 = vtanh.pop %v3332
      %v3461 = vtanh.pop %v3333
      %v3462 = vtanh.pop %v3334
      %v3463 = vtanh.pop %v3335
      %v3464 = vtanh.pop %v3336
      %v3465 = vtanh.pop %v3337
      %v3466 = vtanh.pop %v3338
      %v3467 = vtanh.pop %v3339
      %v3468 = vtanh.pop %v3340
      %v3469 = vtanh.pop %v3341
      %v3470 = vtanh.pop %v3342
      %v3471 = vtanh.pop %v3343
      %v3472 = vtanh.pop %v3344
      %v3473 = vtanh.pop %v3345
      %v3474 = vtanh.pop %v3346
      %v3475 = vtanh.pop %v3347
      %v3476 = vtanh.pop %v3348
      %v3477 = vtanh.pop %v3349
      %v3478 = vtanh.pop %v3350
      %v3479 = vtanh.pop %v3351
      %v3480 = vtanh.pop %v3352
      %v3481 = vtanh.pop %v3353
      %v3482 = vtanh.pop %v3354
      %v3483 = vtanh.pop %v3355
      %v3484 = vtanh.pop %v3356
      %v3485 = vtanh.pop %v3357
      %v3486 = vtanh.pop %v3358
      %v3487 = vtanh.pop %v3359
      %v3488 = vtanh.pop %v3360
      %v3489 = vtanh.pop %v3361
      %v3490 = vtanh.pop %v3362
      %v3491 = vtanh.pop %v3363
      %v3492 = vtanh.pop %v3364
      %v3493 = vtanh.pop %v3365
      %v3494 = vtanh.pop %v3366
      %v3495 = vtanh.pop %v3367
      %v3496 = vtanh.pop %v3368
      %v3497 = vtanh.pop %v3369
      %v3498 = vtanh.pop %v3370
      %v3499 = vtanh.pop %v3371
      %v3500 = vtanh.pop %v3372
      %v3501 = vtanh.pop %v3373
      %v3502 = vtanh.pop %v3374
      %v3503 = vtanh.pop %v3375
      %v3504 = vtanh.pop %v3376
      %v3505 = vtanh.pop %v3377
      %v3506 = vtanh.pop %v3378
      %v3507 = vtanh.pop %v3379
      %v3508 = vtanh.pop %v3380
      %v3509 = vtanh.pop %v3381
      %v3510 = vtanh.pop %v3382
      %v3511 = vtanh.pop %v3383
      %v3512 = vtanh.pop %v3384
      %v3513 = vtanh.pop %v3385
      %v3514 = vtanh.pop %v3386
      %v3515 = vtanh.pop %v3387
      %v3516 = vtanh.pop %v3388
      %v3517 = vtanh.pop %v3389
      %v3518 = vtanh.pop %v3390
      %v3519 = vtanh.pop %v3391
      %v3520 = vtanh.pop %v3392
      %v3521 = vtanh.pop %v3393
      %v3522 = vtanh.pop %v3394
      %v3523 = vtanh.pop %v3395
      %v3524 = vtanh.pop %v3396
      %v3525 = vtanh.pop %v3397
      %v3526 = vtanh.pop %v3398
      %v3527 = vtanh.pop %v3399
      %v3528 = vtanh.pop %v3400
      %v3529 = vtanh.pop %v3401
      %v3530 = vtanh.pop %v3402
      %v3531 = vtanh.pop %v3403
      %v3532 = vtanh.pop %v3404
      %v3533 = vtanh.pop %v3405
      %v3534 = vtanh.pop %v3406
      %v3535 = vtanh.pop %v3407
      %v3536 = vtanh.pop %v3408
      %v3537 = vmul.f32 %v3409, 0.5
      %v3538 = vmul.f32 %v3410, 0.5
      %v3539 = vmul.f32 %v3411, 0.5
      %v3540 = vmul.f32 %v3412, 0.5
      %v3541 = vmul.f32 %v3413, 0.5
      %v3542 = vmul.f32 %v3414, 0.5
      %v3543 = vmul.f32 %v3415, 0.5
      %v3544 = vmul.f32 %v3416, 0.5
      %v3545 = vmul.f32 %v3417, 0.5
      %v3546 = vmul.f32 %v3418, 0.5
      %v3547 = vmul.f32 %v3419, 0.5
      %v3548 = vmul.f32 %v3420, 0.5
      %v3549 = vmul.f32 %v3421, 0.5
      %v3550 = vmul.f32 %v3422, 0.5
      %v3551 = vmul.f32 %v3423, 0.5
      %v3552 = vmul.f32 %v3424, 0.5
      %v3553 = vmul.f32 %v3425, 0.5
      %v3554 = vmul.f32 %v3426, 0.5
      %v3555 = vmul.f32 %v3427, 0.5
      %v3556 = vmul.f32 %v3428, 0.5
      %v3557 = vmul.f32 %v3429, 0.5
      %v3558 = vmul.f32 %v3430, 0.5
      %v3559 = vmul.f32 %v3431, 0.5
      %v3560 = vmul.f32 %v3432, 0.5
      %v3561 = vmul.f32 %v3433, 0.5
      %v3562 = vmul.f32 %v3434, 0.5
      %v3563 = vmul.f32 %v3435, 0.5
      %v3564 = vmul.f32 %v3436, 0.5
      %v3565 = vmul.f32 %v3437, 0.5
      %v3566 = vmul.f32 %v3438, 0.5
      %v3567 = vmul.f32 %v3439, 0.5
      %v3568 = vmul.f32 %v3440, 0.5
      %v3569 = vmul.f32 %v3441, 0.5
      %v3570 = vmul.f32 %v3442, 0.5
      %v3571 = vmul.f32 %v3443, 0.5
      %v3572 = vmul.f32 %v3444, 0.5
      %v3573 = vmul.f32 %v3445, 0.5
      %v3574 = vmul.f32 %v3446, 0.5
      %v3575 = vmul.f32 %v3447, 0.5
      %v3576 = vmul.f32 %v3448, 0.5
      %v3577 = vmul.f32 %v3449, 0.5
      %v3578 = vmul.f32 %v3450, 0.5
      %v3579 = vmul.f32 %v3451, 0.5
      %v3580 = vmul.f32 %v3452, 0.5
      %v3581 = vmul.f32 %v3453, 0.5
      %v3582 = vmul.f32 %v3454, 0.5
      %v3583 = vmul.f32 %v3455, 0.5
      %v3584 = vmul.f32 %v3456, 0.5
      %v3585 = vmul.f32 %v3457, 0.5
      %v3586 = vmul.f32 %v3458, 0.5
      %v3587 = vmul.f32 %v3459, 0.5
      %v3588 = vmul.f32 %v3460, 0.5
      %v3589 = vmul.f32 %v3461, 0.5
      %v3590 = vmul.f32 %v3462, 0.5
      %v3591 = vmul.f32 %v3463, 0.5
      %v3592 = vmul.f32 %v3464, 0.5
      %v3593 = vmul.f32 %v3465, 0.5
      %v3594 = vmul.f32 %v3466, 0.5
      %v3595 = vmul.f32 %v3467, 0.5
      %v3596 = vmul.f32 %v3468, 0.5
      %v3597 = vmul.f32 %v3469, 0.5
      %v3598 = vmul.f32 %v3470, 0.5
      %v3599 = vmul.f32 %v3471, 0.5
      %v3600 = vmul.f32 %v3472, 0.5
      %v3601 = vmul.f32 %v3473, 0.5
      %v3602 = vmul.f32 %v3474, 0.5
      %v3603 = vmul.f32 %v3475, 0.5
      %v3604 = vmul.f32 %v3476, 0.5
      %v3605 = vmul.f32 %v3477, 0.5
      %v3606 = vmul.f32 %v3478, 0.5
      %v3607 = vmul.f32 %v3479, 0.5
      %v3608 = vmul.f32 %v3480, 0.5
      %v3609 = vmul.f32 %v3481, 0.5
      %v3610 = vmul.f32 %v3482, 0.5
      %v3611 = vmul.f32 %v3483, 0.5
      %v3612 = vmul.f32 %v3484, 0.5
      %v3613 = vmul.f32 %v3485, 0.5
      %v3614 = vmul.f32 %v3486, 0.5
      %v3615 = vmul.f32 %v3487, 0.5
      %v3616 = vmul.f32 %v3488, 0.5
      %v3617 = vmul.f32 %v3489, 0.5
      %v3618 = vmul.f32 %v3490, 0.5
      %v3619 = vmul.f32 %v3491, 0.5
      %v3620 = vmul.f32 %v3492, 0.5
      %v3621 = vmul.f32 %v3493, 0.5
      %v3622 = vmul.f32 %v3494, 0.5
      %v3623 = vmul.f32 %v3495, 0.5
      %v3624 = vmul.f32 %v3496, 0.5
      %v3625 = vmul.f32 %v3497, 0.5
      %v3626 = vmul.f32 %v3498, 0.5
      %v3627 = vmul.f32 %v3499, 0.5
      %v3628 = vmul.f32 %v3500, 0.5
      %v3629 = vmul.f32 %v3501, 0.5
      %v3630 = vmul.f32 %v3502, 0.5
      %v3631 = vmul.f32 %v3503, 0.5
      %v3632 = vmul.f32 %v3504, 0.5
      %v3633 = vmul.f32 %v3505, 0.5
      %v3634 = vmul.f32 %v3506, 0.5
      %v3635 = vmul.f32 %v3507, 0.5
      %v3636 = vmul.f32 %v3508, 0.5
      %v3637 = vmul.f32 %v3509, 0.5
      %v3638 = vmul.f32 %v3510, 0.5
      %v3639 = vmul.f32 %v3511, 0.5
      %v3640 = vmul.f32 %v3512, 0.5
      %v3641 = vmul.f32 %v3513, 0.5
      %v3642 = vmul.f32 %v3514, 0.5
      %v3643 = vmul.f32 %v3515, 0.5
      %v3644 = vmul.f32 %v3516, 0.5
      %v3645 = vmul.f32 %v3517, 0.5
      %v3646 = vmul.f32 %v3518, 0.5
      %v3647 = vmul.f32 %v3519, 0.5
      %v3648 = vmul.f32 %v3520, 0.5
      %v3649 = vmul.f32 %v3521, 0.5
      %v3650 = vmul.f32 %v3522, 0.5
      %v3651 = vmul.f32 %v3523, 0.5
      %v3652 = vmul.f32 %v3524, 0.5
      %v3653 = vmul.f32 %v3525, 0.5
      %v3654 = vmul.f32 %v3526, 0.5
      %v3655 = vmul.f32 %v3527, 0.5
      %v3656 = vmul.f32 %v3528, 0.5
      %v3657 = vmul.f32 %v3529, 0.5
      %v3658 = vmul.f32 %v3530, 0.5
      %v3659 = vmul.f32 %v3531, 0.5
      %v3660 = vmul.f32 %v3532, 0.5
      %v3661 = vmul.f32 %v3533, 0.5
      %v3662 = vmul.f32 %v3534, 0.5
      %v3663 = vmul.f32 %v3535, 0.5
      %v3664 = vmul.f32 %v3536, 0.5
      %v3665 = vadd.f32 %v3537, 0.5
      %v3666 = vadd.f32 %v3538, 0.5
      %v3667 = vadd.f32 %v3539, 0.5
      %v3668 = vadd.f32 %v3540, 0.5
      %v3669 = vadd.f32 %v3541, 0.5
      %v3670 = vadd.f32 %v3542, 0.5
      %v3671 = vadd.f32 %v3543, 0.5
      %v3672 = vadd.f32 %v3544, 0.5
      %v3673 = vadd.f32 %v3545, 0.5
      %v3674 = vadd.f32 %v3546, 0.5
      %v3675 = vadd.f32 %v3547, 0.5
      %v3676 = vadd.f32 %v3548, 0.5
      %v3677 = vadd.f32 %v3549, 0.5
      %v3678 = vadd.f32 %v3550, 0.5
      %v3679 = vadd.f32 %v3551, 0.5
      %v3680 = vadd.f32 %v3552, 0.5
      %v3681 = vadd.f32 %v3553, 0.5
      %v3682 = vadd.f32 %v3554, 0.5
      %v3683 = vadd.f32 %v3555, 0.5
      %v3684 = vadd.f32 %v3556, 0.5
      %v3685 = vadd.f32 %v3557, 0.5
      %v3686 = vadd.f32 %v3558, 0.5
      %v3687 = vadd.f32 %v3559, 0.5
      %v3688 = vadd.f32 %v3560, 0.5
      %v3689 = vadd.f32 %v3561, 0.5
      %v3690 = vadd.f32 %v3562, 0.5
      %v3691 = vadd.f32 %v3563, 0.5
      %v3692 = vadd.f32 %v3564, 0.5
      %v3693 = vadd.f32 %v3565, 0.5
      %v3694 = vadd.f32 %v3566, 0.5
      %v3695 = vadd.f32 %v3567, 0.5
      %v3696 = vadd.f32 %v3568, 0.5
      %v3697 = vadd.f32 %v3569, 0.5
      %v3698 = vadd.f32 %v3570, 0.5
      %v3699 = vadd.f32 %v3571, 0.5
      %v3700 = vadd.f32 %v3572, 0.5
      %v3701 = vadd.f32 %v3573, 0.5
      %v3702 = vadd.f32 %v3574, 0.5
      %v3703 = vadd.f32 %v3575, 0.5
      %v3704 = vadd.f32 %v3576, 0.5
      %v3705 = vadd.f32 %v3577, 0.5
      %v3706 = vadd.f32 %v3578, 0.5
      %v3707 = vadd.f32 %v3579, 0.5
      %v3708 = vadd.f32 %v3580, 0.5
      %v3709 = vadd.f32 %v3581, 0.5
      %v3710 = vadd.f32 %v3582, 0.5
      %v3711 = vadd.f32 %v3583, 0.5
      %v3712 = vadd.f32 %v3584, 0.5
      %v3713 = vadd.f32 %v3585, 0.5
      %v3714 = vadd.f32 %v3586, 0.5
      %v3715 = vadd.f32 %v3587, 0.5
      %v3716 = vadd.f32 %v3588, 0.5
      %v3717 = vadd.f32 %v3589, 0.5
      %v3718 = vadd.f32 %v3590, 0.5
      %v3719 = vadd.f32 %v3591, 0.5
      %v3720 = vadd.f32 %v3592, 0.5
      %v3721 = vadd.f32 %v3593, 0.5
      %v3722 = vadd.f32 %v3594, 0.5
      %v3723 = vadd.f32 %v3595, 0.5
      %v3724 = vadd.f32 %v3596, 0.5
      %v3725 = vadd.f32 %v3597, 0.5
      %v3726 = vadd.f32 %v3598, 0.5
      %v3727 = vadd.f32 %v3599, 0.5
      %v3728 = vadd.f32 %v3600, 0.5
      %v3729 = vadd.f32 %v3601, 0.5
      %v3730 = vadd.f32 %v3602, 0.5
      %v3731 = vadd.f32 %v3603, 0.5
      %v3732 = vadd.f32 %v3604, 0.5
      %v3733 = vadd.f32 %v3605, 0.5
      %v3734 = vadd.f32 %v3606, 0.5
      %v3735 = vadd.f32 %v3607, 0.5
      %v3736 = vadd.f32 %v3608, 0.5
      %v3737 = vadd.f32 %v3609, 0.5
      %v3738 = vadd.f32 %v3610, 0.5
      %v3739 = vadd.f32 %v3611, 0.5
      %v3740 = vadd.f32 %v3612, 0.5
      %v3741 = vadd.f32 %v3613, 0.5
      %v3742 = vadd.f32 %v3614, 0.5
      %v3743 = vadd.f32 %v3615, 0.5
      %v3744 = vadd.f32 %v3616, 0.5
      %v3745 = vadd.f32 %v3617, 0.5
      %v3746 = vadd.f32 %v3618, 0.5
      %v3747 = vadd.f32 %v3619, 0.5
      %v3748 = vadd.f32 %v3620, 0.5
      %v3749 = vadd.f32 %v3621, 0.5
      %v3750 = vadd.f32 %v3622, 0.5
      %v3751 = vadd.f32 %v3623, 0.5
      %v3752 = vadd.f32 %v3624, 0.5
      %v3753 = vadd.f32 %v3625, 0.5
      %v3754 = vadd.f32 %v3626, 0.5
      %v3755 = vadd.f32 %v3627, 0.5
      %v3756 = vadd.f32 %v3628, 0.5
      %v3757 = vadd.f32 %v3629, 0.5
      %v3758 = vadd.f32 %v3630, 0.5
      %v3759 = vadd.f32 %v3631, 0.5
      %v3760 = vadd.f32 %v3632, 0.5
      %v3761 = vadd.f32 %v3633, 0.5
      %v3762 = vadd.f32 %v3634, 0.5
      %v3763 = vadd.f32 %v3635, 0.5
      %v3764 = vadd.f32 %v3636, 0.5
      %v3765 = vadd.f32 %v3637, 0.5
      %v3766 = vadd.f32 %v3638, 0.5
      %v3767 = vadd.f32 %v3639, 0.5
      %v3768 = vadd.f32 %v3640, 0.5
      %v3769 = vadd.f32 %v3641, 0.5
      %v3770 = vadd.f32 %v3642, 0.5
      %v3771 = vadd.f32 %v3643, 0.5
      %v3772 = vadd.f32 %v3644, 0.5
      %v3773 = vadd.f32 %v3645, 0.5
      %v3774 = vadd.f32 %v3646, 0.5
      %v3775 = vadd.f32 %v3647, 0.5
      %v3776 = vadd.f32 %v3648, 0.5
      %v3777 = vadd.f32 %v3649, 0.5
      %v3778 = vadd.f32 %v3650, 0.5
      %v3779 = vadd.f32 %v3651, 0.5
      %v3780 = vadd.f32 %v3652, 0.5
      %v3781 = vadd.f32 %v3653, 0.5
      %v3782 = vadd.f32 %v3654, 0.5
      %v3783 = vadd.f32 %v3655, 0.5
      %v3784 = vadd.f32 %v3656, 0.5
      %v3785 = vadd.f32 %v3657, 0.5
      %v3786 = vadd.f32 %v3658, 0.5
      %v3787 = vadd.f32 %v3659, 0.5
      %v3788 = vadd.f32 %v3660, 0.5
      %v3789 = vadd.f32 %v3661, 0.5
      %v3790 = vadd.f32 %v3662, 0.5
      %v3791 = vadd.f32 %v3663, 0.5
      %v3792 = vadd.f32 %v3664, 0.5
      %v3809 = vperm.slane %v405, 0
      %v3810 = vlaneseq
      %v3811 = vshrl.u32 %v3810, 7
      %3813 = vset.pattern.permute.xlu0 %v3811
      %3814 = vperm.xlu0 %3813, %v3809
      %v3815 = vpop.permute.xlu0 %3814
      %v3816 = vperm.slane %v405, 1
      %v3817 = vlaneseq
      %v3818 = vshrl.u32 %v3817, 7
      %3820 = vset.pattern.permute.xlu0 %v3818
      %3821 = vperm.xlu0 %3820, %v3816
      %v3822 = vpop.permute.xlu0 %3821
      %v3823 = vperm.slane %v405, 2
      %v3824 = vlaneseq
      %v3825 = vshrl.u32 %v3824, 7
      %3827 = vset.pattern.permute.xlu0 %v3825
      %3828 = vperm.xlu0 %3827, %v3823
      %v3829 = vpop.permute.xlu0 %3828
      %v3830 = vperm.slane %v405, 3
      %v3831 = vlaneseq
      %v3832 = vshrl.u32 %v3831, 7
      %3834 = vset.pattern.permute.xlu0 %v3832
      %3835 = vperm.xlu0 %3834, %v3830
      %v3836 = vpop.permute.xlu0 %3835
      %v3837 = vperm.slane %v405, 4
      %v3838 = vlaneseq
      %v3839 = vshrl.u32 %v3838, 7
      %3841 = vset.pattern.permute.xlu0 %v3839
      %3842 = vperm.xlu0 %3841, %v3837
      %v3843 = vpop.permute.xlu0 %3842
      %v3844 = vperm.slane %v405, 5
      %v3845 = vlaneseq
      %v3846 = vshrl.u32 %v3845, 7
      %3848 = vset.pattern.permute.xlu0 %v3846
      %3849 = vperm.xlu0 %3848, %v3844
      %v3850 = vpop.permute.xlu0 %3849
      %v3851 = vperm.slane %v405, 6
      %v3852 = vlaneseq
      %v3853 = vshrl.u32 %v3852, 7
      %3855 = vset.pattern.permute.xlu0 %v3853
      %3856 = vperm.xlu0 %3855, %v3851
      %v3857 = vpop.permute.xlu0 %3856
      %v3858 = vperm.slane %v405, 7
      %v3859 = vlaneseq
      %v3860 = vshrl.u32 %v3859, 7
      %3862 = vset.pattern.permute.xlu0 %v3860
      %3863 = vperm.xlu0 %3862, %v3858
      %v3864 = vpop.permute.xlu0 %3863
      %v3865 = vperm.slane %v406, 0
      %v3866 = vlaneseq
      %v3867 = vshrl.u32 %v3866, 7
      %3869 = vset.pattern.permute.xlu0 %v3867
      %3870 = vperm.xlu0 %3869, %v3865
      %v3871 = vpop.permute.xlu0 %3870
      %v3872 = vperm.slane %v406, 1
      %v3873 = vlaneseq
      %v3874 = vshrl.u32 %v3873, 7
      %3876 = vset.pattern.permute.xlu0 %v3874
      %3877 = vperm.xlu0 %3876, %v3872
      %v3878 = vpop.permute.xlu0 %3877
      %v3879 = vperm.slane %v406, 2
      %v3880 = vlaneseq
      %v3881 = vshrl.u32 %v3880, 7
      %3883 = vset.pattern.permute.xlu0 %v3881
      %3884 = vperm.xlu0 %3883, %v3879
      %v3885 = vpop.permute.xlu0 %3884
      %v3886 = vperm.slane %v406, 3
      %v3887 = vlaneseq
      %v3888 = vshrl.u32 %v3887, 7
      %3890 = vset.pattern.permute.xlu0 %v3888
      %3891 = vperm.xlu0 %3890, %v3886
      %v3892 = vpop.permute.xlu0 %3891
      %v3893 = vperm.slane %v406, 4
      %v3894 = vlaneseq
      %v3895 = vshrl.u32 %v3894, 7
      %3897 = vset.pattern.permute.xlu0 %v3895
      %3898 = vperm.xlu0 %3897, %v3893
      %v3899 = vpop.permute.xlu0 %3898
      %v3900 = vperm.slane %v406, 5
      %v3901 = vlaneseq
      %v3902 = vshrl.u32 %v3901, 7
      %3904 = vset.pattern.permute.xlu0 %v3902
      %3905 = vperm.xlu0 %3904, %v3900
      %v3906 = vpop.permute.xlu0 %3905
      %v3907 = vperm.slane %v406, 6
      %v3908 = vlaneseq
      %v3909 = vshrl.u32 %v3908, 7
      %3911 = vset.pattern.permute.xlu0 %v3909
      %3912 = vperm.xlu0 %3911, %v3907
      %v3913 = vpop.permute.xlu0 %3912
      %v3914 = vperm.slane %v406, 7
      %v3915 = vlaneseq
      %v3916 = vshrl.u32 %v3915, 7
      %3918 = vset.pattern.permute.xlu0 %v3916
      %3919 = vperm.xlu0 %3918, %v3914
      %v3920 = vpop.permute.xlu0 %3919
      %v3921 = vperm.slane %v407, 0
      %v3922 = vlaneseq
      %v3923 = vshrl.u32 %v3922, 7
      %3925 = vset.pattern.permute.xlu0 %v3923
      %3926 = vperm.xlu0 %3925, %v3921
      %v3927 = vpop.permute.xlu0 %3926
      %v3928 = vperm.slane %v407, 1
      %v3929 = vlaneseq
      %v3930 = vshrl.u32 %v3929, 7
      %3932 = vset.pattern.permute.xlu0 %v3930
      %3933 = vperm.xlu0 %3932, %v3928
      %v3934 = vpop.permute.xlu0 %3933
      %v3935 = vperm.slane %v407, 2
      %v3936 = vlaneseq
      %v3937 = vshrl.u32 %v3936, 7
      %3939 = vset.pattern.permute.xlu0 %v3937
      %3940 = vperm.xlu0 %3939, %v3935
      %v3941 = vpop.permute.xlu0 %3940
      %v3942 = vperm.slane %v407, 3
      %v3943 = vlaneseq
      %v3944 = vshrl.u32 %v3943, 7
      %3946 = vset.pattern.permute.xlu0 %v3944
      %3947 = vperm.xlu0 %3946, %v3942
      %v3948 = vpop.permute.xlu0 %3947
      %v3949 = vperm.slane %v407, 4
      %v3950 = vlaneseq
      %v3951 = vshrl.u32 %v3950, 7
      %3953 = vset.pattern.permute.xlu0 %v3951
      %3954 = vperm.xlu0 %3953, %v3949
      %v3955 = vpop.permute.xlu0 %3954
      %v3956 = vperm.slane %v407, 5
      %v3957 = vlaneseq
      %v3958 = vshrl.u32 %v3957, 7
      %3960 = vset.pattern.permute.xlu0 %v3958
      %3961 = vperm.xlu0 %3960, %v3956
      %v3962 = vpop.permute.xlu0 %3961
      %v3963 = vperm.slane %v407, 6
      %v3964 = vlaneseq
      %v3965 = vshrl.u32 %v3964, 7
      %3967 = vset.pattern.permute.xlu0 %v3965
      %3968 = vperm.xlu0 %3967, %v3963
      %v3969 = vpop.permute.xlu0 %3968
      %v3970 = vperm.slane %v407, 7
      %v3971 = vlaneseq
      %v3972 = vshrl.u32 %v3971, 7
      %3974 = vset.pattern.permute.xlu0 %v3972
      %3975 = vperm.xlu0 %3974, %v3970
      %v3976 = vpop.permute.xlu0 %3975
      %v3977 = vperm.slane %v408, 0
      %v3978 = vlaneseq
      %v3979 = vshrl.u32 %v3978, 7
      %3981 = vset.pattern.permute.xlu0 %v3979
      %3982 = vperm.xlu0 %3981, %v3977
      %v3983 = vpop.permute.xlu0 %3982
      %v3984 = vperm.slane %v408, 1
      %v3985 = vlaneseq
      %v3986 = vshrl.u32 %v3985, 7
      %3988 = vset.pattern.permute.xlu0 %v3986
      %3989 = vperm.xlu0 %3988, %v3984
      %v3990 = vpop.permute.xlu0 %3989
      %v3991 = vperm.slane %v408, 2
      %v3992 = vlaneseq
      %v3993 = vshrl.u32 %v3992, 7
      %3995 = vset.pattern.permute.xlu0 %v3993
      %3996 = vperm.xlu0 %3995, %v3991
      %v3997 = vpop.permute.xlu0 %3996
      %v3998 = vperm.slane %v408, 3
      %v3999 = vlaneseq
      %v4000 = vshrl.u32 %v3999, 7
      %4002 = vset.pattern.permute.xlu0 %v4000
      %4003 = vperm.xlu0 %4002, %v3998
      %v4004 = vpop.permute.xlu0 %4003
      %v4005 = vperm.slane %v408, 4
      %v4006 = vlaneseq
      %v4007 = vshrl.u32 %v4006, 7
      %4009 = vset.pattern.permute.xlu0 %v4007
      %4010 = vperm.xlu0 %4009, %v4005
      %v4011 = vpop.permute.xlu0 %4010
      %v4012 = vperm.slane %v408, 5
      %v4013 = vlaneseq
      %v4014 = vshrl.u32 %v4013, 7
      %4016 = vset.pattern.permute.xlu0 %v4014
      %4017 = vperm.xlu0 %4016, %v4012
      %v4018 = vpop.permute.xlu0 %4017
      %v4019 = vperm.slane %v408, 6
      %v4020 = vlaneseq
      %v4021 = vshrl.u32 %v4020, 7
      %4023 = vset.pattern.permute.xlu0 %v4021
      %4024 = vperm.xlu0 %4023, %v4019
      %v4025 = vpop.permute.xlu0 %4024
      %v4026 = vperm.slane %v408, 7
      %v4027 = vlaneseq
      %v4028 = vshrl.u32 %v4027, 7
      %4030 = vset.pattern.permute.xlu0 %v4028
      %4031 = vperm.xlu0 %4030, %v4026
      %v4032 = vpop.permute.xlu0 %4031
      %v4033 = vperm.slane %v409, 0
      %v4034 = vlaneseq
      %v4035 = vshrl.u32 %v4034, 7
      %4037 = vset.pattern.permute.xlu0 %v4035
      %4038 = vperm.xlu0 %4037, %v4033
      %v4039 = vpop.permute.xlu0 %4038
      %v4040 = vperm.slane %v409, 1
      %v4041 = vlaneseq
      %v4042 = vshrl.u32 %v4041, 7
      %4044 = vset.pattern.permute.xlu0 %v4042
      %4045 = vperm.xlu0 %4044, %v4040
      %v4046 = vpop.permute.xlu0 %4045
      %v4047 = vperm.slane %v409, 2
      %v4048 = vlaneseq
      %v4049 = vshrl.u32 %v4048, 7
      %4051 = vset.pattern.permute.xlu0 %v4049
      %4052 = vperm.xlu0 %4051, %v4047
      %v4053 = vpop.permute.xlu0 %4052
      %v4054 = vperm.slane %v409, 3
      %v4055 = vlaneseq
      %v4056 = vshrl.u32 %v4055, 7
      %4058 = vset.pattern.permute.xlu0 %v4056
      %4059 = vperm.xlu0 %4058, %v4054
      %v4060 = vpop.permute.xlu0 %4059
      %v4061 = vperm.slane %v409, 4
      %v4062 = vlaneseq
      %v4063 = vshrl.u32 %v4062, 7
      %4065 = vset.pattern.permute.xlu0 %v4063
      %4066 = vperm.xlu0 %4065, %v4061
      %v4067 = vpop.permute.xlu0 %4066
      %v4068 = vperm.slane %v409, 5
      %v4069 = vlaneseq
      %v4070 = vshrl.u32 %v4069, 7
      %4072 = vset.pattern.permute.xlu0 %v4070
      %4073 = vperm.xlu0 %4072, %v4068
      %v4074 = vpop.permute.xlu0 %4073
      %v4075 = vperm.slane %v409, 6
      %v4076 = vlaneseq
      %v4077 = vshrl.u32 %v4076, 7
      %4079 = vset.pattern.permute.xlu0 %v4077
      %4080 = vperm.xlu0 %4079, %v4075
      %v4081 = vpop.permute.xlu0 %4080
      %v4082 = vperm.slane %v409, 7
      %v4083 = vlaneseq
      %v4084 = vshrl.u32 %v4083, 7
      %4086 = vset.pattern.permute.xlu0 %v4084
      %4087 = vperm.xlu0 %4086, %v4082
      %v4088 = vpop.permute.xlu0 %4087
      %v4089 = vperm.slane %v410, 0
      %v4090 = vlaneseq
      %v4091 = vshrl.u32 %v4090, 7
      %4093 = vset.pattern.permute.xlu0 %v4091
      %4094 = vperm.xlu0 %4093, %v4089
      %v4095 = vpop.permute.xlu0 %4094
      %v4096 = vperm.slane %v410, 1
      %v4097 = vlaneseq
      %v4098 = vshrl.u32 %v4097, 7
      %4100 = vset.pattern.permute.xlu0 %v4098
      %4101 = vperm.xlu0 %4100, %v4096
      %v4102 = vpop.permute.xlu0 %4101
      %v4103 = vperm.slane %v410, 2
      %v4104 = vlaneseq
      %v4105 = vshrl.u32 %v4104, 7
      %4107 = vset.pattern.permute.xlu0 %v4105
      %4108 = vperm.xlu0 %4107, %v4103
      %v4109 = vpop.permute.xlu0 %4108
      %v4110 = vperm.slane %v410, 3
      %v4111 = vlaneseq
      %v4112 = vshrl.u32 %v4111, 7
      %4114 = vset.pattern.permute.xlu0 %v4112
      %4115 = vperm.xlu0 %4114, %v4110
      %v4116 = vpop.permute.xlu0 %4115
      %v4117 = vperm.slane %v410, 4
      %v4118 = vlaneseq
      %v4119 = vshrl.u32 %v4118, 7
      %4121 = vset.pattern.permute.xlu0 %v4119
      %4122 = vperm.xlu0 %4121, %v4117
      %v4123 = vpop.permute.xlu0 %4122
      %v4124 = vperm.slane %v410, 5
      %v4125 = vlaneseq
      %v4126 = vshrl.u32 %v4125, 7
      %4128 = vset.pattern.permute.xlu0 %v4126
      %4129 = vperm.xlu0 %4128, %v4124
      %v4130 = vpop.permute.xlu0 %4129
      %v4131 = vperm.slane %v410, 6
      %v4132 = vlaneseq
      %v4133 = vshrl.u32 %v4132, 7
      %4135 = vset.pattern.permute.xlu0 %v4133
      %4136 = vperm.xlu0 %4135, %v4131
      %v4137 = vpop.permute.xlu0 %4136
      %v4138 = vperm.slane %v410, 7
      %v4139 = vlaneseq
      %v4140 = vshrl.u32 %v4139, 7
      %4142 = vset.pattern.permute.xlu0 %v4140
      %4143 = vperm.xlu0 %4142, %v4138
      %v4144 = vpop.permute.xlu0 %4143
      %v4145 = vperm.slane %v411, 0
      %v4146 = vlaneseq
      %v4147 = vshrl.u32 %v4146, 7
      %4149 = vset.pattern.permute.xlu0 %v4147
      %4150 = vperm.xlu0 %4149, %v4145
      %v4151 = vpop.permute.xlu0 %4150
      %v4152 = vperm.slane %v411, 1
      %v4153 = vlaneseq
      %v4154 = vshrl.u32 %v4153, 7
      %4156 = vset.pattern.permute.xlu0 %v4154
      %4157 = vperm.xlu0 %4156, %v4152
      %v4158 = vpop.permute.xlu0 %4157
      %v4159 = vperm.slane %v411, 2
      %v4160 = vlaneseq
      %v4161 = vshrl.u32 %v4160, 7
      %4163 = vset.pattern.permute.xlu0 %v4161
      %4164 = vperm.xlu0 %4163, %v4159
      %v4165 = vpop.permute.xlu0 %4164
      %v4166 = vperm.slane %v411, 3
      %v4167 = vlaneseq
      %v4168 = vshrl.u32 %v4167, 7
      %4170 = vset.pattern.permute.xlu0 %v4168
      %4171 = vperm.xlu0 %4170, %v4166
      %v4172 = vpop.permute.xlu0 %4171
      %v4173 = vperm.slane %v411, 4
      %v4174 = vlaneseq
      %v4175 = vshrl.u32 %v4174, 7
      %4177 = vset.pattern.permute.xlu0 %v4175
      %4178 = vperm.xlu0 %4177, %v4173
      %v4179 = vpop.permute.xlu0 %4178
      %v4180 = vperm.slane %v411, 5
      %v4181 = vlaneseq
      %v4182 = vshrl.u32 %v4181, 7
      %4184 = vset.pattern.permute.xlu0 %v4182
      %4185 = vperm.xlu0 %4184, %v4180
      %v4186 = vpop.permute.xlu0 %4185
      %v4187 = vperm.slane %v411, 6
      %v4188 = vlaneseq
      %v4189 = vshrl.u32 %v4188, 7
      %4191 = vset.pattern.permute.xlu0 %v4189
      %4192 = vperm.xlu0 %4191, %v4187
      %v4193 = vpop.permute.xlu0 %4192
      %v4194 = vperm.slane %v411, 7
      %v4195 = vlaneseq
      %v4196 = vshrl.u32 %v4195, 7
      %4198 = vset.pattern.permute.xlu0 %v4196
      %4199 = vperm.xlu0 %4198, %v4194
      %v4200 = vpop.permute.xlu0 %4199
      %v4201 = vperm.slane %v412, 0
      %v4202 = vlaneseq
      %v4203 = vshrl.u32 %v4202, 7
      %4205 = vset.pattern.permute.xlu0 %v4203
      %4206 = vperm.xlu0 %4205, %v4201
      %v4207 = vpop.permute.xlu0 %4206
      %v4208 = vperm.slane %v412, 1
      %v4209 = vlaneseq
      %v4210 = vshrl.u32 %v4209, 7
      %4212 = vset.pattern.permute.xlu0 %v4210
      %4213 = vperm.xlu0 %4212, %v4208
      %v4214 = vpop.permute.xlu0 %4213
      %v4215 = vperm.slane %v412, 2
      %v4216 = vlaneseq
      %v4217 = vshrl.u32 %v4216, 7
      %4219 = vset.pattern.permute.xlu0 %v4217
      %4220 = vperm.xlu0 %4219, %v4215
      %v4221 = vpop.permute.xlu0 %4220
      %v4222 = vperm.slane %v412, 3
      %v4223 = vlaneseq
      %v4224 = vshrl.u32 %v4223, 7
      %4226 = vset.pattern.permute.xlu0 %v4224
      %4227 = vperm.xlu0 %4226, %v4222
      %v4228 = vpop.permute.xlu0 %4227
      %v4229 = vperm.slane %v412, 4
      %v4230 = vlaneseq
      %v4231 = vshrl.u32 %v4230, 7
      %4233 = vset.pattern.permute.xlu0 %v4231
      %4234 = vperm.xlu0 %4233, %v4229
      %v4235 = vpop.permute.xlu0 %4234
      %v4236 = vperm.slane %v412, 5
      %v4237 = vlaneseq
      %v4238 = vshrl.u32 %v4237, 7
      %4240 = vset.pattern.permute.xlu0 %v4238
      %4241 = vperm.xlu0 %4240, %v4236
      %v4242 = vpop.permute.xlu0 %4241
      %v4243 = vperm.slane %v412, 6
      %v4244 = vlaneseq
      %v4245 = vshrl.u32 %v4244, 7
      %4247 = vset.pattern.permute.xlu0 %v4245
      %4248 = vperm.xlu0 %4247, %v4243
      %v4249 = vpop.permute.xlu0 %4248
      %v4250 = vperm.slane %v412, 7
      %v4251 = vlaneseq
      %v4252 = vshrl.u32 %v4251, 7
      %4254 = vset.pattern.permute.xlu0 %v4252
      %4255 = vperm.xlu0 %4254, %v4250
      %v4256 = vpop.permute.xlu0 %4255
      %v4257 = vperm.slane %v413, 0
      %v4258 = vlaneseq
      %v4259 = vshrl.u32 %v4258, 7
      %4261 = vset.pattern.permute.xlu0 %v4259
      %4262 = vperm.xlu0 %4261, %v4257
      %v4263 = vpop.permute.xlu0 %4262
      %v4264 = vperm.slane %v413, 1
      %v4265 = vlaneseq
      %v4266 = vshrl.u32 %v4265, 7
      %4268 = vset.pattern.permute.xlu0 %v4266
      %4269 = vperm.xlu0 %4268, %v4264
      %v4270 = vpop.permute.xlu0 %4269
      %v4271 = vperm.slane %v413, 2
      %v4272 = vlaneseq
      %v4273 = vshrl.u32 %v4272, 7
      %4275 = vset.pattern.permute.xlu0 %v4273
      %4276 = vperm.xlu0 %4275, %v4271
      %v4277 = vpop.permute.xlu0 %4276
      %v4278 = vperm.slane %v413, 3
      %v4279 = vlaneseq
      %v4280 = vshrl.u32 %v4279, 7
      %4282 = vset.pattern.permute.xlu0 %v4280
      %4283 = vperm.xlu0 %4282, %v4278
      %v4284 = vpop.permute.xlu0 %4283
      %v4285 = vperm.slane %v413, 4
      %v4286 = vlaneseq
      %v4287 = vshrl.u32 %v4286, 7
      %4289 = vset.pattern.permute.xlu0 %v4287
      %4290 = vperm.xlu0 %4289, %v4285
      %v4291 = vpop.permute.xlu0 %4290
      %v4292 = vperm.slane %v413, 5
      %v4293 = vlaneseq
      %v4294 = vshrl.u32 %v4293, 7
      %4296 = vset.pattern.permute.xlu0 %v4294
      %4297 = vperm.xlu0 %4296, %v4292
      %v4298 = vpop.permute.xlu0 %4297
      %v4299 = vperm.slane %v413, 6
      %v4300 = vlaneseq
      %v4301 = vshrl.u32 %v4300, 7
      %4303 = vset.pattern.permute.xlu0 %v4301
      %4304 = vperm.xlu0 %4303, %v4299
      %v4305 = vpop.permute.xlu0 %4304
      %v4306 = vperm.slane %v413, 7
      %v4307 = vlaneseq
      %v4308 = vshrl.u32 %v4307, 7
      %4310 = vset.pattern.permute.xlu0 %v4308
      %4311 = vperm.xlu0 %4310, %v4306
      %v4312 = vpop.permute.xlu0 %4311
      %v4313 = vperm.slane %v414, 0
      %v4314 = vlaneseq
      %v4315 = vshrl.u32 %v4314, 7
      %4317 = vset.pattern.permute.xlu0 %v4315
      %4318 = vperm.xlu0 %4317, %v4313
      %v4319 = vpop.permute.xlu0 %4318
      %v4320 = vperm.slane %v414, 1
      %v4321 = vlaneseq
      %v4322 = vshrl.u32 %v4321, 7
      %4324 = vset.pattern.permute.xlu0 %v4322
      %4325 = vperm.xlu0 %4324, %v4320
      %v4326 = vpop.permute.xlu0 %4325
      %v4327 = vperm.slane %v414, 2
      %v4328 = vlaneseq
      %v4329 = vshrl.u32 %v4328, 7
      %4331 = vset.pattern.permute.xlu0 %v4329
      %4332 = vperm.xlu0 %4331, %v4327
      %v4333 = vpop.permute.xlu0 %4332
      %v4334 = vperm.slane %v414, 3
      %v4335 = vlaneseq
      %v4336 = vshrl.u32 %v4335, 7
      %4338 = vset.pattern.permute.xlu0 %v4336
      %4339 = vperm.xlu0 %4338, %v4334
      %v4340 = vpop.permute.xlu0 %4339
      %v4341 = vperm.slane %v414, 4
      %v4342 = vlaneseq
      %v4343 = vshrl.u32 %v4342, 7
      %4345 = vset.pattern.permute.xlu0 %v4343
      %4346 = vperm.xlu0 %4345, %v4341
      %v4347 = vpop.permute.xlu0 %4346
      %v4348 = vperm.slane %v414, 5
      %v4349 = vlaneseq
      %v4350 = vshrl.u32 %v4349, 7
      %4352 = vset.pattern.permute.xlu0 %v4350
      %4353 = vperm.xlu0 %4352, %v4348
      %v4354 = vpop.permute.xlu0 %4353
      %v4355 = vperm.slane %v414, 6
      %v4356 = vlaneseq
      %v4357 = vshrl.u32 %v4356, 7
      %4359 = vset.pattern.permute.xlu0 %v4357
      %4360 = vperm.xlu0 %4359, %v4355
      %v4361 = vpop.permute.xlu0 %4360
      %v4362 = vperm.slane %v414, 7
      %v4363 = vlaneseq
      %v4364 = vshrl.u32 %v4363, 7
      %4366 = vset.pattern.permute.xlu0 %v4364
      %4367 = vperm.xlu0 %4366, %v4362
      %v4368 = vpop.permute.xlu0 %4367
      %v4369 = vperm.slane %v415, 0
      %v4370 = vlaneseq
      %v4371 = vshrl.u32 %v4370, 7
      %4373 = vset.pattern.permute.xlu0 %v4371
      %4374 = vperm.xlu0 %4373, %v4369
      %v4375 = vpop.permute.xlu0 %4374
      %v4376 = vperm.slane %v415, 1
      %v4377 = vlaneseq
      %v4378 = vshrl.u32 %v4377, 7
      %4380 = vset.pattern.permute.xlu0 %v4378
      %4381 = vperm.xlu0 %4380, %v4376
      %v4382 = vpop.permute.xlu0 %4381
      %v4383 = vperm.slane %v415, 2
      %v4384 = vlaneseq
      %v4385 = vshrl.u32 %v4384, 7
      %4387 = vset.pattern.permute.xlu0 %v4385
      %4388 = vperm.xlu0 %4387, %v4383
      %v4389 = vpop.permute.xlu0 %4388
      %v4390 = vperm.slane %v415, 3
      %v4391 = vlaneseq
      %v4392 = vshrl.u32 %v4391, 7
      %4394 = vset.pattern.permute.xlu0 %v4392
      %4395 = vperm.xlu0 %4394, %v4390
      %v4396 = vpop.permute.xlu0 %4395
      %v4397 = vperm.slane %v415, 4
      %v4398 = vlaneseq
      %v4399 = vshrl.u32 %v4398, 7
      %4401 = vset.pattern.permute.xlu0 %v4399
      %4402 = vperm.xlu0 %4401, %v4397
      %v4403 = vpop.permute.xlu0 %4402
      %v4404 = vperm.slane %v415, 5
      %v4405 = vlaneseq
      %v4406 = vshrl.u32 %v4405, 7
      %4408 = vset.pattern.permute.xlu0 %v4406
      %4409 = vperm.xlu0 %4408, %v4404
      %v4410 = vpop.permute.xlu0 %4409
      %v4411 = vperm.slane %v415, 6
      %v4412 = vlaneseq
      %v4413 = vshrl.u32 %v4412, 7
      %4415 = vset.pattern.permute.xlu0 %v4413
      %4416 = vperm.xlu0 %4415, %v4411
      %v4417 = vpop.permute.xlu0 %4416
      %v4418 = vperm.slane %v415, 7
      %v4419 = vlaneseq
      %v4420 = vshrl.u32 %v4419, 7
      %4422 = vset.pattern.permute.xlu0 %v4420
      %4423 = vperm.xlu0 %4422, %v4418
      %v4424 = vpop.permute.xlu0 %4423
      %v4425 = vperm.slane %v416, 0
      %v4426 = vlaneseq
      %v4427 = vshrl.u32 %v4426, 7
      %4429 = vset.pattern.permute.xlu0 %v4427
      %4430 = vperm.xlu0 %4429, %v4425
      %v4431 = vpop.permute.xlu0 %4430
      %v4432 = vperm.slane %v416, 1
      %v4433 = vlaneseq
      %v4434 = vshrl.u32 %v4433, 7
      %4436 = vset.pattern.permute.xlu0 %v4434
      %4437 = vperm.xlu0 %4436, %v4432
      %v4438 = vpop.permute.xlu0 %4437
      %v4439 = vperm.slane %v416, 2
      %v4440 = vlaneseq
      %v4441 = vshrl.u32 %v4440, 7
      %4443 = vset.pattern.permute.xlu0 %v4441
      %4444 = vperm.xlu0 %4443, %v4439
      %v4445 = vpop.permute.xlu0 %4444
      %v4446 = vperm.slane %v416, 3
      %v4447 = vlaneseq
      %v4448 = vshrl.u32 %v4447, 7
      %4450 = vset.pattern.permute.xlu0 %v4448
      %4451 = vperm.xlu0 %4450, %v4446
      %v4452 = vpop.permute.xlu0 %4451
      %v4453 = vperm.slane %v416, 4
      %v4454 = vlaneseq
      %v4455 = vshrl.u32 %v4454, 7
      %4457 = vset.pattern.permute.xlu0 %v4455
      %4458 = vperm.xlu0 %4457, %v4453
      %v4459 = vpop.permute.xlu0 %4458
      %v4460 = vperm.slane %v416, 5
      %v4461 = vlaneseq
      %v4462 = vshrl.u32 %v4461, 7
      %4464 = vset.pattern.permute.xlu0 %v4462
      %4465 = vperm.xlu0 %4464, %v4460
      %v4466 = vpop.permute.xlu0 %4465
      %v4467 = vperm.slane %v416, 6
      %v4468 = vlaneseq
      %v4469 = vshrl.u32 %v4468, 7
      %4471 = vset.pattern.permute.xlu0 %v4469
      %4472 = vperm.xlu0 %4471, %v4467
      %v4473 = vpop.permute.xlu0 %4472
      %v4474 = vperm.slane %v416, 7
      %v4475 = vlaneseq
      %v4476 = vshrl.u32 %v4475, 7
      %4478 = vset.pattern.permute.xlu0 %v4476
      %4479 = vperm.xlu0 %4478, %v4474
      %v4480 = vpop.permute.xlu0 %4479
      %v4481 = vperm.slane %v417, 0
      %v4482 = vlaneseq
      %v4483 = vshrl.u32 %v4482, 7
      %4485 = vset.pattern.permute.xlu0 %v4483
      %4486 = vperm.xlu0 %4485, %v4481
      %v4487 = vpop.permute.xlu0 %4486
      %v4488 = vperm.slane %v417, 1
      %v4489 = vlaneseq
      %v4490 = vshrl.u32 %v4489, 7
      %4492 = vset.pattern.permute.xlu0 %v4490
      %4493 = vperm.xlu0 %4492, %v4488
      %v4494 = vpop.permute.xlu0 %4493
      %v4495 = vperm.slane %v417, 2
      %v4496 = vlaneseq
      %v4497 = vshrl.u32 %v4496, 7
      %4499 = vset.pattern.permute.xlu0 %v4497
      %4500 = vperm.xlu0 %4499, %v4495
      %v4501 = vpop.permute.xlu0 %4500
      %v4502 = vperm.slane %v417, 3
      %v4503 = vlaneseq
      %v4504 = vshrl.u32 %v4503, 7
      %4506 = vset.pattern.permute.xlu0 %v4504
      %4507 = vperm.xlu0 %4506, %v4502
      %v4508 = vpop.permute.xlu0 %4507
      %v4509 = vperm.slane %v417, 4
      %v4510 = vlaneseq
      %v4511 = vshrl.u32 %v4510, 7
      %4513 = vset.pattern.permute.xlu0 %v4511
      %4514 = vperm.xlu0 %4513, %v4509
      %v4515 = vpop.permute.xlu0 %4514
      %v4516 = vperm.slane %v417, 5
      %v4517 = vlaneseq
      %v4518 = vshrl.u32 %v4517, 7
      %4520 = vset.pattern.permute.xlu0 %v4518
      %4521 = vperm.xlu0 %4520, %v4516
      %v4522 = vpop.permute.xlu0 %4521
      %v4523 = vperm.slane %v417, 6
      %v4524 = vlaneseq
      %v4525 = vshrl.u32 %v4524, 7
      %4527 = vset.pattern.permute.xlu0 %v4525
      %4528 = vperm.xlu0 %4527, %v4523
      %v4529 = vpop.permute.xlu0 %4528
      %v4530 = vperm.slane %v417, 7
      %v4531 = vlaneseq
      %v4532 = vshrl.u32 %v4531, 7
      %4534 = vset.pattern.permute.xlu0 %v4532
      %4535 = vperm.xlu0 %4534, %v4530
      %v4536 = vpop.permute.xlu0 %4535
      %v4537 = vperm.slane %v418, 0
      %v4538 = vlaneseq
      %v4539 = vshrl.u32 %v4538, 7
      %4541 = vset.pattern.permute.xlu0 %v4539
      %4542 = vperm.xlu0 %4541, %v4537
      %v4543 = vpop.permute.xlu0 %4542
      %v4544 = vperm.slane %v418, 1
      %v4545 = vlaneseq
      %v4546 = vshrl.u32 %v4545, 7
      %4548 = vset.pattern.permute.xlu0 %v4546
      %4549 = vperm.xlu0 %4548, %v4544
      %v4550 = vpop.permute.xlu0 %4549
      %v4551 = vperm.slane %v418, 2
      %v4552 = vlaneseq
      %v4553 = vshrl.u32 %v4552, 7
      %4555 = vset.pattern.permute.xlu0 %v4553
      %4556 = vperm.xlu0 %4555, %v4551
      %v4557 = vpop.permute.xlu0 %4556
      %v4558 = vperm.slane %v418, 3
      %v4559 = vlaneseq
      %v4560 = vshrl.u32 %v4559, 7
      %4562 = vset.pattern.permute.xlu0 %v4560
      %4563 = vperm.xlu0 %4562, %v4558
      %v4564 = vpop.permute.xlu0 %4563
      %v4565 = vperm.slane %v418, 4
      %v4566 = vlaneseq
      %v4567 = vshrl.u32 %v4566, 7
      %4569 = vset.pattern.permute.xlu0 %v4567
      %4570 = vperm.xlu0 %4569, %v4565
      %v4571 = vpop.permute.xlu0 %4570
      %v4572 = vperm.slane %v418, 5
      %v4573 = vlaneseq
      %v4574 = vshrl.u32 %v4573, 7
      %4576 = vset.pattern.permute.xlu0 %v4574
      %4577 = vperm.xlu0 %4576, %v4572
      %v4578 = vpop.permute.xlu0 %4577
      %v4579 = vperm.slane %v418, 6
      %v4580 = vlaneseq
      %v4581 = vshrl.u32 %v4580, 7
      %4583 = vset.pattern.permute.xlu0 %v4581
      %4584 = vperm.xlu0 %4583, %v4579
      %v4585 = vpop.permute.xlu0 %4584
      %v4586 = vperm.slane %v418, 7
      %v4587 = vlaneseq
      %v4588 = vshrl.u32 %v4587, 7
      %4590 = vset.pattern.permute.xlu0 %v4588
      %4591 = vperm.xlu0 %4590, %v4586
      %v4592 = vpop.permute.xlu0 %4591
      %v4593 = vperm.slane %v419, 0
      %v4594 = vlaneseq
      %v4595 = vshrl.u32 %v4594, 7
      %4597 = vset.pattern.permute.xlu0 %v4595
      %4598 = vperm.xlu0 %4597, %v4593
      %v4599 = vpop.permute.xlu0 %4598
      %v4600 = vperm.slane %v419, 1
      %v4601 = vlaneseq
      %v4602 = vshrl.u32 %v4601, 7
      %4604 = vset.pattern.permute.xlu0 %v4602
      %4605 = vperm.xlu0 %4604, %v4600
      %v4606 = vpop.permute.xlu0 %4605
      %v4607 = vperm.slane %v419, 2
      %v4608 = vlaneseq
      %v4609 = vshrl.u32 %v4608, 7
      %4611 = vset.pattern.permute.xlu0 %v4609
      %4612 = vperm.xlu0 %4611, %v4607
      %v4613 = vpop.permute.xlu0 %4612
      %v4614 = vperm.slane %v419, 3
      %v4615 = vlaneseq
      %v4616 = vshrl.u32 %v4615, 7
      %4618 = vset.pattern.permute.xlu0 %v4616
      %4619 = vperm.xlu0 %4618, %v4614
      %v4620 = vpop.permute.xlu0 %4619
      %v4621 = vperm.slane %v419, 4
      %v4622 = vlaneseq
      %v4623 = vshrl.u32 %v4622, 7
      %4625 = vset.pattern.permute.xlu0 %v4623
      %4626 = vperm.xlu0 %4625, %v4621
      %v4627 = vpop.permute.xlu0 %4626
      %v4628 = vperm.slane %v419, 5
      %v4629 = vlaneseq
      %v4630 = vshrl.u32 %v4629, 7
      %4632 = vset.pattern.permute.xlu0 %v4630
      %4633 = vperm.xlu0 %4632, %v4628
      %v4634 = vpop.permute.xlu0 %4633
      %v4635 = vperm.slane %v419, 6
      %v4636 = vlaneseq
      %v4637 = vshrl.u32 %v4636, 7
      %4639 = vset.pattern.permute.xlu0 %v4637
      %4640 = vperm.xlu0 %4639, %v4635
      %v4641 = vpop.permute.xlu0 %4640
      %v4642 = vperm.slane %v419, 7
      %v4643 = vlaneseq
      %v4644 = vshrl.u32 %v4643, 7
      %4646 = vset.pattern.permute.xlu0 %v4644
      %4647 = vperm.xlu0 %4646, %v4642
      %v4648 = vpop.permute.xlu0 %4647
      %v4649 = vperm.slane %v420, 0
      %v4650 = vlaneseq
      %v4651 = vshrl.u32 %v4650, 7
      %4653 = vset.pattern.permute.xlu0 %v4651
      %4654 = vperm.xlu0 %4653, %v4649
      %v4655 = vpop.permute.xlu0 %4654
      %v4656 = vperm.slane %v420, 1
      %v4657 = vlaneseq
      %v4658 = vshrl.u32 %v4657, 7
      %4660 = vset.pattern.permute.xlu0 %v4658
      %4661 = vperm.xlu0 %4660, %v4656
      %v4662 = vpop.permute.xlu0 %4661
      %v4663 = vperm.slane %v420, 2
      %v4664 = vlaneseq
      %v4665 = vshrl.u32 %v4664, 7
      %4667 = vset.pattern.permute.xlu0 %v4665
      %4668 = vperm.xlu0 %4667, %v4663
      %v4669 = vpop.permute.xlu0 %4668
      %v4670 = vperm.slane %v420, 3
      %v4671 = vlaneseq
      %v4672 = vshrl.u32 %v4671, 7
      %4674 = vset.pattern.permute.xlu0 %v4672
      %4675 = vperm.xlu0 %4674, %v4670
      %v4676 = vpop.permute.xlu0 %4675
      %v4677 = vperm.slane %v420, 4
      %v4678 = vlaneseq
      %v4679 = vshrl.u32 %v4678, 7
      %4681 = vset.pattern.permute.xlu0 %v4679
      %4682 = vperm.xlu0 %4681, %v4677
      %v4683 = vpop.permute.xlu0 %4682
      %v4684 = vperm.slane %v420, 5
      %v4685 = vlaneseq
      %v4686 = vshrl.u32 %v4685, 7
      %4688 = vset.pattern.permute.xlu0 %v4686
      %4689 = vperm.xlu0 %4688, %v4684
      %v4690 = vpop.permute.xlu0 %4689
      %v4691 = vperm.slane %v420, 6
      %v4692 = vlaneseq
      %v4693 = vshrl.u32 %v4692, 7
      %4695 = vset.pattern.permute.xlu0 %v4693
      %4696 = vperm.xlu0 %4695, %v4691
      %v4697 = vpop.permute.xlu0 %4696
      %v4698 = vperm.slane %v420, 7
      %v4699 = vlaneseq
      %v4700 = vshrl.u32 %v4699, 7
      %4702 = vset.pattern.permute.xlu0 %v4700
      %4703 = vperm.xlu0 %4702, %v4698
      %v4704 = vpop.permute.xlu0 %4703
      %v4833 = vmul.f32 %v3665, %v3815
      %v4834 = vmul.f32 %v3666, %v3822
      %v4835 = vmul.f32 %v3667, %v3829
      %v4836 = vmul.f32 %v3668, %v3836
      %v4837 = vmul.f32 %v3669, %v3843
      %v4838 = vmul.f32 %v3670, %v3850
      %v4839 = vmul.f32 %v3671, %v3857
      %v4840 = vmul.f32 %v3672, %v3864
      %v4841 = vmul.f32 %v3673, %v3871
      %v4842 = vmul.f32 %v3674, %v3878
      %v4843 = vmul.f32 %v3675, %v3885
      %v4844 = vmul.f32 %v3676, %v3892
      %v4845 = vmul.f32 %v3677, %v3899
      %v4846 = vmul.f32 %v3678, %v3906
      %v4847 = vmul.f32 %v3679, %v3913
      %v4848 = vmul.f32 %v3680, %v3920
      %v4849 = vmul.f32 %v3681, %v3927
      %v4850 = vmul.f32 %v3682, %v3934
      %v4851 = vmul.f32 %v3683, %v3941
      %v4852 = vmul.f32 %v3684, %v3948
      %v4853 = vmul.f32 %v3685, %v3955
      %v4854 = vmul.f32 %v3686, %v3962
      %v4855 = vmul.f32 %v3687, %v3969
      %v4856 = vmul.f32 %v3688, %v3976
      %v4857 = vmul.f32 %v3689, %v3983
      %v4858 = vmul.f32 %v3690, %v3990
      %v4859 = vmul.f32 %v3691, %v3997
      %v4860 = vmul.f32 %v3692, %v4004
      %v4861 = vmul.f32 %v3693, %v4011
      %v4862 = vmul.f32 %v3694, %v4018
      %v4863 = vmul.f32 %v3695, %v4025
      %v4864 = vmul.f32 %v3696, %v4032
      %v4865 = vmul.f32 %v3697, %v4039
      %v4866 = vmul.f32 %v3698, %v4046
      %v4867 = vmul.f32 %v3699, %v4053
      %v4868 = vmul.f32 %v3700, %v4060
      %v4869 = vmul.f32 %v3701, %v4067
      %v4870 = vmul.f32 %v3702, %v4074
      %v4871 = vmul.f32 %v3703, %v4081
      %v4872 = vmul.f32 %v3704, %v4088
      %v4873 = vmul.f32 %v3705, %v4095
      %v4874 = vmul.f32 %v3706, %v4102
      %v4875 = vmul.f32 %v3707, %v4109
      %v4876 = vmul.f32 %v3708, %v4116
      %v4877 = vmul.f32 %v3709, %v4123
      %v4878 = vmul.f32 %v3710, %v4130
      %v4879 = vmul.f32 %v3711, %v4137
      %v4880 = vmul.f32 %v3712, %v4144
      %v4881 = vmul.f32 %v3713, %v4151
      %v4882 = vmul.f32 %v3714, %v4158
      %v4883 = vmul.f32 %v3715, %v4165
      %v4884 = vmul.f32 %v3716, %v4172
      %v4885 = vmul.f32 %v3717, %v4179
      %v4886 = vmul.f32 %v3718, %v4186
      %v4887 = vmul.f32 %v3719, %v4193
      %v4888 = vmul.f32 %v3720, %v4200
      %v4889 = vmul.f32 %v3721, %v4207
      %v4890 = vmul.f32 %v3722, %v4214
      %v4891 = vmul.f32 %v3723, %v4221
      %v4892 = vmul.f32 %v3724, %v4228
      %v4893 = vmul.f32 %v3725, %v4235
      %v4894 = vmul.f32 %v3726, %v4242
      %v4895 = vmul.f32 %v3727, %v4249
      %v4896 = vmul.f32 %v3728, %v4256
      %v4897 = vmul.f32 %v3729, %v4263
      %v4898 = vmul.f32 %v3730, %v4270
      %v4899 = vmul.f32 %v3731, %v4277
      %v4900 = vmul.f32 %v3732, %v4284
      %v4901 = vmul.f32 %v3733, %v4291
      %v4902 = vmul.f32 %v3734, %v4298
      %v4903 = vmul.f32 %v3735, %v4305
      %v4904 = vmul.f32 %v3736, %v4312
      %v4905 = vmul.f32 %v3737, %v4319
      %v4906 = vmul.f32 %v3738, %v4326
      %v4907 = vmul.f32 %v3739, %v4333
      %v4908 = vmul.f32 %v3740, %v4340
      %v4909 = vmul.f32 %v3741, %v4347
      %v4910 = vmul.f32 %v3742, %v4354
      %v4911 = vmul.f32 %v3743, %v4361
      %v4912 = vmul.f32 %v3744, %v4368
      %v4913 = vmul.f32 %v3745, %v4375
      %v4914 = vmul.f32 %v3746, %v4382
      %v4915 = vmul.f32 %v3747, %v4389
      %v4916 = vmul.f32 %v3748, %v4396
      %v4917 = vmul.f32 %v3749, %v4403
      %v4918 = vmul.f32 %v3750, %v4410
      %v4919 = vmul.f32 %v3751, %v4417
      %v4920 = vmul.f32 %v3752, %v4424
      %v4921 = vmul.f32 %v3753, %v4431
      %v4922 = vmul.f32 %v3754, %v4438
      %v4923 = vmul.f32 %v3755, %v4445
      %v4924 = vmul.f32 %v3756, %v4452
      %v4925 = vmul.f32 %v3757, %v4459
      %v4926 = vmul.f32 %v3758, %v4466
      %v4927 = vmul.f32 %v3759, %v4473
      %v4928 = vmul.f32 %v3760, %v4480
      %v4929 = vmul.f32 %v3761, %v4487
      %v4930 = vmul.f32 %v3762, %v4494
      %v4931 = vmul.f32 %v3763, %v4501
      %v4932 = vmul.f32 %v3764, %v4508
      %v4933 = vmul.f32 %v3765, %v4515
      %v4934 = vmul.f32 %v3766, %v4522
      %v4935 = vmul.f32 %v3767, %v4529
      %v4936 = vmul.f32 %v3768, %v4536
      %v4937 = vmul.f32 %v3769, %v4543
      %v4938 = vmul.f32 %v3770, %v4550
      %v4939 = vmul.f32 %v3771, %v4557
      %v4940 = vmul.f32 %v3772, %v4564
      %v4941 = vmul.f32 %v3773, %v4571
      %v4942 = vmul.f32 %v3774, %v4578
      %v4943 = vmul.f32 %v3775, %v4585
      %v4944 = vmul.f32 %v3776, %v4592
      %v4945 = vmul.f32 %v3777, %v4599
      %v4946 = vmul.f32 %v3778, %v4606
      %v4947 = vmul.f32 %v3779, %v4613
      %v4948 = vmul.f32 %v3780, %v4620
      %v4949 = vmul.f32 %v3781, %v4627
      %v4950 = vmul.f32 %v3782, %v4634
      %v4951 = vmul.f32 %v3783, %v4641
      %v4952 = vmul.f32 %v3784, %v4648
      %v4953 = vmul.f32 %v3785, %v4655
      %v4954 = vmul.f32 %v3786, %v4662
      %v4955 = vmul.f32 %v3787, %v4669
      %v4956 = vmul.f32 %v3788, %v4676
      %v4957 = vmul.f32 %v3789, %v4683
      %v4958 = vmul.f32 %v3790, %v4690
      %v4959 = vmul.f32 %v3791, %v4697
      %v4960 = vmul.f32 %v3792, %v4704
      %4969 = vset.pattern.permute.xlu0 0
      %4970 = vperm.xlu0 %4969, %v4833
      %v4971 = vpop.permute.xlu0 %4970
      %4972 = vset.pattern.permute.xlu0 0
      %4973 = vperm.xlu0 %4972, %v4834
      %v4974 = vpop.permute.xlu0 %4973
      %4975 = vset.pattern.permute.xlu0 0
      %4976 = vperm.xlu0 %4975, %v4835
      %v4977 = vpop.permute.xlu0 %4976
      %4978 = vset.pattern.permute.xlu0 0
      %4979 = vperm.xlu0 %4978, %v4836
      %v4980 = vpop.permute.xlu0 %4979
      %4981 = vset.pattern.permute.xlu0 0
      %4982 = vperm.xlu0 %4981, %v4837
      %v4983 = vpop.permute.xlu0 %4982
      %4984 = vset.pattern.permute.xlu0 0
      %4985 = vperm.xlu0 %4984, %v4838
      %v4986 = vpop.permute.xlu0 %4985
      %4987 = vset.pattern.permute.xlu0 0
      %4988 = vperm.xlu0 %4987, %v4839
      %v4989 = vpop.permute.xlu0 %4988
      %4990 = vset.pattern.permute.xlu0 0
      %4991 = vperm.xlu0 %4990, %v4840
      %v4992 = vpop.permute.xlu0 %4991
      %v4993 = vlaneseq
      %v4994 = vand.u32 %v4993, 127
      %v4995 = vperm.slane %v4971, %v4994
      %v4996 = vperm.slane %v4974, %v4994
      %v4997 = vperm.slane %v4977, %v4994
      %v4998 = vperm.slane %v4980, %v4994
      %v4999 = vperm.slane %v4983, %v4994
      %v5000 = vperm.slane %v4986, %v4994
      %v5001 = vperm.slane %v4989, %v4994
      %v5002 = vperm.slane %v4992, %v4994
      %vm5003 = vcmask 1041409
      %v5004 = vsel %vm5003, %v4996, %v4995
      %vm5005 = vcmask 1042434
      %v5006 = vsel %vm5005, %v4997, %v5004
      %vm5007 = vcmask 1043459
      %v5008 = vsel %vm5007, %v4998, %v5006
      %vm5009 = vcmask 1044484
      %v5010 = vsel %vm5009, %v4999, %v5008
      %vm5011 = vcmask 1045509
      %v5012 = vsel %vm5011, %v5000, %v5010
      %vm5013 = vcmask 1046534
      %v5014 = vsel %vm5013, %v5001, %v5012
      %vm5015 = vcmask 1047559
      %v5016 = vsel %vm5015, %v5002, %v5014
      %vm5018 = vcmask 64512
      %v5019 = vsel %vm5018, %v5016, 0
      %5021 = vmatpush.msra.mxu0 0.0
      %5022 = vmatpush.msra.mxu0 0.0
      %5023 = vmatpush.msra.mxu0 0.0
      %5024 = vmatpush.msra.mxu0 0.0
      %5025 = vmatpush.msra.mxu0 0.0
      %5026 = vmatpush.msra.mxu0 0.0
      %5027 = vmatpush.msra.mxu0 0.0
      %5028 = vmatpush.msra.mxu0 0.0
      %5029 = vmatpush.msra.mxu0 0.0
      %5030 = vmatpush.msra.mxu0 0.0
      %5031 = vmatpush.msra.mxu0 0.0
      %5032 = vmatpush.msra.mxu0 0.0
      %5033 = vmatpush.msra.mxu0 0.0
      %5034 = vmatpush.msra.mxu0 0.0
      %5035 = vmatpush.msra.mxu0 0.0
      %5036 = vmatpush.msra.mxu0 %v1436
      %5037 = vmatmul.f32.gmra.mxu0 %v5019
      %v5038 = vpop.f32.mrf.mxu0
      %v5039 = vadd.f32 0.0, %v5038
      %5040 = vdwg.mxu0
      %5049 = vset.pattern.permute.xlu0 0
      %5050 = vperm.xlu0 %5049, %v4841
      %v5051 = vpop.permute.xlu0 %5050
      %5052 = vset.pattern.permute.xlu0 0
      %5053 = vperm.xlu0 %5052, %v4842
      %v5054 = vpop.permute.xlu0 %5053
      %5055 = vset.pattern.permute.xlu0 0
      %5056 = vperm.xlu0 %5055, %v4843
      %v5057 = vpop.permute.xlu0 %5056
      %5058 = vset.pattern.permute.xlu0 0
      %5059 = vperm.xlu0 %5058, %v4844
      %v5060 = vpop.permute.xlu0 %5059
      %5061 = vset.pattern.permute.xlu0 0
      %5062 = vperm.xlu0 %5061, %v4845
      %v5063 = vpop.permute.xlu0 %5062
      %5064 = vset.pattern.permute.xlu0 0
      %5065 = vperm.xlu0 %5064, %v4846
      %v5066 = vpop.permute.xlu0 %5065
      %5067 = vset.pattern.permute.xlu0 0
      %5068 = vperm.xlu0 %5067, %v4847
      %v5069 = vpop.permute.xlu0 %5068
      %5070 = vset.pattern.permute.xlu0 0
      %5071 = vperm.xlu0 %5070, %v4848
      %v5072 = vpop.permute.xlu0 %5071
      %v5073 = vperm.slane %v5051, %v4994
      %v5074 = vperm.slane %v5054, %v4994
      %v5075 = vperm.slane %v5057, %v4994
      %v5076 = vperm.slane %v5060, %v4994
      %v5077 = vperm.slane %v5063, %v4994
      %v5078 = vperm.slane %v5066, %v4994
      %v5079 = vperm.slane %v5069, %v4994
      %v5080 = vperm.slane %v5072, %v4994
      %v5081 = vsel %vm5003, %v5074, %v5073
      %v5082 = vsel %vm5005, %v5075, %v5081
      %v5083 = vsel %vm5007, %v5076, %v5082
      %v5084 = vsel %vm5009, %v5077, %v5083
      %v5085 = vsel %vm5011, %v5078, %v5084
      %v5086 = vsel %vm5013, %v5079, %v5085
      %v5087 = vsel %vm5015, %v5080, %v5086
      %v5089 = vsel %vm5018, %v5087, 0
      %5091 = vmatpush.msra.mxu0 0.0
      %5092 = vmatpush.msra.mxu0 0.0
      %5093 = vmatpush.msra.mxu0 0.0
      %5094 = vmatpush.msra.mxu0 0.0
      %5095 = vmatpush.msra.mxu0 0.0
      %5096 = vmatpush.msra.mxu0 0.0
      %5097 = vmatpush.msra.mxu0 0.0
      %5098 = vmatpush.msra.mxu0 0.0
      %5099 = vmatpush.msra.mxu0 0.0
      %5100 = vmatpush.msra.mxu0 0.0
      %5101 = vmatpush.msra.mxu0 0.0
      %5102 = vmatpush.msra.mxu0 0.0
      %5103 = vmatpush.msra.mxu0 0.0
      %5104 = vmatpush.msra.mxu0 0.0
      %5105 = vmatpush.msra.mxu0 0.0
      %5106 = vmatpush.msra.mxu0 %v1438
      %5107 = vmatmul.f32.gmra.mxu0 %v5089
      %v5108 = vpop.f32.mrf.mxu0
      %v5109 = vadd.f32 0.0, %v5108
      %5110 = vdwg.mxu0
      %5119 = vset.pattern.permute.xlu0 0
      %5120 = vperm.xlu0 %5119, %v4849
      %v5121 = vpop.permute.xlu0 %5120
      %5122 = vset.pattern.permute.xlu0 0
      %5123 = vperm.xlu0 %5122, %v4850
      %v5124 = vpop.permute.xlu0 %5123
      %5125 = vset.pattern.permute.xlu0 0
      %5126 = vperm.xlu0 %5125, %v4851
      %v5127 = vpop.permute.xlu0 %5126
      %5128 = vset.pattern.permute.xlu0 0
      %5129 = vperm.xlu0 %5128, %v4852
      %v5130 = vpop.permute.xlu0 %5129
      %5131 = vset.pattern.permute.xlu0 0
      %5132 = vperm.xlu0 %5131, %v4853
      %v5133 = vpop.permute.xlu0 %5132
      %5134 = vset.pattern.permute.xlu0 0
      %5135 = vperm.xlu0 %5134, %v4854
      %v5136 = vpop.permute.xlu0 %5135
      %5137 = vset.pattern.permute.xlu0 0
      %5138 = vperm.xlu0 %5137, %v4855
      %v5139 = vpop.permute.xlu0 %5138
      %5140 = vset.pattern.permute.xlu0 0
      %5141 = vperm.xlu0 %5140, %v4856
      %v5142 = vpop.permute.xlu0 %5141
      %v5143 = vperm.slane %v5121, %v4994
      %v5144 = vperm.slane %v5124, %v4994
      %v5145 = vperm.slane %v5127, %v4994
      %v5146 = vperm.slane %v5130, %v4994
      %v5147 = vperm.slane %v5133, %v4994
      %v5148 = vperm.slane %v5136, %v4994
      %v5149 = vperm.slane %v5139, %v4994
      %v5150 = vperm.slane %v5142, %v4994
      %v5151 = vsel %vm5003, %v5144, %v5143
      %v5152 = vsel %vm5005, %v5145, %v5151
      %v5153 = vsel %vm5007, %v5146, %v5152
      %v5154 = vsel %vm5009, %v5147, %v5153
      %v5155 = vsel %vm5011, %v5148, %v5154
      %v5156 = vsel %vm5013, %v5149, %v5155
      %v5157 = vsel %vm5015, %v5150, %v5156
      %v5159 = vsel %vm5018, %v5157, 0
      %5161 = vmatpush.msra.mxu0 0.0
      %5162 = vmatpush.msra.mxu0 0.0
      %5163 = vmatpush.msra.mxu0 0.0
      %5164 = vmatpush.msra.mxu0 0.0
      %5165 = vmatpush.msra.mxu0 0.0
      %5166 = vmatpush.msra.mxu0 0.0
      %5167 = vmatpush.msra.mxu0 0.0
      %5168 = vmatpush.msra.mxu0 0.0
      %5169 = vmatpush.msra.mxu0 0.0
      %5170 = vmatpush.msra.mxu0 0.0
      %5171 = vmatpush.msra.mxu0 0.0
      %5172 = vmatpush.msra.mxu0 0.0
      %5173 = vmatpush.msra.mxu0 0.0
      %5174 = vmatpush.msra.mxu0 0.0
      %5175 = vmatpush.msra.mxu0 0.0
      %5176 = vmatpush.msra.mxu0 %v1440
      %5177 = vmatmul.f32.gmra.mxu0 %v5159
      %v5178 = vpop.f32.mrf.mxu0
      %v5179 = vadd.f32 0.0, %v5178
      %5180 = vdwg.mxu0
      %5189 = vset.pattern.permute.xlu0 0
      %5190 = vperm.xlu0 %5189, %v4857
      %v5191 = vpop.permute.xlu0 %5190
      %5192 = vset.pattern.permute.xlu0 0
      %5193 = vperm.xlu0 %5192, %v4858
      %v5194 = vpop.permute.xlu0 %5193
      %5195 = vset.pattern.permute.xlu0 0
      %5196 = vperm.xlu0 %5195, %v4859
      %v5197 = vpop.permute.xlu0 %5196
      %5198 = vset.pattern.permute.xlu0 0
      %5199 = vperm.xlu0 %5198, %v4860
      %v5200 = vpop.permute.xlu0 %5199
      %5201 = vset.pattern.permute.xlu0 0
      %5202 = vperm.xlu0 %5201, %v4861
      %v5203 = vpop.permute.xlu0 %5202
      %5204 = vset.pattern.permute.xlu0 0
      %5205 = vperm.xlu0 %5204, %v4862
      %v5206 = vpop.permute.xlu0 %5205
      %5207 = vset.pattern.permute.xlu0 0
      %5208 = vperm.xlu0 %5207, %v4863
      %v5209 = vpop.permute.xlu0 %5208
      %5210 = vset.pattern.permute.xlu0 0
      %5211 = vperm.xlu0 %5210, %v4864
      %v5212 = vpop.permute.xlu0 %5211
      %v5213 = vperm.slane %v5191, %v4994
      %v5214 = vperm.slane %v5194, %v4994
      %v5215 = vperm.slane %v5197, %v4994
      %v5216 = vperm.slane %v5200, %v4994
      %v5217 = vperm.slane %v5203, %v4994
      %v5218 = vperm.slane %v5206, %v4994
      %v5219 = vperm.slane %v5209, %v4994
      %v5220 = vperm.slane %v5212, %v4994
      %v5221 = vsel %vm5003, %v5214, %v5213
      %v5222 = vsel %vm5005, %v5215, %v5221
      %v5223 = vsel %vm5007, %v5216, %v5222
      %v5224 = vsel %vm5009, %v5217, %v5223
      %v5225 = vsel %vm5011, %v5218, %v5224
      %v5226 = vsel %vm5013, %v5219, %v5225
      %v5227 = vsel %vm5015, %v5220, %v5226
      %v5229 = vsel %vm5018, %v5227, 0
      %5231 = vmatpush.msra.mxu0 0.0
      %5232 = vmatpush.msra.mxu0 0.0
      %5233 = vmatpush.msra.mxu0 0.0
      %5234 = vmatpush.msra.mxu0 0.0
      %5235 = vmatpush.msra.mxu0 0.0
      %5236 = vmatpush.msra.mxu0 0.0
      %5237 = vmatpush.msra.mxu0 0.0
      %5238 = vmatpush.msra.mxu0 0.0
      %5239 = vmatpush.msra.mxu0 0.0
      %5240 = vmatpush.msra.mxu0 0.0
      %5241 = vmatpush.msra.mxu0 0.0
      %5242 = vmatpush.msra.mxu0 0.0
      %5243 = vmatpush.msra.mxu0 0.0
      %5244 = vmatpush.msra.mxu0 0.0
      %5245 = vmatpush.msra.mxu0 0.0
      %5246 = vmatpush.msra.mxu0 %v1442
      %5247 = vmatmul.f32.gmra.mxu0 %v5229
      %v5248 = vpop.f32.mrf.mxu0
      %v5249 = vadd.f32 0.0, %v5248
      %5250 = vdwg.mxu0
      %5259 = vset.pattern.permute.xlu0 0
      %5260 = vperm.xlu0 %5259, %v4865
      %v5261 = vpop.permute.xlu0 %5260
      %5262 = vset.pattern.permute.xlu0 0
      %5263 = vperm.xlu0 %5262, %v4866
      %v5264 = vpop.permute.xlu0 %5263
      %5265 = vset.pattern.permute.xlu0 0
      %5266 = vperm.xlu0 %5265, %v4867
      %v5267 = vpop.permute.xlu0 %5266
      %5268 = vset.pattern.permute.xlu0 0
      %5269 = vperm.xlu0 %5268, %v4868
      %v5270 = vpop.permute.xlu0 %5269
      %5271 = vset.pattern.permute.xlu0 0
      %5272 = vperm.xlu0 %5271, %v4869
      %v5273 = vpop.permute.xlu0 %5272
      %5274 = vset.pattern.permute.xlu0 0
      %5275 = vperm.xlu0 %5274, %v4870
      %v5276 = vpop.permute.xlu0 %5275
      %5277 = vset.pattern.permute.xlu0 0
      %5278 = vperm.xlu0 %5277, %v4871
      %v5279 = vpop.permute.xlu0 %5278
      %5280 = vset.pattern.permute.xlu0 0
      %5281 = vperm.xlu0 %5280, %v4872
      %v5282 = vpop.permute.xlu0 %5281
      %v5283 = vperm.slane %v5261, %v4994
      %v5284 = vperm.slane %v5264, %v4994
      %v5285 = vperm.slane %v5267, %v4994
      %v5286 = vperm.slane %v5270, %v4994
      %v5287 = vperm.slane %v5273, %v4994
      %v5288 = vperm.slane %v5276, %v4994
      %v5289 = vperm.slane %v5279, %v4994
      %v5290 = vperm.slane %v5282, %v4994
      %v5291 = vsel %vm5003, %v5284, %v5283
      %v5292 = vsel %vm5005, %v5285, %v5291
      %v5293 = vsel %vm5007, %v5286, %v5292
      %v5294 = vsel %vm5009, %v5287, %v5293
      %v5295 = vsel %vm5011, %v5288, %v5294
      %v5296 = vsel %vm5013, %v5289, %v5295
      %v5297 = vsel %vm5015, %v5290, %v5296
      %v5299 = vsel %vm5018, %v5297, 0
      %5301 = vmatpush.msra.mxu0 0.0
      %5302 = vmatpush.msra.mxu0 0.0
      %5303 = vmatpush.msra.mxu0 0.0
      %5304 = vmatpush.msra.mxu0 0.0
      %5305 = vmatpush.msra.mxu0 0.0
      %5306 = vmatpush.msra.mxu0 0.0
      %5307 = vmatpush.msra.mxu0 0.0
      %5308 = vmatpush.msra.mxu0 0.0
      %5309 = vmatpush.msra.mxu0 0.0
      %5310 = vmatpush.msra.mxu0 0.0
      %5311 = vmatpush.msra.mxu0 0.0
      %5312 = vmatpush.msra.mxu0 0.0
      %5313 = vmatpush.msra.mxu0 0.0
      %5314 = vmatpush.msra.mxu0 0.0
      %5315 = vmatpush.msra.mxu0 0.0
      %5316 = vmatpush.msra.mxu0 %v1444
      %5317 = vmatmul.f32.gmra.mxu0 %v5299
      %v5318 = vpop.f32.mrf.mxu0
      %v5319 = vadd.f32 0.0, %v5318
      %5320 = vdwg.mxu0
      %5329 = vset.pattern.permute.xlu0 0
      %5330 = vperm.xlu0 %5329, %v4873
      %v5331 = vpop.permute.xlu0 %5330
      %5332 = vset.pattern.permute.xlu0 0
      %5333 = vperm.xlu0 %5332, %v4874
      %v5334 = vpop.permute.xlu0 %5333
      %5335 = vset.pattern.permute.xlu0 0
      %5336 = vperm.xlu0 %5335, %v4875
      %v5337 = vpop.permute.xlu0 %5336
      %5338 = vset.pattern.permute.xlu0 0
      %5339 = vperm.xlu0 %5338, %v4876
      %v5340 = vpop.permute.xlu0 %5339
      %5341 = vset.pattern.permute.xlu0 0
      %5342 = vperm.xlu0 %5341, %v4877
      %v5343 = vpop.permute.xlu0 %5342
      %5344 = vset.pattern.permute.xlu0 0
      %5345 = vperm.xlu0 %5344, %v4878
      %v5346 = vpop.permute.xlu0 %5345
      %5347 = vset.pattern.permute.xlu0 0
      %5348 = vperm.xlu0 %5347, %v4879
      %v5349 = vpop.permute.xlu0 %5348
      %5350 = vset.pattern.permute.xlu0 0
      %5351 = vperm.xlu0 %5350, %v4880
      %v5352 = vpop.permute.xlu0 %5351
      %v5353 = vperm.slane %v5331, %v4994
      %v5354 = vperm.slane %v5334, %v4994
      %v5355 = vperm.slane %v5337, %v4994
      %v5356 = vperm.slane %v5340, %v4994
      %v5357 = vperm.slane %v5343, %v4994
      %v5358 = vperm.slane %v5346, %v4994
      %v5359 = vperm.slane %v5349, %v4994
      %v5360 = vperm.slane %v5352, %v4994
      %v5361 = vsel %vm5003, %v5354, %v5353
      %v5362 = vsel %vm5005, %v5355, %v5361
      %v5363 = vsel %vm5007, %v5356, %v5362
      %v5364 = vsel %vm5009, %v5357, %v5363
      %v5365 = vsel %vm5011, %v5358, %v5364
      %v5366 = vsel %vm5013, %v5359, %v5365
      %v5367 = vsel %vm5015, %v5360, %v5366
      %v5369 = vsel %vm5018, %v5367, 0
      %5371 = vmatpush.msra.mxu0 0.0
      %5372 = vmatpush.msra.mxu0 0.0
      %5373 = vmatpush.msra.mxu0 0.0
      %5374 = vmatpush.msra.mxu0 0.0
      %5375 = vmatpush.msra.mxu0 0.0
      %5376 = vmatpush.msra.mxu0 0.0
      %5377 = vmatpush.msra.mxu0 0.0
      %5378 = vmatpush.msra.mxu0 0.0
      %5379 = vmatpush.msra.mxu0 0.0
      %5380 = vmatpush.msra.mxu0 0.0
      %5381 = vmatpush.msra.mxu0 0.0
      %5382 = vmatpush.msra.mxu0 0.0
      %5383 = vmatpush.msra.mxu0 0.0
      %5384 = vmatpush.msra.mxu0 0.0
      %5385 = vmatpush.msra.mxu0 0.0
      %5386 = vmatpush.msra.mxu0 %v1446
      %5387 = vmatmul.f32.gmra.mxu0 %v5369
      %v5388 = vpop.f32.mrf.mxu0
      %v5389 = vadd.f32 0.0, %v5388
      %5390 = vdwg.mxu0
      %5399 = vset.pattern.permute.xlu0 0
      %5400 = vperm.xlu0 %5399, %v4881
      %v5401 = vpop.permute.xlu0 %5400
      %5402 = vset.pattern.permute.xlu0 0
      %5403 = vperm.xlu0 %5402, %v4882
      %v5404 = vpop.permute.xlu0 %5403
      %5405 = vset.pattern.permute.xlu0 0
      %5406 = vperm.xlu0 %5405, %v4883
      %v5407 = vpop.permute.xlu0 %5406
      %5408 = vset.pattern.permute.xlu0 0
      %5409 = vperm.xlu0 %5408, %v4884
      %v5410 = vpop.permute.xlu0 %5409
      %5411 = vset.pattern.permute.xlu0 0
      %5412 = vperm.xlu0 %5411, %v4885
      %v5413 = vpop.permute.xlu0 %5412
      %5414 = vset.pattern.permute.xlu0 0
      %5415 = vperm.xlu0 %5414, %v4886
      %v5416 = vpop.permute.xlu0 %5415
      %5417 = vset.pattern.permute.xlu0 0
      %5418 = vperm.xlu0 %5417, %v4887
      %v5419 = vpop.permute.xlu0 %5418
      %5420 = vset.pattern.permute.xlu0 0
      %5421 = vperm.xlu0 %5420, %v4888
      %v5422 = vpop.permute.xlu0 %5421
      %v5423 = vperm.slane %v5401, %v4994
      %v5424 = vperm.slane %v5404, %v4994
      %v5425 = vperm.slane %v5407, %v4994
      %v5426 = vperm.slane %v5410, %v4994
      %v5427 = vperm.slane %v5413, %v4994
      %v5428 = vperm.slane %v5416, %v4994
      %v5429 = vperm.slane %v5419, %v4994
      %v5430 = vperm.slane %v5422, %v4994
      %v5431 = vsel %vm5003, %v5424, %v5423
      %v5432 = vsel %vm5005, %v5425, %v5431
      %v5433 = vsel %vm5007, %v5426, %v5432
      %v5434 = vsel %vm5009, %v5427, %v5433
      %v5435 = vsel %vm5011, %v5428, %v5434
      %v5436 = vsel %vm5013, %v5429, %v5435
      %v5437 = vsel %vm5015, %v5430, %v5436
      %v5439 = vsel %vm5018, %v5437, 0
      %5441 = vmatpush.msra.mxu0 0.0
      %5442 = vmatpush.msra.mxu0 0.0
      %5443 = vmatpush.msra.mxu0 0.0
      %5444 = vmatpush.msra.mxu0 0.0
      %5445 = vmatpush.msra.mxu0 0.0
      %5446 = vmatpush.msra.mxu0 0.0
      %5447 = vmatpush.msra.mxu0 0.0
      %5448 = vmatpush.msra.mxu0 0.0
      %5449 = vmatpush.msra.mxu0 0.0
      %5450 = vmatpush.msra.mxu0 0.0
      %5451 = vmatpush.msra.mxu0 0.0
      %5452 = vmatpush.msra.mxu0 0.0
      %5453 = vmatpush.msra.mxu0 0.0
      %5454 = vmatpush.msra.mxu0 0.0
      %5455 = vmatpush.msra.mxu0 0.0
      %5456 = vmatpush.msra.mxu0 %v1448
      %5457 = vmatmul.f32.gmra.mxu0 %v5439
      %v5458 = vpop.f32.mrf.mxu0
      %v5459 = vadd.f32 0.0, %v5458
      %5460 = vdwg.mxu0
      %5469 = vset.pattern.permute.xlu0 0
      %5470 = vperm.xlu0 %5469, %v4889
      %v5471 = vpop.permute.xlu0 %5470
      %5472 = vset.pattern.permute.xlu0 0
      %5473 = vperm.xlu0 %5472, %v4890
      %v5474 = vpop.permute.xlu0 %5473
      %5475 = vset.pattern.permute.xlu0 0
      %5476 = vperm.xlu0 %5475, %v4891
      %v5477 = vpop.permute.xlu0 %5476
      %5478 = vset.pattern.permute.xlu0 0
      %5479 = vperm.xlu0 %5478, %v4892
      %v5480 = vpop.permute.xlu0 %5479
      %5481 = vset.pattern.permute.xlu0 0
      %5482 = vperm.xlu0 %5481, %v4893
      %v5483 = vpop.permute.xlu0 %5482
      %5484 = vset.pattern.permute.xlu0 0
      %5485 = vperm.xlu0 %5484, %v4894
      %v5486 = vpop.permute.xlu0 %5485
      %5487 = vset.pattern.permute.xlu0 0
      %5488 = vperm.xlu0 %5487, %v4895
      %v5489 = vpop.permute.xlu0 %5488
      %5490 = vset.pattern.permute.xlu0 0
      %5491 = vperm.xlu0 %5490, %v4896
      %v5492 = vpop.permute.xlu0 %5491
      %v5493 = vperm.slane %v5471, %v4994
      %v5494 = vperm.slane %v5474, %v4994
      %v5495 = vperm.slane %v5477, %v4994
      %v5496 = vperm.slane %v5480, %v4994
      %v5497 = vperm.slane %v5483, %v4994
      %v5498 = vperm.slane %v5486, %v4994
      %v5499 = vperm.slane %v5489, %v4994
      %v5500 = vperm.slane %v5492, %v4994
      %v5501 = vsel %vm5003, %v5494, %v5493
      %v5502 = vsel %vm5005, %v5495, %v5501
      %v5503 = vsel %vm5007, %v5496, %v5502
      %v5504 = vsel %vm5009, %v5497, %v5503
      %v5505 = vsel %vm5011, %v5498, %v5504
      %v5506 = vsel %vm5013, %v5499, %v5505
      %v5507 = vsel %vm5015, %v5500, %v5506
      %v5509 = vsel %vm5018, %v5507, 0
      %5511 = vmatpush.msra.mxu0 0.0
      %5512 = vmatpush.msra.mxu0 0.0
      %5513 = vmatpush.msra.mxu0 0.0
      %5514 = vmatpush.msra.mxu0 0.0
      %5515 = vmatpush.msra.mxu0 0.0
      %5516 = vmatpush.msra.mxu0 0.0
      %5517 = vmatpush.msra.mxu0 0.0
      %5518 = vmatpush.msra.mxu0 0.0
      %5519 = vmatpush.msra.mxu0 0.0
      %5520 = vmatpush.msra.mxu0 0.0
      %5521 = vmatpush.msra.mxu0 0.0
      %5522 = vmatpush.msra.mxu0 0.0
      %5523 = vmatpush.msra.mxu0 0.0
      %5524 = vmatpush.msra.mxu0 0.0
      %5525 = vmatpush.msra.mxu0 0.0
      %5526 = vmatpush.msra.mxu0 %v1450
      %5527 = vmatmul.f32.gmra.mxu0 %v5509
      %v5528 = vpop.f32.mrf.mxu0
      %v5529 = vadd.f32 0.0, %v5528
      %5530 = vdwg.mxu0
      %5539 = vset.pattern.permute.xlu0 0
      %5540 = vperm.xlu0 %5539, %v4897
      %v5541 = vpop.permute.xlu0 %5540
      %5542 = vset.pattern.permute.xlu0 0
      %5543 = vperm.xlu0 %5542, %v4898
      %v5544 = vpop.permute.xlu0 %5543
      %5545 = vset.pattern.permute.xlu0 0
      %5546 = vperm.xlu0 %5545, %v4899
      %v5547 = vpop.permute.xlu0 %5546
      %5548 = vset.pattern.permute.xlu0 0
      %5549 = vperm.xlu0 %5548, %v4900
      %v5550 = vpop.permute.xlu0 %5549
      %5551 = vset.pattern.permute.xlu0 0
      %5552 = vperm.xlu0 %5551, %v4901
      %v5553 = vpop.permute.xlu0 %5552
      %5554 = vset.pattern.permute.xlu0 0
      %5555 = vperm.xlu0 %5554, %v4902
      %v5556 = vpop.permute.xlu0 %5555
      %5557 = vset.pattern.permute.xlu0 0
      %5558 = vperm.xlu0 %5557, %v4903
      %v5559 = vpop.permute.xlu0 %5558
      %5560 = vset.pattern.permute.xlu0 0
      %5561 = vperm.xlu0 %5560, %v4904
      %v5562 = vpop.permute.xlu0 %5561
      %v5563 = vperm.slane %v5541, %v4994
      %v5564 = vperm.slane %v5544, %v4994
      %v5565 = vperm.slane %v5547, %v4994
      %v5566 = vperm.slane %v5550, %v4994
      %v5567 = vperm.slane %v5553, %v4994
      %v5568 = vperm.slane %v5556, %v4994
      %v5569 = vperm.slane %v5559, %v4994
      %v5570 = vperm.slane %v5562, %v4994
      %v5571 = vsel %vm5003, %v5564, %v5563
      %v5572 = vsel %vm5005, %v5565, %v5571
      %v5573 = vsel %vm5007, %v5566, %v5572
      %v5574 = vsel %vm5009, %v5567, %v5573
      %v5575 = vsel %vm5011, %v5568, %v5574
      %v5576 = vsel %vm5013, %v5569, %v5575
      %v5577 = vsel %vm5015, %v5570, %v5576
      %v5579 = vsel %vm5018, %v5577, 0
      %5581 = vmatpush.msra.mxu0 0.0
      %5582 = vmatpush.msra.mxu0 0.0
      %5583 = vmatpush.msra.mxu0 0.0
      %5584 = vmatpush.msra.mxu0 0.0
      %5585 = vmatpush.msra.mxu0 0.0
      %5586 = vmatpush.msra.mxu0 0.0
      %5587 = vmatpush.msra.mxu0 0.0
      %5588 = vmatpush.msra.mxu0 0.0
      %5589 = vmatpush.msra.mxu0 0.0
      %5590 = vmatpush.msra.mxu0 0.0
      %5591 = vmatpush.msra.mxu0 0.0
      %5592 = vmatpush.msra.mxu0 0.0
      %5593 = vmatpush.msra.mxu0 0.0
      %5594 = vmatpush.msra.mxu0 0.0
      %5595 = vmatpush.msra.mxu0 0.0
      %5596 = vmatpush.msra.mxu0 %v1452
      %5597 = vmatmul.f32.gmra.mxu0 %v5579
      %v5598 = vpop.f32.mrf.mxu0
      %v5599 = vadd.f32 0.0, %v5598
      %5600 = vdwg.mxu0
      %5609 = vset.pattern.permute.xlu0 0
      %5610 = vperm.xlu0 %5609, %v4905
      %v5611 = vpop.permute.xlu0 %5610
      %5612 = vset.pattern.permute.xlu0 0
      %5613 = vperm.xlu0 %5612, %v4906
      %v5614 = vpop.permute.xlu0 %5613
      %5615 = vset.pattern.permute.xlu0 0
      %5616 = vperm.xlu0 %5615, %v4907
      %v5617 = vpop.permute.xlu0 %5616
      %5618 = vset.pattern.permute.xlu0 0
      %5619 = vperm.xlu0 %5618, %v4908
      %v5620 = vpop.permute.xlu0 %5619
      %5621 = vset.pattern.permute.xlu0 0
      %5622 = vperm.xlu0 %5621, %v4909
      %v5623 = vpop.permute.xlu0 %5622
      %5624 = vset.pattern.permute.xlu0 0
      %5625 = vperm.xlu0 %5624, %v4910
      %v5626 = vpop.permute.xlu0 %5625
      %5627 = vset.pattern.permute.xlu0 0
      %5628 = vperm.xlu0 %5627, %v4911
      %v5629 = vpop.permute.xlu0 %5628
      %5630 = vset.pattern.permute.xlu0 0
      %5631 = vperm.xlu0 %5630, %v4912
      %v5632 = vpop.permute.xlu0 %5631
      %v5633 = vperm.slane %v5611, %v4994
      %v5634 = vperm.slane %v5614, %v4994
      %v5635 = vperm.slane %v5617, %v4994
      %v5636 = vperm.slane %v5620, %v4994
      %v5637 = vperm.slane %v5623, %v4994
      %v5638 = vperm.slane %v5626, %v4994
      %v5639 = vperm.slane %v5629, %v4994
      %v5640 = vperm.slane %v5632, %v4994
      %v5641 = vsel %vm5003, %v5634, %v5633
      %v5642 = vsel %vm5005, %v5635, %v5641
      %v5643 = vsel %vm5007, %v5636, %v5642
      %v5644 = vsel %vm5009, %v5637, %v5643
      %v5645 = vsel %vm5011, %v5638, %v5644
      %v5646 = vsel %vm5013, %v5639, %v5645
      %v5647 = vsel %vm5015, %v5640, %v5646
      %v5649 = vsel %vm5018, %v5647, 0
      %5651 = vmatpush.msra.mxu0 0.0
      %5652 = vmatpush.msra.mxu0 0.0
      %5653 = vmatpush.msra.mxu0 0.0
      %5654 = vmatpush.msra.mxu0 0.0
      %5655 = vmatpush.msra.mxu0 0.0
      %5656 = vmatpush.msra.mxu0 0.0
      %5657 = vmatpush.msra.mxu0 0.0
      %5658 = vmatpush.msra.mxu0 0.0
      %5659 = vmatpush.msra.mxu0 0.0
      %5660 = vmatpush.msra.mxu0 0.0
      %5661 = vmatpush.msra.mxu0 0.0
      %5662 = vmatpush.msra.mxu0 0.0
      %5663 = vmatpush.msra.mxu0 0.0
      %5664 = vmatpush.msra.mxu0 0.0
      %5665 = vmatpush.msra.mxu0 0.0
      %5666 = vmatpush.msra.mxu0 %v1454
      %5667 = vmatmul.f32.gmra.mxu0 %v5649
      %v5668 = vpop.f32.mrf.mxu0
      %v5669 = vadd.f32 0.0, %v5668
      %5670 = vdwg.mxu0
      %5679 = vset.pattern.permute.xlu0 0
      %5680 = vperm.xlu0 %5679, %v4913
      %v5681 = vpop.permute.xlu0 %5680
      %5682 = vset.pattern.permute.xlu0 0
      %5683 = vperm.xlu0 %5682, %v4914
      %v5684 = vpop.permute.xlu0 %5683
      %5685 = vset.pattern.permute.xlu0 0
      %5686 = vperm.xlu0 %5685, %v4915
      %v5687 = vpop.permute.xlu0 %5686
      %5688 = vset.pattern.permute.xlu0 0
      %5689 = vperm.xlu0 %5688, %v4916
      %v5690 = vpop.permute.xlu0 %5689
      %5691 = vset.pattern.permute.xlu0 0
      %5692 = vperm.xlu0 %5691, %v4917
      %v5693 = vpop.permute.xlu0 %5692
      %5694 = vset.pattern.permute.xlu0 0
      %5695 = vperm.xlu0 %5694, %v4918
      %v5696 = vpop.permute.xlu0 %5695
      %5697 = vset.pattern.permute.xlu0 0
      %5698 = vperm.xlu0 %5697, %v4919
      %v5699 = vpop.permute.xlu0 %5698
      %5700 = vset.pattern.permute.xlu0 0
      %5701 = vperm.xlu0 %5700, %v4920
      %v5702 = vpop.permute.xlu0 %5701
      %v5703 = vperm.slane %v5681, %v4994
      %v5704 = vperm.slane %v5684, %v4994
      %v5705 = vperm.slane %v5687, %v4994
      %v5706 = vperm.slane %v5690, %v4994
      %v5707 = vperm.slane %v5693, %v4994
      %v5708 = vperm.slane %v5696, %v4994
      %v5709 = vperm.slane %v5699, %v4994
      %v5710 = vperm.slane %v5702, %v4994
      %v5711 = vsel %vm5003, %v5704, %v5703
      %v5712 = vsel %vm5005, %v5705, %v5711
      %v5713 = vsel %vm5007, %v5706, %v5712
      %v5714 = vsel %vm5009, %v5707, %v5713
      %v5715 = vsel %vm5011, %v5708, %v5714
      %v5716 = vsel %vm5013, %v5709, %v5715
      %v5717 = vsel %vm5015, %v5710, %v5716
      %v5719 = vsel %vm5018, %v5717, 0
      %5721 = vmatpush.msra.mxu0 0.0
      %5722 = vmatpush.msra.mxu0 0.0
      %5723 = vmatpush.msra.mxu0 0.0
      %5724 = vmatpush.msra.mxu0 0.0
      %5725 = vmatpush.msra.mxu0 0.0
      %5726 = vmatpush.msra.mxu0 0.0
      %5727 = vmatpush.msra.mxu0 0.0
      %5728 = vmatpush.msra.mxu0 0.0
      %5729 = vmatpush.msra.mxu0 0.0
      %5730 = vmatpush.msra.mxu0 0.0
      %5731 = vmatpush.msra.mxu0 0.0
      %5732 = vmatpush.msra.mxu0 0.0
      %5733 = vmatpush.msra.mxu0 0.0
      %5734 = vmatpush.msra.mxu0 0.0
      %5735 = vmatpush.msra.mxu0 0.0
      %5736 = vmatpush.msra.mxu0 %v1456
      %5737 = vmatmul.f32.gmra.mxu0 %v5719
      %v5738 = vpop.f32.mrf.mxu0
      %v5739 = vadd.f32 0.0, %v5738
      %5740 = vdwg.mxu0
      %5749 = vset.pattern.permute.xlu0 0
      %5750 = vperm.xlu0 %5749, %v4921
      %v5751 = vpop.permute.xlu0 %5750
      %5752 = vset.pattern.permute.xlu0 0
      %5753 = vperm.xlu0 %5752, %v4922
      %v5754 = vpop.permute.xlu0 %5753
      %5755 = vset.pattern.permute.xlu0 0
      %5756 = vperm.xlu0 %5755, %v4923
      %v5757 = vpop.permute.xlu0 %5756
      %5758 = vset.pattern.permute.xlu0 0
      %5759 = vperm.xlu0 %5758, %v4924
      %v5760 = vpop.permute.xlu0 %5759
      %5761 = vset.pattern.permute.xlu0 0
      %5762 = vperm.xlu0 %5761, %v4925
      %v5763 = vpop.permute.xlu0 %5762
      %5764 = vset.pattern.permute.xlu0 0
      %5765 = vperm.xlu0 %5764, %v4926
      %v5766 = vpop.permute.xlu0 %5765
      %5767 = vset.pattern.permute.xlu0 0
      %5768 = vperm.xlu0 %5767, %v4927
      %v5769 = vpop.permute.xlu0 %5768
      %5770 = vset.pattern.permute.xlu0 0
      %5771 = vperm.xlu0 %5770, %v4928
      %v5772 = vpop.permute.xlu0 %5771
      %v5773 = vperm.slane %v5751, %v4994
      %v5774 = vperm.slane %v5754, %v4994
      %v5775 = vperm.slane %v5757, %v4994
      %v5776 = vperm.slane %v5760, %v4994
      %v5777 = vperm.slane %v5763, %v4994
      %v5778 = vperm.slane %v5766, %v4994
      %v5779 = vperm.slane %v5769, %v4994
      %v5780 = vperm.slane %v5772, %v4994
      %v5781 = vsel %vm5003, %v5774, %v5773
      %v5782 = vsel %vm5005, %v5775, %v5781
      %v5783 = vsel %vm5007, %v5776, %v5782
      %v5784 = vsel %vm5009, %v5777, %v5783
      %v5785 = vsel %vm5011, %v5778, %v5784
      %v5786 = vsel %vm5013, %v5779, %v5785
      %v5787 = vsel %vm5015, %v5780, %v5786
      %v5789 = vsel %vm5018, %v5787, 0
      %5791 = vmatpush.msra.mxu0 0.0
      %5792 = vmatpush.msra.mxu0 0.0
      %5793 = vmatpush.msra.mxu0 0.0
      %5794 = vmatpush.msra.mxu0 0.0
      %5795 = vmatpush.msra.mxu0 0.0
      %5796 = vmatpush.msra.mxu0 0.0
      %5797 = vmatpush.msra.mxu0 0.0
      %5798 = vmatpush.msra.mxu0 0.0
      %5799 = vmatpush.msra.mxu0 0.0
      %5800 = vmatpush.msra.mxu0 0.0
      %5801 = vmatpush.msra.mxu0 0.0
      %5802 = vmatpush.msra.mxu0 0.0
      %5803 = vmatpush.msra.mxu0 0.0
      %5804 = vmatpush.msra.mxu0 0.0
      %5805 = vmatpush.msra.mxu0 0.0
      %5806 = vmatpush.msra.mxu0 %v1458
      %5807 = vmatmul.f32.gmra.mxu0 %v5789
      %v5808 = vpop.f32.mrf.mxu0
      %v5809 = vadd.f32 0.0, %v5808
      %5810 = vdwg.mxu0
      %5819 = vset.pattern.permute.xlu0 0
      %5820 = vperm.xlu0 %5819, %v4929
      %v5821 = vpop.permute.xlu0 %5820
      %5822 = vset.pattern.permute.xlu0 0
      %5823 = vperm.xlu0 %5822, %v4930
      %v5824 = vpop.permute.xlu0 %5823
      %5825 = vset.pattern.permute.xlu0 0
      %5826 = vperm.xlu0 %5825, %v4931
      %v5827 = vpop.permute.xlu0 %5826
      %5828 = vset.pattern.permute.xlu0 0
      %5829 = vperm.xlu0 %5828, %v4932
      %v5830 = vpop.permute.xlu0 %5829
      %5831 = vset.pattern.permute.xlu0 0
      %5832 = vperm.xlu0 %5831, %v4933
      %v5833 = vpop.permute.xlu0 %5832
      %5834 = vset.pattern.permute.xlu0 0
      %5835 = vperm.xlu0 %5834, %v4934
      %v5836 = vpop.permute.xlu0 %5835
      %5837 = vset.pattern.permute.xlu0 0
      %5838 = vperm.xlu0 %5837, %v4935
      %v5839 = vpop.permute.xlu0 %5838
      %5840 = vset.pattern.permute.xlu0 0
      %5841 = vperm.xlu0 %5840, %v4936
      %v5842 = vpop.permute.xlu0 %5841
      %v5843 = vperm.slane %v5821, %v4994
      %v5844 = vperm.slane %v5824, %v4994
      %v5845 = vperm.slane %v5827, %v4994
      %v5846 = vperm.slane %v5830, %v4994
      %v5847 = vperm.slane %v5833, %v4994
      %v5848 = vperm.slane %v5836, %v4994
      %v5849 = vperm.slane %v5839, %v4994
      %v5850 = vperm.slane %v5842, %v4994
      %v5851 = vsel %vm5003, %v5844, %v5843
      %v5852 = vsel %vm5005, %v5845, %v5851
      %v5853 = vsel %vm5007, %v5846, %v5852
      %v5854 = vsel %vm5009, %v5847, %v5853
      %v5855 = vsel %vm5011, %v5848, %v5854
      %v5856 = vsel %vm5013, %v5849, %v5855
      %v5857 = vsel %vm5015, %v5850, %v5856
      %v5859 = vsel %vm5018, %v5857, 0
      %5861 = vmatpush.msra.mxu0 0.0
      %5862 = vmatpush.msra.mxu0 0.0
      %5863 = vmatpush.msra.mxu0 0.0
      %5864 = vmatpush.msra.mxu0 0.0
      %5865 = vmatpush.msra.mxu0 0.0
      %5866 = vmatpush.msra.mxu0 0.0
      %5867 = vmatpush.msra.mxu0 0.0
      %5868 = vmatpush.msra.mxu0 0.0
      %5869 = vmatpush.msra.mxu0 0.0
      %5870 = vmatpush.msra.mxu0 0.0
      %5871 = vmatpush.msra.mxu0 0.0
      %5872 = vmatpush.msra.mxu0 0.0
      %5873 = vmatpush.msra.mxu0 0.0
      %5874 = vmatpush.msra.mxu0 0.0
      %5875 = vmatpush.msra.mxu0 0.0
      %5876 = vmatpush.msra.mxu0 %v1460
      %5877 = vmatmul.f32.gmra.mxu0 %v5859
      %v5878 = vpop.f32.mrf.mxu0
      %v5879 = vadd.f32 0.0, %v5878
      %5880 = vdwg.mxu0
      %5889 = vset.pattern.permute.xlu0 0
      %5890 = vperm.xlu0 %5889, %v4937
      %v5891 = vpop.permute.xlu0 %5890
      %5892 = vset.pattern.permute.xlu0 0
      %5893 = vperm.xlu0 %5892, %v4938
      %v5894 = vpop.permute.xlu0 %5893
      %5895 = vset.pattern.permute.xlu0 0
      %5896 = vperm.xlu0 %5895, %v4939
      %v5897 = vpop.permute.xlu0 %5896
      %5898 = vset.pattern.permute.xlu0 0
      %5899 = vperm.xlu0 %5898, %v4940
      %v5900 = vpop.permute.xlu0 %5899
      %5901 = vset.pattern.permute.xlu0 0
      %5902 = vperm.xlu0 %5901, %v4941
      %v5903 = vpop.permute.xlu0 %5902
      %5904 = vset.pattern.permute.xlu0 0
      %5905 = vperm.xlu0 %5904, %v4942
      %v5906 = vpop.permute.xlu0 %5905
      %5907 = vset.pattern.permute.xlu0 0
      %5908 = vperm.xlu0 %5907, %v4943
      %v5909 = vpop.permute.xlu0 %5908
      %5910 = vset.pattern.permute.xlu0 0
      %5911 = vperm.xlu0 %5910, %v4944
      %v5912 = vpop.permute.xlu0 %5911
      %v5913 = vperm.slane %v5891, %v4994
      %v5914 = vperm.slane %v5894, %v4994
      %v5915 = vperm.slane %v5897, %v4994
      %v5916 = vperm.slane %v5900, %v4994
      %v5917 = vperm.slane %v5903, %v4994
      %v5918 = vperm.slane %v5906, %v4994
      %v5919 = vperm.slane %v5909, %v4994
      %v5920 = vperm.slane %v5912, %v4994
      %v5921 = vsel %vm5003, %v5914, %v5913
      %v5922 = vsel %vm5005, %v5915, %v5921
      %v5923 = vsel %vm5007, %v5916, %v5922
      %v5924 = vsel %vm5009, %v5917, %v5923
      %v5925 = vsel %vm5011, %v5918, %v5924
      %v5926 = vsel %vm5013, %v5919, %v5925
      %v5927 = vsel %vm5015, %v5920, %v5926
      %v5929 = vsel %vm5018, %v5927, 0
      %5931 = vmatpush.msra.mxu0 0.0
      %5932 = vmatpush.msra.mxu0 0.0
      %5933 = vmatpush.msra.mxu0 0.0
      %5934 = vmatpush.msra.mxu0 0.0
      %5935 = vmatpush.msra.mxu0 0.0
      %5936 = vmatpush.msra.mxu0 0.0
      %5937 = vmatpush.msra.mxu0 0.0
      %5938 = vmatpush.msra.mxu0 0.0
      %5939 = vmatpush.msra.mxu0 0.0
      %5940 = vmatpush.msra.mxu0 0.0
      %5941 = vmatpush.msra.mxu0 0.0
      %5942 = vmatpush.msra.mxu0 0.0
      %5943 = vmatpush.msra.mxu0 0.0
      %5944 = vmatpush.msra.mxu0 0.0
      %5945 = vmatpush.msra.mxu0 0.0
      %5946 = vmatpush.msra.mxu0 %v1462
      %5947 = vmatmul.f32.gmra.mxu0 %v5929
      %v5948 = vpop.f32.mrf.mxu0
      %v5949 = vadd.f32 0.0, %v5948
      %5950 = vdwg.mxu0
      %5959 = vset.pattern.permute.xlu0 0
      %5960 = vperm.xlu0 %5959, %v4945
      %v5961 = vpop.permute.xlu0 %5960
      %5962 = vset.pattern.permute.xlu0 0
      %5963 = vperm.xlu0 %5962, %v4946
      %v5964 = vpop.permute.xlu0 %5963
      %5965 = vset.pattern.permute.xlu0 0
      %5966 = vperm.xlu0 %5965, %v4947
      %v5967 = vpop.permute.xlu0 %5966
      %5968 = vset.pattern.permute.xlu0 0
      %5969 = vperm.xlu0 %5968, %v4948
      %v5970 = vpop.permute.xlu0 %5969
      %5971 = vset.pattern.permute.xlu0 0
      %5972 = vperm.xlu0 %5971, %v4949
      %v5973 = vpop.permute.xlu0 %5972
      %5974 = vset.pattern.permute.xlu0 0
      %5975 = vperm.xlu0 %5974, %v4950
      %v5976 = vpop.permute.xlu0 %5975
      %5977 = vset.pattern.permute.xlu0 0
      %5978 = vperm.xlu0 %5977, %v4951
      %v5979 = vpop.permute.xlu0 %5978
      %5980 = vset.pattern.permute.xlu0 0
      %5981 = vperm.xlu0 %5980, %v4952
      %v5982 = vpop.permute.xlu0 %5981
      %v5983 = vperm.slane %v5961, %v4994
      %v5984 = vperm.slane %v5964, %v4994
      %v5985 = vperm.slane %v5967, %v4994
      %v5986 = vperm.slane %v5970, %v4994
      %v5987 = vperm.slane %v5973, %v4994
      %v5988 = vperm.slane %v5976, %v4994
      %v5989 = vperm.slane %v5979, %v4994
      %v5990 = vperm.slane %v5982, %v4994
      %v5991 = vsel %vm5003, %v5984, %v5983
      %v5992 = vsel %vm5005, %v5985, %v5991
      %v5993 = vsel %vm5007, %v5986, %v5992
      %v5994 = vsel %vm5009, %v5987, %v5993
      %v5995 = vsel %vm5011, %v5988, %v5994
      %v5996 = vsel %vm5013, %v5989, %v5995
      %v5997 = vsel %vm5015, %v5990, %v5996
      %v5999 = vsel %vm5018, %v5997, 0
      %6001 = vmatpush.msra.mxu0 0.0
      %6002 = vmatpush.msra.mxu0 0.0
      %6003 = vmatpush.msra.mxu0 0.0
      %6004 = vmatpush.msra.mxu0 0.0
      %6005 = vmatpush.msra.mxu0 0.0
      %6006 = vmatpush.msra.mxu0 0.0
      %6007 = vmatpush.msra.mxu0 0.0
      %6008 = vmatpush.msra.mxu0 0.0
      %6009 = vmatpush.msra.mxu0 0.0
      %6010 = vmatpush.msra.mxu0 0.0
      %6011 = vmatpush.msra.mxu0 0.0
      %6012 = vmatpush.msra.mxu0 0.0
      %6013 = vmatpush.msra.mxu0 0.0
      %6014 = vmatpush.msra.mxu0 0.0
      %6015 = vmatpush.msra.mxu0 0.0
      %6016 = vmatpush.msra.mxu0 %v1464
      %6017 = vmatmul.f32.gmra.mxu0 %v5999
      %v6018 = vpop.f32.mrf.mxu0
      %v6019 = vadd.f32 0.0, %v6018
      %6020 = vdwg.mxu0
      %6029 = vset.pattern.permute.xlu0 0
      %6030 = vperm.xlu0 %6029, %v4953
      %v6031 = vpop.permute.xlu0 %6030
      %6032 = vset.pattern.permute.xlu0 0
      %6033 = vperm.xlu0 %6032, %v4954
      %v6034 = vpop.permute.xlu0 %6033
      %6035 = vset.pattern.permute.xlu0 0
      %6036 = vperm.xlu0 %6035, %v4955
      %v6037 = vpop.permute.xlu0 %6036
      %6038 = vset.pattern.permute.xlu0 0
      %6039 = vperm.xlu0 %6038, %v4956
      %v6040 = vpop.permute.xlu0 %6039
      %6041 = vset.pattern.permute.xlu0 0
      %6042 = vperm.xlu0 %6041, %v4957
      %v6043 = vpop.permute.xlu0 %6042
      %6044 = vset.pattern.permute.xlu0 0
      %6045 = vperm.xlu0 %6044, %v4958
      %v6046 = vpop.permute.xlu0 %6045
      %6047 = vset.pattern.permute.xlu0 0
      %6048 = vperm.xlu0 %6047, %v4959
      %v6049 = vpop.permute.xlu0 %6048
      %6050 = vset.pattern.permute.xlu0 0
      %6051 = vperm.xlu0 %6050, %v4960
      %v6052 = vpop.permute.xlu0 %6051
      %v6053 = vperm.slane %v6031, %v4994
      %v6054 = vperm.slane %v6034, %v4994
      %v6055 = vperm.slane %v6037, %v4994
      %v6056 = vperm.slane %v6040, %v4994
      %v6057 = vperm.slane %v6043, %v4994
      %v6058 = vperm.slane %v6046, %v4994
      %v6059 = vperm.slane %v6049, %v4994
      %v6060 = vperm.slane %v6052, %v4994
      %v6061 = vsel %vm5003, %v6054, %v6053
      %v6062 = vsel %vm5005, %v6055, %v6061
      %v6063 = vsel %vm5007, %v6056, %v6062
      %v6064 = vsel %vm5009, %v6057, %v6063
      %v6065 = vsel %vm5011, %v6058, %v6064
      %v6066 = vsel %vm5013, %v6059, %v6065
      %v6067 = vsel %vm5015, %v6060, %v6066
      %v6069 = vsel %vm5018, %v6067, 0
      %6071 = vmatpush.msra.mxu0 0.0
      %6072 = vmatpush.msra.mxu0 0.0
      %6073 = vmatpush.msra.mxu0 0.0
      %6074 = vmatpush.msra.mxu0 0.0
      %6075 = vmatpush.msra.mxu0 0.0
      %6076 = vmatpush.msra.mxu0 0.0
      %6077 = vmatpush.msra.mxu0 0.0
      %6078 = vmatpush.msra.mxu0 0.0
      %6079 = vmatpush.msra.mxu0 0.0
      %6080 = vmatpush.msra.mxu0 0.0
      %6081 = vmatpush.msra.mxu0 0.0
      %6082 = vmatpush.msra.mxu0 0.0
      %6083 = vmatpush.msra.mxu0 0.0
      %6084 = vmatpush.msra.mxu0 0.0
      %6085 = vmatpush.msra.mxu0 0.0
      %6086 = vmatpush.msra.mxu0 %v1466
      %6087 = vmatmul.f32.gmra.mxu0 %v6069
      %v6088 = vpop.f32.mrf.mxu0
      %v6089 = vadd.f32 0.0, %v6088
      %6090 = vdwg.mxu0
      %v6092 = vsel %vm644, %v5039, 0
      %v6095 = vsel %vm644, %v5109, 0
      %v6098 = vsel %vm644, %v5179, 0
      %v6101 = vsel %vm644, %v5249, 0
      %v6104 = vsel %vm644, %v5319, 0
      %v6107 = vsel %vm644, %v5389, 0
      %v6110 = vsel %vm644, %v5459, 0
      %v6113 = vsel %vm644, %v5529, 0
      %v6116 = vsel %vm644, %v5599, 0
      %v6119 = vsel %vm644, %v5669, 0
      %v6122 = vsel %vm644, %v5739, 0
      %v6125 = vsel %vm644, %v5809, 0
      %v6128 = vsel %vm644, %v5879, 0
      %v6131 = vsel %vm644, %v5949, 0
      %v6134 = vsel %vm644, %v6019, 0
      %v6137 = vsel %vm644, %v6089, 0
      %6139 = vmatpush.msra.mxu0 0.0
      %6140 = vmatpush.msra.mxu0 0.0
      %6141 = vmatpush.msra.mxu0 0.0
      %6142 = vmatpush.msra.mxu0 0.0
      %6143 = vmatpush.msra.mxu0 0.0
      %6144 = vmatpush.msra.mxu0 0.0
      %6145 = vmatpush.msra.mxu0 0.0
      %6146 = vmatpush.msra.mxu0 0.0
      %6147 = vmatpush.msra.mxu0 0.0
      %6148 = vmatpush.msra.mxu0 0.0
      %6149 = vmatpush.msra.mxu0 0.0
      %6150 = vmatpush.msra.mxu0 0.0
      %6151 = vmatpush.msra.mxu0 %v438
      %6152 = vmatpush.msra.mxu0 %v437
      %6153 = vmatpush.msra.mxu0 %v436
      %6154 = vmatpush.msra.mxu0 %v435
      %6155 = vmatmul.f32.gmra.mxu0 %v6092
      %v6156 = vpop.f32.mrf.mxu0
      %v6157 = vadd.f32 0.0, %v6156
      %6158 = vmatmul.f32.gmra.mxu0 %v6095
      %v6159 = vpop.f32.mrf.mxu0
      %v6160 = vadd.f32 0.0, %v6159
      %6161 = vmatmul.f32.gmra.mxu0 %v6098
      %v6162 = vpop.f32.mrf.mxu0
      %v6163 = vadd.f32 0.0, %v6162
      %6164 = vmatmul.f32.gmra.mxu0 %v6101
      %v6165 = vpop.f32.mrf.mxu0
      %v6166 = vadd.f32 0.0, %v6165
      %6167 = vmatmul.f32.gmra.mxu0 %v6104
      %v6168 = vpop.f32.mrf.mxu0
      %v6169 = vadd.f32 0.0, %v6168
      %6170 = vmatmul.f32.gmra.mxu0 %v6107
      %v6171 = vpop.f32.mrf.mxu0
      %v6172 = vadd.f32 0.0, %v6171
      %6173 = vmatmul.f32.gmra.mxu0 %v6110
      %v6174 = vpop.f32.mrf.mxu0
      %v6175 = vadd.f32 0.0, %v6174
      %6176 = vmatmul.f32.gmra.mxu0 %v6113
      %v6177 = vpop.f32.mrf.mxu0
      %v6178 = vadd.f32 0.0, %v6177
      %6179 = vmatmul.f32.gmra.mxu0 %v6116
      %v6180 = vpop.f32.mrf.mxu0
      %v6181 = vadd.f32 0.0, %v6180
      %6182 = vmatmul.f32.gmra.mxu0 %v6119
      %v6183 = vpop.f32.mrf.mxu0
      %v6184 = vadd.f32 0.0, %v6183
      %6185 = vmatmul.f32.gmra.mxu0 %v6122
      %v6186 = vpop.f32.mrf.mxu0
      %v6187 = vadd.f32 0.0, %v6186
      %6188 = vmatmul.f32.gmra.mxu0 %v6125
      %v6189 = vpop.f32.mrf.mxu0
      %v6190 = vadd.f32 0.0, %v6189
      %6191 = vmatmul.f32.gmra.mxu0 %v6128
      %v6192 = vpop.f32.mrf.mxu0
      %v6193 = vadd.f32 0.0, %v6192
      %6194 = vmatmul.f32.gmra.mxu0 %v6131
      %v6195 = vpop.f32.mrf.mxu0
      %v6196 = vadd.f32 0.0, %v6195
      %6197 = vmatmul.f32.gmra.mxu0 %v6134
      %v6198 = vpop.f32.mrf.mxu0
      %v6199 = vadd.f32 0.0, %v6198
      %6200 = vmatmul.f32.gmra.mxu0 %v6137
      %v6201 = vpop.f32.mrf.mxu0
      %v6202 = vadd.f32 0.0, %v6201
      %6203 = vdwg.mxu0
      %6204 = vmatpush.msra.mxu0 %v6202
      %6205 = vmatpush.msra.mxu0 %v6199
      %6206 = vmatpush.msra.mxu0 %v6196
      %6207 = vmatpush.msra.mxu0 %v6193
      %6208 = vmatpush.msra.mxu0 %v6190
      %6209 = vmatpush.msra.mxu0 %v6187
      %6210 = vmatpush.msra.mxu0 %v6184
      %6211 = vmatpush.msra.mxu0 %v6181
      %6212 = vmatpush.msra.mxu0 %v6178
      %6213 = vmatpush.msra.mxu0 %v6175
      %6214 = vmatpush.msra.mxu0 %v6172
      %6215 = vmatpush.msra.mxu0 %v6169
      %6216 = vmatpush.msra.mxu0 %v6166
      %6217 = vmatpush.msra.mxu0 %v6163
      %6218 = vmatpush.msra.mxu0 %v6160
      %6219 = vmatpush.msra.mxu0 %v6157
      %6220 = vmatmul.f32.gmra.mxu0 %v389
      %v6221 = vpop.f32.mrf.mxu0
      %v6222 = vadd.f32 0.0, %v6221
      %6223 = vmatmul.f32.gmra.mxu0 %v390
      %v6224 = vpop.f32.mrf.mxu0
      %v6225 = vadd.f32 0.0, %v6224
      %6226 = vmatmul.f32.gmra.mxu0 %v391
      %v6227 = vpop.f32.mrf.mxu0
      %v6228 = vadd.f32 0.0, %v6227
      %6229 = vmatmul.f32.gmra.mxu0 %v392
      %v6230 = vpop.f32.mrf.mxu0
      %v6231 = vadd.f32 0.0, %v6230
      %6232 = vmatmul.f32.gmra.mxu0 %v393
      %v6233 = vpop.f32.mrf.mxu0
      %v6234 = vadd.f32 0.0, %v6233
      %6235 = vmatmul.f32.gmra.mxu0 %v394
      %v6236 = vpop.f32.mrf.mxu0
      %v6237 = vadd.f32 0.0, %v6236
      %6238 = vmatmul.f32.gmra.mxu0 %v395
      %v6239 = vpop.f32.mrf.mxu0
      %v6240 = vadd.f32 0.0, %v6239
      %6241 = vmatmul.f32.gmra.mxu0 %v396
      %v6242 = vpop.f32.mrf.mxu0
      %v6243 = vadd.f32 0.0, %v6242
      %6244 = vmatmul.f32.gmra.mxu0 %v397
      %v6245 = vpop.f32.mrf.mxu0
      %v6246 = vadd.f32 0.0, %v6245
      %6247 = vmatmul.f32.gmra.mxu0 %v398
      %v6248 = vpop.f32.mrf.mxu0
      %v6249 = vadd.f32 0.0, %v6248
      %6250 = vmatmul.f32.gmra.mxu0 %v399
      %v6251 = vpop.f32.mrf.mxu0
      %v6252 = vadd.f32 0.0, %v6251
      %6253 = vmatmul.f32.gmra.mxu0 %v400
      %v6254 = vpop.f32.mrf.mxu0
      %v6255 = vadd.f32 0.0, %v6254
      %6256 = vmatmul.f32.gmra.mxu0 %v401
      %v6257 = vpop.f32.mrf.mxu0
      %v6258 = vadd.f32 0.0, %v6257
      %6259 = vmatmul.f32.gmra.mxu0 %v402
      %v6260 = vpop.f32.mrf.mxu0
      %v6261 = vadd.f32 0.0, %v6260
      %6262 = vmatmul.f32.gmra.mxu0 %v403
      %v6263 = vpop.f32.mrf.mxu0
      %v6264 = vadd.f32 0.0, %v6263
      %6265 = vmatmul.f32.gmra.mxu0 %v404
      %v6266 = vpop.f32.mrf.mxu0
      %v6267 = vadd.f32 0.0, %v6266
      %6268 = vdwg.mxu0
      %6269 = vrot.lane.b32.xlu0 %v5039, 32
      %v6270 = vpop.permute.xlu0 %6269
      %6271 = vrot.lane.b32.xlu0 %v5109, 32
      %v6272 = vpop.permute.xlu0 %6271
      %6273 = vrot.lane.b32.xlu0 %v5179, 32
      %v6274 = vpop.permute.xlu0 %6273
      %6275 = vrot.lane.b32.xlu0 %v5249, 32
      %v6276 = vpop.permute.xlu0 %6275
      %6277 = vrot.lane.b32.xlu0 %v5319, 32
      %v6278 = vpop.permute.xlu0 %6277
      %6279 = vrot.lane.b32.xlu0 %v5389, 32
      %v6280 = vpop.permute.xlu0 %6279
      %6281 = vrot.lane.b32.xlu0 %v5459, 32
      %v6282 = vpop.permute.xlu0 %6281
      %6283 = vrot.lane.b32.xlu0 %v5529, 32
      %v6284 = vpop.permute.xlu0 %6283
      %6285 = vrot.lane.b32.xlu0 %v5599, 32
      %v6286 = vpop.permute.xlu0 %6285
      %6287 = vrot.lane.b32.xlu0 %v5669, 32
      %v6288 = vpop.permute.xlu0 %6287
      %6289 = vrot.lane.b32.xlu0 %v5739, 32
      %v6290 = vpop.permute.xlu0 %6289
      %6291 = vrot.lane.b32.xlu0 %v5809, 32
      %v6292 = vpop.permute.xlu0 %6291
      %6293 = vrot.lane.b32.xlu0 %v5879, 32
      %v6294 = vpop.permute.xlu0 %6293
      %6295 = vrot.lane.b32.xlu0 %v5949, 32
      %v6296 = vpop.permute.xlu0 %6295
      %6297 = vrot.lane.b32.xlu0 %v6019, 32
      %v6298 = vpop.permute.xlu0 %6297
      %6299 = vrot.lane.b32.xlu0 %v6089, 32
      %v6300 = vpop.permute.xlu0 %6299
      %v6317 = vsel %vm644, %v6222, %v6270
      %v6318 = vsel %vm644, %v6225, %v6272
      %v6319 = vsel %vm644, %v6228, %v6274
      %v6320 = vsel %vm644, %v6231, %v6276
      %v6321 = vsel %vm644, %v6234, %v6278
      %v6322 = vsel %vm644, %v6237, %v6280
      %v6323 = vsel %vm644, %v6240, %v6282
      %v6324 = vsel %vm644, %v6243, %v6284
      %v6325 = vsel %vm644, %v6246, %v6286
      %v6326 = vsel %vm644, %v6249, %v6288
      %v6327 = vsel %vm644, %v6252, %v6290
      %v6328 = vsel %vm644, %v6255, %v6292
      %v6329 = vsel %vm644, %v6258, %v6294
      %v6330 = vsel %vm644, %v6261, %v6296
      %v6331 = vsel %vm644, %v6264, %v6298
      %v6332 = vsel %vm644, %v6267, %v6300
      %v6334 = vsel %vm887, %v6317, 0
      %v6337 = vsel %vm887, %v6318, 0
      %v6340 = vsel %vm887, %v6319, 0
      %v6343 = vsel %vm887, %v6320, 0
      %v6346 = vsel %vm887, %v6321, 0
      %v6349 = vsel %vm887, %v6322, 0
      %v6352 = vsel %vm887, %v6323, 0
      %v6355 = vsel %vm887, %v6324, 0
      %v6358 = vsel %vm887, %v6325, 0
      %v6361 = vsel %vm887, %v6326, 0
      %v6364 = vsel %vm887, %v6327, 0
      %v6367 = vsel %vm887, %v6328, 0
      %v6370 = vsel %vm887, %v6329, 0
      %v6373 = vsel %vm887, %v6330, 0
      %v6376 = vsel %vm887, %v6331, 0
      %v6379 = vsel %vm887, %v6332, 0
      %6381 = vmatpush.msra.mxu0 0.0
      %6382 = vmatpush.msra.mxu0 0.0
      %6383 = vmatpush.msra.mxu0 0.0
      %6384 = vmatpush.msra.mxu0 0.0
      %6385 = vmatpush.msra.mxu0 0.0
      %6386 = vmatpush.msra.mxu0 0.0
      %6387 = vmatpush.msra.mxu0 0.0
      %6388 = vmatpush.msra.mxu0 0.0
      %6389 = vmatpush.msra.mxu0 %v466
      %6390 = vmatpush.msra.mxu0 %v465
      %6391 = vmatpush.msra.mxu0 %v464
      %6392 = vmatpush.msra.mxu0 %v463
      %6393 = vmatpush.msra.mxu0 %v462
      %6394 = vmatpush.msra.mxu0 %v461
      %6395 = vmatpush.msra.mxu0 %v460
      %6396 = vmatpush.msra.mxu0 %v459
      %6397 = vmatmul.f32.gmra.mxu0 %v6334
      %v6398 = vpop.f32.mrf.mxu0
      %v6399 = vadd.f32 %v428, %v6398
      %6400 = vmatmul.f32.gmra.mxu0 %v6337
      %v6401 = vpop.f32.mrf.mxu0
      %v6402 = vadd.f32 %v428, %v6401
      %6403 = vmatmul.f32.gmra.mxu0 %v6340
      %v6404 = vpop.f32.mrf.mxu0
      %v6405 = vadd.f32 %v428, %v6404
      %6406 = vmatmul.f32.gmra.mxu0 %v6343
      %v6407 = vpop.f32.mrf.mxu0
      %v6408 = vadd.f32 %v428, %v6407
      %6409 = vmatmul.f32.gmra.mxu0 %v6346
      %v6410 = vpop.f32.mrf.mxu0
      %v6411 = vadd.f32 %v428, %v6410
      %6412 = vmatmul.f32.gmra.mxu0 %v6349
      %v6413 = vpop.f32.mrf.mxu0
      %v6414 = vadd.f32 %v428, %v6413
      %6415 = vmatmul.f32.gmra.mxu0 %v6352
      %v6416 = vpop.f32.mrf.mxu0
      %v6417 = vadd.f32 %v428, %v6416
      %6418 = vmatmul.f32.gmra.mxu0 %v6355
      %v6419 = vpop.f32.mrf.mxu0
      %v6420 = vadd.f32 %v428, %v6419
      %6421 = vmatmul.f32.gmra.mxu0 %v6358
      %v6422 = vpop.f32.mrf.mxu0
      %v6423 = vadd.f32 %v428, %v6422
      %6424 = vmatmul.f32.gmra.mxu0 %v6361
      %v6425 = vpop.f32.mrf.mxu0
      %v6426 = vadd.f32 %v428, %v6425
      %6427 = vmatmul.f32.gmra.mxu0 %v6364
      %v6428 = vpop.f32.mrf.mxu0
      %v6429 = vadd.f32 %v428, %v6428
      %6430 = vmatmul.f32.gmra.mxu0 %v6367
      %v6431 = vpop.f32.mrf.mxu0
      %v6432 = vadd.f32 %v428, %v6431
      %6433 = vmatmul.f32.gmra.mxu0 %v6370
      %v6434 = vpop.f32.mrf.mxu0
      %v6435 = vadd.f32 %v428, %v6434
      %6436 = vmatmul.f32.gmra.mxu0 %v6373
      %v6437 = vpop.f32.mrf.mxu0
      %v6438 = vadd.f32 %v428, %v6437
      %6439 = vmatmul.f32.gmra.mxu0 %v6376
      %v6440 = vpop.f32.mrf.mxu0
      %v6441 = vadd.f32 %v428, %v6440
      %6442 = vmatmul.f32.gmra.mxu0 %v6379
      %v6443 = vpop.f32.mrf.mxu0
      %v6444 = vadd.f32 %v428, %v6443
      %6445 = vdwg.mxu0
      %v6446 = vmul.f32 %v6399, 0.5
      %v6447 = vmul.f32 %v6402, 0.5
      %v6448 = vmul.f32 %v6405, 0.5
      %v6449 = vmul.f32 %v6408, 0.5
      %v6450 = vmul.f32 %v6411, 0.5
      %v6451 = vmul.f32 %v6414, 0.5
      %v6452 = vmul.f32 %v6417, 0.5
      %v6453 = vmul.f32 %v6420, 0.5
      %v6454 = vmul.f32 %v6423, 0.5
      %v6455 = vmul.f32 %v6426, 0.5
      %v6456 = vmul.f32 %v6429, 0.5
      %v6457 = vmul.f32 %v6432, 0.5
      %v6458 = vmul.f32 %v6435, 0.5
      %v6459 = vmul.f32 %v6438, 0.5
      %v6460 = vmul.f32 %v6441, 0.5
      %v6461 = vmul.f32 %v6444, 0.5
      %v6462 = vtanh.pop %v6446
      %v6463 = vtanh.pop %v6447
      %v6464 = vtanh.pop %v6448
      %v6465 = vtanh.pop %v6449
      %v6466 = vtanh.pop %v6450
      %v6467 = vtanh.pop %v6451
      %v6468 = vtanh.pop %v6452
      %v6469 = vtanh.pop %v6453
      %v6470 = vtanh.pop %v6454
      %v6471 = vtanh.pop %v6455
      %v6472 = vtanh.pop %v6456
      %v6473 = vtanh.pop %v6457
      %v6474 = vtanh.pop %v6458
      %v6475 = vtanh.pop %v6459
      %v6476 = vtanh.pop %v6460
      %v6477 = vtanh.pop %v6461
      %v6478 = vmul.f32 %v6462, 0.5
      %v6479 = vmul.f32 %v6463, 0.5
      %v6480 = vmul.f32 %v6464, 0.5
      %v6481 = vmul.f32 %v6465, 0.5
      %v6482 = vmul.f32 %v6466, 0.5
      %v6483 = vmul.f32 %v6467, 0.5
      %v6484 = vmul.f32 %v6468, 0.5
      %v6485 = vmul.f32 %v6469, 0.5
      %v6486 = vmul.f32 %v6470, 0.5
      %v6487 = vmul.f32 %v6471, 0.5
      %v6488 = vmul.f32 %v6472, 0.5
      %v6489 = vmul.f32 %v6473, 0.5
      %v6490 = vmul.f32 %v6474, 0.5
      %v6491 = vmul.f32 %v6475, 0.5
      %v6492 = vmul.f32 %v6476, 0.5
      %v6493 = vmul.f32 %v6477, 0.5
      %v6494 = vadd.f32 %v6478, 0.5
      %v6495 = vadd.f32 %v6479, 0.5
      %v6496 = vadd.f32 %v6480, 0.5
      %v6497 = vadd.f32 %v6481, 0.5
      %v6498 = vadd.f32 %v6482, 0.5
      %v6499 = vadd.f32 %v6483, 0.5
      %v6500 = vadd.f32 %v6484, 0.5
      %v6501 = vadd.f32 %v6485, 0.5
      %v6502 = vadd.f32 %v6486, 0.5
      %v6503 = vadd.f32 %v6487, 0.5
      %v6504 = vadd.f32 %v6488, 0.5
      %v6505 = vadd.f32 %v6489, 0.5
      %v6506 = vadd.f32 %v6490, 0.5
      %v6507 = vadd.f32 %v6491, 0.5
      %v6508 = vadd.f32 %v6492, 0.5
      %v6509 = vadd.f32 %v6493, 0.5
      %v6511 = vsel %vm644, %v6222, 0
      %v6514 = vsel %vm644, %v6225, 0
      %v6517 = vsel %vm644, %v6228, 0
      %v6520 = vsel %vm644, %v6231, 0
      %v6523 = vsel %vm644, %v6234, 0
      %v6526 = vsel %vm644, %v6237, 0
      %v6529 = vsel %vm644, %v6240, 0
      %v6532 = vsel %vm644, %v6243, 0
      %v6535 = vsel %vm644, %v6246, 0
      %v6538 = vsel %vm644, %v6249, 0
      %v6541 = vsel %vm644, %v6252, 0
      %v6544 = vsel %vm644, %v6255, 0
      %v6547 = vsel %vm644, %v6258, 0
      %v6550 = vsel %vm644, %v6261, 0
      %v6553 = vsel %vm644, %v6264, 0
      %v6556 = vsel %vm644, %v6267, 0
      %6558 = vmatpush.msra.mxu0 0.0
      %6559 = vmatpush.msra.mxu0 0.0
      %6560 = vmatpush.msra.mxu0 0.0
      %6561 = vmatpush.msra.mxu0 0.0
      %6562 = vmatpush.msra.mxu0 0.0
      %6563 = vmatpush.msra.mxu0 0.0
      %6564 = vmatpush.msra.mxu0 0.0
      %6565 = vmatpush.msra.mxu0 0.0
      %6566 = vmatpush.msra.mxu0 0.0
      %6567 = vmatpush.msra.mxu0 0.0
      %6568 = vmatpush.msra.mxu0 0.0
      %6569 = vmatpush.msra.mxu0 0.0
      %6570 = vmatpush.msra.mxu0 %v443
      %6571 = vmatpush.msra.mxu0 %v442
      %6572 = vmatpush.msra.mxu0 %v441
      %6573 = vmatpush.msra.mxu0 %v440
      %6574 = vmatmul.f32.gmra.mxu0 %v6511
      %v6575 = vpop.f32.mrf.mxu0
      %v6576 = vadd.f32 %v430, %v6575
      %6577 = vmatmul.f32.gmra.mxu0 %v6514
      %v6578 = vpop.f32.mrf.mxu0
      %v6579 = vadd.f32 %v430, %v6578
      %6580 = vmatmul.f32.gmra.mxu0 %v6517
      %v6581 = vpop.f32.mrf.mxu0
      %v6582 = vadd.f32 %v430, %v6581
      %6583 = vmatmul.f32.gmra.mxu0 %v6520
      %v6584 = vpop.f32.mrf.mxu0
      %v6585 = vadd.f32 %v430, %v6584
      %6586 = vmatmul.f32.gmra.mxu0 %v6523
      %v6587 = vpop.f32.mrf.mxu0
      %v6588 = vadd.f32 %v430, %v6587
      %6589 = vmatmul.f32.gmra.mxu0 %v6526
      %v6590 = vpop.f32.mrf.mxu0
      %v6591 = vadd.f32 %v430, %v6590
      %6592 = vmatmul.f32.gmra.mxu0 %v6529
      %v6593 = vpop.f32.mrf.mxu0
      %v6594 = vadd.f32 %v430, %v6593
      %6595 = vmatmul.f32.gmra.mxu0 %v6532
      %v6596 = vpop.f32.mrf.mxu0
      %v6597 = vadd.f32 %v430, %v6596
      %6598 = vmatmul.f32.gmra.mxu0 %v6535
      %v6599 = vpop.f32.mrf.mxu0
      %v6600 = vadd.f32 %v430, %v6599
      %6601 = vmatmul.f32.gmra.mxu0 %v6538
      %v6602 = vpop.f32.mrf.mxu0
      %v6603 = vadd.f32 %v430, %v6602
      %6604 = vmatmul.f32.gmra.mxu0 %v6541
      %v6605 = vpop.f32.mrf.mxu0
      %v6606 = vadd.f32 %v430, %v6605
      %6607 = vmatmul.f32.gmra.mxu0 %v6544
      %v6608 = vpop.f32.mrf.mxu0
      %v6609 = vadd.f32 %v430, %v6608
      %6610 = vmatmul.f32.gmra.mxu0 %v6547
      %v6611 = vpop.f32.mrf.mxu0
      %v6612 = vadd.f32 %v430, %v6611
      %6613 = vmatmul.f32.gmra.mxu0 %v6550
      %v6614 = vpop.f32.mrf.mxu0
      %v6615 = vadd.f32 %v430, %v6614
      %6616 = vmatmul.f32.gmra.mxu0 %v6553
      %v6617 = vpop.f32.mrf.mxu0
      %v6618 = vadd.f32 %v430, %v6617
      %6619 = vmatmul.f32.gmra.mxu0 %v6556
      %v6620 = vpop.f32.mrf.mxu0
      %v6621 = vadd.f32 %v430, %v6620
      %6622 = vdwg.mxu0
      %6623 = vmatpush.msra.mxu0 0.0
      %6624 = vmatpush.msra.mxu0 0.0
      %6625 = vmatpush.msra.mxu0 0.0
      %6626 = vmatpush.msra.mxu0 0.0
      %6627 = vmatpush.msra.mxu0 0.0
      %6628 = vmatpush.msra.mxu0 0.0
      %6629 = vmatpush.msra.mxu0 0.0
      %6630 = vmatpush.msra.mxu0 0.0
      %6631 = vmatpush.msra.mxu0 0.0
      %6632 = vmatpush.msra.mxu0 0.0
      %6633 = vmatpush.msra.mxu0 0.0
      %6634 = vmatpush.msra.mxu0 0.0
      %6635 = vmatpush.msra.mxu0 %v448
      %6636 = vmatpush.msra.mxu0 %v447
      %6637 = vmatpush.msra.mxu0 %v446
      %6638 = vmatpush.msra.mxu0 %v445
      %6639 = vmatmul.f32.gmra.mxu0 %v6092
      %v6640 = vpop.f32.mrf.mxu0
      %v6641 = vadd.f32 %v432, %v6640
      %6642 = vmatmul.f32.gmra.mxu0 %v6095
      %v6643 = vpop.f32.mrf.mxu0
      %v6644 = vadd.f32 %v432, %v6643
      %6645 = vmatmul.f32.gmra.mxu0 %v6098
      %v6646 = vpop.f32.mrf.mxu0
      %v6647 = vadd.f32 %v432, %v6646
      %6648 = vmatmul.f32.gmra.mxu0 %v6101
      %v6649 = vpop.f32.mrf.mxu0
      %v6650 = vadd.f32 %v432, %v6649
      %6651 = vmatmul.f32.gmra.mxu0 %v6104
      %v6652 = vpop.f32.mrf.mxu0
      %v6653 = vadd.f32 %v432, %v6652
      %6654 = vmatmul.f32.gmra.mxu0 %v6107
      %v6655 = vpop.f32.mrf.mxu0
      %v6656 = vadd.f32 %v432, %v6655
      %6657 = vmatmul.f32.gmra.mxu0 %v6110
      %v6658 = vpop.f32.mrf.mxu0
      %v6659 = vadd.f32 %v432, %v6658
      %6660 = vmatmul.f32.gmra.mxu0 %v6113
      %v6661 = vpop.f32.mrf.mxu0
      %v6662 = vadd.f32 %v432, %v6661
      %6663 = vmatmul.f32.gmra.mxu0 %v6116
      %v6664 = vpop.f32.mrf.mxu0
      %v6665 = vadd.f32 %v432, %v6664
      %6666 = vmatmul.f32.gmra.mxu0 %v6119
      %v6667 = vpop.f32.mrf.mxu0
      %v6668 = vadd.f32 %v432, %v6667
      %6669 = vmatmul.f32.gmra.mxu0 %v6122
      %v6670 = vpop.f32.mrf.mxu0
      %v6671 = vadd.f32 %v432, %v6670
      %6672 = vmatmul.f32.gmra.mxu0 %v6125
      %v6673 = vpop.f32.mrf.mxu0
      %v6674 = vadd.f32 %v432, %v6673
      %6675 = vmatmul.f32.gmra.mxu0 %v6128
      %v6676 = vpop.f32.mrf.mxu0
      %v6677 = vadd.f32 %v432, %v6676
      %6678 = vmatmul.f32.gmra.mxu0 %v6131
      %v6679 = vpop.f32.mrf.mxu0
      %v6680 = vadd.f32 %v432, %v6679
      %6681 = vmatmul.f32.gmra.mxu0 %v6134
      %v6682 = vpop.f32.mrf.mxu0
      %v6683 = vadd.f32 %v432, %v6682
      %6684 = vmatmul.f32.gmra.mxu0 %v6137
      %v6685 = vpop.f32.mrf.mxu0
      %v6686 = vadd.f32 %v432, %v6685
      %6687 = vdwg.mxu0
      %v6688 = vmul.f32 %v6494, %v6641
      %v6689 = vmul.f32 %v6495, %v6644
      %v6690 = vmul.f32 %v6496, %v6647
      %v6691 = vmul.f32 %v6497, %v6650
      %v6692 = vmul.f32 %v6498, %v6653
      %v6693 = vmul.f32 %v6499, %v6656
      %v6694 = vmul.f32 %v6500, %v6659
      %v6695 = vmul.f32 %v6501, %v6662
      %v6696 = vmul.f32 %v6502, %v6665
      %v6697 = vmul.f32 %v6503, %v6668
      %v6698 = vmul.f32 %v6504, %v6671
      %v6699 = vmul.f32 %v6505, %v6674
      %v6700 = vmul.f32 %v6506, %v6677
      %v6701 = vmul.f32 %v6507, %v6680
      %v6702 = vmul.f32 %v6508, %v6683
      %v6703 = vmul.f32 %v6509, %v6686
      %v6704 = vadd.f32 %v6576, %v6688
      %v6705 = vadd.f32 %v6579, %v6689
      %v6706 = vadd.f32 %v6582, %v6690
      %v6707 = vadd.f32 %v6585, %v6691
      %v6708 = vadd.f32 %v6588, %v6692
      %v6709 = vadd.f32 %v6591, %v6693
      %v6710 = vadd.f32 %v6594, %v6694
      %v6711 = vadd.f32 %v6597, %v6695
      %v6712 = vadd.f32 %v6600, %v6696
      %v6713 = vadd.f32 %v6603, %v6697
      %v6714 = vadd.f32 %v6606, %v6698
      %v6715 = vadd.f32 %v6609, %v6699
      %v6716 = vadd.f32 %v6612, %v6700
      %v6717 = vadd.f32 %v6615, %v6701
      %v6718 = vadd.f32 %v6618, %v6702
      %v6719 = vadd.f32 %v6621, %v6703
      %v6720 = vtanh.pop %v6704
      %v6721 = vtanh.pop %v6705
      %v6722 = vtanh.pop %v6706
      %v6723 = vtanh.pop %v6707
      %v6724 = vtanh.pop %v6708
      %v6725 = vtanh.pop %v6709
      %v6726 = vtanh.pop %v6710
      %v6727 = vtanh.pop %v6711
      %v6728 = vtanh.pop %v6712
      %v6729 = vtanh.pop %v6713
      %v6730 = vtanh.pop %v6714
      %v6731 = vtanh.pop %v6715
      %v6732 = vtanh.pop %v6716
      %v6733 = vtanh.pop %v6717
      %v6734 = vtanh.pop %v6718
      %v6735 = vtanh.pop %v6719
      %v6736 = vsub.f32 1.0, %v6494
      %v6737 = vsub.f32 1.0, %v6495
      %v6738 = vsub.f32 1.0, %v6496
      %v6739 = vsub.f32 1.0, %v6497
      %v6740 = vsub.f32 1.0, %v6498
      %v6741 = vsub.f32 1.0, %v6499
      %v6742 = vsub.f32 1.0, %v6500
      %v6743 = vsub.f32 1.0, %v6501
      %v6744 = vsub.f32 1.0, %v6502
      %v6745 = vsub.f32 1.0, %v6503
      %v6746 = vsub.f32 1.0, %v6504
      %v6747 = vsub.f32 1.0, %v6505
      %v6748 = vsub.f32 1.0, %v6506
      %v6749 = vsub.f32 1.0, %v6507
      %v6750 = vsub.f32 1.0, %v6508
      %v6751 = vsub.f32 1.0, %v6509
      %6768 = vrot.lane.b32.xlu0 %v6720, 32
      %v6769 = vpop.permute.xlu0 %6768
      %6770 = vrot.lane.b32.xlu0 %v6721, 32
      %v6771 = vpop.permute.xlu0 %6770
      %6772 = vrot.lane.b32.xlu0 %v6722, 32
      %v6773 = vpop.permute.xlu0 %6772
      %6774 = vrot.lane.b32.xlu0 %v6723, 32
      %v6775 = vpop.permute.xlu0 %6774
      %6776 = vrot.lane.b32.xlu0 %v6724, 32
      %v6777 = vpop.permute.xlu0 %6776
      %6778 = vrot.lane.b32.xlu0 %v6725, 32
      %v6779 = vpop.permute.xlu0 %6778
      %6780 = vrot.lane.b32.xlu0 %v6726, 32
      %v6781 = vpop.permute.xlu0 %6780
      %6782 = vrot.lane.b32.xlu0 %v6727, 32
      %v6783 = vpop.permute.xlu0 %6782
      %6784 = vrot.lane.b32.xlu0 %v6728, 32
      %v6785 = vpop.permute.xlu0 %6784
      %6786 = vrot.lane.b32.xlu0 %v6729, 32
      %v6787 = vpop.permute.xlu0 %6786
      %6788 = vrot.lane.b32.xlu0 %v6730, 32
      %v6789 = vpop.permute.xlu0 %6788
      %6790 = vrot.lane.b32.xlu0 %v6731, 32
      %v6791 = vpop.permute.xlu0 %6790
      %6792 = vrot.lane.b32.xlu0 %v6732, 32
      %v6793 = vpop.permute.xlu0 %6792
      %6794 = vrot.lane.b32.xlu0 %v6733, 32
      %v6795 = vpop.permute.xlu0 %6794
      %6796 = vrot.lane.b32.xlu0 %v6734, 32
      %v6797 = vpop.permute.xlu0 %6796
      %6798 = vrot.lane.b32.xlu0 %v6735, 32
      %v6799 = vpop.permute.xlu0 %6798
      %v6816 = vmul.f32 %v6736, %v6769
      %v6817 = vmul.f32 %v6737, %v6771
      %v6818 = vmul.f32 %v6738, %v6773
      %v6819 = vmul.f32 %v6739, %v6775
      %v6820 = vmul.f32 %v6740, %v6777
      %v6821 = vmul.f32 %v6741, %v6779
      %v6822 = vmul.f32 %v6742, %v6781
      %v6823 = vmul.f32 %v6743, %v6783
      %v6824 = vmul.f32 %v6744, %v6785
      %v6825 = vmul.f32 %v6745, %v6787
      %v6826 = vmul.f32 %v6746, %v6789
      %v6827 = vmul.f32 %v6747, %v6791
      %v6828 = vmul.f32 %v6748, %v6793
      %v6829 = vmul.f32 %v6749, %v6795
      %v6830 = vmul.f32 %v6750, %v6797
      %v6831 = vmul.f32 %v6751, %v6799
      %v6832 = vmul.f32 %v6494, %v6270
      %v6833 = vmul.f32 %v6495, %v6272
      %v6834 = vmul.f32 %v6496, %v6274
      %v6835 = vmul.f32 %v6497, %v6276
      %v6836 = vmul.f32 %v6498, %v6278
      %v6837 = vmul.f32 %v6499, %v6280
      %v6838 = vmul.f32 %v6500, %v6282
      %v6839 = vmul.f32 %v6501, %v6284
      %v6840 = vmul.f32 %v6502, %v6286
      %v6841 = vmul.f32 %v6503, %v6288
      %v6842 = vmul.f32 %v6504, %v6290
      %v6843 = vmul.f32 %v6505, %v6292
      %v6844 = vmul.f32 %v6506, %v6294
      %v6845 = vmul.f32 %v6507, %v6296
      %v6846 = vmul.f32 %v6508, %v6298
      %v6847 = vmul.f32 %v6509, %v6300
      %v6848 = vadd.f32 %v6816, %v6832
      %v6849 = vadd.f32 %v6817, %v6833
      %v6850 = vadd.f32 %v6818, %v6834
      %v6851 = vadd.f32 %v6819, %v6835
      %v6852 = vadd.f32 %v6820, %v6836
      %v6853 = vadd.f32 %v6821, %v6837
      %v6854 = vadd.f32 %v6822, %v6838
      %v6855 = vadd.f32 %v6823, %v6839
      %v6856 = vadd.f32 %v6824, %v6840
      %v6857 = vadd.f32 %v6825, %v6841
      %v6858 = vadd.f32 %v6826, %v6842
      %v6859 = vadd.f32 %v6827, %v6843
      %v6860 = vadd.f32 %v6828, %v6844
      %v6861 = vadd.f32 %v6829, %v6845
      %v6862 = vadd.f32 %v6830, %v6846
      %v6863 = vadd.f32 %v6831, %v6847
      %6880 = vrot.lane.b32.xlu0 %v6848, 96
      %v6881 = vpop.permute.xlu0 %6880
      %6882 = vrot.lane.b32.xlu0 %v6849, 96
      %v6883 = vpop.permute.xlu0 %6882
      %6884 = vrot.lane.b32.xlu0 %v6850, 96
      %v6885 = vpop.permute.xlu0 %6884
      %6886 = vrot.lane.b32.xlu0 %v6851, 96
      %v6887 = vpop.permute.xlu0 %6886
      %6888 = vrot.lane.b32.xlu0 %v6852, 96
      %v6889 = vpop.permute.xlu0 %6888
      %6890 = vrot.lane.b32.xlu0 %v6853, 96
      %v6891 = vpop.permute.xlu0 %6890
      %6892 = vrot.lane.b32.xlu0 %v6854, 96
      %v6893 = vpop.permute.xlu0 %6892
      %6894 = vrot.lane.b32.xlu0 %v6855, 96
      %v6895 = vpop.permute.xlu0 %6894
      %6896 = vrot.lane.b32.xlu0 %v6856, 96
      %v6897 = vpop.permute.xlu0 %6896
      %6898 = vrot.lane.b32.xlu0 %v6857, 96
      %v6899 = vpop.permute.xlu0 %6898
      %6900 = vrot.lane.b32.xlu0 %v6858, 96
      %v6901 = vpop.permute.xlu0 %6900
      %6902 = vrot.lane.b32.xlu0 %v6859, 96
      %v6903 = vpop.permute.xlu0 %6902
      %6904 = vrot.lane.b32.xlu0 %v6860, 96
      %v6905 = vpop.permute.xlu0 %6904
      %6906 = vrot.lane.b32.xlu0 %v6861, 96
      %v6907 = vpop.permute.xlu0 %6906
      %6908 = vrot.lane.b32.xlu0 %v6862, 96
      %v6909 = vpop.permute.xlu0 %6908
      %6910 = vrot.lane.b32.xlu0 %v6863, 96
      %v6911 = vpop.permute.xlu0 %6910
      %v6912 = vsel %vm644, %v6881, 0
      %v6914 = vsel %vm644, %v6883, 0
      %v6916 = vsel %vm644, %v6885, 0
      %v6918 = vsel %vm644, %v6887, 0
      %v6920 = vsel %vm644, %v6889, 0
      %v6922 = vsel %vm644, %v6891, 0
      %v6924 = vsel %vm644, %v6893, 0
      %v6926 = vsel %vm644, %v6895, 0
      %v6928 = vsel %vm644, %v6897, 0
      %v6930 = vsel %vm644, %v6899, 0
      %v6932 = vsel %vm644, %v6901, 0
      %v6934 = vsel %vm644, %v6903, 0
      %v6936 = vsel %vm644, %v6905, 0
      %v6938 = vsel %vm644, %v6907, 0
      %v6940 = vsel %vm644, %v6909, 0
      %v6942 = vsel %vm644, %v6911, 0
      %6944 = vmatpush.msra.mxu0 0.0
      %6945 = vmatpush.msra.mxu0 0.0
      %6946 = vmatpush.msra.mxu0 0.0
      %6947 = vmatpush.msra.mxu0 0.0
      %6948 = vmatpush.msra.mxu0 0.0
      %6949 = vmatpush.msra.mxu0 0.0
      %6950 = vmatpush.msra.mxu0 0.0
      %6951 = vmatpush.msra.mxu0 0.0
      %6952 = vmatpush.msra.mxu0 0.0
      %6953 = vmatpush.msra.mxu0 0.0
      %6954 = vmatpush.msra.mxu0 0.0
      %6955 = vmatpush.msra.mxu0 0.0
      %6956 = vmatpush.msra.mxu0 %v470
      %6957 = vmatpush.msra.mxu0 %v469
      %6958 = vmatpush.msra.mxu0 %v468
      %6959 = vmatpush.msra.mxu0 %v467
      %6960 = vmatmul.f32.gmra.mxu0 %v6912
      %v6961 = vpop.f32.mrf.mxu0
      %v6962 = vadd.f32 %v434, %v6961
      %6963 = vmatmul.f32.gmra.mxu0 %v6914
      %v6964 = vpop.f32.mrf.mxu0
      %v6965 = vadd.f32 %v434, %v6964
      %6966 = vmatmul.f32.gmra.mxu0 %v6916
      %v6967 = vpop.f32.mrf.mxu0
      %v6968 = vadd.f32 %v434, %v6967
      %6969 = vmatmul.f32.gmra.mxu0 %v6918
      %v6970 = vpop.f32.mrf.mxu0
      %v6971 = vadd.f32 %v434, %v6970
      %6972 = vmatmul.f32.gmra.mxu0 %v6920
      %v6973 = vpop.f32.mrf.mxu0
      %v6974 = vadd.f32 %v434, %v6973
      %6975 = vmatmul.f32.gmra.mxu0 %v6922
      %v6976 = vpop.f32.mrf.mxu0
      %v6977 = vadd.f32 %v434, %v6976
      %6978 = vmatmul.f32.gmra.mxu0 %v6924
      %v6979 = vpop.f32.mrf.mxu0
      %v6980 = vadd.f32 %v434, %v6979
      %6981 = vmatmul.f32.gmra.mxu0 %v6926
      %v6982 = vpop.f32.mrf.mxu0
      %v6983 = vadd.f32 %v434, %v6982
      %6984 = vmatmul.f32.gmra.mxu0 %v6928
      %v6985 = vpop.f32.mrf.mxu0
      %v6986 = vadd.f32 %v434, %v6985
      %6987 = vmatmul.f32.gmra.mxu0 %v6930
      %v6988 = vpop.f32.mrf.mxu0
      %v6989 = vadd.f32 %v434, %v6988
      %6990 = vmatmul.f32.gmra.mxu0 %v6932
      %v6991 = vpop.f32.mrf.mxu0
      %v6992 = vadd.f32 %v434, %v6991
      %6993 = vmatmul.f32.gmra.mxu0 %v6934
      %v6994 = vpop.f32.mrf.mxu0
      %v6995 = vadd.f32 %v434, %v6994
      %6996 = vmatmul.f32.gmra.mxu0 %v6936
      %v6997 = vpop.f32.mrf.mxu0
      %v6998 = vadd.f32 %v434, %v6997
      %6999 = vmatmul.f32.gmra.mxu0 %v6938
      %v7000 = vpop.f32.mrf.mxu0
      %v7001 = vadd.f32 %v434, %v7000
      %7002 = vmatmul.f32.gmra.mxu0 %v6940
      %v7003 = vpop.f32.mrf.mxu0
      %v7004 = vadd.f32 %v434, %v7003
      %7005 = vmatmul.f32.gmra.mxu0 %v6942
      %v7006 = vpop.f32.mrf.mxu0
      %v7007 = vadd.f32 %v434, %v7006
      %7008 = vdwg.mxu0
      %v7025 = vrot.slane %v6962, 1
      %v7026 = vrot.slane %v6962, 2
      %v7027 = vrot.slane %v6962, 3
      %v7028 = vrot.slane %v6962, 4
      %v7029 = vrot.slane %v6962, 5
      %v7030 = vrot.slane %v6962, 6
      %v7031 = vrot.slane %v6962, 7
      %v7032 = vrot.slane %v6965, 1
      %v7033 = vrot.slane %v6965, 2
      %v7034 = vrot.slane %v6965, 3
      %v7035 = vrot.slane %v6965, 4
      %v7036 = vrot.slane %v6965, 5
      %v7037 = vrot.slane %v6965, 6
      %v7038 = vrot.slane %v6965, 7
      %v7039 = vrot.slane %v6968, 1
      %v7040 = vrot.slane %v6968, 2
      %v7041 = vrot.slane %v6968, 3
      %v7042 = vrot.slane %v6968, 4
      %v7043 = vrot.slane %v6968, 5
      %v7044 = vrot.slane %v6968, 6
      %v7045 = vrot.slane %v6968, 7
      %v7046 = vrot.slane %v6971, 1
      %v7047 = vrot.slane %v6971, 2
      %v7048 = vrot.slane %v6971, 3
      %v7049 = vrot.slane %v6971, 4
      %v7050 = vrot.slane %v6971, 5
      %v7051 = vrot.slane %v6971, 6
      %v7052 = vrot.slane %v6971, 7
      %v7053 = vrot.slane %v6974, 1
      %v7054 = vrot.slane %v6974, 2
      %v7055 = vrot.slane %v6974, 3
      %v7056 = vrot.slane %v6974, 4
      %v7057 = vrot.slane %v6974, 5
      %v7058 = vrot.slane %v6974, 6
      %v7059 = vrot.slane %v6974, 7
      %v7060 = vrot.slane %v6977, 1
      %v7061 = vrot.slane %v6977, 2
      %v7062 = vrot.slane %v6977, 3
      %v7063 = vrot.slane %v6977, 4
      %v7064 = vrot.slane %v6977, 5
      %v7065 = vrot.slane %v6977, 6
      %v7066 = vrot.slane %v6977, 7
      %v7067 = vrot.slane %v6980, 1
      %v7068 = vrot.slane %v6980, 2
      %v7069 = vrot.slane %v6980, 3
      %v7070 = vrot.slane %v6980, 4
      %v7071 = vrot.slane %v6980, 5
      %v7072 = vrot.slane %v6980, 6
      %v7073 = vrot.slane %v6980, 7
      %v7074 = vrot.slane %v6983, 1
      %v7075 = vrot.slane %v6983, 2
      %v7076 = vrot.slane %v6983, 3
      %v7077 = vrot.slane %v6983, 4
      %v7078 = vrot.slane %v6983, 5
      %v7079 = vrot.slane %v6983, 6
      %v7080 = vrot.slane %v6983, 7
      %v7081 = vrot.slane %v6986, 1
      %v7082 = vrot.slane %v6986, 2
      %v7083 = vrot.slane %v6986, 3
      %v7084 = vrot.slane %v6986, 4
      %v7085 = vrot.slane %v6986, 5
      %v7086 = vrot.slane %v6986, 6
      %v7087 = vrot.slane %v6986, 7
      %v7088 = vrot.slane %v6989, 1
      %v7089 = vrot.slane %v6989, 2
      %v7090 = vrot.slane %v6989, 3
      %v7091 = vrot.slane %v6989, 4
      %v7092 = vrot.slane %v6989, 5
      %v7093 = vrot.slane %v6989, 6
      %v7094 = vrot.slane %v6989, 7
      %v7095 = vrot.slane %v6992, 1
      %v7096 = vrot.slane %v6992, 2
      %v7097 = vrot.slane %v6992, 3
      %v7098 = vrot.slane %v6992, 4
      %v7099 = vrot.slane %v6992, 5
      %v7100 = vrot.slane %v6992, 6
      %v7101 = vrot.slane %v6992, 7
      %v7102 = vrot.slane %v6995, 1
      %v7103 = vrot.slane %v6995, 2
      %v7104 = vrot.slane %v6995, 3
      %v7105 = vrot.slane %v6995, 4
      %v7106 = vrot.slane %v6995, 5
      %v7107 = vrot.slane %v6995, 6
      %v7108 = vrot.slane %v6995, 7
      %v7109 = vrot.slane %v6998, 1
      %v7110 = vrot.slane %v6998, 2
      %v7111 = vrot.slane %v6998, 3
      %v7112 = vrot.slane %v6998, 4
      %v7113 = vrot.slane %v6998, 5
      %v7114 = vrot.slane %v6998, 6
      %v7115 = vrot.slane %v6998, 7
      %v7116 = vrot.slane %v7001, 1
      %v7117 = vrot.slane %v7001, 2
      %v7118 = vrot.slane %v7001, 3
      %v7119 = vrot.slane %v7001, 4
      %v7120 = vrot.slane %v7001, 5
      %v7121 = vrot.slane %v7001, 6
      %v7122 = vrot.slane %v7001, 7
      %v7123 = vrot.slane %v7004, 1
      %v7124 = vrot.slane %v7004, 2
      %v7125 = vrot.slane %v7004, 3
      %v7126 = vrot.slane %v7004, 4
      %v7127 = vrot.slane %v7004, 5
      %v7128 = vrot.slane %v7004, 6
      %v7129 = vrot.slane %v7004, 7
      %v7130 = vrot.slane %v7007, 1
      %v7131 = vrot.slane %v7007, 2
      %v7132 = vrot.slane %v7007, 3
      %v7133 = vrot.slane %v7007, 4
      %v7134 = vrot.slane %v7007, 5
      %v7135 = vrot.slane %v7007, 6
      %v7136 = vrot.slane %v7007, 7
      %v7137 = vperm.slane %v6962, 0
      %v7138 = vperm.slane %v7025, 0
      %v7139 = vperm.slane %v7026, 0
      %v7140 = vperm.slane %v7027, 0
      %v7141 = vperm.slane %v7028, 0
      %v7142 = vperm.slane %v7029, 0
      %v7143 = vperm.slane %v7030, 0
      %v7144 = vperm.slane %v7031, 0
      %v7145 = vperm.slane %v6965, 0
      %v7146 = vperm.slane %v7032, 0
      %v7147 = vperm.slane %v7033, 0
      %v7148 = vperm.slane %v7034, 0
      %v7149 = vperm.slane %v7035, 0
      %v7150 = vperm.slane %v7036, 0
      %v7151 = vperm.slane %v7037, 0
      %v7152 = vperm.slane %v7038, 0
      %v7153 = vperm.slane %v6968, 0
      %v7154 = vperm.slane %v7039, 0
      %v7155 = vperm.slane %v7040, 0
      %v7156 = vperm.slane %v7041, 0
      %v7157 = vperm.slane %v7042, 0
      %v7158 = vperm.slane %v7043, 0
      %v7159 = vperm.slane %v7044, 0
      %v7160 = vperm.slane %v7045, 0
      %v7161 = vperm.slane %v6971, 0
      %v7162 = vperm.slane %v7046, 0
      %v7163 = vperm.slane %v7047, 0
      %v7164 = vperm.slane %v7048, 0
      %v7165 = vperm.slane %v7049, 0
      %v7166 = vperm.slane %v7050, 0
      %v7167 = vperm.slane %v7051, 0
      %v7168 = vperm.slane %v7052, 0
      %v7169 = vperm.slane %v6974, 0
      %v7170 = vperm.slane %v7053, 0
      %v7171 = vperm.slane %v7054, 0
      %v7172 = vperm.slane %v7055, 0
      %v7173 = vperm.slane %v7056, 0
      %v7174 = vperm.slane %v7057, 0
      %v7175 = vperm.slane %v7058, 0
      %v7176 = vperm.slane %v7059, 0
      %v7177 = vperm.slane %v6977, 0
      %v7178 = vperm.slane %v7060, 0
      %v7179 = vperm.slane %v7061, 0
      %v7180 = vperm.slane %v7062, 0
      %v7181 = vperm.slane %v7063, 0
      %v7182 = vperm.slane %v7064, 0
      %v7183 = vperm.slane %v7065, 0
      %v7184 = vperm.slane %v7066, 0
      %v7185 = vperm.slane %v6980, 0
      %v7186 = vperm.slane %v7067, 0
      %v7187 = vperm.slane %v7068, 0
      %v7188 = vperm.slane %v7069, 0
      %v7189 = vperm.slane %v7070, 0
      %v7190 = vperm.slane %v7071, 0
      %v7191 = vperm.slane %v7072, 0
      %v7192 = vperm.slane %v7073, 0
      %v7193 = vperm.slane %v6983, 0
      %v7194 = vperm.slane %v7074, 0
      %v7195 = vperm.slane %v7075, 0
      %v7196 = vperm.slane %v7076, 0
      %v7197 = vperm.slane %v7077, 0
      %v7198 = vperm.slane %v7078, 0
      %v7199 = vperm.slane %v7079, 0
      %v7200 = vperm.slane %v7080, 0
      %v7201 = vperm.slane %v6986, 0
      %v7202 = vperm.slane %v7081, 0
      %v7203 = vperm.slane %v7082, 0
      %v7204 = vperm.slane %v7083, 0
      %v7205 = vperm.slane %v7084, 0
      %v7206 = vperm.slane %v7085, 0
      %v7207 = vperm.slane %v7086, 0
      %v7208 = vperm.slane %v7087, 0
      %v7209 = vperm.slane %v6989, 0
      %v7210 = vperm.slane %v7088, 0
      %v7211 = vperm.slane %v7089, 0
      %v7212 = vperm.slane %v7090, 0
      %v7213 = vperm.slane %v7091, 0
      %v7214 = vperm.slane %v7092, 0
      %v7215 = vperm.slane %v7093, 0
      %v7216 = vperm.slane %v7094, 0
      %v7217 = vperm.slane %v6992, 0
      %v7218 = vperm.slane %v7095, 0
      %v7219 = vperm.slane %v7096, 0
      %v7220 = vperm.slane %v7097, 0
      %v7221 = vperm.slane %v7098, 0
      %v7222 = vperm.slane %v7099, 0
      %v7223 = vperm.slane %v7100, 0
      %v7224 = vperm.slane %v7101, 0
      %v7225 = vperm.slane %v6995, 0
      %v7226 = vperm.slane %v7102, 0
      %v7227 = vperm.slane %v7103, 0
      %v7228 = vperm.slane %v7104, 0
      %v7229 = vperm.slane %v7105, 0
      %v7230 = vperm.slane %v7106, 0
      %v7231 = vperm.slane %v7107, 0
      %v7232 = vperm.slane %v7108, 0
      %v7233 = vperm.slane %v6998, 0
      %v7234 = vperm.slane %v7109, 0
      %v7235 = vperm.slane %v7110, 0
      %v7236 = vperm.slane %v7111, 0
      %v7237 = vperm.slane %v7112, 0
      %v7238 = vperm.slane %v7113, 0
      %v7239 = vperm.slane %v7114, 0
      %v7240 = vperm.slane %v7115, 0
      %v7241 = vperm.slane %v7001, 0
      %v7242 = vperm.slane %v7116, 0
      %v7243 = vperm.slane %v7117, 0
      %v7244 = vperm.slane %v7118, 0
      %v7245 = vperm.slane %v7119, 0
      %v7246 = vperm.slane %v7120, 0
      %v7247 = vperm.slane %v7121, 0
      %v7248 = vperm.slane %v7122, 0
      %v7249 = vperm.slane %v7004, 0
      %v7250 = vperm.slane %v7123, 0
      %v7251 = vperm.slane %v7124, 0
      %v7252 = vperm.slane %v7125, 0
      %v7253 = vperm.slane %v7126, 0
      %v7254 = vperm.slane %v7127, 0
      %v7255 = vperm.slane %v7128, 0
      %v7256 = vperm.slane %v7129, 0
      %v7257 = vperm.slane %v7007, 0
      %v7258 = vperm.slane %v7130, 0
      %v7259 = vperm.slane %v7131, 0
      %v7260 = vperm.slane %v7132, 0
      %v7261 = vperm.slane %v7133, 0
      %v7262 = vperm.slane %v7134, 0
      %v7263 = vperm.slane %v7135, 0
      %v7264 = vperm.slane %v7136, 0
      %7393 = vrot.lane.b32.xlu0 %v6962, 96
      %v7394 = vpop.permute.xlu0 %7393
      %7395 = vrot.lane.b32.xlu0 %v6965, 96
      %v7396 = vpop.permute.xlu0 %7395
      %7397 = vrot.lane.b32.xlu0 %v6968, 96
      %v7398 = vpop.permute.xlu0 %7397
      %7399 = vrot.lane.b32.xlu0 %v6971, 96
      %v7400 = vpop.permute.xlu0 %7399
      %7401 = vrot.lane.b32.xlu0 %v6974, 96
      %v7402 = vpop.permute.xlu0 %7401
      %7403 = vrot.lane.b32.xlu0 %v6977, 96
      %v7404 = vpop.permute.xlu0 %7403
      %7405 = vrot.lane.b32.xlu0 %v6980, 96
      %v7406 = vpop.permute.xlu0 %7405
      %7407 = vrot.lane.b32.xlu0 %v6983, 96
      %v7408 = vpop.permute.xlu0 %7407
      %7409 = vrot.lane.b32.xlu0 %v6986, 96
      %v7410 = vpop.permute.xlu0 %7409
      %7411 = vrot.lane.b32.xlu0 %v6989, 96
      %v7412 = vpop.permute.xlu0 %7411
      %7413 = vrot.lane.b32.xlu0 %v6992, 96
      %v7414 = vpop.permute.xlu0 %7413
      %7415 = vrot.lane.b32.xlu0 %v6995, 96
      %v7416 = vpop.permute.xlu0 %7415
      %7417 = vrot.lane.b32.xlu0 %v6998, 96
      %v7418 = vpop.permute.xlu0 %7417
      %7419 = vrot.lane.b32.xlu0 %v7001, 96
      %v7420 = vpop.permute.xlu0 %7419
      %7421 = vrot.lane.b32.xlu0 %v7004, 96
      %v7422 = vpop.permute.xlu0 %7421
      %7423 = vrot.lane.b32.xlu0 %v7007, 96
      %v7424 = vpop.permute.xlu0 %7423
      %v7441 = vadd.f32 %v7137, %v7394
      %v7442 = vadd.f32 %v7138, %v7394
      %v7443 = vadd.f32 %v7139, %v7394
      %v7444 = vadd.f32 %v7140, %v7394
      %v7445 = vadd.f32 %v7141, %v7394
      %v7446 = vadd.f32 %v7142, %v7394
      %v7447 = vadd.f32 %v7143, %v7394
      %v7448 = vadd.f32 %v7144, %v7394
      %v7449 = vadd.f32 %v7145, %v7396
      %v7450 = vadd.f32 %v7146, %v7396
      %v7451 = vadd.f32 %v7147, %v7396
      %v7452 = vadd.f32 %v7148, %v7396
      %v7453 = vadd.f32 %v7149, %v7396
      %v7454 = vadd.f32 %v7150, %v7396
      %v7455 = vadd.f32 %v7151, %v7396
      %v7456 = vadd.f32 %v7152, %v7396
      %v7457 = vadd.f32 %v7153, %v7398
      %v7458 = vadd.f32 %v7154, %v7398
      %v7459 = vadd.f32 %v7155, %v7398
      %v7460 = vadd.f32 %v7156, %v7398
      %v7461 = vadd.f32 %v7157, %v7398
      %v7462 = vadd.f32 %v7158, %v7398
      %v7463 = vadd.f32 %v7159, %v7398
      %v7464 = vadd.f32 %v7160, %v7398
      %v7465 = vadd.f32 %v7161, %v7400
      %v7466 = vadd.f32 %v7162, %v7400
      %v7467 = vadd.f32 %v7163, %v7400
      %v7468 = vadd.f32 %v7164, %v7400
      %v7469 = vadd.f32 %v7165, %v7400
      %v7470 = vadd.f32 %v7166, %v7400
      %v7471 = vadd.f32 %v7167, %v7400
      %v7472 = vadd.f32 %v7168, %v7400
      %v7473 = vadd.f32 %v7169, %v7402
      %v7474 = vadd.f32 %v7170, %v7402
      %v7475 = vadd.f32 %v7171, %v7402
      %v7476 = vadd.f32 %v7172, %v7402
      %v7477 = vadd.f32 %v7173, %v7402
      %v7478 = vadd.f32 %v7174, %v7402
      %v7479 = vadd.f32 %v7175, %v7402
      %v7480 = vadd.f32 %v7176, %v7402
      %v7481 = vadd.f32 %v7177, %v7404
      %v7482 = vadd.f32 %v7178, %v7404
      %v7483 = vadd.f32 %v7179, %v7404
      %v7484 = vadd.f32 %v7180, %v7404
      %v7485 = vadd.f32 %v7181, %v7404
      %v7486 = vadd.f32 %v7182, %v7404
      %v7487 = vadd.f32 %v7183, %v7404
      %v7488 = vadd.f32 %v7184, %v7404
      %v7489 = vadd.f32 %v7185, %v7406
      %v7490 = vadd.f32 %v7186, %v7406
      %v7491 = vadd.f32 %v7187, %v7406
      %v7492 = vadd.f32 %v7188, %v7406
      %v7493 = vadd.f32 %v7189, %v7406
      %v7494 = vadd.f32 %v7190, %v7406
      %v7495 = vadd.f32 %v7191, %v7406
      %v7496 = vadd.f32 %v7192, %v7406
      %v7497 = vadd.f32 %v7193, %v7408
      %v7498 = vadd.f32 %v7194, %v7408
      %v7499 = vadd.f32 %v7195, %v7408
      %v7500 = vadd.f32 %v7196, %v7408
      %v7501 = vadd.f32 %v7197, %v7408
      %v7502 = vadd.f32 %v7198, %v7408
      %v7503 = vadd.f32 %v7199, %v7408
      %v7504 = vadd.f32 %v7200, %v7408
      %v7505 = vadd.f32 %v7201, %v7410
      %v7506 = vadd.f32 %v7202, %v7410
      %v7507 = vadd.f32 %v7203, %v7410
      %v7508 = vadd.f32 %v7204, %v7410
      %v7509 = vadd.f32 %v7205, %v7410
      %v7510 = vadd.f32 %v7206, %v7410
      %v7511 = vadd.f32 %v7207, %v7410
      %v7512 = vadd.f32 %v7208, %v7410
      %v7513 = vadd.f32 %v7209, %v7412
      %v7514 = vadd.f32 %v7210, %v7412
      %v7515 = vadd.f32 %v7211, %v7412
      %v7516 = vadd.f32 %v7212, %v7412
      %v7517 = vadd.f32 %v7213, %v7412
      %v7518 = vadd.f32 %v7214, %v7412
      %v7519 = vadd.f32 %v7215, %v7412
      %v7520 = vadd.f32 %v7216, %v7412
      %v7521 = vadd.f32 %v7217, %v7414
      %v7522 = vadd.f32 %v7218, %v7414
      %v7523 = vadd.f32 %v7219, %v7414
      %v7524 = vadd.f32 %v7220, %v7414
      %v7525 = vadd.f32 %v7221, %v7414
      %v7526 = vadd.f32 %v7222, %v7414
      %v7527 = vadd.f32 %v7223, %v7414
      %v7528 = vadd.f32 %v7224, %v7414
      %v7529 = vadd.f32 %v7225, %v7416
      %v7530 = vadd.f32 %v7226, %v7416
      %v7531 = vadd.f32 %v7227, %v7416
      %v7532 = vadd.f32 %v7228, %v7416
      %v7533 = vadd.f32 %v7229, %v7416
      %v7534 = vadd.f32 %v7230, %v7416
      %v7535 = vadd.f32 %v7231, %v7416
      %v7536 = vadd.f32 %v7232, %v7416
      %v7537 = vadd.f32 %v7233, %v7418
      %v7538 = vadd.f32 %v7234, %v7418
      %v7539 = vadd.f32 %v7235, %v7418
      %v7540 = vadd.f32 %v7236, %v7418
      %v7541 = vadd.f32 %v7237, %v7418
      %v7542 = vadd.f32 %v7238, %v7418
      %v7543 = vadd.f32 %v7239, %v7418
      %v7544 = vadd.f32 %v7240, %v7418
      %v7545 = vadd.f32 %v7241, %v7420
      %v7546 = vadd.f32 %v7242, %v7420
      %v7547 = vadd.f32 %v7243, %v7420
      %v7548 = vadd.f32 %v7244, %v7420
      %v7549 = vadd.f32 %v7245, %v7420
      %v7550 = vadd.f32 %v7246, %v7420
      %v7551 = vadd.f32 %v7247, %v7420
      %v7552 = vadd.f32 %v7248, %v7420
      %v7553 = vadd.f32 %v7249, %v7422
      %v7554 = vadd.f32 %v7250, %v7422
      %v7555 = vadd.f32 %v7251, %v7422
      %v7556 = vadd.f32 %v7252, %v7422
      %v7557 = vadd.f32 %v7253, %v7422
      %v7558 = vadd.f32 %v7254, %v7422
      %v7559 = vadd.f32 %v7255, %v7422
      %v7560 = vadd.f32 %v7256, %v7422
      %v7561 = vadd.f32 %v7257, %v7424
      %v7562 = vadd.f32 %v7258, %v7424
      %v7563 = vadd.f32 %v7259, %v7424
      %v7564 = vadd.f32 %v7260, %v7424
      %v7565 = vadd.f32 %v7261, %v7424
      %v7566 = vadd.f32 %v7262, %v7424
      %v7567 = vadd.f32 %v7263, %v7424
      %v7568 = vadd.f32 %v7264, %v7424
      %v7569 = vmul.f32 %v7441, 0.5
      %v7570 = vmul.f32 %v7442, 0.5
      %v7571 = vmul.f32 %v7443, 0.5
      %v7572 = vmul.f32 %v7444, 0.5
      %v7573 = vmul.f32 %v7445, 0.5
      %v7574 = vmul.f32 %v7446, 0.5
      %v7575 = vmul.f32 %v7447, 0.5
      %v7576 = vmul.f32 %v7448, 0.5
      %v7577 = vmul.f32 %v7449, 0.5
      %v7578 = vmul.f32 %v7450, 0.5
      %v7579 = vmul.f32 %v7451, 0.5
      %v7580 = vmul.f32 %v7452, 0.5
      %v7581 = vmul.f32 %v7453, 0.5
      %v7582 = vmul.f32 %v7454, 0.5
      %v7583 = vmul.f32 %v7455, 0.5
      %v7584 = vmul.f32 %v7456, 0.5
      %v7585 = vmul.f32 %v7457, 0.5
      %v7586 = vmul.f32 %v7458, 0.5
      %v7587 = vmul.f32 %v7459, 0.5
      %v7588 = vmul.f32 %v7460, 0.5
      %v7589 = vmul.f32 %v7461, 0.5
      %v7590 = vmul.f32 %v7462, 0.5
      %v7591 = vmul.f32 %v7463, 0.5
      %v7592 = vmul.f32 %v7464, 0.5
      %v7593 = vmul.f32 %v7465, 0.5
      %v7594 = vmul.f32 %v7466, 0.5
      %v7595 = vmul.f32 %v7467, 0.5
      %v7596 = vmul.f32 %v7468, 0.5
      %v7597 = vmul.f32 %v7469, 0.5
      %v7598 = vmul.f32 %v7470, 0.5
      %v7599 = vmul.f32 %v7471, 0.5
      %v7600 = vmul.f32 %v7472, 0.5
      %v7601 = vmul.f32 %v7473, 0.5
      %v7602 = vmul.f32 %v7474, 0.5
      %v7603 = vmul.f32 %v7475, 0.5
      %v7604 = vmul.f32 %v7476, 0.5
      %v7605 = vmul.f32 %v7477, 0.5
      %v7606 = vmul.f32 %v7478, 0.5
      %v7607 = vmul.f32 %v7479, 0.5
      %v7608 = vmul.f32 %v7480, 0.5
      %v7609 = vmul.f32 %v7481, 0.5
      %v7610 = vmul.f32 %v7482, 0.5
      %v7611 = vmul.f32 %v7483, 0.5
      %v7612 = vmul.f32 %v7484, 0.5
      %v7613 = vmul.f32 %v7485, 0.5
      %v7614 = vmul.f32 %v7486, 0.5
      %v7615 = vmul.f32 %v7487, 0.5
      %v7616 = vmul.f32 %v7488, 0.5
      %v7617 = vmul.f32 %v7489, 0.5
      %v7618 = vmul.f32 %v7490, 0.5
      %v7619 = vmul.f32 %v7491, 0.5
      %v7620 = vmul.f32 %v7492, 0.5
      %v7621 = vmul.f32 %v7493, 0.5
      %v7622 = vmul.f32 %v7494, 0.5
      %v7623 = vmul.f32 %v7495, 0.5
      %v7624 = vmul.f32 %v7496, 0.5
      %v7625 = vmul.f32 %v7497, 0.5
      %v7626 = vmul.f32 %v7498, 0.5
      %v7627 = vmul.f32 %v7499, 0.5
      %v7628 = vmul.f32 %v7500, 0.5
      %v7629 = vmul.f32 %v7501, 0.5
      %v7630 = vmul.f32 %v7502, 0.5
      %v7631 = vmul.f32 %v7503, 0.5
      %v7632 = vmul.f32 %v7504, 0.5
      %v7633 = vmul.f32 %v7505, 0.5
      %v7634 = vmul.f32 %v7506, 0.5
      %v7635 = vmul.f32 %v7507, 0.5
      %v7636 = vmul.f32 %v7508, 0.5
      %v7637 = vmul.f32 %v7509, 0.5
      %v7638 = vmul.f32 %v7510, 0.5
      %v7639 = vmul.f32 %v7511, 0.5
      %v7640 = vmul.f32 %v7512, 0.5
      %v7641 = vmul.f32 %v7513, 0.5
      %v7642 = vmul.f32 %v7514, 0.5
      %v7643 = vmul.f32 %v7515, 0.5
      %v7644 = vmul.f32 %v7516, 0.5
      %v7645 = vmul.f32 %v7517, 0.5
      %v7646 = vmul.f32 %v7518, 0.5
      %v7647 = vmul.f32 %v7519, 0.5
      %v7648 = vmul.f32 %v7520, 0.5
      %v7649 = vmul.f32 %v7521, 0.5
      %v7650 = vmul.f32 %v7522, 0.5
      %v7651 = vmul.f32 %v7523, 0.5
      %v7652 = vmul.f32 %v7524, 0.5
      %v7653 = vmul.f32 %v7525, 0.5
      %v7654 = vmul.f32 %v7526, 0.5
      %v7655 = vmul.f32 %v7527, 0.5
      %v7656 = vmul.f32 %v7528, 0.5
      %v7657 = vmul.f32 %v7529, 0.5
      %v7658 = vmul.f32 %v7530, 0.5
      %v7659 = vmul.f32 %v7531, 0.5
      %v7660 = vmul.f32 %v7532, 0.5
      %v7661 = vmul.f32 %v7533, 0.5
      %v7662 = vmul.f32 %v7534, 0.5
      %v7663 = vmul.f32 %v7535, 0.5
      %v7664 = vmul.f32 %v7536, 0.5
      %v7665 = vmul.f32 %v7537, 0.5
      %v7666 = vmul.f32 %v7538, 0.5
      %v7667 = vmul.f32 %v7539, 0.5
      %v7668 = vmul.f32 %v7540, 0.5
      %v7669 = vmul.f32 %v7541, 0.5
      %v7670 = vmul.f32 %v7542, 0.5
      %v7671 = vmul.f32 %v7543, 0.5
      %v7672 = vmul.f32 %v7544, 0.5
      %v7673 = vmul.f32 %v7545, 0.5
      %v7674 = vmul.f32 %v7546, 0.5
      %v7675 = vmul.f32 %v7547, 0.5
      %v7676 = vmul.f32 %v7548, 0.5
      %v7677 = vmul.f32 %v7549, 0.5
      %v7678 = vmul.f32 %v7550, 0.5
      %v7679 = vmul.f32 %v7551, 0.5
      %v7680 = vmul.f32 %v7552, 0.5
      %v7681 = vmul.f32 %v7553, 0.5
      %v7682 = vmul.f32 %v7554, 0.5
      %v7683 = vmul.f32 %v7555, 0.5
      %v7684 = vmul.f32 %v7556, 0.5
      %v7685 = vmul.f32 %v7557, 0.5
      %v7686 = vmul.f32 %v7558, 0.5
      %v7687 = vmul.f32 %v7559, 0.5
      %v7688 = vmul.f32 %v7560, 0.5
      %v7689 = vmul.f32 %v7561, 0.5
      %v7690 = vmul.f32 %v7562, 0.5
      %v7691 = vmul.f32 %v7563, 0.5
      %v7692 = vmul.f32 %v7564, 0.5
      %v7693 = vmul.f32 %v7565, 0.5
      %v7694 = vmul.f32 %v7566, 0.5
      %v7695 = vmul.f32 %v7567, 0.5
      %v7696 = vmul.f32 %v7568, 0.5
      %v7697 = vtanh.pop %v7569
      %v7698 = vtanh.pop %v7570
      %v7699 = vtanh.pop %v7571
      %v7700 = vtanh.pop %v7572
      %v7701 = vtanh.pop %v7573
      %v7702 = vtanh.pop %v7574
      %v7703 = vtanh.pop %v7575
      %v7704 = vtanh.pop %v7576
      %v7705 = vtanh.pop %v7577
      %v7706 = vtanh.pop %v7578
      %v7707 = vtanh.pop %v7579
      %v7708 = vtanh.pop %v7580
      %v7709 = vtanh.pop %v7581
      %v7710 = vtanh.pop %v7582
      %v7711 = vtanh.pop %v7583
      %v7712 = vtanh.pop %v7584
      %v7713 = vtanh.pop %v7585
      %v7714 = vtanh.pop %v7586
      %v7715 = vtanh.pop %v7587
      %v7716 = vtanh.pop %v7588
      %v7717 = vtanh.pop %v7589
      %v7718 = vtanh.pop %v7590
      %v7719 = vtanh.pop %v7591
      %v7720 = vtanh.pop %v7592
      %v7721 = vtanh.pop %v7593
      %v7722 = vtanh.pop %v7594
      %v7723 = vtanh.pop %v7595
      %v7724 = vtanh.pop %v7596
      %v7725 = vtanh.pop %v7597
      %v7726 = vtanh.pop %v7598
      %v7727 = vtanh.pop %v7599
      %v7728 = vtanh.pop %v7600
      %v7729 = vtanh.pop %v7601
      %v7730 = vtanh.pop %v7602
      %v7731 = vtanh.pop %v7603
      %v7732 = vtanh.pop %v7604
      %v7733 = vtanh.pop %v7605
      %v7734 = vtanh.pop %v7606
      %v7735 = vtanh.pop %v7607
      %v7736 = vtanh.pop %v7608
      %v7737 = vtanh.pop %v7609
      %v7738 = vtanh.pop %v7610
      %v7739 = vtanh.pop %v7611
      %v7740 = vtanh.pop %v7612
      %v7741 = vtanh.pop %v7613
      %v7742 = vtanh.pop %v7614
      %v7743 = vtanh.pop %v7615
      %v7744 = vtanh.pop %v7616
      %v7745 = vtanh.pop %v7617
      %v7746 = vtanh.pop %v7618
      %v7747 = vtanh.pop %v7619
      %v7748 = vtanh.pop %v7620
      %v7749 = vtanh.pop %v7621
      %v7750 = vtanh.pop %v7622
      %v7751 = vtanh.pop %v7623
      %v7752 = vtanh.pop %v7624
      %v7753 = vtanh.pop %v7625
      %v7754 = vtanh.pop %v7626
      %v7755 = vtanh.pop %v7627
      %v7756 = vtanh.pop %v7628
      %v7757 = vtanh.pop %v7629
      %v7758 = vtanh.pop %v7630
      %v7759 = vtanh.pop %v7631
      %v7760 = vtanh.pop %v7632
      %v7761 = vtanh.pop %v7633
      %v7762 = vtanh.pop %v7634
      %v7763 = vtanh.pop %v7635
      %v7764 = vtanh.pop %v7636
      %v7765 = vtanh.pop %v7637
      %v7766 = vtanh.pop %v7638
      %v7767 = vtanh.pop %v7639
      %v7768 = vtanh.pop %v7640
      %v7769 = vtanh.pop %v7641
      %v7770 = vtanh.pop %v7642
      %v7771 = vtanh.pop %v7643
      %v7772 = vtanh.pop %v7644
      %v7773 = vtanh.pop %v7645
      %v7774 = vtanh.pop %v7646
      %v7775 = vtanh.pop %v7647
      %v7776 = vtanh.pop %v7648
      %v7777 = vtanh.pop %v7649
      %v7778 = vtanh.pop %v7650
      %v7779 = vtanh.pop %v7651
      %v7780 = vtanh.pop %v7652
      %v7781 = vtanh.pop %v7653
      %v7782 = vtanh.pop %v7654
      %v7783 = vtanh.pop %v7655
      %v7784 = vtanh.pop %v7656
      %v7785 = vtanh.pop %v7657
      %v7786 = vtanh.pop %v7658
      %v7787 = vtanh.pop %v7659
      %v7788 = vtanh.pop %v7660
      %v7789 = vtanh.pop %v7661
      %v7790 = vtanh.pop %v7662
      %v7791 = vtanh.pop %v7663
      %v7792 = vtanh.pop %v7664
      %v7793 = vtanh.pop %v7665
      %v7794 = vtanh.pop %v7666
      %v7795 = vtanh.pop %v7667
      %v7796 = vtanh.pop %v7668
      %v7797 = vtanh.pop %v7669
      %v7798 = vtanh.pop %v7670
      %v7799 = vtanh.pop %v7671
      %v7800 = vtanh.pop %v7672
      %v7801 = vtanh.pop %v7673
      %v7802 = vtanh.pop %v7674
      %v7803 = vtanh.pop %v7675
      %v7804 = vtanh.pop %v7676
      %v7805 = vtanh.pop %v7677
      %v7806 = vtanh.pop %v7678
      %v7807 = vtanh.pop %v7679
      %v7808 = vtanh.pop %v7680
      %v7809 = vtanh.pop %v7681
      %v7810 = vtanh.pop %v7682
      %v7811 = vtanh.pop %v7683
      %v7812 = vtanh.pop %v7684
      %v7813 = vtanh.pop %v7685
      %v7814 = vtanh.pop %v7686
      %v7815 = vtanh.pop %v7687
      %v7816 = vtanh.pop %v7688
      %v7817 = vtanh.pop %v7689
      %v7818 = vtanh.pop %v7690
      %v7819 = vtanh.pop %v7691
      %v7820 = vtanh.pop %v7692
      %v7821 = vtanh.pop %v7693
      %v7822 = vtanh.pop %v7694
      %v7823 = vtanh.pop %v7695
      %v7824 = vtanh.pop %v7696
      %v7825 = vmul.f32 %v7697, 0.5
      %v7826 = vmul.f32 %v7698, 0.5
      %v7827 = vmul.f32 %v7699, 0.5
      %v7828 = vmul.f32 %v7700, 0.5
      %v7829 = vmul.f32 %v7701, 0.5
      %v7830 = vmul.f32 %v7702, 0.5
      %v7831 = vmul.f32 %v7703, 0.5
      %v7832 = vmul.f32 %v7704, 0.5
      %v7833 = vmul.f32 %v7705, 0.5
      %v7834 = vmul.f32 %v7706, 0.5
      %v7835 = vmul.f32 %v7707, 0.5
      %v7836 = vmul.f32 %v7708, 0.5
      %v7837 = vmul.f32 %v7709, 0.5
      %v7838 = vmul.f32 %v7710, 0.5
      %v7839 = vmul.f32 %v7711, 0.5
      %v7840 = vmul.f32 %v7712, 0.5
      %v7841 = vmul.f32 %v7713, 0.5
      %v7842 = vmul.f32 %v7714, 0.5
      %v7843 = vmul.f32 %v7715, 0.5
      %v7844 = vmul.f32 %v7716, 0.5
      %v7845 = vmul.f32 %v7717, 0.5
      %v7846 = vmul.f32 %v7718, 0.5
      %v7847 = vmul.f32 %v7719, 0.5
      %v7848 = vmul.f32 %v7720, 0.5
      %v7849 = vmul.f32 %v7721, 0.5
      %v7850 = vmul.f32 %v7722, 0.5
      %v7851 = vmul.f32 %v7723, 0.5
      %v7852 = vmul.f32 %v7724, 0.5
      %v7853 = vmul.f32 %v7725, 0.5
      %v7854 = vmul.f32 %v7726, 0.5
      %v7855 = vmul.f32 %v7727, 0.5
      %v7856 = vmul.f32 %v7728, 0.5
      %v7857 = vmul.f32 %v7729, 0.5
      %v7858 = vmul.f32 %v7730, 0.5
      %v7859 = vmul.f32 %v7731, 0.5
      %v7860 = vmul.f32 %v7732, 0.5
      %v7861 = vmul.f32 %v7733, 0.5
      %v7862 = vmul.f32 %v7734, 0.5
      %v7863 = vmul.f32 %v7735, 0.5
      %v7864 = vmul.f32 %v7736, 0.5
      %v7865 = vmul.f32 %v7737, 0.5
      %v7866 = vmul.f32 %v7738, 0.5
      %v7867 = vmul.f32 %v7739, 0.5
      %v7868 = vmul.f32 %v7740, 0.5
      %v7869 = vmul.f32 %v7741, 0.5
      %v7870 = vmul.f32 %v7742, 0.5
      %v7871 = vmul.f32 %v7743, 0.5
      %v7872 = vmul.f32 %v7744, 0.5
      %v7873 = vmul.f32 %v7745, 0.5
      %v7874 = vmul.f32 %v7746, 0.5
      %v7875 = vmul.f32 %v7747, 0.5
      %v7876 = vmul.f32 %v7748, 0.5
      %v7877 = vmul.f32 %v7749, 0.5
      %v7878 = vmul.f32 %v7750, 0.5
      %v7879 = vmul.f32 %v7751, 0.5
      %v7880 = vmul.f32 %v7752, 0.5
      %v7881 = vmul.f32 %v7753, 0.5
      %v7882 = vmul.f32 %v7754, 0.5
      %v7883 = vmul.f32 %v7755, 0.5
      %v7884 = vmul.f32 %v7756, 0.5
      %v7885 = vmul.f32 %v7757, 0.5
      %v7886 = vmul.f32 %v7758, 0.5
      %v7887 = vmul.f32 %v7759, 0.5
      %v7888 = vmul.f32 %v7760, 0.5
      %v7889 = vmul.f32 %v7761, 0.5
      %v7890 = vmul.f32 %v7762, 0.5
      %v7891 = vmul.f32 %v7763, 0.5
      %v7892 = vmul.f32 %v7764, 0.5
      %v7893 = vmul.f32 %v7765, 0.5
      %v7894 = vmul.f32 %v7766, 0.5
      %v7895 = vmul.f32 %v7767, 0.5
      %v7896 = vmul.f32 %v7768, 0.5
      %v7897 = vmul.f32 %v7769, 0.5
      %v7898 = vmul.f32 %v7770, 0.5
      %v7899 = vmul.f32 %v7771, 0.5
      %v7900 = vmul.f32 %v7772, 0.5
      %v7901 = vmul.f32 %v7773, 0.5
      %v7902 = vmul.f32 %v7774, 0.5
      %v7903 = vmul.f32 %v7775, 0.5
      %v7904 = vmul.f32 %v7776, 0.5
      %v7905 = vmul.f32 %v7777, 0.5
      %v7906 = vmul.f32 %v7778, 0.5
      %v7907 = vmul.f32 %v7779, 0.5
      %v7908 = vmul.f32 %v7780, 0.5
      %v7909 = vmul.f32 %v7781, 0.5
      %v7910 = vmul.f32 %v7782, 0.5
      %v7911 = vmul.f32 %v7783, 0.5
      %v7912 = vmul.f32 %v7784, 0.5
      %v7913 = vmul.f32 %v7785, 0.5
      %v7914 = vmul.f32 %v7786, 0.5
      %v7915 = vmul.f32 %v7787, 0.5
      %v7916 = vmul.f32 %v7788, 0.5
      %v7917 = vmul.f32 %v7789, 0.5
      %v7918 = vmul.f32 %v7790, 0.5
      %v7919 = vmul.f32 %v7791, 0.5
      %v7920 = vmul.f32 %v7792, 0.5
      %v7921 = vmul.f32 %v7793, 0.5
      %v7922 = vmul.f32 %v7794, 0.5
      %v7923 = vmul.f32 %v7795, 0.5
      %v7924 = vmul.f32 %v7796, 0.5
      %v7925 = vmul.f32 %v7797, 0.5
      %v7926 = vmul.f32 %v7798, 0.5
      %v7927 = vmul.f32 %v7799, 0.5
      %v7928 = vmul.f32 %v7800, 0.5
      %v7929 = vmul.f32 %v7801, 0.5
      %v7930 = vmul.f32 %v7802, 0.5
      %v7931 = vmul.f32 %v7803, 0.5
      %v7932 = vmul.f32 %v7804, 0.5
      %v7933 = vmul.f32 %v7805, 0.5
      %v7934 = vmul.f32 %v7806, 0.5
      %v7935 = vmul.f32 %v7807, 0.5
      %v7936 = vmul.f32 %v7808, 0.5
      %v7937 = vmul.f32 %v7809, 0.5
      %v7938 = vmul.f32 %v7810, 0.5
      %v7939 = vmul.f32 %v7811, 0.5
      %v7940 = vmul.f32 %v7812, 0.5
      %v7941 = vmul.f32 %v7813, 0.5
      %v7942 = vmul.f32 %v7814, 0.5
      %v7943 = vmul.f32 %v7815, 0.5
      %v7944 = vmul.f32 %v7816, 0.5
      %v7945 = vmul.f32 %v7817, 0.5
      %v7946 = vmul.f32 %v7818, 0.5
      %v7947 = vmul.f32 %v7819, 0.5
      %v7948 = vmul.f32 %v7820, 0.5
      %v7949 = vmul.f32 %v7821, 0.5
      %v7950 = vmul.f32 %v7822, 0.5
      %v7951 = vmul.f32 %v7823, 0.5
      %v7952 = vmul.f32 %v7824, 0.5
      %v7953 = vadd.f32 %v7825, 0.5
      %v7954 = vadd.f32 %v7826, 0.5
      %v7955 = vadd.f32 %v7827, 0.5
      %v7956 = vadd.f32 %v7828, 0.5
      %v7957 = vadd.f32 %v7829, 0.5
      %v7958 = vadd.f32 %v7830, 0.5
      %v7959 = vadd.f32 %v7831, 0.5
      %v7960 = vadd.f32 %v7832, 0.5
      %v7961 = vadd.f32 %v7833, 0.5
      %v7962 = vadd.f32 %v7834, 0.5
      %v7963 = vadd.f32 %v7835, 0.5
      %v7964 = vadd.f32 %v7836, 0.5
      %v7965 = vadd.f32 %v7837, 0.5
      %v7966 = vadd.f32 %v7838, 0.5
      %v7967 = vadd.f32 %v7839, 0.5
      %v7968 = vadd.f32 %v7840, 0.5
      %v7969 = vadd.f32 %v7841, 0.5
      %v7970 = vadd.f32 %v7842, 0.5
      %v7971 = vadd.f32 %v7843, 0.5
      %v7972 = vadd.f32 %v7844, 0.5
      %v7973 = vadd.f32 %v7845, 0.5
      %v7974 = vadd.f32 %v7846, 0.5
      %v7975 = vadd.f32 %v7847, 0.5
      %v7976 = vadd.f32 %v7848, 0.5
      %v7977 = vadd.f32 %v7849, 0.5
      %v7978 = vadd.f32 %v7850, 0.5
      %v7979 = vadd.f32 %v7851, 0.5
      %v7980 = vadd.f32 %v7852, 0.5
      %v7981 = vadd.f32 %v7853, 0.5
      %v7982 = vadd.f32 %v7854, 0.5
      %v7983 = vadd.f32 %v7855, 0.5
      %v7984 = vadd.f32 %v7856, 0.5
      %v7985 = vadd.f32 %v7857, 0.5
      %v7986 = vadd.f32 %v7858, 0.5
      %v7987 = vadd.f32 %v7859, 0.5
      %v7988 = vadd.f32 %v7860, 0.5
      %v7989 = vadd.f32 %v7861, 0.5
      %v7990 = vadd.f32 %v7862, 0.5
      %v7991 = vadd.f32 %v7863, 0.5
      %v7992 = vadd.f32 %v7864, 0.5
      %v7993 = vadd.f32 %v7865, 0.5
      %v7994 = vadd.f32 %v7866, 0.5
      %v7995 = vadd.f32 %v7867, 0.5
      %v7996 = vadd.f32 %v7868, 0.5
      %v7997 = vadd.f32 %v7869, 0.5
      %v7998 = vadd.f32 %v7870, 0.5
      %v7999 = vadd.f32 %v7871, 0.5
      %v8000 = vadd.f32 %v7872, 0.5
      %v8001 = vadd.f32 %v7873, 0.5
      %v8002 = vadd.f32 %v7874, 0.5
      %v8003 = vadd.f32 %v7875, 0.5
      %v8004 = vadd.f32 %v7876, 0.5
      %v8005 = vadd.f32 %v7877, 0.5
      %v8006 = vadd.f32 %v7878, 0.5
      %v8007 = vadd.f32 %v7879, 0.5
      %v8008 = vadd.f32 %v7880, 0.5
      %v8009 = vadd.f32 %v7881, 0.5
      %v8010 = vadd.f32 %v7882, 0.5
      %v8011 = vadd.f32 %v7883, 0.5
      %v8012 = vadd.f32 %v7884, 0.5
      %v8013 = vadd.f32 %v7885, 0.5
      %v8014 = vadd.f32 %v7886, 0.5
      %v8015 = vadd.f32 %v7887, 0.5
      %v8016 = vadd.f32 %v7888, 0.5
      %v8017 = vadd.f32 %v7889, 0.5
      %v8018 = vadd.f32 %v7890, 0.5
      %v8019 = vadd.f32 %v7891, 0.5
      %v8020 = vadd.f32 %v7892, 0.5
      %v8021 = vadd.f32 %v7893, 0.5
      %v8022 = vadd.f32 %v7894, 0.5
      %v8023 = vadd.f32 %v7895, 0.5
      %v8024 = vadd.f32 %v7896, 0.5
      %v8025 = vadd.f32 %v7897, 0.5
      %v8026 = vadd.f32 %v7898, 0.5
      %v8027 = vadd.f32 %v7899, 0.5
      %v8028 = vadd.f32 %v7900, 0.5
      %v8029 = vadd.f32 %v7901, 0.5
      %v8030 = vadd.f32 %v7902, 0.5
      %v8031 = vadd.f32 %v7903, 0.5
      %v8032 = vadd.f32 %v7904, 0.5
      %v8033 = vadd.f32 %v7905, 0.5
      %v8034 = vadd.f32 %v7906, 0.5
      %v8035 = vadd.f32 %v7907, 0.5
      %v8036 = vadd.f32 %v7908, 0.5
      %v8037 = vadd.f32 %v7909, 0.5
      %v8038 = vadd.f32 %v7910, 0.5
      %v8039 = vadd.f32 %v7911, 0.5
      %v8040 = vadd.f32 %v7912, 0.5
      %v8041 = vadd.f32 %v7913, 0.5
      %v8042 = vadd.f32 %v7914, 0.5
      %v8043 = vadd.f32 %v7915, 0.5
      %v8044 = vadd.f32 %v7916, 0.5
      %v8045 = vadd.f32 %v7917, 0.5
      %v8046 = vadd.f32 %v7918, 0.5
      %v8047 = vadd.f32 %v7919, 0.5
      %v8048 = vadd.f32 %v7920, 0.5
      %v8049 = vadd.f32 %v7921, 0.5
      %v8050 = vadd.f32 %v7922, 0.5
      %v8051 = vadd.f32 %v7923, 0.5
      %v8052 = vadd.f32 %v7924, 0.5
      %v8053 = vadd.f32 %v7925, 0.5
      %v8054 = vadd.f32 %v7926, 0.5
      %v8055 = vadd.f32 %v7927, 0.5
      %v8056 = vadd.f32 %v7928, 0.5
      %v8057 = vadd.f32 %v7929, 0.5
      %v8058 = vadd.f32 %v7930, 0.5
      %v8059 = vadd.f32 %v7931, 0.5
      %v8060 = vadd.f32 %v7932, 0.5
      %v8061 = vadd.f32 %v7933, 0.5
      %v8062 = vadd.f32 %v7934, 0.5
      %v8063 = vadd.f32 %v7935, 0.5
      %v8064 = vadd.f32 %v7936, 0.5
      %v8065 = vadd.f32 %v7937, 0.5
      %v8066 = vadd.f32 %v7938, 0.5
      %v8067 = vadd.f32 %v7939, 0.5
      %v8068 = vadd.f32 %v7940, 0.5
      %v8069 = vadd.f32 %v7941, 0.5
      %v8070 = vadd.f32 %v7942, 0.5
      %v8071 = vadd.f32 %v7943, 0.5
      %v8072 = vadd.f32 %v7944, 0.5
      %v8073 = vadd.f32 %v7945, 0.5
      %v8074 = vadd.f32 %v7946, 0.5
      %v8075 = vadd.f32 %v7947, 0.5
      %v8076 = vadd.f32 %v7948, 0.5
      %v8077 = vadd.f32 %v7949, 0.5
      %v8078 = vadd.f32 %v7950, 0.5
      %v8079 = vadd.f32 %v7951, 0.5
      %v8080 = vadd.f32 %v7952, 0.5
      %v8081 = vmul.f32 %v7953, %v2636
      %v8082 = vmul.f32 %v7954, %v2636
      %v8083 = vmul.f32 %v7955, %v2636
      %v8084 = vmul.f32 %v7956, %v2636
      %v8085 = vmul.f32 %v7957, %v2636
      %v8086 = vmul.f32 %v7958, %v2636
      %v8087 = vmul.f32 %v7959, %v2636
      %v8088 = vmul.f32 %v7960, %v2636
      %v8089 = vmul.f32 %v7961, %v2636
      %v8090 = vmul.f32 %v7962, %v2636
      %v8091 = vmul.f32 %v7963, %v2636
      %v8092 = vmul.f32 %v7964, %v2636
      %v8093 = vmul.f32 %v7965, %v2636
      %v8094 = vmul.f32 %v7966, %v2636
      %v8095 = vmul.f32 %v7967, %v2636
      %v8096 = vmul.f32 %v7968, %v2636
      %v8097 = vmul.f32 %v7969, %v2636
      %v8098 = vmul.f32 %v7970, %v2636
      %v8099 = vmul.f32 %v7971, %v2636
      %v8100 = vmul.f32 %v7972, %v2636
      %v8101 = vmul.f32 %v7973, %v2636
      %v8102 = vmul.f32 %v7974, %v2636
      %v8103 = vmul.f32 %v7975, %v2636
      %v8104 = vmul.f32 %v7976, %v2636
      %v8105 = vmul.f32 %v7977, %v2636
      %v8106 = vmul.f32 %v7978, %v2636
      %v8107 = vmul.f32 %v7979, %v2636
      %v8108 = vmul.f32 %v7980, %v2636
      %v8109 = vmul.f32 %v7981, %v2636
      %v8110 = vmul.f32 %v7982, %v2636
      %v8111 = vmul.f32 %v7983, %v2636
      %v8112 = vmul.f32 %v7984, %v2636
      %v8113 = vmul.f32 %v7985, %v2636
      %v8114 = vmul.f32 %v7986, %v2636
      %v8115 = vmul.f32 %v7987, %v2636
      %v8116 = vmul.f32 %v7988, %v2636
      %v8117 = vmul.f32 %v7989, %v2636
      %v8118 = vmul.f32 %v7990, %v2636
      %v8119 = vmul.f32 %v7991, %v2636
      %v8120 = vmul.f32 %v7992, %v2636
      %v8121 = vmul.f32 %v7993, %v2636
      %v8122 = vmul.f32 %v7994, %v2636
      %v8123 = vmul.f32 %v7995, %v2636
      %v8124 = vmul.f32 %v7996, %v2636
      %v8125 = vmul.f32 %v7997, %v2636
      %v8126 = vmul.f32 %v7998, %v2636
      %v8127 = vmul.f32 %v7999, %v2636
      %v8128 = vmul.f32 %v8000, %v2636
      %v8129 = vmul.f32 %v8001, %v2636
      %v8130 = vmul.f32 %v8002, %v2636
      %v8131 = vmul.f32 %v8003, %v2636
      %v8132 = vmul.f32 %v8004, %v2636
      %v8133 = vmul.f32 %v8005, %v2636
      %v8134 = vmul.f32 %v8006, %v2636
      %v8135 = vmul.f32 %v8007, %v2636
      %v8136 = vmul.f32 %v8008, %v2636
      %v8137 = vmul.f32 %v8009, %v2636
      %v8138 = vmul.f32 %v8010, %v2636
      %v8139 = vmul.f32 %v8011, %v2636
      %v8140 = vmul.f32 %v8012, %v2636
      %v8141 = vmul.f32 %v8013, %v2636
      %v8142 = vmul.f32 %v8014, %v2636
      %v8143 = vmul.f32 %v8015, %v2636
      %v8144 = vmul.f32 %v8016, %v2636
      %v8145 = vmul.f32 %v8017, %v2636
      %v8146 = vmul.f32 %v8018, %v2636
      %v8147 = vmul.f32 %v8019, %v2636
      %v8148 = vmul.f32 %v8020, %v2636
      %v8149 = vmul.f32 %v8021, %v2636
      %v8150 = vmul.f32 %v8022, %v2636
      %v8151 = vmul.f32 %v8023, %v2636
      %v8152 = vmul.f32 %v8024, %v2636
      %v8153 = vmul.f32 %v8025, %v2636
      %v8154 = vmul.f32 %v8026, %v2636
      %v8155 = vmul.f32 %v8027, %v2636
      %v8156 = vmul.f32 %v8028, %v2636
      %v8157 = vmul.f32 %v8029, %v2636
      %v8158 = vmul.f32 %v8030, %v2636
      %v8159 = vmul.f32 %v8031, %v2636
      %v8160 = vmul.f32 %v8032, %v2636
      %v8161 = vmul.f32 %v8033, %v2636
      %v8162 = vmul.f32 %v8034, %v2636
      %v8163 = vmul.f32 %v8035, %v2636
      %v8164 = vmul.f32 %v8036, %v2636
      %v8165 = vmul.f32 %v8037, %v2636
      %v8166 = vmul.f32 %v8038, %v2636
      %v8167 = vmul.f32 %v8039, %v2636
      %v8168 = vmul.f32 %v8040, %v2636
      %v8169 = vmul.f32 %v8041, %v2636
      %v8170 = vmul.f32 %v8042, %v2636
      %v8171 = vmul.f32 %v8043, %v2636
      %v8172 = vmul.f32 %v8044, %v2636
      %v8173 = vmul.f32 %v8045, %v2636
      %v8174 = vmul.f32 %v8046, %v2636
      %v8175 = vmul.f32 %v8047, %v2636
      %v8176 = vmul.f32 %v8048, %v2636
      %v8177 = vmul.f32 %v8049, %v2636
      %v8178 = vmul.f32 %v8050, %v2636
      %v8179 = vmul.f32 %v8051, %v2636
      %v8180 = vmul.f32 %v8052, %v2636
      %v8181 = vmul.f32 %v8053, %v2636
      %v8182 = vmul.f32 %v8054, %v2636
      %v8183 = vmul.f32 %v8055, %v2636
      %v8184 = vmul.f32 %v8056, %v2636
      %v8185 = vmul.f32 %v8057, %v2636
      %v8186 = vmul.f32 %v8058, %v2636
      %v8187 = vmul.f32 %v8059, %v2636
      %v8188 = vmul.f32 %v8060, %v2636
      %v8189 = vmul.f32 %v8061, %v2636
      %v8190 = vmul.f32 %v8062, %v2636
      %v8191 = vmul.f32 %v8063, %v2636
      %v8192 = vmul.f32 %v8064, %v2636
      %v8193 = vmul.f32 %v8065, %v2636
      %v8194 = vmul.f32 %v8066, %v2636
      %v8195 = vmul.f32 %v8067, %v2636
      %v8196 = vmul.f32 %v8068, %v2636
      %v8197 = vmul.f32 %v8069, %v2636
      %v8198 = vmul.f32 %v8070, %v2636
      %v8199 = vmul.f32 %v8071, %v2636
      %v8200 = vmul.f32 %v8072, %v2636
      %v8201 = vmul.f32 %v8073, %v2636
      %v8202 = vmul.f32 %v8074, %v2636
      %v8203 = vmul.f32 %v8075, %v2636
      %v8204 = vmul.f32 %v8076, %v2636
      %v8205 = vmul.f32 %v8077, %v2636
      %v8206 = vmul.f32 %v8078, %v2636
      %v8207 = vmul.f32 %v8079, %v2636
      %v8208 = vmul.f32 %v8080, %v2636
      %v8209 = vsel %vm644, %v8081, 0.0
      %8210 = vadd.xlane.f32.xlu0 %v8209
      %v8211 = vpop.xlane.xlu0 %8210
      %v8212 = vsel %vm644, %v8082, 0.0
      %8213 = vadd.xlane.f32.xlu0 %v8212
      %v8214 = vpop.xlane.xlu0 %8213
      %v8215 = vsel %vm644, %v8083, 0.0
      %8216 = vadd.xlane.f32.xlu0 %v8215
      %v8217 = vpop.xlane.xlu0 %8216
      %v8218 = vsel %vm644, %v8084, 0.0
      %8219 = vadd.xlane.f32.xlu0 %v8218
      %v8220 = vpop.xlane.xlu0 %8219
      %v8221 = vsel %vm644, %v8085, 0.0
      %8222 = vadd.xlane.f32.xlu0 %v8221
      %v8223 = vpop.xlane.xlu0 %8222
      %v8224 = vsel %vm644, %v8086, 0.0
      %8225 = vadd.xlane.f32.xlu0 %v8224
      %v8226 = vpop.xlane.xlu0 %8225
      %v8227 = vsel %vm644, %v8087, 0.0
      %8228 = vadd.xlane.f32.xlu0 %v8227
      %v8229 = vpop.xlane.xlu0 %8228
      %v8230 = vsel %vm644, %v8088, 0.0
      %8231 = vadd.xlane.f32.xlu0 %v8230
      %v8232 = vpop.xlane.xlu0 %8231
      %v8233 = vsel %vm644, %v8089, 0.0
      %8234 = vadd.xlane.f32.xlu0 %v8233
      %v8235 = vpop.xlane.xlu0 %8234
      %v8236 = vsel %vm644, %v8090, 0.0
      %8237 = vadd.xlane.f32.xlu0 %v8236
      %v8238 = vpop.xlane.xlu0 %8237
      %v8239 = vsel %vm644, %v8091, 0.0
      %8240 = vadd.xlane.f32.xlu0 %v8239
      %v8241 = vpop.xlane.xlu0 %8240
      %v8242 = vsel %vm644, %v8092, 0.0
      %8243 = vadd.xlane.f32.xlu0 %v8242
      %v8244 = vpop.xlane.xlu0 %8243
      %v8245 = vsel %vm644, %v8093, 0.0
      %8246 = vadd.xlane.f32.xlu0 %v8245
      %v8247 = vpop.xlane.xlu0 %8246
      %v8248 = vsel %vm644, %v8094, 0.0
      %8249 = vadd.xlane.f32.xlu0 %v8248
      %v8250 = vpop.xlane.xlu0 %8249
      %v8251 = vsel %vm644, %v8095, 0.0
      %8252 = vadd.xlane.f32.xlu0 %v8251
      %v8253 = vpop.xlane.xlu0 %8252
      %v8254 = vsel %vm644, %v8096, 0.0
      %8255 = vadd.xlane.f32.xlu0 %v8254
      %v8256 = vpop.xlane.xlu0 %8255
      %v8257 = vsel %vm644, %v8097, 0.0
      %8258 = vadd.xlane.f32.xlu0 %v8257
      %v8259 = vpop.xlane.xlu0 %8258
      %v8260 = vsel %vm644, %v8098, 0.0
      %8261 = vadd.xlane.f32.xlu0 %v8260
      %v8262 = vpop.xlane.xlu0 %8261
      %v8263 = vsel %vm644, %v8099, 0.0
      %8264 = vadd.xlane.f32.xlu0 %v8263
      %v8265 = vpop.xlane.xlu0 %8264
      %v8266 = vsel %vm644, %v8100, 0.0
      %8267 = vadd.xlane.f32.xlu0 %v8266
      %v8268 = vpop.xlane.xlu0 %8267
      %v8269 = vsel %vm644, %v8101, 0.0
      %8270 = vadd.xlane.f32.xlu0 %v8269
      %v8271 = vpop.xlane.xlu0 %8270
      %v8272 = vsel %vm644, %v8102, 0.0
      %8273 = vadd.xlane.f32.xlu0 %v8272
      %v8274 = vpop.xlane.xlu0 %8273
      %v8275 = vsel %vm644, %v8103, 0.0
      %8276 = vadd.xlane.f32.xlu0 %v8275
      %v8277 = vpop.xlane.xlu0 %8276
      %v8278 = vsel %vm644, %v8104, 0.0
      %8279 = vadd.xlane.f32.xlu0 %v8278
      %v8280 = vpop.xlane.xlu0 %8279
      %v8281 = vsel %vm644, %v8105, 0.0
      %8282 = vadd.xlane.f32.xlu0 %v8281
      %v8283 = vpop.xlane.xlu0 %8282
      %v8284 = vsel %vm644, %v8106, 0.0
      %8285 = vadd.xlane.f32.xlu0 %v8284
      %v8286 = vpop.xlane.xlu0 %8285
      %v8287 = vsel %vm644, %v8107, 0.0
      %8288 = vadd.xlane.f32.xlu0 %v8287
      %v8289 = vpop.xlane.xlu0 %8288
      %v8290 = vsel %vm644, %v8108, 0.0
      %8291 = vadd.xlane.f32.xlu0 %v8290
      %v8292 = vpop.xlane.xlu0 %8291
      %v8293 = vsel %vm644, %v8109, 0.0
      %8294 = vadd.xlane.f32.xlu0 %v8293
      %v8295 = vpop.xlane.xlu0 %8294
      %v8296 = vsel %vm644, %v8110, 0.0
      %8297 = vadd.xlane.f32.xlu0 %v8296
      %v8298 = vpop.xlane.xlu0 %8297
      %v8299 = vsel %vm644, %v8111, 0.0
      %8300 = vadd.xlane.f32.xlu0 %v8299
      %v8301 = vpop.xlane.xlu0 %8300
      %v8302 = vsel %vm644, %v8112, 0.0
      %8303 = vadd.xlane.f32.xlu0 %v8302
      %v8304 = vpop.xlane.xlu0 %8303
      %v8305 = vsel %vm644, %v8113, 0.0
      %8306 = vadd.xlane.f32.xlu0 %v8305
      %v8307 = vpop.xlane.xlu0 %8306
      %v8308 = vsel %vm644, %v8114, 0.0
      %8309 = vadd.xlane.f32.xlu0 %v8308
      %v8310 = vpop.xlane.xlu0 %8309
      %v8311 = vsel %vm644, %v8115, 0.0
      %8312 = vadd.xlane.f32.xlu0 %v8311
      %v8313 = vpop.xlane.xlu0 %8312
      %v8314 = vsel %vm644, %v8116, 0.0
      %8315 = vadd.xlane.f32.xlu0 %v8314
      %v8316 = vpop.xlane.xlu0 %8315
      %v8317 = vsel %vm644, %v8117, 0.0
      %8318 = vadd.xlane.f32.xlu0 %v8317
      %v8319 = vpop.xlane.xlu0 %8318
      %v8320 = vsel %vm644, %v8118, 0.0
      %8321 = vadd.xlane.f32.xlu0 %v8320
      %v8322 = vpop.xlane.xlu0 %8321
      %v8323 = vsel %vm644, %v8119, 0.0
      %8324 = vadd.xlane.f32.xlu0 %v8323
      %v8325 = vpop.xlane.xlu0 %8324
      %v8326 = vsel %vm644, %v8120, 0.0
      %8327 = vadd.xlane.f32.xlu0 %v8326
      %v8328 = vpop.xlane.xlu0 %8327
      %v8329 = vsel %vm644, %v8121, 0.0
      %8330 = vadd.xlane.f32.xlu0 %v8329
      %v8331 = vpop.xlane.xlu0 %8330
      %v8332 = vsel %vm644, %v8122, 0.0
      %8333 = vadd.xlane.f32.xlu0 %v8332
      %v8334 = vpop.xlane.xlu0 %8333
      %v8335 = vsel %vm644, %v8123, 0.0
      %8336 = vadd.xlane.f32.xlu0 %v8335
      %v8337 = vpop.xlane.xlu0 %8336
      %v8338 = vsel %vm644, %v8124, 0.0
      %8339 = vadd.xlane.f32.xlu0 %v8338
      %v8340 = vpop.xlane.xlu0 %8339
      %v8341 = vsel %vm644, %v8125, 0.0
      %8342 = vadd.xlane.f32.xlu0 %v8341
      %v8343 = vpop.xlane.xlu0 %8342
      %v8344 = vsel %vm644, %v8126, 0.0
      %8345 = vadd.xlane.f32.xlu0 %v8344
      %v8346 = vpop.xlane.xlu0 %8345
      %v8347 = vsel %vm644, %v8127, 0.0
      %8348 = vadd.xlane.f32.xlu0 %v8347
      %v8349 = vpop.xlane.xlu0 %8348
      %v8350 = vsel %vm644, %v8128, 0.0
      %8351 = vadd.xlane.f32.xlu0 %v8350
      %v8352 = vpop.xlane.xlu0 %8351
      %v8353 = vsel %vm644, %v8129, 0.0
      %8354 = vadd.xlane.f32.xlu0 %v8353
      %v8355 = vpop.xlane.xlu0 %8354
      %v8356 = vsel %vm644, %v8130, 0.0
      %8357 = vadd.xlane.f32.xlu0 %v8356
      %v8358 = vpop.xlane.xlu0 %8357
      %v8359 = vsel %vm644, %v8131, 0.0
      %8360 = vadd.xlane.f32.xlu0 %v8359
      %v8361 = vpop.xlane.xlu0 %8360
      %v8362 = vsel %vm644, %v8132, 0.0
      %8363 = vadd.xlane.f32.xlu0 %v8362
      %v8364 = vpop.xlane.xlu0 %8363
      %v8365 = vsel %vm644, %v8133, 0.0
      %8366 = vadd.xlane.f32.xlu0 %v8365
      %v8367 = vpop.xlane.xlu0 %8366
      %v8368 = vsel %vm644, %v8134, 0.0
      %8369 = vadd.xlane.f32.xlu0 %v8368
      %v8370 = vpop.xlane.xlu0 %8369
      %v8371 = vsel %vm644, %v8135, 0.0
      %8372 = vadd.xlane.f32.xlu0 %v8371
      %v8373 = vpop.xlane.xlu0 %8372
      %v8374 = vsel %vm644, %v8136, 0.0
      %8375 = vadd.xlane.f32.xlu0 %v8374
      %v8376 = vpop.xlane.xlu0 %8375
      %v8377 = vsel %vm644, %v8137, 0.0
      %8378 = vadd.xlane.f32.xlu0 %v8377
      %v8379 = vpop.xlane.xlu0 %8378
      %v8380 = vsel %vm644, %v8138, 0.0
      %8381 = vadd.xlane.f32.xlu0 %v8380
      %v8382 = vpop.xlane.xlu0 %8381
      %v8383 = vsel %vm644, %v8139, 0.0
      %8384 = vadd.xlane.f32.xlu0 %v8383
      %v8385 = vpop.xlane.xlu0 %8384
      %v8386 = vsel %vm644, %v8140, 0.0
      %8387 = vadd.xlane.f32.xlu0 %v8386
      %v8388 = vpop.xlane.xlu0 %8387
      %v8389 = vsel %vm644, %v8141, 0.0
      %8390 = vadd.xlane.f32.xlu0 %v8389
      %v8391 = vpop.xlane.xlu0 %8390
      %v8392 = vsel %vm644, %v8142, 0.0
      %8393 = vadd.xlane.f32.xlu0 %v8392
      %v8394 = vpop.xlane.xlu0 %8393
      %v8395 = vsel %vm644, %v8143, 0.0
      %8396 = vadd.xlane.f32.xlu0 %v8395
      %v8397 = vpop.xlane.xlu0 %8396
      %v8398 = vsel %vm644, %v8144, 0.0
      %8399 = vadd.xlane.f32.xlu0 %v8398
      %v8400 = vpop.xlane.xlu0 %8399
      %v8401 = vsel %vm644, %v8145, 0.0
      %8402 = vadd.xlane.f32.xlu0 %v8401
      %v8403 = vpop.xlane.xlu0 %8402
      %v8404 = vsel %vm644, %v8146, 0.0
      %8405 = vadd.xlane.f32.xlu0 %v8404
      %v8406 = vpop.xlane.xlu0 %8405
      %v8407 = vsel %vm644, %v8147, 0.0
      %8408 = vadd.xlane.f32.xlu0 %v8407
      %v8409 = vpop.xlane.xlu0 %8408
      %v8410 = vsel %vm644, %v8148, 0.0
      %8411 = vadd.xlane.f32.xlu0 %v8410
      %v8412 = vpop.xlane.xlu0 %8411
      %v8413 = vsel %vm644, %v8149, 0.0
      %8414 = vadd.xlane.f32.xlu0 %v8413
      %v8415 = vpop.xlane.xlu0 %8414
      %v8416 = vsel %vm644, %v8150, 0.0
      %8417 = vadd.xlane.f32.xlu0 %v8416
      %v8418 = vpop.xlane.xlu0 %8417
      %v8419 = vsel %vm644, %v8151, 0.0
      %8420 = vadd.xlane.f32.xlu0 %v8419
      %v8421 = vpop.xlane.xlu0 %8420
      %v8422 = vsel %vm644, %v8152, 0.0
      %8423 = vadd.xlane.f32.xlu0 %v8422
      %v8424 = vpop.xlane.xlu0 %8423
      %v8425 = vsel %vm644, %v8153, 0.0
      %8426 = vadd.xlane.f32.xlu0 %v8425
      %v8427 = vpop.xlane.xlu0 %8426
      %v8428 = vsel %vm644, %v8154, 0.0
      %8429 = vadd.xlane.f32.xlu0 %v8428
      %v8430 = vpop.xlane.xlu0 %8429
      %v8431 = vsel %vm644, %v8155, 0.0
      %8432 = vadd.xlane.f32.xlu0 %v8431
      %v8433 = vpop.xlane.xlu0 %8432
      %v8434 = vsel %vm644, %v8156, 0.0
      %8435 = vadd.xlane.f32.xlu0 %v8434
      %v8436 = vpop.xlane.xlu0 %8435
      %v8437 = vsel %vm644, %v8157, 0.0
      %8438 = vadd.xlane.f32.xlu0 %v8437
      %v8439 = vpop.xlane.xlu0 %8438
      %v8440 = vsel %vm644, %v8158, 0.0
      %8441 = vadd.xlane.f32.xlu0 %v8440
      %v8442 = vpop.xlane.xlu0 %8441
      %v8443 = vsel %vm644, %v8159, 0.0
      %8444 = vadd.xlane.f32.xlu0 %v8443
      %v8445 = vpop.xlane.xlu0 %8444
      %v8446 = vsel %vm644, %v8160, 0.0
      %8447 = vadd.xlane.f32.xlu0 %v8446
      %v8448 = vpop.xlane.xlu0 %8447
      %v8449 = vsel %vm644, %v8161, 0.0
      %8450 = vadd.xlane.f32.xlu0 %v8449
      %v8451 = vpop.xlane.xlu0 %8450
      %v8452 = vsel %vm644, %v8162, 0.0
      %8453 = vadd.xlane.f32.xlu0 %v8452
      %v8454 = vpop.xlane.xlu0 %8453
      %v8455 = vsel %vm644, %v8163, 0.0
      %8456 = vadd.xlane.f32.xlu0 %v8455
      %v8457 = vpop.xlane.xlu0 %8456
      %v8458 = vsel %vm644, %v8164, 0.0
      %8459 = vadd.xlane.f32.xlu0 %v8458
      %v8460 = vpop.xlane.xlu0 %8459
      %v8461 = vsel %vm644, %v8165, 0.0
      %8462 = vadd.xlane.f32.xlu0 %v8461
      %v8463 = vpop.xlane.xlu0 %8462
      %v8464 = vsel %vm644, %v8166, 0.0
      %8465 = vadd.xlane.f32.xlu0 %v8464
      %v8466 = vpop.xlane.xlu0 %8465
      %v8467 = vsel %vm644, %v8167, 0.0
      %8468 = vadd.xlane.f32.xlu0 %v8467
      %v8469 = vpop.xlane.xlu0 %8468
      %v8470 = vsel %vm644, %v8168, 0.0
      %8471 = vadd.xlane.f32.xlu0 %v8470
      %v8472 = vpop.xlane.xlu0 %8471
      %v8473 = vsel %vm644, %v8169, 0.0
      %8474 = vadd.xlane.f32.xlu0 %v8473
      %v8475 = vpop.xlane.xlu0 %8474
      %v8476 = vsel %vm644, %v8170, 0.0
      %8477 = vadd.xlane.f32.xlu0 %v8476
      %v8478 = vpop.xlane.xlu0 %8477
      %v8479 = vsel %vm644, %v8171, 0.0
      %8480 = vadd.xlane.f32.xlu0 %v8479
      %v8481 = vpop.xlane.xlu0 %8480
      %v8482 = vsel %vm644, %v8172, 0.0
      %8483 = vadd.xlane.f32.xlu0 %v8482
      %v8484 = vpop.xlane.xlu0 %8483
      %v8485 = vsel %vm644, %v8173, 0.0
      %8486 = vadd.xlane.f32.xlu0 %v8485
      %v8487 = vpop.xlane.xlu0 %8486
      %v8488 = vsel %vm644, %v8174, 0.0
      %8489 = vadd.xlane.f32.xlu0 %v8488
      %v8490 = vpop.xlane.xlu0 %8489
      %v8491 = vsel %vm644, %v8175, 0.0
      %8492 = vadd.xlane.f32.xlu0 %v8491
      %v8493 = vpop.xlane.xlu0 %8492
      %v8494 = vsel %vm644, %v8176, 0.0
      %8495 = vadd.xlane.f32.xlu0 %v8494
      %v8496 = vpop.xlane.xlu0 %8495
      %v8497 = vsel %vm644, %v8177, 0.0
      %8498 = vadd.xlane.f32.xlu0 %v8497
      %v8499 = vpop.xlane.xlu0 %8498
      %v8500 = vsel %vm644, %v8178, 0.0
      %8501 = vadd.xlane.f32.xlu0 %v8500
      %v8502 = vpop.xlane.xlu0 %8501
      %v8503 = vsel %vm644, %v8179, 0.0
      %8504 = vadd.xlane.f32.xlu0 %v8503
      %v8505 = vpop.xlane.xlu0 %8504
      %v8506 = vsel %vm644, %v8180, 0.0
      %8507 = vadd.xlane.f32.xlu0 %v8506
      %v8508 = vpop.xlane.xlu0 %8507
      %v8509 = vsel %vm644, %v8181, 0.0
      %8510 = vadd.xlane.f32.xlu0 %v8509
      %v8511 = vpop.xlane.xlu0 %8510
      %v8512 = vsel %vm644, %v8182, 0.0
      %8513 = vadd.xlane.f32.xlu0 %v8512
      %v8514 = vpop.xlane.xlu0 %8513
      %v8515 = vsel %vm644, %v8183, 0.0
      %8516 = vadd.xlane.f32.xlu0 %v8515
      %v8517 = vpop.xlane.xlu0 %8516
      %v8518 = vsel %vm644, %v8184, 0.0
      %8519 = vadd.xlane.f32.xlu0 %v8518
      %v8520 = vpop.xlane.xlu0 %8519
      %v8521 = vsel %vm644, %v8185, 0.0
      %8522 = vadd.xlane.f32.xlu0 %v8521
      %v8523 = vpop.xlane.xlu0 %8522
      %v8524 = vsel %vm644, %v8186, 0.0
      %8525 = vadd.xlane.f32.xlu0 %v8524
      %v8526 = vpop.xlane.xlu0 %8525
      %v8527 = vsel %vm644, %v8187, 0.0
      %8528 = vadd.xlane.f32.xlu0 %v8527
      %v8529 = vpop.xlane.xlu0 %8528
      %v8530 = vsel %vm644, %v8188, 0.0
      %8531 = vadd.xlane.f32.xlu0 %v8530
      %v8532 = vpop.xlane.xlu0 %8531
      %v8533 = vsel %vm644, %v8189, 0.0
      %8534 = vadd.xlane.f32.xlu0 %v8533
      %v8535 = vpop.xlane.xlu0 %8534
      %v8536 = vsel %vm644, %v8190, 0.0
      %8537 = vadd.xlane.f32.xlu0 %v8536
      %v8538 = vpop.xlane.xlu0 %8537
      %v8539 = vsel %vm644, %v8191, 0.0
      %8540 = vadd.xlane.f32.xlu0 %v8539
      %v8541 = vpop.xlane.xlu0 %8540
      %v8542 = vsel %vm644, %v8192, 0.0
      %8543 = vadd.xlane.f32.xlu0 %v8542
      %v8544 = vpop.xlane.xlu0 %8543
      %v8545 = vsel %vm644, %v8193, 0.0
      %8546 = vadd.xlane.f32.xlu0 %v8545
      %v8547 = vpop.xlane.xlu0 %8546
      %v8548 = vsel %vm644, %v8194, 0.0
      %8549 = vadd.xlane.f32.xlu0 %v8548
      %v8550 = vpop.xlane.xlu0 %8549
      %v8551 = vsel %vm644, %v8195, 0.0
      %8552 = vadd.xlane.f32.xlu0 %v8551
      %v8553 = vpop.xlane.xlu0 %8552
      %v8554 = vsel %vm644, %v8196, 0.0
      %8555 = vadd.xlane.f32.xlu0 %v8554
      %v8556 = vpop.xlane.xlu0 %8555
      %v8557 = vsel %vm644, %v8197, 0.0
      %8558 = vadd.xlane.f32.xlu0 %v8557
      %v8559 = vpop.xlane.xlu0 %8558
      %v8560 = vsel %vm644, %v8198, 0.0
      %8561 = vadd.xlane.f32.xlu0 %v8560
      %v8562 = vpop.xlane.xlu0 %8561
      %v8563 = vsel %vm644, %v8199, 0.0
      %8564 = vadd.xlane.f32.xlu0 %v8563
      %v8565 = vpop.xlane.xlu0 %8564
      %v8566 = vsel %vm644, %v8200, 0.0
      %8567 = vadd.xlane.f32.xlu0 %v8566
      %v8568 = vpop.xlane.xlu0 %8567
      %v8569 = vsel %vm644, %v8201, 0.0
      %8570 = vadd.xlane.f32.xlu0 %v8569
      %v8571 = vpop.xlane.xlu0 %8570
      %v8572 = vsel %vm644, %v8202, 0.0
      %8573 = vadd.xlane.f32.xlu0 %v8572
      %v8574 = vpop.xlane.xlu0 %8573
      %v8575 = vsel %vm644, %v8203, 0.0
      %8576 = vadd.xlane.f32.xlu0 %v8575
      %v8577 = vpop.xlane.xlu0 %8576
      %v8578 = vsel %vm644, %v8204, 0.0
      %8579 = vadd.xlane.f32.xlu0 %v8578
      %v8580 = vpop.xlane.xlu0 %8579
      %v8581 = vsel %vm644, %v8205, 0.0
      %8582 = vadd.xlane.f32.xlu0 %v8581
      %v8583 = vpop.xlane.xlu0 %8582
      %v8584 = vsel %vm644, %v8206, 0.0
      %8585 = vadd.xlane.f32.xlu0 %v8584
      %v8586 = vpop.xlane.xlu0 %8585
      %v8587 = vsel %vm644, %v8207, 0.0
      %8588 = vadd.xlane.f32.xlu0 %v8587
      %v8589 = vpop.xlane.xlu0 %8588
      %v8590 = vsel %vm644, %v8208, 0.0
      %8591 = vadd.xlane.f32.xlu0 %v8590
      %v8592 = vpop.xlane.xlu0 %8591
      %v8593 = vadd.f32 %v8211, %v3151
      %v8594 = vadd.f32 %v8214, %v3151
      %v8595 = vadd.f32 %v8217, %v3151
      %v8596 = vadd.f32 %v8220, %v3151
      %v8597 = vadd.f32 %v8223, %v3151
      %v8598 = vadd.f32 %v8226, %v3151
      %v8599 = vadd.f32 %v8229, %v3151
      %v8600 = vadd.f32 %v8232, %v3151
      %v8601 = vadd.f32 %v8235, %v3151
      %v8602 = vadd.f32 %v8238, %v3151
      %v8603 = vadd.f32 %v8241, %v3151
      %v8604 = vadd.f32 %v8244, %v3151
      %v8605 = vadd.f32 %v8247, %v3151
      %v8606 = vadd.f32 %v8250, %v3151
      %v8607 = vadd.f32 %v8253, %v3151
      %v8608 = vadd.f32 %v8256, %v3151
      %v8609 = vadd.f32 %v8259, %v3151
      %v8610 = vadd.f32 %v8262, %v3151
      %v8611 = vadd.f32 %v8265, %v3151
      %v8612 = vadd.f32 %v8268, %v3151
      %v8613 = vadd.f32 %v8271, %v3151
      %v8614 = vadd.f32 %v8274, %v3151
      %v8615 = vadd.f32 %v8277, %v3151
      %v8616 = vadd.f32 %v8280, %v3151
      %v8617 = vadd.f32 %v8283, %v3151
      %v8618 = vadd.f32 %v8286, %v3151
      %v8619 = vadd.f32 %v8289, %v3151
      %v8620 = vadd.f32 %v8292, %v3151
      %v8621 = vadd.f32 %v8295, %v3151
      %v8622 = vadd.f32 %v8298, %v3151
      %v8623 = vadd.f32 %v8301, %v3151
      %v8624 = vadd.f32 %v8304, %v3151
      %v8625 = vadd.f32 %v8307, %v3151
      %v8626 = vadd.f32 %v8310, %v3151
      %v8627 = vadd.f32 %v8313, %v3151
      %v8628 = vadd.f32 %v8316, %v3151
      %v8629 = vadd.f32 %v8319, %v3151
      %v8630 = vadd.f32 %v8322, %v3151
      %v8631 = vadd.f32 %v8325, %v3151
      %v8632 = vadd.f32 %v8328, %v3151
      %v8633 = vadd.f32 %v8331, %v3151
      %v8634 = vadd.f32 %v8334, %v3151
      %v8635 = vadd.f32 %v8337, %v3151
      %v8636 = vadd.f32 %v8340, %v3151
      %v8637 = vadd.f32 %v8343, %v3151
      %v8638 = vadd.f32 %v8346, %v3151
      %v8639 = vadd.f32 %v8349, %v3151
      %v8640 = vadd.f32 %v8352, %v3151
      %v8641 = vadd.f32 %v8355, %v3151
      %v8642 = vadd.f32 %v8358, %v3151
      %v8643 = vadd.f32 %v8361, %v3151
      %v8644 = vadd.f32 %v8364, %v3151
      %v8645 = vadd.f32 %v8367, %v3151
      %v8646 = vadd.f32 %v8370, %v3151
      %v8647 = vadd.f32 %v8373, %v3151
      %v8648 = vadd.f32 %v8376, %v3151
      %v8649 = vadd.f32 %v8379, %v3151
      %v8650 = vadd.f32 %v8382, %v3151
      %v8651 = vadd.f32 %v8385, %v3151
      %v8652 = vadd.f32 %v8388, %v3151
      %v8653 = vadd.f32 %v8391, %v3151
      %v8654 = vadd.f32 %v8394, %v3151
      %v8655 = vadd.f32 %v8397, %v3151
      %v8656 = vadd.f32 %v8400, %v3151
      %v8657 = vadd.f32 %v8403, %v3151
      %v8658 = vadd.f32 %v8406, %v3151
      %v8659 = vadd.f32 %v8409, %v3151
      %v8660 = vadd.f32 %v8412, %v3151
      %v8661 = vadd.f32 %v8415, %v3151
      %v8662 = vadd.f32 %v8418, %v3151
      %v8663 = vadd.f32 %v8421, %v3151
      %v8664 = vadd.f32 %v8424, %v3151
      %v8665 = vadd.f32 %v8427, %v3151
      %v8666 = vadd.f32 %v8430, %v3151
      %v8667 = vadd.f32 %v8433, %v3151
      %v8668 = vadd.f32 %v8436, %v3151
      %v8669 = vadd.f32 %v8439, %v3151
      %v8670 = vadd.f32 %v8442, %v3151
      %v8671 = vadd.f32 %v8445, %v3151
      %v8672 = vadd.f32 %v8448, %v3151
      %v8673 = vadd.f32 %v8451, %v3151
      %v8674 = vadd.f32 %v8454, %v3151
      %v8675 = vadd.f32 %v8457, %v3151
      %v8676 = vadd.f32 %v8460, %v3151
      %v8677 = vadd.f32 %v8463, %v3151
      %v8678 = vadd.f32 %v8466, %v3151
      %v8679 = vadd.f32 %v8469, %v3151
      %v8680 = vadd.f32 %v8472, %v3151
      %v8681 = vadd.f32 %v8475, %v3151
      %v8682 = vadd.f32 %v8478, %v3151
      %v8683 = vadd.f32 %v8481, %v3151
      %v8684 = vadd.f32 %v8484, %v3151
      %v8685 = vadd.f32 %v8487, %v3151
      %v8686 = vadd.f32 %v8490, %v3151
      %v8687 = vadd.f32 %v8493, %v3151
      %v8688 = vadd.f32 %v8496, %v3151
      %v8689 = vadd.f32 %v8499, %v3151
      %v8690 = vadd.f32 %v8502, %v3151
      %v8691 = vadd.f32 %v8505, %v3151
      %v8692 = vadd.f32 %v8508, %v3151
      %v8693 = vadd.f32 %v8511, %v3151
      %v8694 = vadd.f32 %v8514, %v3151
      %v8695 = vadd.f32 %v8517, %v3151
      %v8696 = vadd.f32 %v8520, %v3151
      %v8697 = vadd.f32 %v8523, %v3151
      %v8698 = vadd.f32 %v8526, %v3151
      %v8699 = vadd.f32 %v8529, %v3151
      %v8700 = vadd.f32 %v8532, %v3151
      %v8701 = vadd.f32 %v8535, %v3151
      %v8702 = vadd.f32 %v8538, %v3151
      %v8703 = vadd.f32 %v8541, %v3151
      %v8704 = vadd.f32 %v8544, %v3151
      %v8705 = vadd.f32 %v8547, %v3151
      %v8706 = vadd.f32 %v8550, %v3151
      %v8707 = vadd.f32 %v8553, %v3151
      %v8708 = vadd.f32 %v8556, %v3151
      %v8709 = vadd.f32 %v8559, %v3151
      %v8710 = vadd.f32 %v8562, %v3151
      %v8711 = vadd.f32 %v8565, %v3151
      %v8712 = vadd.f32 %v8568, %v3151
      %v8713 = vadd.f32 %v8571, %v3151
      %v8714 = vadd.f32 %v8574, %v3151
      %v8715 = vadd.f32 %v8577, %v3151
      %v8716 = vadd.f32 %v8580, %v3151
      %v8717 = vadd.f32 %v8583, %v3151
      %v8718 = vadd.f32 %v8586, %v3151
      %v8719 = vadd.f32 %v8589, %v3151
      %v8720 = vadd.f32 %v8592, %v3151
      %v8721 = vmul.f32 %v8593, 0.5
      %v8722 = vmul.f32 %v8594, 0.5
      %v8723 = vmul.f32 %v8595, 0.5
      %v8724 = vmul.f32 %v8596, 0.5
      %v8725 = vmul.f32 %v8597, 0.5
      %v8726 = vmul.f32 %v8598, 0.5
      %v8727 = vmul.f32 %v8599, 0.5
      %v8728 = vmul.f32 %v8600, 0.5
      %v8729 = vmul.f32 %v8601, 0.5
      %v8730 = vmul.f32 %v8602, 0.5
      %v8731 = vmul.f32 %v8603, 0.5
      %v8732 = vmul.f32 %v8604, 0.5
      %v8733 = vmul.f32 %v8605, 0.5
      %v8734 = vmul.f32 %v8606, 0.5
      %v8735 = vmul.f32 %v8607, 0.5
      %v8736 = vmul.f32 %v8608, 0.5
      %v8737 = vmul.f32 %v8609, 0.5
      %v8738 = vmul.f32 %v8610, 0.5
      %v8739 = vmul.f32 %v8611, 0.5
      %v8740 = vmul.f32 %v8612, 0.5
      %v8741 = vmul.f32 %v8613, 0.5
      %v8742 = vmul.f32 %v8614, 0.5
      %v8743 = vmul.f32 %v8615, 0.5
      %v8744 = vmul.f32 %v8616, 0.5
      %v8745 = vmul.f32 %v8617, 0.5
      %v8746 = vmul.f32 %v8618, 0.5
      %v8747 = vmul.f32 %v8619, 0.5
      %v8748 = vmul.f32 %v8620, 0.5
      %v8749 = vmul.f32 %v8621, 0.5
      %v8750 = vmul.f32 %v8622, 0.5
      %v8751 = vmul.f32 %v8623, 0.5
      %v8752 = vmul.f32 %v8624, 0.5
      %v8753 = vmul.f32 %v8625, 0.5
      %v8754 = vmul.f32 %v8626, 0.5
      %v8755 = vmul.f32 %v8627, 0.5
      %v8756 = vmul.f32 %v8628, 0.5
      %v8757 = vmul.f32 %v8629, 0.5
      %v8758 = vmul.f32 %v8630, 0.5
      %v8759 = vmul.f32 %v8631, 0.5
      %v8760 = vmul.f32 %v8632, 0.5
      %v8761 = vmul.f32 %v8633, 0.5
      %v8762 = vmul.f32 %v8634, 0.5
      %v8763 = vmul.f32 %v8635, 0.5
      %v8764 = vmul.f32 %v8636, 0.5
      %v8765 = vmul.f32 %v8637, 0.5
      %v8766 = vmul.f32 %v8638, 0.5
      %v8767 = vmul.f32 %v8639, 0.5
      %v8768 = vmul.f32 %v8640, 0.5
      %v8769 = vmul.f32 %v8641, 0.5
      %v8770 = vmul.f32 %v8642, 0.5
      %v8771 = vmul.f32 %v8643, 0.5
      %v8772 = vmul.f32 %v8644, 0.5
      %v8773 = vmul.f32 %v8645, 0.5
      %v8774 = vmul.f32 %v8646, 0.5
      %v8775 = vmul.f32 %v8647, 0.5
      %v8776 = vmul.f32 %v8648, 0.5
      %v8777 = vmul.f32 %v8649, 0.5
      %v8778 = vmul.f32 %v8650, 0.5
      %v8779 = vmul.f32 %v8651, 0.5
      %v8780 = vmul.f32 %v8652, 0.5
      %v8781 = vmul.f32 %v8653, 0.5
      %v8782 = vmul.f32 %v8654, 0.5
      %v8783 = vmul.f32 %v8655, 0.5
      %v8784 = vmul.f32 %v8656, 0.5
      %v8785 = vmul.f32 %v8657, 0.5
      %v8786 = vmul.f32 %v8658, 0.5
      %v8787 = vmul.f32 %v8659, 0.5
      %v8788 = vmul.f32 %v8660, 0.5
      %v8789 = vmul.f32 %v8661, 0.5
      %v8790 = vmul.f32 %v8662, 0.5
      %v8791 = vmul.f32 %v8663, 0.5
      %v8792 = vmul.f32 %v8664, 0.5
      %v8793 = vmul.f32 %v8665, 0.5
      %v8794 = vmul.f32 %v8666, 0.5
      %v8795 = vmul.f32 %v8667, 0.5
      %v8796 = vmul.f32 %v8668, 0.5
      %v8797 = vmul.f32 %v8669, 0.5
      %v8798 = vmul.f32 %v8670, 0.5
      %v8799 = vmul.f32 %v8671, 0.5
      %v8800 = vmul.f32 %v8672, 0.5
      %v8801 = vmul.f32 %v8673, 0.5
      %v8802 = vmul.f32 %v8674, 0.5
      %v8803 = vmul.f32 %v8675, 0.5
      %v8804 = vmul.f32 %v8676, 0.5
      %v8805 = vmul.f32 %v8677, 0.5
      %v8806 = vmul.f32 %v8678, 0.5
      %v8807 = vmul.f32 %v8679, 0.5
      %v8808 = vmul.f32 %v8680, 0.5
      %v8809 = vmul.f32 %v8681, 0.5
      %v8810 = vmul.f32 %v8682, 0.5
      %v8811 = vmul.f32 %v8683, 0.5
      %v8812 = vmul.f32 %v8684, 0.5
      %v8813 = vmul.f32 %v8685, 0.5
      %v8814 = vmul.f32 %v8686, 0.5
      %v8815 = vmul.f32 %v8687, 0.5
      %v8816 = vmul.f32 %v8688, 0.5
      %v8817 = vmul.f32 %v8689, 0.5
      %v8818 = vmul.f32 %v8690, 0.5
      %v8819 = vmul.f32 %v8691, 0.5
      %v8820 = vmul.f32 %v8692, 0.5
      %v8821 = vmul.f32 %v8693, 0.5
      %v8822 = vmul.f32 %v8694, 0.5
      %v8823 = vmul.f32 %v8695, 0.5
      %v8824 = vmul.f32 %v8696, 0.5
      %v8825 = vmul.f32 %v8697, 0.5
      %v8826 = vmul.f32 %v8698, 0.5
      %v8827 = vmul.f32 %v8699, 0.5
      %v8828 = vmul.f32 %v8700, 0.5
      %v8829 = vmul.f32 %v8701, 0.5
      %v8830 = vmul.f32 %v8702, 0.5
      %v8831 = vmul.f32 %v8703, 0.5
      %v8832 = vmul.f32 %v8704, 0.5
      %v8833 = vmul.f32 %v8705, 0.5
      %v8834 = vmul.f32 %v8706, 0.5
      %v8835 = vmul.f32 %v8707, 0.5
      %v8836 = vmul.f32 %v8708, 0.5
      %v8837 = vmul.f32 %v8709, 0.5
      %v8838 = vmul.f32 %v8710, 0.5
      %v8839 = vmul.f32 %v8711, 0.5
      %v8840 = vmul.f32 %v8712, 0.5
      %v8841 = vmul.f32 %v8713, 0.5
      %v8842 = vmul.f32 %v8714, 0.5
      %v8843 = vmul.f32 %v8715, 0.5
      %v8844 = vmul.f32 %v8716, 0.5
      %v8845 = vmul.f32 %v8717, 0.5
      %v8846 = vmul.f32 %v8718, 0.5
      %v8847 = vmul.f32 %v8719, 0.5
      %v8848 = vmul.f32 %v8720, 0.5
      %v8849 = vtanh.pop %v8721
      %v8850 = vtanh.pop %v8722
      %v8851 = vtanh.pop %v8723
      %v8852 = vtanh.pop %v8724
      %v8853 = vtanh.pop %v8725
      %v8854 = vtanh.pop %v8726
      %v8855 = vtanh.pop %v8727
      %v8856 = vtanh.pop %v8728
      %v8857 = vtanh.pop %v8729
      %v8858 = vtanh.pop %v8730
      %v8859 = vtanh.pop %v8731
      %v8860 = vtanh.pop %v8732
      %v8861 = vtanh.pop %v8733
      %v8862 = vtanh.pop %v8734
      %v8863 = vtanh.pop %v8735
      %v8864 = vtanh.pop %v8736
      %v8865 = vtanh.pop %v8737
      %v8866 = vtanh.pop %v8738
      %v8867 = vtanh.pop %v8739
      %v8868 = vtanh.pop %v8740
      %v8869 = vtanh.pop %v8741
      %v8870 = vtanh.pop %v8742
      %v8871 = vtanh.pop %v8743
      %v8872 = vtanh.pop %v8744
      %v8873 = vtanh.pop %v8745
      %v8874 = vtanh.pop %v8746
      %v8875 = vtanh.pop %v8747
      %v8876 = vtanh.pop %v8748
      %v8877 = vtanh.pop %v8749
      %v8878 = vtanh.pop %v8750
      %v8879 = vtanh.pop %v8751
      %v8880 = vtanh.pop %v8752
      %v8881 = vtanh.pop %v8753
      %v8882 = vtanh.pop %v8754
      %v8883 = vtanh.pop %v8755
      %v8884 = vtanh.pop %v8756
      %v8885 = vtanh.pop %v8757
      %v8886 = vtanh.pop %v8758
      %v8887 = vtanh.pop %v8759
      %v8888 = vtanh.pop %v8760
      %v8889 = vtanh.pop %v8761
      %v8890 = vtanh.pop %v8762
      %v8891 = vtanh.pop %v8763
      %v8892 = vtanh.pop %v8764
      %v8893 = vtanh.pop %v8765
      %v8894 = vtanh.pop %v8766
      %v8895 = vtanh.pop %v8767
      %v8896 = vtanh.pop %v8768
      %v8897 = vtanh.pop %v8769
      %v8898 = vtanh.pop %v8770
      %v8899 = vtanh.pop %v8771
      %v8900 = vtanh.pop %v8772
      %v8901 = vtanh.pop %v8773
      %v8902 = vtanh.pop %v8774
      %v8903 = vtanh.pop %v8775
      %v8904 = vtanh.pop %v8776
      %v8905 = vtanh.pop %v8777
      %v8906 = vtanh.pop %v8778
      %v8907 = vtanh.pop %v8779
      %v8908 = vtanh.pop %v8780
      %v8909 = vtanh.pop %v8781
      %v8910 = vtanh.pop %v8782
      %v8911 = vtanh.pop %v8783
      %v8912 = vtanh.pop %v8784
      %v8913 = vtanh.pop %v8785
      %v8914 = vtanh.pop %v8786
      %v8915 = vtanh.pop %v8787
      %v8916 = vtanh.pop %v8788
      %v8917 = vtanh.pop %v8789
      %v8918 = vtanh.pop %v8790
      %v8919 = vtanh.pop %v8791
      %v8920 = vtanh.pop %v8792
      %v8921 = vtanh.pop %v8793
      %v8922 = vtanh.pop %v8794
      %v8923 = vtanh.pop %v8795
      %v8924 = vtanh.pop %v8796
      %v8925 = vtanh.pop %v8797
      %v8926 = vtanh.pop %v8798
      %v8927 = vtanh.pop %v8799
      %v8928 = vtanh.pop %v8800
      %v8929 = vtanh.pop %v8801
      %v8930 = vtanh.pop %v8802
      %v8931 = vtanh.pop %v8803
      %v8932 = vtanh.pop %v8804
      %v8933 = vtanh.pop %v8805
      %v8934 = vtanh.pop %v8806
      %v8935 = vtanh.pop %v8807
      %v8936 = vtanh.pop %v8808
      %v8937 = vtanh.pop %v8809
      %v8938 = vtanh.pop %v8810
      %v8939 = vtanh.pop %v8811
      %v8940 = vtanh.pop %v8812
      %v8941 = vtanh.pop %v8813
      %v8942 = vtanh.pop %v8814
      %v8943 = vtanh.pop %v8815
      %v8944 = vtanh.pop %v8816
      %v8945 = vtanh.pop %v8817
      %v8946 = vtanh.pop %v8818
      %v8947 = vtanh.pop %v8819
      %v8948 = vtanh.pop %v8820
      %v8949 = vtanh.pop %v8821
      %v8950 = vtanh.pop %v8822
      %v8951 = vtanh.pop %v8823
      %v8952 = vtanh.pop %v8824
      %v8953 = vtanh.pop %v8825
      %v8954 = vtanh.pop %v8826
      %v8955 = vtanh.pop %v8827
      %v8956 = vtanh.pop %v8828
      %v8957 = vtanh.pop %v8829
      %v8958 = vtanh.pop %v8830
      %v8959 = vtanh.pop %v8831
      %v8960 = vtanh.pop %v8832
      %v8961 = vtanh.pop %v8833
      %v8962 = vtanh.pop %v8834
      %v8963 = vtanh.pop %v8835
      %v8964 = vtanh.pop %v8836
      %v8965 = vtanh.pop %v8837
      %v8966 = vtanh.pop %v8838
      %v8967 = vtanh.pop %v8839
      %v8968 = vtanh.pop %v8840
      %v8969 = vtanh.pop %v8841
      %v8970 = vtanh.pop %v8842
      %v8971 = vtanh.pop %v8843
      %v8972 = vtanh.pop %v8844
      %v8973 = vtanh.pop %v8845
      %v8974 = vtanh.pop %v8846
      %v8975 = vtanh.pop %v8847
      %v8976 = vtanh.pop %v8848
      %v8977 = vmul.f32 %v8849, 0.5
      %v8978 = vmul.f32 %v8850, 0.5
      %v8979 = vmul.f32 %v8851, 0.5
      %v8980 = vmul.f32 %v8852, 0.5
      %v8981 = vmul.f32 %v8853, 0.5
      %v8982 = vmul.f32 %v8854, 0.5
      %v8983 = vmul.f32 %v8855, 0.5
      %v8984 = vmul.f32 %v8856, 0.5
      %v8985 = vmul.f32 %v8857, 0.5
      %v8986 = vmul.f32 %v8858, 0.5
      %v8987 = vmul.f32 %v8859, 0.5
      %v8988 = vmul.f32 %v8860, 0.5
      %v8989 = vmul.f32 %v8861, 0.5
      %v8990 = vmul.f32 %v8862, 0.5
      %v8991 = vmul.f32 %v8863, 0.5
      %v8992 = vmul.f32 %v8864, 0.5
      %v8993 = vmul.f32 %v8865, 0.5
      %v8994 = vmul.f32 %v8866, 0.5
      %v8995 = vmul.f32 %v8867, 0.5
      %v8996 = vmul.f32 %v8868, 0.5
      %v8997 = vmul.f32 %v8869, 0.5
      %v8998 = vmul.f32 %v8870, 0.5
      %v8999 = vmul.f32 %v8871, 0.5
      %v9000 = vmul.f32 %v8872, 0.5
      %v9001 = vmul.f32 %v8873, 0.5
      %v9002 = vmul.f32 %v8874, 0.5
      %v9003 = vmul.f32 %v8875, 0.5
      %v9004 = vmul.f32 %v8876, 0.5
      %v9005 = vmul.f32 %v8877, 0.5
      %v9006 = vmul.f32 %v8878, 0.5
      %v9007 = vmul.f32 %v8879, 0.5
      %v9008 = vmul.f32 %v8880, 0.5
      %v9009 = vmul.f32 %v8881, 0.5
      %v9010 = vmul.f32 %v8882, 0.5
      %v9011 = vmul.f32 %v8883, 0.5
      %v9012 = vmul.f32 %v8884, 0.5
      %v9013 = vmul.f32 %v8885, 0.5
      %v9014 = vmul.f32 %v8886, 0.5
      %v9015 = vmul.f32 %v8887, 0.5
      %v9016 = vmul.f32 %v8888, 0.5
      %v9017 = vmul.f32 %v8889, 0.5
      %v9018 = vmul.f32 %v8890, 0.5
      %v9019 = vmul.f32 %v8891, 0.5
      %v9020 = vmul.f32 %v8892, 0.5
      %v9021 = vmul.f32 %v8893, 0.5
      %v9022 = vmul.f32 %v8894, 0.5
      %v9023 = vmul.f32 %v8895, 0.5
      %v9024 = vmul.f32 %v8896, 0.5
      %v9025 = vmul.f32 %v8897, 0.5
      %v9026 = vmul.f32 %v8898, 0.5
      %v9027 = vmul.f32 %v8899, 0.5
      %v9028 = vmul.f32 %v8900, 0.5
      %v9029 = vmul.f32 %v8901, 0.5
      %v9030 = vmul.f32 %v8902, 0.5
      %v9031 = vmul.f32 %v8903, 0.5
      %v9032 = vmul.f32 %v8904, 0.5
      %v9033 = vmul.f32 %v8905, 0.5
      %v9034 = vmul.f32 %v8906, 0.5
      %v9035 = vmul.f32 %v8907, 0.5
      %v9036 = vmul.f32 %v8908, 0.5
      %v9037 = vmul.f32 %v8909, 0.5
      %v9038 = vmul.f32 %v8910, 0.5
      %v9039 = vmul.f32 %v8911, 0.5
      %v9040 = vmul.f32 %v8912, 0.5
      %v9041 = vmul.f32 %v8913, 0.5
      %v9042 = vmul.f32 %v8914, 0.5
      %v9043 = vmul.f32 %v8915, 0.5
      %v9044 = vmul.f32 %v8916, 0.5
      %v9045 = vmul.f32 %v8917, 0.5
      %v9046 = vmul.f32 %v8918, 0.5
      %v9047 = vmul.f32 %v8919, 0.5
      %v9048 = vmul.f32 %v8920, 0.5
      %v9049 = vmul.f32 %v8921, 0.5
      %v9050 = vmul.f32 %v8922, 0.5
      %v9051 = vmul.f32 %v8923, 0.5
      %v9052 = vmul.f32 %v8924, 0.5
      %v9053 = vmul.f32 %v8925, 0.5
      %v9054 = vmul.f32 %v8926, 0.5
      %v9055 = vmul.f32 %v8927, 0.5
      %v9056 = vmul.f32 %v8928, 0.5
      %v9057 = vmul.f32 %v8929, 0.5
      %v9058 = vmul.f32 %v8930, 0.5
      %v9059 = vmul.f32 %v8931, 0.5
      %v9060 = vmul.f32 %v8932, 0.5
      %v9061 = vmul.f32 %v8933, 0.5
      %v9062 = vmul.f32 %v8934, 0.5
      %v9063 = vmul.f32 %v8935, 0.5
      %v9064 = vmul.f32 %v8936, 0.5
      %v9065 = vmul.f32 %v8937, 0.5
      %v9066 = vmul.f32 %v8938, 0.5
      %v9067 = vmul.f32 %v8939, 0.5
      %v9068 = vmul.f32 %v8940, 0.5
      %v9069 = vmul.f32 %v8941, 0.5
      %v9070 = vmul.f32 %v8942, 0.5
      %v9071 = vmul.f32 %v8943, 0.5
      %v9072 = vmul.f32 %v8944, 0.5
      %v9073 = vmul.f32 %v8945, 0.5
      %v9074 = vmul.f32 %v8946, 0.5
      %v9075 = vmul.f32 %v8947, 0.5
      %v9076 = vmul.f32 %v8948, 0.5
      %v9077 = vmul.f32 %v8949, 0.5
      %v9078 = vmul.f32 %v8950, 0.5
      %v9079 = vmul.f32 %v8951, 0.5
      %v9080 = vmul.f32 %v8952, 0.5
      %v9081 = vmul.f32 %v8953, 0.5
      %v9082 = vmul.f32 %v8954, 0.5
      %v9083 = vmul.f32 %v8955, 0.5
      %v9084 = vmul.f32 %v8956, 0.5
      %v9085 = vmul.f32 %v8957, 0.5
      %v9086 = vmul.f32 %v8958, 0.5
      %v9087 = vmul.f32 %v8959, 0.5
      %v9088 = vmul.f32 %v8960, 0.5
      %v9089 = vmul.f32 %v8961, 0.5
      %v9090 = vmul.f32 %v8962, 0.5
      %v9091 = vmul.f32 %v8963, 0.5
      %v9092 = vmul.f32 %v8964, 0.5
      %v9093 = vmul.f32 %v8965, 0.5
      %v9094 = vmul.f32 %v8966, 0.5
      %v9095 = vmul.f32 %v8967, 0.5
      %v9096 = vmul.f32 %v8968, 0.5
      %v9097 = vmul.f32 %v8969, 0.5
      %v9098 = vmul.f32 %v8970, 0.5
      %v9099 = vmul.f32 %v8971, 0.5
      %v9100 = vmul.f32 %v8972, 0.5
      %v9101 = vmul.f32 %v8973, 0.5
      %v9102 = vmul.f32 %v8974, 0.5
      %v9103 = vmul.f32 %v8975, 0.5
      %v9104 = vmul.f32 %v8976, 0.5
      %v9105 = vadd.f32 %v8977, 0.5
      %v9106 = vadd.f32 %v8978, 0.5
      %v9107 = vadd.f32 %v8979, 0.5
      %v9108 = vadd.f32 %v8980, 0.5
      %v9109 = vadd.f32 %v8981, 0.5
      %v9110 = vadd.f32 %v8982, 0.5
      %v9111 = vadd.f32 %v8983, 0.5
      %v9112 = vadd.f32 %v8984, 0.5
      %v9113 = vadd.f32 %v8985, 0.5
      %v9114 = vadd.f32 %v8986, 0.5
      %v9115 = vadd.f32 %v8987, 0.5
      %v9116 = vadd.f32 %v8988, 0.5
      %v9117 = vadd.f32 %v8989, 0.5
      %v9118 = vadd.f32 %v8990, 0.5
      %v9119 = vadd.f32 %v8991, 0.5
      %v9120 = vadd.f32 %v8992, 0.5
      %v9121 = vadd.f32 %v8993, 0.5
      %v9122 = vadd.f32 %v8994, 0.5
      %v9123 = vadd.f32 %v8995, 0.5
      %v9124 = vadd.f32 %v8996, 0.5
      %v9125 = vadd.f32 %v8997, 0.5
      %v9126 = vadd.f32 %v8998, 0.5
      %v9127 = vadd.f32 %v8999, 0.5
      %v9128 = vadd.f32 %v9000, 0.5
      %v9129 = vadd.f32 %v9001, 0.5
      %v9130 = vadd.f32 %v9002, 0.5
      %v9131 = vadd.f32 %v9003, 0.5
      %v9132 = vadd.f32 %v9004, 0.5
      %v9133 = vadd.f32 %v9005, 0.5
      %v9134 = vadd.f32 %v9006, 0.5
      %v9135 = vadd.f32 %v9007, 0.5
      %v9136 = vadd.f32 %v9008, 0.5
      %v9137 = vadd.f32 %v9009, 0.5
      %v9138 = vadd.f32 %v9010, 0.5
      %v9139 = vadd.f32 %v9011, 0.5
      %v9140 = vadd.f32 %v9012, 0.5
      %v9141 = vadd.f32 %v9013, 0.5
      %v9142 = vadd.f32 %v9014, 0.5
      %v9143 = vadd.f32 %v9015, 0.5
      %v9144 = vadd.f32 %v9016, 0.5
      %v9145 = vadd.f32 %v9017, 0.5
      %v9146 = vadd.f32 %v9018, 0.5
      %v9147 = vadd.f32 %v9019, 0.5
      %v9148 = vadd.f32 %v9020, 0.5
      %v9149 = vadd.f32 %v9021, 0.5
      %v9150 = vadd.f32 %v9022, 0.5
      %v9151 = vadd.f32 %v9023, 0.5
      %v9152 = vadd.f32 %v9024, 0.5
      %v9153 = vadd.f32 %v9025, 0.5
      %v9154 = vadd.f32 %v9026, 0.5
      %v9155 = vadd.f32 %v9027, 0.5
      %v9156 = vadd.f32 %v9028, 0.5
      %v9157 = vadd.f32 %v9029, 0.5
      %v9158 = vadd.f32 %v9030, 0.5
      %v9159 = vadd.f32 %v9031, 0.5
      %v9160 = vadd.f32 %v9032, 0.5
      %v9161 = vadd.f32 %v9033, 0.5
      %v9162 = vadd.f32 %v9034, 0.5
      %v9163 = vadd.f32 %v9035, 0.5
      %v9164 = vadd.f32 %v9036, 0.5
      %v9165 = vadd.f32 %v9037, 0.5
      %v9166 = vadd.f32 %v9038, 0.5
      %v9167 = vadd.f32 %v9039, 0.5
      %v9168 = vadd.f32 %v9040, 0.5
      %v9169 = vadd.f32 %v9041, 0.5
      %v9170 = vadd.f32 %v9042, 0.5
      %v9171 = vadd.f32 %v9043, 0.5
      %v9172 = vadd.f32 %v9044, 0.5
      %v9173 = vadd.f32 %v9045, 0.5
      %v9174 = vadd.f32 %v9046, 0.5
      %v9175 = vadd.f32 %v9047, 0.5
      %v9176 = vadd.f32 %v9048, 0.5
      %v9177 = vadd.f32 %v9049, 0.5
      %v9178 = vadd.f32 %v9050, 0.5
      %v9179 = vadd.f32 %v9051, 0.5
      %v9180 = vadd.f32 %v9052, 0.5
      %v9181 = vadd.f32 %v9053, 0.5
      %v9182 = vadd.f32 %v9054, 0.5
      %v9183 = vadd.f32 %v9055, 0.5
      %v9184 = vadd.f32 %v9056, 0.5
      %v9185 = vadd.f32 %v9057, 0.5
      %v9186 = vadd.f32 %v9058, 0.5
      %v9187 = vadd.f32 %v9059, 0.5
      %v9188 = vadd.f32 %v9060, 0.5
      %v9189 = vadd.f32 %v9061, 0.5
      %v9190 = vadd.f32 %v9062, 0.5
      %v9191 = vadd.f32 %v9063, 0.5
      %v9192 = vadd.f32 %v9064, 0.5
      %v9193 = vadd.f32 %v9065, 0.5
      %v9194 = vadd.f32 %v9066, 0.5
      %v9195 = vadd.f32 %v9067, 0.5
      %v9196 = vadd.f32 %v9068, 0.5
      %v9197 = vadd.f32 %v9069, 0.5
      %v9198 = vadd.f32 %v9070, 0.5
      %v9199 = vadd.f32 %v9071, 0.5
      %v9200 = vadd.f32 %v9072, 0.5
      %v9201 = vadd.f32 %v9073, 0.5
      %v9202 = vadd.f32 %v9074, 0.5
      %v9203 = vadd.f32 %v9075, 0.5
      %v9204 = vadd.f32 %v9076, 0.5
      %v9205 = vadd.f32 %v9077, 0.5
      %v9206 = vadd.f32 %v9078, 0.5
      %v9207 = vadd.f32 %v9079, 0.5
      %v9208 = vadd.f32 %v9080, 0.5
      %v9209 = vadd.f32 %v9081, 0.5
      %v9210 = vadd.f32 %v9082, 0.5
      %v9211 = vadd.f32 %v9083, 0.5
      %v9212 = vadd.f32 %v9084, 0.5
      %v9213 = vadd.f32 %v9085, 0.5
      %v9214 = vadd.f32 %v9086, 0.5
      %v9215 = vadd.f32 %v9087, 0.5
      %v9216 = vadd.f32 %v9088, 0.5
      %v9217 = vadd.f32 %v9089, 0.5
      %v9218 = vadd.f32 %v9090, 0.5
      %v9219 = vadd.f32 %v9091, 0.5
      %v9220 = vadd.f32 %v9092, 0.5
      %v9221 = vadd.f32 %v9093, 0.5
      %v9222 = vadd.f32 %v9094, 0.5
      %v9223 = vadd.f32 %v9095, 0.5
      %v9224 = vadd.f32 %v9096, 0.5
      %v9225 = vadd.f32 %v9097, 0.5
      %v9226 = vadd.f32 %v9098, 0.5
      %v9227 = vadd.f32 %v9099, 0.5
      %v9228 = vadd.f32 %v9100, 0.5
      %v9229 = vadd.f32 %v9101, 0.5
      %v9230 = vadd.f32 %v9102, 0.5
      %v9231 = vadd.f32 %v9103, 0.5
      %v9232 = vadd.f32 %v9104, 0.5
      %v9233 = vmul.f32 %v9105, %v3815
      %v9234 = vmul.f32 %v9106, %v3822
      %v9235 = vmul.f32 %v9107, %v3829
      %v9236 = vmul.f32 %v9108, %v3836
      %v9237 = vmul.f32 %v9109, %v3843
      %v9238 = vmul.f32 %v9110, %v3850
      %v9239 = vmul.f32 %v9111, %v3857
      %v9240 = vmul.f32 %v9112, %v3864
      %v9241 = vmul.f32 %v9113, %v3871
      %v9242 = vmul.f32 %v9114, %v3878
      %v9243 = vmul.f32 %v9115, %v3885
      %v9244 = vmul.f32 %v9116, %v3892
      %v9245 = vmul.f32 %v9117, %v3899
      %v9246 = vmul.f32 %v9118, %v3906
      %v9247 = vmul.f32 %v9119, %v3913
      %v9248 = vmul.f32 %v9120, %v3920
      %v9249 = vmul.f32 %v9121, %v3927
      %v9250 = vmul.f32 %v9122, %v3934
      %v9251 = vmul.f32 %v9123, %v3941
      %v9252 = vmul.f32 %v9124, %v3948
      %v9253 = vmul.f32 %v9125, %v3955
      %v9254 = vmul.f32 %v9126, %v3962
      %v9255 = vmul.f32 %v9127, %v3969
      %v9256 = vmul.f32 %v9128, %v3976
      %v9257 = vmul.f32 %v9129, %v3983
      %v9258 = vmul.f32 %v9130, %v3990
      %v9259 = vmul.f32 %v9131, %v3997
      %v9260 = vmul.f32 %v9132, %v4004
      %v9261 = vmul.f32 %v9133, %v4011
      %v9262 = vmul.f32 %v9134, %v4018
      %v9263 = vmul.f32 %v9135, %v4025
      %v9264 = vmul.f32 %v9136, %v4032
      %v9265 = vmul.f32 %v9137, %v4039
      %v9266 = vmul.f32 %v9138, %v4046
      %v9267 = vmul.f32 %v9139, %v4053
      %v9268 = vmul.f32 %v9140, %v4060
      %v9269 = vmul.f32 %v9141, %v4067
      %v9270 = vmul.f32 %v9142, %v4074
      %v9271 = vmul.f32 %v9143, %v4081
      %v9272 = vmul.f32 %v9144, %v4088
      %v9273 = vmul.f32 %v9145, %v4095
      %v9274 = vmul.f32 %v9146, %v4102
      %v9275 = vmul.f32 %v9147, %v4109
      %v9276 = vmul.f32 %v9148, %v4116
      %v9277 = vmul.f32 %v9149, %v4123
      %v9278 = vmul.f32 %v9150, %v4130
      %v9279 = vmul.f32 %v9151, %v4137
      %v9280 = vmul.f32 %v9152, %v4144
      %v9281 = vmul.f32 %v9153, %v4151
      %v9282 = vmul.f32 %v9154, %v4158
      %v9283 = vmul.f32 %v9155, %v4165
      %v9284 = vmul.f32 %v9156, %v4172
      %v9285 = vmul.f32 %v9157, %v4179
      %v9286 = vmul.f32 %v9158, %v4186
      %v9287 = vmul.f32 %v9159, %v4193
      %v9288 = vmul.f32 %v9160, %v4200
      %v9289 = vmul.f32 %v9161, %v4207
      %v9290 = vmul.f32 %v9162, %v4214
      %v9291 = vmul.f32 %v9163, %v4221
      %v9292 = vmul.f32 %v9164, %v4228
      %v9293 = vmul.f32 %v9165, %v4235
      %v9294 = vmul.f32 %v9166, %v4242
      %v9295 = vmul.f32 %v9167, %v4249
      %v9296 = vmul.f32 %v9168, %v4256
      %v9297 = vmul.f32 %v9169, %v4263
      %v9298 = vmul.f32 %v9170, %v4270
      %v9299 = vmul.f32 %v9171, %v4277
      %v9300 = vmul.f32 %v9172, %v4284
      %v9301 = vmul.f32 %v9173, %v4291
      %v9302 = vmul.f32 %v9174, %v4298
      %v9303 = vmul.f32 %v9175, %v4305
      %v9304 = vmul.f32 %v9176, %v4312
      %v9305 = vmul.f32 %v9177, %v4319
      %v9306 = vmul.f32 %v9178, %v4326
      %v9307 = vmul.f32 %v9179, %v4333
      %v9308 = vmul.f32 %v9180, %v4340
      %v9309 = vmul.f32 %v9181, %v4347
      %v9310 = vmul.f32 %v9182, %v4354
      %v9311 = vmul.f32 %v9183, %v4361
      %v9312 = vmul.f32 %v9184, %v4368
      %v9313 = vmul.f32 %v9185, %v4375
      %v9314 = vmul.f32 %v9186, %v4382
      %v9315 = vmul.f32 %v9187, %v4389
      %v9316 = vmul.f32 %v9188, %v4396
      %v9317 = vmul.f32 %v9189, %v4403
      %v9318 = vmul.f32 %v9190, %v4410
      %v9319 = vmul.f32 %v9191, %v4417
      %v9320 = vmul.f32 %v9192, %v4424
      %v9321 = vmul.f32 %v9193, %v4431
      %v9322 = vmul.f32 %v9194, %v4438
      %v9323 = vmul.f32 %v9195, %v4445
      %v9324 = vmul.f32 %v9196, %v4452
      %v9325 = vmul.f32 %v9197, %v4459
      %v9326 = vmul.f32 %v9198, %v4466
      %v9327 = vmul.f32 %v9199, %v4473
      %v9328 = vmul.f32 %v9200, %v4480
      %v9329 = vmul.f32 %v9201, %v4487
      %v9330 = vmul.f32 %v9202, %v4494
      %v9331 = vmul.f32 %v9203, %v4501
      %v9332 = vmul.f32 %v9204, %v4508
      %v9333 = vmul.f32 %v9205, %v4515
      %v9334 = vmul.f32 %v9206, %v4522
      %v9335 = vmul.f32 %v9207, %v4529
      %v9336 = vmul.f32 %v9208, %v4536
      %v9337 = vmul.f32 %v9209, %v4543
      %v9338 = vmul.f32 %v9210, %v4550
      %v9339 = vmul.f32 %v9211, %v4557
      %v9340 = vmul.f32 %v9212, %v4564
      %v9341 = vmul.f32 %v9213, %v4571
      %v9342 = vmul.f32 %v9214, %v4578
      %v9343 = vmul.f32 %v9215, %v4585
      %v9344 = vmul.f32 %v9216, %v4592
      %v9345 = vmul.f32 %v9217, %v4599
      %v9346 = vmul.f32 %v9218, %v4606
      %v9347 = vmul.f32 %v9219, %v4613
      %v9348 = vmul.f32 %v9220, %v4620
      %v9349 = vmul.f32 %v9221, %v4627
      %v9350 = vmul.f32 %v9222, %v4634
      %v9351 = vmul.f32 %v9223, %v4641
      %v9352 = vmul.f32 %v9224, %v4648
      %v9353 = vmul.f32 %v9225, %v4655
      %v9354 = vmul.f32 %v9226, %v4662
      %v9355 = vmul.f32 %v9227, %v4669
      %v9356 = vmul.f32 %v9228, %v4676
      %v9357 = vmul.f32 %v9229, %v4683
      %v9358 = vmul.f32 %v9230, %v4690
      %v9359 = vmul.f32 %v9231, %v4697
      %v9360 = vmul.f32 %v9232, %v4704
      %9369 = vset.pattern.permute.xlu0 0
      %9370 = vperm.xlu0 %9369, %v9233
      %v9371 = vpop.permute.xlu0 %9370
      %9372 = vset.pattern.permute.xlu0 0
      %9373 = vperm.xlu0 %9372, %v9234
      %v9374 = vpop.permute.xlu0 %9373
      %9375 = vset.pattern.permute.xlu0 0
      %9376 = vperm.xlu0 %9375, %v9235
      %v9377 = vpop.permute.xlu0 %9376
      %9378 = vset.pattern.permute.xlu0 0
      %9379 = vperm.xlu0 %9378, %v9236
      %v9380 = vpop.permute.xlu0 %9379
      %9381 = vset.pattern.permute.xlu0 0
      %9382 = vperm.xlu0 %9381, %v9237
      %v9383 = vpop.permute.xlu0 %9382
      %9384 = vset.pattern.permute.xlu0 0
      %9385 = vperm.xlu0 %9384, %v9238
      %v9386 = vpop.permute.xlu0 %9385
      %9387 = vset.pattern.permute.xlu0 0
      %9388 = vperm.xlu0 %9387, %v9239
      %v9389 = vpop.permute.xlu0 %9388
      %9390 = vset.pattern.permute.xlu0 0
      %9391 = vperm.xlu0 %9390, %v9240
      %v9392 = vpop.permute.xlu0 %9391
      %v9393 = vperm.slane %v9371, %v4994
      %v9394 = vperm.slane %v9374, %v4994
      %v9395 = vperm.slane %v9377, %v4994
      %v9396 = vperm.slane %v9380, %v4994
      %v9397 = vperm.slane %v9383, %v4994
      %v9398 = vperm.slane %v9386, %v4994
      %v9399 = vperm.slane %v9389, %v4994
      %v9400 = vperm.slane %v9392, %v4994
      %v9401 = vsel %vm5003, %v9394, %v9393
      %v9402 = vsel %vm5005, %v9395, %v9401
      %v9403 = vsel %vm5007, %v9396, %v9402
      %v9404 = vsel %vm5009, %v9397, %v9403
      %v9405 = vsel %vm5011, %v9398, %v9404
      %v9406 = vsel %vm5013, %v9399, %v9405
      %v9407 = vsel %vm5015, %v9400, %v9406
      %v9409 = vsel %vm5018, %v9407, 0
      %9411 = vmatpush.msra.mxu0 0.0
      %9412 = vmatpush.msra.mxu0 0.0
      %9413 = vmatpush.msra.mxu0 0.0
      %9414 = vmatpush.msra.mxu0 0.0
      %9415 = vmatpush.msra.mxu0 0.0
      %9416 = vmatpush.msra.mxu0 0.0
      %9417 = vmatpush.msra.mxu0 0.0
      %9418 = vmatpush.msra.mxu0 0.0
      %9419 = vmatpush.msra.mxu0 0.0
      %9420 = vmatpush.msra.mxu0 0.0
      %9421 = vmatpush.msra.mxu0 0.0
      %9422 = vmatpush.msra.mxu0 0.0
      %9423 = vmatpush.msra.mxu0 0.0
      %9424 = vmatpush.msra.mxu0 0.0
      %9425 = vmatpush.msra.mxu0 0.0
      %9426 = vmatpush.msra.mxu0 %v6881
      %9427 = vmatmul.f32.gmra.mxu0 %v9409
      %v9428 = vpop.f32.mrf.mxu0
      %v9429 = vadd.f32 0.0, %v9428
      %9430 = vdwg.mxu0
      %9439 = vset.pattern.permute.xlu0 0
      %9440 = vperm.xlu0 %9439, %v9241
      %v9441 = vpop.permute.xlu0 %9440
      %9442 = vset.pattern.permute.xlu0 0
      %9443 = vperm.xlu0 %9442, %v9242
      %v9444 = vpop.permute.xlu0 %9443
      %9445 = vset.pattern.permute.xlu0 0
      %9446 = vperm.xlu0 %9445, %v9243
      %v9447 = vpop.permute.xlu0 %9446
      %9448 = vset.pattern.permute.xlu0 0
      %9449 = vperm.xlu0 %9448, %v9244
      %v9450 = vpop.permute.xlu0 %9449
      %9451 = vset.pattern.permute.xlu0 0
      %9452 = vperm.xlu0 %9451, %v9245
      %v9453 = vpop.permute.xlu0 %9452
      %9454 = vset.pattern.permute.xlu0 0
      %9455 = vperm.xlu0 %9454, %v9246
      %v9456 = vpop.permute.xlu0 %9455
      %9457 = vset.pattern.permute.xlu0 0
      %9458 = vperm.xlu0 %9457, %v9247
      %v9459 = vpop.permute.xlu0 %9458
      %9460 = vset.pattern.permute.xlu0 0
      %9461 = vperm.xlu0 %9460, %v9248
      %v9462 = vpop.permute.xlu0 %9461
      %v9463 = vperm.slane %v9441, %v4994
      %v9464 = vperm.slane %v9444, %v4994
      %v9465 = vperm.slane %v9447, %v4994
      %v9466 = vperm.slane %v9450, %v4994
      %v9467 = vperm.slane %v9453, %v4994
      %v9468 = vperm.slane %v9456, %v4994
      %v9469 = vperm.slane %v9459, %v4994
      %v9470 = vperm.slane %v9462, %v4994
      %v9471 = vsel %vm5003, %v9464, %v9463
      %v9472 = vsel %vm5005, %v9465, %v9471
      %v9473 = vsel %vm5007, %v9466, %v9472
      %v9474 = vsel %vm5009, %v9467, %v9473
      %v9475 = vsel %vm5011, %v9468, %v9474
      %v9476 = vsel %vm5013, %v9469, %v9475
      %v9477 = vsel %vm5015, %v9470, %v9476
      %v9479 = vsel %vm5018, %v9477, 0
      %9481 = vmatpush.msra.mxu0 0.0
      %9482 = vmatpush.msra.mxu0 0.0
      %9483 = vmatpush.msra.mxu0 0.0
      %9484 = vmatpush.msra.mxu0 0.0
      %9485 = vmatpush.msra.mxu0 0.0
      %9486 = vmatpush.msra.mxu0 0.0
      %9487 = vmatpush.msra.mxu0 0.0
      %9488 = vmatpush.msra.mxu0 0.0
      %9489 = vmatpush.msra.mxu0 0.0
      %9490 = vmatpush.msra.mxu0 0.0
      %9491 = vmatpush.msra.mxu0 0.0
      %9492 = vmatpush.msra.mxu0 0.0
      %9493 = vmatpush.msra.mxu0 0.0
      %9494 = vmatpush.msra.mxu0 0.0
      %9495 = vmatpush.msra.mxu0 0.0
      %9496 = vmatpush.msra.mxu0 %v6883
      %9497 = vmatmul.f32.gmra.mxu0 %v9479
      %v9498 = vpop.f32.mrf.mxu0
      %v9499 = vadd.f32 0.0, %v9498
      %9500 = vdwg.mxu0
      %9509 = vset.pattern.permute.xlu0 0
      %9510 = vperm.xlu0 %9509, %v9249
      %v9511 = vpop.permute.xlu0 %9510
      %9512 = vset.pattern.permute.xlu0 0
      %9513 = vperm.xlu0 %9512, %v9250
      %v9514 = vpop.permute.xlu0 %9513
      %9515 = vset.pattern.permute.xlu0 0
      %9516 = vperm.xlu0 %9515, %v9251
      %v9517 = vpop.permute.xlu0 %9516
      %9518 = vset.pattern.permute.xlu0 0
      %9519 = vperm.xlu0 %9518, %v9252
      %v9520 = vpop.permute.xlu0 %9519
      %9521 = vset.pattern.permute.xlu0 0
      %9522 = vperm.xlu0 %9521, %v9253
      %v9523 = vpop.permute.xlu0 %9522
      %9524 = vset.pattern.permute.xlu0 0
      %9525 = vperm.xlu0 %9524, %v9254
      %v9526 = vpop.permute.xlu0 %9525
      %9527 = vset.pattern.permute.xlu0 0
      %9528 = vperm.xlu0 %9527, %v9255
      %v9529 = vpop.permute.xlu0 %9528
      %9530 = vset.pattern.permute.xlu0 0
      %9531 = vperm.xlu0 %9530, %v9256
      %v9532 = vpop.permute.xlu0 %9531
      %v9533 = vperm.slane %v9511, %v4994
      %v9534 = vperm.slane %v9514, %v4994
      %v9535 = vperm.slane %v9517, %v4994
      %v9536 = vperm.slane %v9520, %v4994
      %v9537 = vperm.slane %v9523, %v4994
      %v9538 = vperm.slane %v9526, %v4994
      %v9539 = vperm.slane %v9529, %v4994
      %v9540 = vperm.slane %v9532, %v4994
      %v9541 = vsel %vm5003, %v9534, %v9533
      %v9542 = vsel %vm5005, %v9535, %v9541
      %v9543 = vsel %vm5007, %v9536, %v9542
      %v9544 = vsel %vm5009, %v9537, %v9543
      %v9545 = vsel %vm5011, %v9538, %v9544
      %v9546 = vsel %vm5013, %v9539, %v9545
      %v9547 = vsel %vm5015, %v9540, %v9546
      %v9549 = vsel %vm5018, %v9547, 0
      %9551 = vmatpush.msra.mxu0 0.0
      %9552 = vmatpush.msra.mxu0 0.0
      %9553 = vmatpush.msra.mxu0 0.0
      %9554 = vmatpush.msra.mxu0 0.0
      %9555 = vmatpush.msra.mxu0 0.0
      %9556 = vmatpush.msra.mxu0 0.0
      %9557 = vmatpush.msra.mxu0 0.0
      %9558 = vmatpush.msra.mxu0 0.0
      %9559 = vmatpush.msra.mxu0 0.0
      %9560 = vmatpush.msra.mxu0 0.0
      %9561 = vmatpush.msra.mxu0 0.0
      %9562 = vmatpush.msra.mxu0 0.0
      %9563 = vmatpush.msra.mxu0 0.0
      %9564 = vmatpush.msra.mxu0 0.0
      %9565 = vmatpush.msra.mxu0 0.0
      %9566 = vmatpush.msra.mxu0 %v6885
      %9567 = vmatmul.f32.gmra.mxu0 %v9549
      %v9568 = vpop.f32.mrf.mxu0
      %v9569 = vadd.f32 0.0, %v9568
      %9570 = vdwg.mxu0
      %9579 = vset.pattern.permute.xlu0 0
      %9580 = vperm.xlu0 %9579, %v9257
      %v9581 = vpop.permute.xlu0 %9580
      %9582 = vset.pattern.permute.xlu0 0
      %9583 = vperm.xlu0 %9582, %v9258
      %v9584 = vpop.permute.xlu0 %9583
      %9585 = vset.pattern.permute.xlu0 0
      %9586 = vperm.xlu0 %9585, %v9259
      %v9587 = vpop.permute.xlu0 %9586
      %9588 = vset.pattern.permute.xlu0 0
      %9589 = vperm.xlu0 %9588, %v9260
      %v9590 = vpop.permute.xlu0 %9589
      %9591 = vset.pattern.permute.xlu0 0
      %9592 = vperm.xlu0 %9591, %v9261
      %v9593 = vpop.permute.xlu0 %9592
      %9594 = vset.pattern.permute.xlu0 0
      %9595 = vperm.xlu0 %9594, %v9262
      %v9596 = vpop.permute.xlu0 %9595
      %9597 = vset.pattern.permute.xlu0 0
      %9598 = vperm.xlu0 %9597, %v9263
      %v9599 = vpop.permute.xlu0 %9598
      %9600 = vset.pattern.permute.xlu0 0
      %9601 = vperm.xlu0 %9600, %v9264
      %v9602 = vpop.permute.xlu0 %9601
      %v9603 = vperm.slane %v9581, %v4994
      %v9604 = vperm.slane %v9584, %v4994
      %v9605 = vperm.slane %v9587, %v4994
      %v9606 = vperm.slane %v9590, %v4994
      %v9607 = vperm.slane %v9593, %v4994
      %v9608 = vperm.slane %v9596, %v4994
      %v9609 = vperm.slane %v9599, %v4994
      %v9610 = vperm.slane %v9602, %v4994
      %v9611 = vsel %vm5003, %v9604, %v9603
      %v9612 = vsel %vm5005, %v9605, %v9611
      %v9613 = vsel %vm5007, %v9606, %v9612
      %v9614 = vsel %vm5009, %v9607, %v9613
      %v9615 = vsel %vm5011, %v9608, %v9614
      %v9616 = vsel %vm5013, %v9609, %v9615
      %v9617 = vsel %vm5015, %v9610, %v9616
      %v9619 = vsel %vm5018, %v9617, 0
      %9621 = vmatpush.msra.mxu0 0.0
      %9622 = vmatpush.msra.mxu0 0.0
      %9623 = vmatpush.msra.mxu0 0.0
      %9624 = vmatpush.msra.mxu0 0.0
      %9625 = vmatpush.msra.mxu0 0.0
      %9626 = vmatpush.msra.mxu0 0.0
      %9627 = vmatpush.msra.mxu0 0.0
      %9628 = vmatpush.msra.mxu0 0.0
      %9629 = vmatpush.msra.mxu0 0.0
      %9630 = vmatpush.msra.mxu0 0.0
      %9631 = vmatpush.msra.mxu0 0.0
      %9632 = vmatpush.msra.mxu0 0.0
      %9633 = vmatpush.msra.mxu0 0.0
      %9634 = vmatpush.msra.mxu0 0.0
      %9635 = vmatpush.msra.mxu0 0.0
      %9636 = vmatpush.msra.mxu0 %v6887
      %9637 = vmatmul.f32.gmra.mxu0 %v9619
      %v9638 = vpop.f32.mrf.mxu0
      %v9639 = vadd.f32 0.0, %v9638
      %9640 = vdwg.mxu0
      %9649 = vset.pattern.permute.xlu0 0
      %9650 = vperm.xlu0 %9649, %v9265
      %v9651 = vpop.permute.xlu0 %9650
      %9652 = vset.pattern.permute.xlu0 0
      %9653 = vperm.xlu0 %9652, %v9266
      %v9654 = vpop.permute.xlu0 %9653
      %9655 = vset.pattern.permute.xlu0 0
      %9656 = vperm.xlu0 %9655, %v9267
      %v9657 = vpop.permute.xlu0 %9656
      %9658 = vset.pattern.permute.xlu0 0
      %9659 = vperm.xlu0 %9658, %v9268
      %v9660 = vpop.permute.xlu0 %9659
      %9661 = vset.pattern.permute.xlu0 0
      %9662 = vperm.xlu0 %9661, %v9269
      %v9663 = vpop.permute.xlu0 %9662
      %9664 = vset.pattern.permute.xlu0 0
      %9665 = vperm.xlu0 %9664, %v9270
      %v9666 = vpop.permute.xlu0 %9665
      %9667 = vset.pattern.permute.xlu0 0
      %9668 = vperm.xlu0 %9667, %v9271
      %v9669 = vpop.permute.xlu0 %9668
      %9670 = vset.pattern.permute.xlu0 0
      %9671 = vperm.xlu0 %9670, %v9272
      %v9672 = vpop.permute.xlu0 %9671
      %v9673 = vperm.slane %v9651, %v4994
      %v9674 = vperm.slane %v9654, %v4994
      %v9675 = vperm.slane %v9657, %v4994
      %v9676 = vperm.slane %v9660, %v4994
      %v9677 = vperm.slane %v9663, %v4994
      %v9678 = vperm.slane %v9666, %v4994
      %v9679 = vperm.slane %v9669, %v4994
      %v9680 = vperm.slane %v9672, %v4994
      %v9681 = vsel %vm5003, %v9674, %v9673
      %v9682 = vsel %vm5005, %v9675, %v9681
      %v9683 = vsel %vm5007, %v9676, %v9682
      %v9684 = vsel %vm5009, %v9677, %v9683
      %v9685 = vsel %vm5011, %v9678, %v9684
      %v9686 = vsel %vm5013, %v9679, %v9685
      %v9687 = vsel %vm5015, %v9680, %v9686
      %v9689 = vsel %vm5018, %v9687, 0
      %9691 = vmatpush.msra.mxu0 0.0
      %9692 = vmatpush.msra.mxu0 0.0
      %9693 = vmatpush.msra.mxu0 0.0
      %9694 = vmatpush.msra.mxu0 0.0
      %9695 = vmatpush.msra.mxu0 0.0
      %9696 = vmatpush.msra.mxu0 0.0
      %9697 = vmatpush.msra.mxu0 0.0
      %9698 = vmatpush.msra.mxu0 0.0
      %9699 = vmatpush.msra.mxu0 0.0
      %9700 = vmatpush.msra.mxu0 0.0
      %9701 = vmatpush.msra.mxu0 0.0
      %9702 = vmatpush.msra.mxu0 0.0
      %9703 = vmatpush.msra.mxu0 0.0
      %9704 = vmatpush.msra.mxu0 0.0
      %9705 = vmatpush.msra.mxu0 0.0
      %9706 = vmatpush.msra.mxu0 %v6889
      %9707 = vmatmul.f32.gmra.mxu0 %v9689
      %v9708 = vpop.f32.mrf.mxu0
      %v9709 = vadd.f32 0.0, %v9708
      %9710 = vdwg.mxu0
      %9719 = vset.pattern.permute.xlu0 0
      %9720 = vperm.xlu0 %9719, %v9273
      %v9721 = vpop.permute.xlu0 %9720
      %9722 = vset.pattern.permute.xlu0 0
      %9723 = vperm.xlu0 %9722, %v9274
      %v9724 = vpop.permute.xlu0 %9723
      %9725 = vset.pattern.permute.xlu0 0
      %9726 = vperm.xlu0 %9725, %v9275
      %v9727 = vpop.permute.xlu0 %9726
      %9728 = vset.pattern.permute.xlu0 0
      %9729 = vperm.xlu0 %9728, %v9276
      %v9730 = vpop.permute.xlu0 %9729
      %9731 = vset.pattern.permute.xlu0 0
      %9732 = vperm.xlu0 %9731, %v9277
      %v9733 = vpop.permute.xlu0 %9732
      %9734 = vset.pattern.permute.xlu0 0
      %9735 = vperm.xlu0 %9734, %v9278
      %v9736 = vpop.permute.xlu0 %9735
      %9737 = vset.pattern.permute.xlu0 0
      %9738 = vperm.xlu0 %9737, %v9279
      %v9739 = vpop.permute.xlu0 %9738
      %9740 = vset.pattern.permute.xlu0 0
      %9741 = vperm.xlu0 %9740, %v9280
      %v9742 = vpop.permute.xlu0 %9741
      %v9743 = vperm.slane %v9721, %v4994
      %v9744 = vperm.slane %v9724, %v4994
      %v9745 = vperm.slane %v9727, %v4994
      %v9746 = vperm.slane %v9730, %v4994
      %v9747 = vperm.slane %v9733, %v4994
      %v9748 = vperm.slane %v9736, %v4994
      %v9749 = vperm.slane %v9739, %v4994
      %v9750 = vperm.slane %v9742, %v4994
      %v9751 = vsel %vm5003, %v9744, %v9743
      %v9752 = vsel %vm5005, %v9745, %v9751
      %v9753 = vsel %vm5007, %v9746, %v9752
      %v9754 = vsel %vm5009, %v9747, %v9753
      %v9755 = vsel %vm5011, %v9748, %v9754
      %v9756 = vsel %vm5013, %v9749, %v9755
      %v9757 = vsel %vm5015, %v9750, %v9756
      %v9759 = vsel %vm5018, %v9757, 0
      %9761 = vmatpush.msra.mxu0 0.0
      %9762 = vmatpush.msra.mxu0 0.0
      %9763 = vmatpush.msra.mxu0 0.0
      %9764 = vmatpush.msra.mxu0 0.0
      %9765 = vmatpush.msra.mxu0 0.0
      %9766 = vmatpush.msra.mxu0 0.0
      %9767 = vmatpush.msra.mxu0 0.0
      %9768 = vmatpush.msra.mxu0 0.0
      %9769 = vmatpush.msra.mxu0 0.0
      %9770 = vmatpush.msra.mxu0 0.0
      %9771 = vmatpush.msra.mxu0 0.0
      %9772 = vmatpush.msra.mxu0 0.0
      %9773 = vmatpush.msra.mxu0 0.0
      %9774 = vmatpush.msra.mxu0 0.0
      %9775 = vmatpush.msra.mxu0 0.0
      %9776 = vmatpush.msra.mxu0 %v6891
      %9777 = vmatmul.f32.gmra.mxu0 %v9759
      %v9778 = vpop.f32.mrf.mxu0
      %v9779 = vadd.f32 0.0, %v9778
      %9780 = vdwg.mxu0
      %9789 = vset.pattern.permute.xlu0 0
      %9790 = vperm.xlu0 %9789, %v9281
      %v9791 = vpop.permute.xlu0 %9790
      %9792 = vset.pattern.permute.xlu0 0
      %9793 = vperm.xlu0 %9792, %v9282
      %v9794 = vpop.permute.xlu0 %9793
      %9795 = vset.pattern.permute.xlu0 0
      %9796 = vperm.xlu0 %9795, %v9283
      %v9797 = vpop.permute.xlu0 %9796
      %9798 = vset.pattern.permute.xlu0 0
      %9799 = vperm.xlu0 %9798, %v9284
      %v9800 = vpop.permute.xlu0 %9799
      %9801 = vset.pattern.permute.xlu0 0
      %9802 = vperm.xlu0 %9801, %v9285
      %v9803 = vpop.permute.xlu0 %9802
      %9804 = vset.pattern.permute.xlu0 0
      %9805 = vperm.xlu0 %9804, %v9286
      %v9806 = vpop.permute.xlu0 %9805
      %9807 = vset.pattern.permute.xlu0 0
      %9808 = vperm.xlu0 %9807, %v9287
      %v9809 = vpop.permute.xlu0 %9808
      %9810 = vset.pattern.permute.xlu0 0
      %9811 = vperm.xlu0 %9810, %v9288
      %v9812 = vpop.permute.xlu0 %9811
      %v9813 = vperm.slane %v9791, %v4994
      %v9814 = vperm.slane %v9794, %v4994
      %v9815 = vperm.slane %v9797, %v4994
      %v9816 = vperm.slane %v9800, %v4994
      %v9817 = vperm.slane %v9803, %v4994
      %v9818 = vperm.slane %v9806, %v4994
      %v9819 = vperm.slane %v9809, %v4994
      %v9820 = vperm.slane %v9812, %v4994
      %v9821 = vsel %vm5003, %v9814, %v9813
      %v9822 = vsel %vm5005, %v9815, %v9821
      %v9823 = vsel %vm5007, %v9816, %v9822
      %v9824 = vsel %vm5009, %v9817, %v9823
      %v9825 = vsel %vm5011, %v9818, %v9824
      %v9826 = vsel %vm5013, %v9819, %v9825
      %v9827 = vsel %vm5015, %v9820, %v9826
      %v9829 = vsel %vm5018, %v9827, 0
      %9831 = vmatpush.msra.mxu0 0.0
      %9832 = vmatpush.msra.mxu0 0.0
      %9833 = vmatpush.msra.mxu0 0.0
      %9834 = vmatpush.msra.mxu0 0.0
      %9835 = vmatpush.msra.mxu0 0.0
      %9836 = vmatpush.msra.mxu0 0.0
      %9837 = vmatpush.msra.mxu0 0.0
      %9838 = vmatpush.msra.mxu0 0.0
      %9839 = vmatpush.msra.mxu0 0.0
      %9840 = vmatpush.msra.mxu0 0.0
      %9841 = vmatpush.msra.mxu0 0.0
      %9842 = vmatpush.msra.mxu0 0.0
      %9843 = vmatpush.msra.mxu0 0.0
      %9844 = vmatpush.msra.mxu0 0.0
      %9845 = vmatpush.msra.mxu0 0.0
      %9846 = vmatpush.msra.mxu0 %v6893
      %9847 = vmatmul.f32.gmra.mxu0 %v9829
      %v9848 = vpop.f32.mrf.mxu0
      %v9849 = vadd.f32 0.0, %v9848
      %9850 = vdwg.mxu0
      %9859 = vset.pattern.permute.xlu0 0
      %9860 = vperm.xlu0 %9859, %v9289
      %v9861 = vpop.permute.xlu0 %9860
      %9862 = vset.pattern.permute.xlu0 0
      %9863 = vperm.xlu0 %9862, %v9290
      %v9864 = vpop.permute.xlu0 %9863
      %9865 = vset.pattern.permute.xlu0 0
      %9866 = vperm.xlu0 %9865, %v9291
      %v9867 = vpop.permute.xlu0 %9866
      %9868 = vset.pattern.permute.xlu0 0
      %9869 = vperm.xlu0 %9868, %v9292
      %v9870 = vpop.permute.xlu0 %9869
      %9871 = vset.pattern.permute.xlu0 0
      %9872 = vperm.xlu0 %9871, %v9293
      %v9873 = vpop.permute.xlu0 %9872
      %9874 = vset.pattern.permute.xlu0 0
      %9875 = vperm.xlu0 %9874, %v9294
      %v9876 = vpop.permute.xlu0 %9875
      %9877 = vset.pattern.permute.xlu0 0
      %9878 = vperm.xlu0 %9877, %v9295
      %v9879 = vpop.permute.xlu0 %9878
      %9880 = vset.pattern.permute.xlu0 0
      %9881 = vperm.xlu0 %9880, %v9296
      %v9882 = vpop.permute.xlu0 %9881
      %v9883 = vperm.slane %v9861, %v4994
      %v9884 = vperm.slane %v9864, %v4994
      %v9885 = vperm.slane %v9867, %v4994
      %v9886 = vperm.slane %v9870, %v4994
      %v9887 = vperm.slane %v9873, %v4994
      %v9888 = vperm.slane %v9876, %v4994
      %v9889 = vperm.slane %v9879, %v4994
      %v9890 = vperm.slane %v9882, %v4994
      %v9891 = vsel %vm5003, %v9884, %v9883
      %v9892 = vsel %vm5005, %v9885, %v9891
      %v9893 = vsel %vm5007, %v9886, %v9892
      %v9894 = vsel %vm5009, %v9887, %v9893
      %v9895 = vsel %vm5011, %v9888, %v9894
      %v9896 = vsel %vm5013, %v9889, %v9895
      %v9897 = vsel %vm5015, %v9890, %v9896
      %v9899 = vsel %vm5018, %v9897, 0
      %9901 = vmatpush.msra.mxu0 0.0
      %9902 = vmatpush.msra.mxu0 0.0
      %9903 = vmatpush.msra.mxu0 0.0
      %9904 = vmatpush.msra.mxu0 0.0
      %9905 = vmatpush.msra.mxu0 0.0
      %9906 = vmatpush.msra.mxu0 0.0
      %9907 = vmatpush.msra.mxu0 0.0
      %9908 = vmatpush.msra.mxu0 0.0
      %9909 = vmatpush.msra.mxu0 0.0
      %9910 = vmatpush.msra.mxu0 0.0
      %9911 = vmatpush.msra.mxu0 0.0
      %9912 = vmatpush.msra.mxu0 0.0
      %9913 = vmatpush.msra.mxu0 0.0
      %9914 = vmatpush.msra.mxu0 0.0
      %9915 = vmatpush.msra.mxu0 0.0
      %9916 = vmatpush.msra.mxu0 %v6895
      %9917 = vmatmul.f32.gmra.mxu0 %v9899
      %v9918 = vpop.f32.mrf.mxu0
      %v9919 = vadd.f32 0.0, %v9918
      %9920 = vdwg.mxu0
      %9929 = vset.pattern.permute.xlu0 0
      %9930 = vperm.xlu0 %9929, %v9297
      %v9931 = vpop.permute.xlu0 %9930
      %9932 = vset.pattern.permute.xlu0 0
      %9933 = vperm.xlu0 %9932, %v9298
      %v9934 = vpop.permute.xlu0 %9933
      %9935 = vset.pattern.permute.xlu0 0
      %9936 = vperm.xlu0 %9935, %v9299
      %v9937 = vpop.permute.xlu0 %9936
      %9938 = vset.pattern.permute.xlu0 0
      %9939 = vperm.xlu0 %9938, %v9300
      %v9940 = vpop.permute.xlu0 %9939
      %9941 = vset.pattern.permute.xlu0 0
      %9942 = vperm.xlu0 %9941, %v9301
      %v9943 = vpop.permute.xlu0 %9942
      %9944 = vset.pattern.permute.xlu0 0
      %9945 = vperm.xlu0 %9944, %v9302
      %v9946 = vpop.permute.xlu0 %9945
      %9947 = vset.pattern.permute.xlu0 0
      %9948 = vperm.xlu0 %9947, %v9303
      %v9949 = vpop.permute.xlu0 %9948
      %9950 = vset.pattern.permute.xlu0 0
      %9951 = vperm.xlu0 %9950, %v9304
      %v9952 = vpop.permute.xlu0 %9951
      %v9953 = vperm.slane %v9931, %v4994
      %v9954 = vperm.slane %v9934, %v4994
      %v9955 = vperm.slane %v9937, %v4994
      %v9956 = vperm.slane %v9940, %v4994
      %v9957 = vperm.slane %v9943, %v4994
      %v9958 = vperm.slane %v9946, %v4994
      %v9959 = vperm.slane %v9949, %v4994
      %v9960 = vperm.slane %v9952, %v4994
      %v9961 = vsel %vm5003, %v9954, %v9953
      %v9962 = vsel %vm5005, %v9955, %v9961
      %v9963 = vsel %vm5007, %v9956, %v9962
      %v9964 = vsel %vm5009, %v9957, %v9963
      %v9965 = vsel %vm5011, %v9958, %v9964
      %v9966 = vsel %vm5013, %v9959, %v9965
      %v9967 = vsel %vm5015, %v9960, %v9966
      %v9969 = vsel %vm5018, %v9967, 0
      %9971 = vmatpush.msra.mxu0 0.0
      %9972 = vmatpush.msra.mxu0 0.0
      %9973 = vmatpush.msra.mxu0 0.0
      %9974 = vmatpush.msra.mxu0 0.0
      %9975 = vmatpush.msra.mxu0 0.0
      %9976 = vmatpush.msra.mxu0 0.0
      %9977 = vmatpush.msra.mxu0 0.0
      %9978 = vmatpush.msra.mxu0 0.0
      %9979 = vmatpush.msra.mxu0 0.0
      %9980 = vmatpush.msra.mxu0 0.0
      %9981 = vmatpush.msra.mxu0 0.0
      %9982 = vmatpush.msra.mxu0 0.0
      %9983 = vmatpush.msra.mxu0 0.0
      %9984 = vmatpush.msra.mxu0 0.0
      %9985 = vmatpush.msra.mxu0 0.0
      %9986 = vmatpush.msra.mxu0 %v6897
      %9987 = vmatmul.f32.gmra.mxu0 %v9969
      %v9988 = vpop.f32.mrf.mxu0
      %v9989 = vadd.f32 0.0, %v9988
      %9990 = vdwg.mxu0
      %9999 = vset.pattern.permute.xlu0 0
      %10000 = vperm.xlu0 %9999, %v9305
      %v10001 = vpop.permute.xlu0 %10000
      %10002 = vset.pattern.permute.xlu0 0
      %10003 = vperm.xlu0 %10002, %v9306
      %v10004 = vpop.permute.xlu0 %10003
      %10005 = vset.pattern.permute.xlu0 0
      %10006 = vperm.xlu0 %10005, %v9307
      %v10007 = vpop.permute.xlu0 %10006
      %10008 = vset.pattern.permute.xlu0 0
      %10009 = vperm.xlu0 %10008, %v9308
      %v10010 = vpop.permute.xlu0 %10009
      %10011 = vset.pattern.permute.xlu0 0
      %10012 = vperm.xlu0 %10011, %v9309
      %v10013 = vpop.permute.xlu0 %10012
      %10014 = vset.pattern.permute.xlu0 0
      %10015 = vperm.xlu0 %10014, %v9310
      %v10016 = vpop.permute.xlu0 %10015
      %10017 = vset.pattern.permute.xlu0 0
      %10018 = vperm.xlu0 %10017, %v9311
      %v10019 = vpop.permute.xlu0 %10018
      %10020 = vset.pattern.permute.xlu0 0
      %10021 = vperm.xlu0 %10020, %v9312
      %v10022 = vpop.permute.xlu0 %10021
      %v10023 = vperm.slane %v10001, %v4994
      %v10024 = vperm.slane %v10004, %v4994
      %v10025 = vperm.slane %v10007, %v4994
      %v10026 = vperm.slane %v10010, %v4994
      %v10027 = vperm.slane %v10013, %v4994
      %v10028 = vperm.slane %v10016, %v4994
      %v10029 = vperm.slane %v10019, %v4994
      %v10030 = vperm.slane %v10022, %v4994
      %v10031 = vsel %vm5003, %v10024, %v10023
      %v10032 = vsel %vm5005, %v10025, %v10031
      %v10033 = vsel %vm5007, %v10026, %v10032
      %v10034 = vsel %vm5009, %v10027, %v10033
      %v10035 = vsel %vm5011, %v10028, %v10034
      %v10036 = vsel %vm5013, %v10029, %v10035
      %v10037 = vsel %vm5015, %v10030, %v10036
      %v10039 = vsel %vm5018, %v10037, 0
      %10041 = vmatpush.msra.mxu0 0.0
      %10042 = vmatpush.msra.mxu0 0.0
      %10043 = vmatpush.msra.mxu0 0.0
      %10044 = vmatpush.msra.mxu0 0.0
      %10045 = vmatpush.msra.mxu0 0.0
      %10046 = vmatpush.msra.mxu0 0.0
      %10047 = vmatpush.msra.mxu0 0.0
      %10048 = vmatpush.msra.mxu0 0.0
      %10049 = vmatpush.msra.mxu0 0.0
      %10050 = vmatpush.msra.mxu0 0.0
      %10051 = vmatpush.msra.mxu0 0.0
      %10052 = vmatpush.msra.mxu0 0.0
      %10053 = vmatpush.msra.mxu0 0.0
      %10054 = vmatpush.msra.mxu0 0.0
      %10055 = vmatpush.msra.mxu0 0.0
      %10056 = vmatpush.msra.mxu0 %v6899
      %10057 = vmatmul.f32.gmra.mxu0 %v10039
      %v10058 = vpop.f32.mrf.mxu0
      %v10059 = vadd.f32 0.0, %v10058
      %10060 = vdwg.mxu0
      %10069 = vset.pattern.permute.xlu0 0
      %10070 = vperm.xlu0 %10069, %v9313
      %v10071 = vpop.permute.xlu0 %10070
      %10072 = vset.pattern.permute.xlu0 0
      %10073 = vperm.xlu0 %10072, %v9314
      %v10074 = vpop.permute.xlu0 %10073
      %10075 = vset.pattern.permute.xlu0 0
      %10076 = vperm.xlu0 %10075, %v9315
      %v10077 = vpop.permute.xlu0 %10076
      %10078 = vset.pattern.permute.xlu0 0
      %10079 = vperm.xlu0 %10078, %v9316
      %v10080 = vpop.permute.xlu0 %10079
      %10081 = vset.pattern.permute.xlu0 0
      %10082 = vperm.xlu0 %10081, %v9317
      %v10083 = vpop.permute.xlu0 %10082
      %10084 = vset.pattern.permute.xlu0 0
      %10085 = vperm.xlu0 %10084, %v9318
      %v10086 = vpop.permute.xlu0 %10085
      %10087 = vset.pattern.permute.xlu0 0
      %10088 = vperm.xlu0 %10087, %v9319
      %v10089 = vpop.permute.xlu0 %10088
      %10090 = vset.pattern.permute.xlu0 0
      %10091 = vperm.xlu0 %10090, %v9320
      %v10092 = vpop.permute.xlu0 %10091
      %v10093 = vperm.slane %v10071, %v4994
      %v10094 = vperm.slane %v10074, %v4994
      %v10095 = vperm.slane %v10077, %v4994
      %v10096 = vperm.slane %v10080, %v4994
      %v10097 = vperm.slane %v10083, %v4994
      %v10098 = vperm.slane %v10086, %v4994
      %v10099 = vperm.slane %v10089, %v4994
      %v10100 = vperm.slane %v10092, %v4994
      %v10101 = vsel %vm5003, %v10094, %v10093
      %v10102 = vsel %vm5005, %v10095, %v10101
      %v10103 = vsel %vm5007, %v10096, %v10102
      %v10104 = vsel %vm5009, %v10097, %v10103
      %v10105 = vsel %vm5011, %v10098, %v10104
      %v10106 = vsel %vm5013, %v10099, %v10105
      %v10107 = vsel %vm5015, %v10100, %v10106
      %v10109 = vsel %vm5018, %v10107, 0
      %10111 = vmatpush.msra.mxu0 0.0
      %10112 = vmatpush.msra.mxu0 0.0
      %10113 = vmatpush.msra.mxu0 0.0
      %10114 = vmatpush.msra.mxu0 0.0
      %10115 = vmatpush.msra.mxu0 0.0
      %10116 = vmatpush.msra.mxu0 0.0
      %10117 = vmatpush.msra.mxu0 0.0
      %10118 = vmatpush.msra.mxu0 0.0
      %10119 = vmatpush.msra.mxu0 0.0
      %10120 = vmatpush.msra.mxu0 0.0
      %10121 = vmatpush.msra.mxu0 0.0
      %10122 = vmatpush.msra.mxu0 0.0
      %10123 = vmatpush.msra.mxu0 0.0
      %10124 = vmatpush.msra.mxu0 0.0
      %10125 = vmatpush.msra.mxu0 0.0
      %10126 = vmatpush.msra.mxu0 %v6901
      %10127 = vmatmul.f32.gmra.mxu0 %v10109
      %v10128 = vpop.f32.mrf.mxu0
      %v10129 = vadd.f32 0.0, %v10128
      %10130 = vdwg.mxu0
      %10139 = vset.pattern.permute.xlu0 0
      %10140 = vperm.xlu0 %10139, %v9321
      %v10141 = vpop.permute.xlu0 %10140
      %10142 = vset.pattern.permute.xlu0 0
      %10143 = vperm.xlu0 %10142, %v9322
      %v10144 = vpop.permute.xlu0 %10143
      %10145 = vset.pattern.permute.xlu0 0
      %10146 = vperm.xlu0 %10145, %v9323
      %v10147 = vpop.permute.xlu0 %10146
      %10148 = vset.pattern.permute.xlu0 0
      %10149 = vperm.xlu0 %10148, %v9324
      %v10150 = vpop.permute.xlu0 %10149
      %10151 = vset.pattern.permute.xlu0 0
      %10152 = vperm.xlu0 %10151, %v9325
      %v10153 = vpop.permute.xlu0 %10152
      %10154 = vset.pattern.permute.xlu0 0
      %10155 = vperm.xlu0 %10154, %v9326
      %v10156 = vpop.permute.xlu0 %10155
      %10157 = vset.pattern.permute.xlu0 0
      %10158 = vperm.xlu0 %10157, %v9327
      %v10159 = vpop.permute.xlu0 %10158
      %10160 = vset.pattern.permute.xlu0 0
      %10161 = vperm.xlu0 %10160, %v9328
      %v10162 = vpop.permute.xlu0 %10161
      %v10163 = vperm.slane %v10141, %v4994
      %v10164 = vperm.slane %v10144, %v4994
      %v10165 = vperm.slane %v10147, %v4994
      %v10166 = vperm.slane %v10150, %v4994
      %v10167 = vperm.slane %v10153, %v4994
      %v10168 = vperm.slane %v10156, %v4994
      %v10169 = vperm.slane %v10159, %v4994
      %v10170 = vperm.slane %v10162, %v4994
      %v10171 = vsel %vm5003, %v10164, %v10163
      %v10172 = vsel %vm5005, %v10165, %v10171
      %v10173 = vsel %vm5007, %v10166, %v10172
      %v10174 = vsel %vm5009, %v10167, %v10173
      %v10175 = vsel %vm5011, %v10168, %v10174
      %v10176 = vsel %vm5013, %v10169, %v10175
      %v10177 = vsel %vm5015, %v10170, %v10176
      %v10179 = vsel %vm5018, %v10177, 0
      %10181 = vmatpush.msra.mxu0 0.0
      %10182 = vmatpush.msra.mxu0 0.0
      %10183 = vmatpush.msra.mxu0 0.0
      %10184 = vmatpush.msra.mxu0 0.0
      %10185 = vmatpush.msra.mxu0 0.0
      %10186 = vmatpush.msra.mxu0 0.0
      %10187 = vmatpush.msra.mxu0 0.0
      %10188 = vmatpush.msra.mxu0 0.0
      %10189 = vmatpush.msra.mxu0 0.0
      %10190 = vmatpush.msra.mxu0 0.0
      %10191 = vmatpush.msra.mxu0 0.0
      %10192 = vmatpush.msra.mxu0 0.0
      %10193 = vmatpush.msra.mxu0 0.0
      %10194 = vmatpush.msra.mxu0 0.0
      %10195 = vmatpush.msra.mxu0 0.0
      %10196 = vmatpush.msra.mxu0 %v6903
      %10197 = vmatmul.f32.gmra.mxu0 %v10179
      %v10198 = vpop.f32.mrf.mxu0
      %v10199 = vadd.f32 0.0, %v10198
      %10200 = vdwg.mxu0
      %10209 = vset.pattern.permute.xlu0 0
      %10210 = vperm.xlu0 %10209, %v9329
      %v10211 = vpop.permute.xlu0 %10210
      %10212 = vset.pattern.permute.xlu0 0
      %10213 = vperm.xlu0 %10212, %v9330
      %v10214 = vpop.permute.xlu0 %10213
      %10215 = vset.pattern.permute.xlu0 0
      %10216 = vperm.xlu0 %10215, %v9331
      %v10217 = vpop.permute.xlu0 %10216
      %10218 = vset.pattern.permute.xlu0 0
      %10219 = vperm.xlu0 %10218, %v9332
      %v10220 = vpop.permute.xlu0 %10219
      %10221 = vset.pattern.permute.xlu0 0
      %10222 = vperm.xlu0 %10221, %v9333
      %v10223 = vpop.permute.xlu0 %10222
      %10224 = vset.pattern.permute.xlu0 0
      %10225 = vperm.xlu0 %10224, %v9334
      %v10226 = vpop.permute.xlu0 %10225
      %10227 = vset.pattern.permute.xlu0 0
      %10228 = vperm.xlu0 %10227, %v9335
      %v10229 = vpop.permute.xlu0 %10228
      %10230 = vset.pattern.permute.xlu0 0
      %10231 = vperm.xlu0 %10230, %v9336
      %v10232 = vpop.permute.xlu0 %10231
      %v10233 = vperm.slane %v10211, %v4994
      %v10234 = vperm.slane %v10214, %v4994
      %v10235 = vperm.slane %v10217, %v4994
      %v10236 = vperm.slane %v10220, %v4994
      %v10237 = vperm.slane %v10223, %v4994
      %v10238 = vperm.slane %v10226, %v4994
      %v10239 = vperm.slane %v10229, %v4994
      %v10240 = vperm.slane %v10232, %v4994
      %v10241 = vsel %vm5003, %v10234, %v10233
      %v10242 = vsel %vm5005, %v10235, %v10241
      %v10243 = vsel %vm5007, %v10236, %v10242
      %v10244 = vsel %vm5009, %v10237, %v10243
      %v10245 = vsel %vm5011, %v10238, %v10244
      %v10246 = vsel %vm5013, %v10239, %v10245
      %v10247 = vsel %vm5015, %v10240, %v10246
      %v10249 = vsel %vm5018, %v10247, 0
      %10251 = vmatpush.msra.mxu0 0.0
      %10252 = vmatpush.msra.mxu0 0.0
      %10253 = vmatpush.msra.mxu0 0.0
      %10254 = vmatpush.msra.mxu0 0.0
      %10255 = vmatpush.msra.mxu0 0.0
      %10256 = vmatpush.msra.mxu0 0.0
      %10257 = vmatpush.msra.mxu0 0.0
      %10258 = vmatpush.msra.mxu0 0.0
      %10259 = vmatpush.msra.mxu0 0.0
      %10260 = vmatpush.msra.mxu0 0.0
      %10261 = vmatpush.msra.mxu0 0.0
      %10262 = vmatpush.msra.mxu0 0.0
      %10263 = vmatpush.msra.mxu0 0.0
      %10264 = vmatpush.msra.mxu0 0.0
      %10265 = vmatpush.msra.mxu0 0.0
      %10266 = vmatpush.msra.mxu0 %v6905
      %10267 = vmatmul.f32.gmra.mxu0 %v10249
      %v10268 = vpop.f32.mrf.mxu0
      %v10269 = vadd.f32 0.0, %v10268
      %10270 = vdwg.mxu0
      %10279 = vset.pattern.permute.xlu0 0
      %10280 = vperm.xlu0 %10279, %v9337
      %v10281 = vpop.permute.xlu0 %10280
      %10282 = vset.pattern.permute.xlu0 0
      %10283 = vperm.xlu0 %10282, %v9338
      %v10284 = vpop.permute.xlu0 %10283
      %10285 = vset.pattern.permute.xlu0 0
      %10286 = vperm.xlu0 %10285, %v9339
      %v10287 = vpop.permute.xlu0 %10286
      %10288 = vset.pattern.permute.xlu0 0
      %10289 = vperm.xlu0 %10288, %v9340
      %v10290 = vpop.permute.xlu0 %10289
      %10291 = vset.pattern.permute.xlu0 0
      %10292 = vperm.xlu0 %10291, %v9341
      %v10293 = vpop.permute.xlu0 %10292
      %10294 = vset.pattern.permute.xlu0 0
      %10295 = vperm.xlu0 %10294, %v9342
      %v10296 = vpop.permute.xlu0 %10295
      %10297 = vset.pattern.permute.xlu0 0
      %10298 = vperm.xlu0 %10297, %v9343
      %v10299 = vpop.permute.xlu0 %10298
      %10300 = vset.pattern.permute.xlu0 0
      %10301 = vperm.xlu0 %10300, %v9344
      %v10302 = vpop.permute.xlu0 %10301
      %v10303 = vperm.slane %v10281, %v4994
      %v10304 = vperm.slane %v10284, %v4994
      %v10305 = vperm.slane %v10287, %v4994
      %v10306 = vperm.slane %v10290, %v4994
      %v10307 = vperm.slane %v10293, %v4994
      %v10308 = vperm.slane %v10296, %v4994
      %v10309 = vperm.slane %v10299, %v4994
      %v10310 = vperm.slane %v10302, %v4994
      %v10311 = vsel %vm5003, %v10304, %v10303
      %v10312 = vsel %vm5005, %v10305, %v10311
      %v10313 = vsel %vm5007, %v10306, %v10312
      %v10314 = vsel %vm5009, %v10307, %v10313
      %v10315 = vsel %vm5011, %v10308, %v10314
      %v10316 = vsel %vm5013, %v10309, %v10315
      %v10317 = vsel %vm5015, %v10310, %v10316
      %v10319 = vsel %vm5018, %v10317, 0
      %10321 = vmatpush.msra.mxu0 0.0
      %10322 = vmatpush.msra.mxu0 0.0
      %10323 = vmatpush.msra.mxu0 0.0
      %10324 = vmatpush.msra.mxu0 0.0
      %10325 = vmatpush.msra.mxu0 0.0
      %10326 = vmatpush.msra.mxu0 0.0
      %10327 = vmatpush.msra.mxu0 0.0
      %10328 = vmatpush.msra.mxu0 0.0
      %10329 = vmatpush.msra.mxu0 0.0
      %10330 = vmatpush.msra.mxu0 0.0
      %10331 = vmatpush.msra.mxu0 0.0
      %10332 = vmatpush.msra.mxu0 0.0
      %10333 = vmatpush.msra.mxu0 0.0
      %10334 = vmatpush.msra.mxu0 0.0
      %10335 = vmatpush.msra.mxu0 0.0
      %10336 = vmatpush.msra.mxu0 %v6907
      %10337 = vmatmul.f32.gmra.mxu0 %v10319
      %v10338 = vpop.f32.mrf.mxu0
      %v10339 = vadd.f32 0.0, %v10338
      %10340 = vdwg.mxu0
      %10349 = vset.pattern.permute.xlu0 0
      %10350 = vperm.xlu0 %10349, %v9345
      %v10351 = vpop.permute.xlu0 %10350
      %10352 = vset.pattern.permute.xlu0 0
      %10353 = vperm.xlu0 %10352, %v9346
      %v10354 = vpop.permute.xlu0 %10353
      %10355 = vset.pattern.permute.xlu0 0
      %10356 = vperm.xlu0 %10355, %v9347
      %v10357 = vpop.permute.xlu0 %10356
      %10358 = vset.pattern.permute.xlu0 0
      %10359 = vperm.xlu0 %10358, %v9348
      %v10360 = vpop.permute.xlu0 %10359
      %10361 = vset.pattern.permute.xlu0 0
      %10362 = vperm.xlu0 %10361, %v9349
      %v10363 = vpop.permute.xlu0 %10362
      %10364 = vset.pattern.permute.xlu0 0
      %10365 = vperm.xlu0 %10364, %v9350
      %v10366 = vpop.permute.xlu0 %10365
      %10367 = vset.pattern.permute.xlu0 0
      %10368 = vperm.xlu0 %10367, %v9351
      %v10369 = vpop.permute.xlu0 %10368
      %10370 = vset.pattern.permute.xlu0 0
      %10371 = vperm.xlu0 %10370, %v9352
      %v10372 = vpop.permute.xlu0 %10371
      %v10373 = vperm.slane %v10351, %v4994
      %v10374 = vperm.slane %v10354, %v4994
      %v10375 = vperm.slane %v10357, %v4994
      %v10376 = vperm.slane %v10360, %v4994
      %v10377 = vperm.slane %v10363, %v4994
      %v10378 = vperm.slane %v10366, %v4994
      %v10379 = vperm.slane %v10369, %v4994
      %v10380 = vperm.slane %v10372, %v4994
      %v10381 = vsel %vm5003, %v10374, %v10373
      %v10382 = vsel %vm5005, %v10375, %v10381
      %v10383 = vsel %vm5007, %v10376, %v10382
      %v10384 = vsel %vm5009, %v10377, %v10383
      %v10385 = vsel %vm5011, %v10378, %v10384
      %v10386 = vsel %vm5013, %v10379, %v10385
      %v10387 = vsel %vm5015, %v10380, %v10386
      %v10389 = vsel %vm5018, %v10387, 0
      %10391 = vmatpush.msra.mxu0 0.0
      %10392 = vmatpush.msra.mxu0 0.0
      %10393 = vmatpush.msra.mxu0 0.0
      %10394 = vmatpush.msra.mxu0 0.0
      %10395 = vmatpush.msra.mxu0 0.0
      %10396 = vmatpush.msra.mxu0 0.0
      %10397 = vmatpush.msra.mxu0 0.0
      %10398 = vmatpush.msra.mxu0 0.0
      %10399 = vmatpush.msra.mxu0 0.0
      %10400 = vmatpush.msra.mxu0 0.0
      %10401 = vmatpush.msra.mxu0 0.0
      %10402 = vmatpush.msra.mxu0 0.0
      %10403 = vmatpush.msra.mxu0 0.0
      %10404 = vmatpush.msra.mxu0 0.0
      %10405 = vmatpush.msra.mxu0 0.0
      %10406 = vmatpush.msra.mxu0 %v6909
      %10407 = vmatmul.f32.gmra.mxu0 %v10389
      %v10408 = vpop.f32.mrf.mxu0
      %v10409 = vadd.f32 0.0, %v10408
      %10410 = vdwg.mxu0
      %10419 = vset.pattern.permute.xlu0 0
      %10420 = vperm.xlu0 %10419, %v9353
      %v10421 = vpop.permute.xlu0 %10420
      %10422 = vset.pattern.permute.xlu0 0
      %10423 = vperm.xlu0 %10422, %v9354
      %v10424 = vpop.permute.xlu0 %10423
      %10425 = vset.pattern.permute.xlu0 0
      %10426 = vperm.xlu0 %10425, %v9355
      %v10427 = vpop.permute.xlu0 %10426
      %10428 = vset.pattern.permute.xlu0 0
      %10429 = vperm.xlu0 %10428, %v9356
      %v10430 = vpop.permute.xlu0 %10429
      %10431 = vset.pattern.permute.xlu0 0
      %10432 = vperm.xlu0 %10431, %v9357
      %v10433 = vpop.permute.xlu0 %10432
      %10434 = vset.pattern.permute.xlu0 0
      %10435 = vperm.xlu0 %10434, %v9358
      %v10436 = vpop.permute.xlu0 %10435
      %10437 = vset.pattern.permute.xlu0 0
      %10438 = vperm.xlu0 %10437, %v9359
      %v10439 = vpop.permute.xlu0 %10438
      %10440 = vset.pattern.permute.xlu0 0
      %10441 = vperm.xlu0 %10440, %v9360
      %v10442 = vpop.permute.xlu0 %10441
      %v10443 = vperm.slane %v10421, %v4994
      %v10444 = vperm.slane %v10424, %v4994
      %v10445 = vperm.slane %v10427, %v4994
      %v10446 = vperm.slane %v10430, %v4994
      %v10447 = vperm.slane %v10433, %v4994
      %v10448 = vperm.slane %v10436, %v4994
      %v10449 = vperm.slane %v10439, %v4994
      %v10450 = vperm.slane %v10442, %v4994
      %v10451 = vsel %vm5003, %v10444, %v10443
      %v10452 = vsel %vm5005, %v10445, %v10451
      %v10453 = vsel %vm5007, %v10446, %v10452
      %v10454 = vsel %vm5009, %v10447, %v10453
      %v10455 = vsel %vm5011, %v10448, %v10454
      %v10456 = vsel %vm5013, %v10449, %v10455
      %v10457 = vsel %vm5015, %v10450, %v10456
      %v10459 = vsel %vm5018, %v10457, 0
      %10461 = vmatpush.msra.mxu0 0.0
      %10462 = vmatpush.msra.mxu0 0.0
      %10463 = vmatpush.msra.mxu0 0.0
      %10464 = vmatpush.msra.mxu0 0.0
      %10465 = vmatpush.msra.mxu0 0.0
      %10466 = vmatpush.msra.mxu0 0.0
      %10467 = vmatpush.msra.mxu0 0.0
      %10468 = vmatpush.msra.mxu0 0.0
      %10469 = vmatpush.msra.mxu0 0.0
      %10470 = vmatpush.msra.mxu0 0.0
      %10471 = vmatpush.msra.mxu0 0.0
      %10472 = vmatpush.msra.mxu0 0.0
      %10473 = vmatpush.msra.mxu0 0.0
      %10474 = vmatpush.msra.mxu0 0.0
      %10475 = vmatpush.msra.mxu0 0.0
      %10476 = vmatpush.msra.mxu0 %v6911
      %10477 = vmatmul.f32.gmra.mxu0 %v10459
      %v10478 = vpop.f32.mrf.mxu0
      %v10479 = vadd.f32 0.0, %v10478
      %10480 = vdwg.mxu0
      %v10481 = vperm.slane %v422, 0
      %v10483 = vsel %vm644, %v9429, 0
      %v10486 = vsel %vm644, %v9499, 0
      %v10489 = vsel %vm644, %v9569, 0
      %v10492 = vsel %vm644, %v9639, 0
      %v10495 = vsel %vm644, %v9709, 0
      %v10498 = vsel %vm644, %v9779, 0
      %v10501 = vsel %vm644, %v9849, 0
      %v10504 = vsel %vm644, %v9919, 0
      %v10507 = vsel %vm644, %v9989, 0
      %v10510 = vsel %vm644, %v10059, 0
      %v10513 = vsel %vm644, %v10129, 0
      %v10516 = vsel %vm644, %v10199, 0
      %v10519 = vsel %vm644, %v10269, 0
      %v10522 = vsel %vm644, %v10339, 0
      %v10525 = vsel %vm644, %v10409, 0
      %v10528 = vsel %vm644, %v10479, 0
      %10530 = vmatpush.msra.mxu0 0.0
      %10531 = vmatpush.msra.mxu0 0.0
      %10532 = vmatpush.msra.mxu0 0.0
      %10533 = vmatpush.msra.mxu0 0.0
      %10534 = vmatpush.msra.mxu0 0.0
      %10535 = vmatpush.msra.mxu0 0.0
      %10536 = vmatpush.msra.mxu0 0.0
      %10537 = vmatpush.msra.mxu0 0.0
      %10538 = vmatpush.msra.mxu0 0.0
      %10539 = vmatpush.msra.mxu0 0.0
      %10540 = vmatpush.msra.mxu0 0.0
      %10541 = vmatpush.msra.mxu0 0.0
      %10542 = vmatpush.msra.mxu0 %v453
      %10543 = vmatpush.msra.mxu0 %v452
      %10544 = vmatpush.msra.mxu0 %v451
      %10545 = vmatpush.msra.mxu0 %v450
      %10546 = vmatmul.f32.gmra.mxu0 %v10483
      %v10547 = vpop.f32.mrf.mxu0
      %v10548 = vadd.f32 %v10481, %v10547
      %10549 = vmatmul.f32.gmra.mxu0 %v10486
      %v10550 = vpop.f32.mrf.mxu0
      %v10551 = vadd.f32 %v10481, %v10550
      %10552 = vmatmul.f32.gmra.mxu0 %v10489
      %v10553 = vpop.f32.mrf.mxu0
      %v10554 = vadd.f32 %v10481, %v10553
      %10555 = vmatmul.f32.gmra.mxu0 %v10492
      %v10556 = vpop.f32.mrf.mxu0
      %v10557 = vadd.f32 %v10481, %v10556
      %10558 = vmatmul.f32.gmra.mxu0 %v10495
      %v10559 = vpop.f32.mrf.mxu0
      %v10560 = vadd.f32 %v10481, %v10559
      %10561 = vmatmul.f32.gmra.mxu0 %v10498
      %v10562 = vpop.f32.mrf.mxu0
      %v10563 = vadd.f32 %v10481, %v10562
      %10564 = vmatmul.f32.gmra.mxu0 %v10501
      %v10565 = vpop.f32.mrf.mxu0
      %v10566 = vadd.f32 %v10481, %v10565
      %10567 = vmatmul.f32.gmra.mxu0 %v10504
      %v10568 = vpop.f32.mrf.mxu0
      %v10569 = vadd.f32 %v10481, %v10568
      %10570 = vmatmul.f32.gmra.mxu0 %v10507
      %v10571 = vpop.f32.mrf.mxu0
      %v10572 = vadd.f32 %v10481, %v10571
      %10573 = vmatmul.f32.gmra.mxu0 %v10510
      %v10574 = vpop.f32.mrf.mxu0
      %v10575 = vadd.f32 %v10481, %v10574
      %10576 = vmatmul.f32.gmra.mxu0 %v10513
      %v10577 = vpop.f32.mrf.mxu0
      %v10578 = vadd.f32 %v10481, %v10577
      %10579 = vmatmul.f32.gmra.mxu0 %v10516
      %v10580 = vpop.f32.mrf.mxu0
      %v10581 = vadd.f32 %v10481, %v10580
      %10582 = vmatmul.f32.gmra.mxu0 %v10519
      %v10583 = vpop.f32.mrf.mxu0
      %v10584 = vadd.f32 %v10481, %v10583
      %10585 = vmatmul.f32.gmra.mxu0 %v10522
      %v10586 = vpop.f32.mrf.mxu0
      %v10587 = vadd.f32 %v10481, %v10586
      %10588 = vmatmul.f32.gmra.mxu0 %v10525
      %v10589 = vpop.f32.mrf.mxu0
      %v10590 = vadd.f32 %v10481, %v10589
      %10591 = vmatmul.f32.gmra.mxu0 %v10528
      %v10592 = vpop.f32.mrf.mxu0
      %v10593 = vadd.f32 %v10481, %v10592
      %10594 = vdwg.mxu0
      %vm10595 = vcmp.gt.f32.partialorder %v10548, 0.0
      %vm10596 = vcmp.gt.f32.partialorder %v10551, 0.0
      %vm10597 = vcmp.gt.f32.partialorder %v10554, 0.0
      %vm10598 = vcmp.gt.f32.partialorder %v10557, 0.0
      %vm10599 = vcmp.gt.f32.partialorder %v10560, 0.0
      %vm10600 = vcmp.gt.f32.partialorder %v10563, 0.0
      %vm10601 = vcmp.gt.f32.partialorder %v10566, 0.0
      %vm10602 = vcmp.gt.f32.partialorder %v10569, 0.0
      %vm10603 = vcmp.gt.f32.partialorder %v10572, 0.0
      %vm10604 = vcmp.gt.f32.partialorder %v10575, 0.0
      %vm10605 = vcmp.gt.f32.partialorder %v10578, 0.0
      %vm10606 = vcmp.gt.f32.partialorder %v10581, 0.0
      %vm10607 = vcmp.gt.f32.partialorder %v10584, 0.0
      %vm10608 = vcmp.gt.f32.partialorder %v10587, 0.0
      %vm10609 = vcmp.gt.f32.partialorder %v10590, 0.0
      %vm10610 = vcmp.gt.f32.partialorder %v10593, 0.0
      %v10611 = vmul.f32 %v10548, 0.01
      %v10612 = vmul.f32 %v10551, 0.01
      %v10613 = vmul.f32 %v10554, 0.01
      %v10614 = vmul.f32 %v10557, 0.01
      %v10615 = vmul.f32 %v10560, 0.01
      %v10616 = vmul.f32 %v10563, 0.01
      %v10617 = vmul.f32 %v10566, 0.01
      %v10618 = vmul.f32 %v10569, 0.01
      %v10619 = vmul.f32 %v10572, 0.01
      %v10620 = vmul.f32 %v10575, 0.01
      %v10621 = vmul.f32 %v10578, 0.01
      %v10622 = vmul.f32 %v10581, 0.01
      %v10623 = vmul.f32 %v10584, 0.01
      %v10624 = vmul.f32 %v10587, 0.01
      %v10625 = vmul.f32 %v10590, 0.01
      %v10626 = vmul.f32 %v10593, 0.01
      %v10627 = vsel %vm10595, %v10548, %v10611
      %v10628 = vsel %vm10596, %v10551, %v10612
      %v10629 = vsel %vm10597, %v10554, %v10613
      %v10630 = vsel %vm10598, %v10557, %v10614
      %v10631 = vsel %vm10599, %v10560, %v10615
      %v10632 = vsel %vm10600, %v10563, %v10616
      %v10633 = vsel %vm10601, %v10566, %v10617
      %v10634 = vsel %vm10602, %v10569, %v10618
      %v10635 = vsel %vm10603, %v10572, %v10619
      %v10636 = vsel %vm10604, %v10575, %v10620
      %v10637 = vsel %vm10605, %v10578, %v10621
      %v10638 = vsel %vm10606, %v10581, %v10622
      %v10639 = vsel %vm10607, %v10584, %v10623
      %v10640 = vsel %vm10608, %v10587, %v10624
      %v10641 = vsel %vm10609, %v10590, %v10625
      %v10642 = vsel %vm10610, %v10593, %v10626
      %v10643 = vperm.slane %v423, 0
      %v10645 = vsel %vm644, %v10627, 0
      %v10648 = vsel %vm644, %v10628, 0
      %v10651 = vsel %vm644, %v10629, 0
      %v10654 = vsel %vm644, %v10630, 0
      %v10657 = vsel %vm644, %v10631, 0
      %v10660 = vsel %vm644, %v10632, 0
      %v10663 = vsel %vm644, %v10633, 0
      %v10666 = vsel %vm644, %v10634, 0
      %v10669 = vsel %vm644, %v10635, 0
      %v10672 = vsel %vm644, %v10636, 0
      %v10675 = vsel %vm644, %v10637, 0
      %v10678 = vsel %vm644, %v10638, 0
      %v10681 = vsel %vm644, %v10639, 0
      %v10684 = vsel %vm644, %v10640, 0
      %v10687 = vsel %vm644, %v10641, 0
      %v10690 = vsel %vm644, %v10642, 0
      %10692 = vmatpush.msra.mxu0 0.0
      %10693 = vmatpush.msra.mxu0 0.0
      %10694 = vmatpush.msra.mxu0 0.0
      %10695 = vmatpush.msra.mxu0 0.0
      %10696 = vmatpush.msra.mxu0 0.0
      %10697 = vmatpush.msra.mxu0 0.0
      %10698 = vmatpush.msra.mxu0 0.0
      %10699 = vmatpush.msra.mxu0 0.0
      %10700 = vmatpush.msra.mxu0 0.0
      %10701 = vmatpush.msra.mxu0 0.0
      %10702 = vmatpush.msra.mxu0 0.0
      %10703 = vmatpush.msra.mxu0 0.0
      %10704 = vmatpush.msra.mxu0 %v458
      %10705 = vmatpush.msra.mxu0 %v457
      %10706 = vmatpush.msra.mxu0 %v456
      %10707 = vmatpush.msra.mxu0 %v455
      %10708 = vmatmul.f32.gmra.mxu0 %v10645
      %v10709 = vpop.f32.mrf.mxu0
      %v10710 = vadd.f32 %v10643, %v10709
      %10711 = vmatmul.f32.gmra.mxu0 %v10648
      %v10712 = vpop.f32.mrf.mxu0
      %v10713 = vadd.f32 %v10643, %v10712
      %10714 = vmatmul.f32.gmra.mxu0 %v10651
      %v10715 = vpop.f32.mrf.mxu0
      %v10716 = vadd.f32 %v10643, %v10715
      %10717 = vmatmul.f32.gmra.mxu0 %v10654
      %v10718 = vpop.f32.mrf.mxu0
      %v10719 = vadd.f32 %v10643, %v10718
      %10720 = vmatmul.f32.gmra.mxu0 %v10657
      %v10721 = vpop.f32.mrf.mxu0
      %v10722 = vadd.f32 %v10643, %v10721
      %10723 = vmatmul.f32.gmra.mxu0 %v10660
      %v10724 = vpop.f32.mrf.mxu0
      %v10725 = vadd.f32 %v10643, %v10724
      %10726 = vmatmul.f32.gmra.mxu0 %v10663
      %v10727 = vpop.f32.mrf.mxu0
      %v10728 = vadd.f32 %v10643, %v10727
      %10729 = vmatmul.f32.gmra.mxu0 %v10666
      %v10730 = vpop.f32.mrf.mxu0
      %v10731 = vadd.f32 %v10643, %v10730
      %10732 = vmatmul.f32.gmra.mxu0 %v10669
      %v10733 = vpop.f32.mrf.mxu0
      %v10734 = vadd.f32 %v10643, %v10733
      %10735 = vmatmul.f32.gmra.mxu0 %v10672
      %v10736 = vpop.f32.mrf.mxu0
      %v10737 = vadd.f32 %v10643, %v10736
      %10738 = vmatmul.f32.gmra.mxu0 %v10675
      %v10739 = vpop.f32.mrf.mxu0
      %v10740 = vadd.f32 %v10643, %v10739
      %10741 = vmatmul.f32.gmra.mxu0 %v10678
      %v10742 = vpop.f32.mrf.mxu0
      %v10743 = vadd.f32 %v10643, %v10742
      %10744 = vmatmul.f32.gmra.mxu0 %v10681
      %v10745 = vpop.f32.mrf.mxu0
      %v10746 = vadd.f32 %v10643, %v10745
      %10747 = vmatmul.f32.gmra.mxu0 %v10684
      %v10748 = vpop.f32.mrf.mxu0
      %v10749 = vadd.f32 %v10643, %v10748
      %10750 = vmatmul.f32.gmra.mxu0 %v10687
      %v10751 = vpop.f32.mrf.mxu0
      %v10752 = vadd.f32 %v10643, %v10751
      %10753 = vmatmul.f32.gmra.mxu0 %v10690
      %v10754 = vpop.f32.mrf.mxu0
      %v10755 = vadd.f32 %v10643, %v10754
      %10756 = vdwg.mxu0
      %vm10757 = vcmp.gt.f32.partialorder %v10710, 0.0
      %vm10758 = vcmp.gt.f32.partialorder %v10713, 0.0
      %vm10759 = vcmp.gt.f32.partialorder %v10716, 0.0
      %vm10760 = vcmp.gt.f32.partialorder %v10719, 0.0
      %vm10761 = vcmp.gt.f32.partialorder %v10722, 0.0
      %vm10762 = vcmp.gt.f32.partialorder %v10725, 0.0
      %vm10763 = vcmp.gt.f32.partialorder %v10728, 0.0
      %vm10764 = vcmp.gt.f32.partialorder %v10731, 0.0
      %vm10765 = vcmp.gt.f32.partialorder %v10734, 0.0
      %vm10766 = vcmp.gt.f32.partialorder %v10737, 0.0
      %vm10767 = vcmp.gt.f32.partialorder %v10740, 0.0
      %vm10768 = vcmp.gt.f32.partialorder %v10743, 0.0
      %vm10769 = vcmp.gt.f32.partialorder %v10746, 0.0
      %vm10770 = vcmp.gt.f32.partialorder %v10749, 0.0
      %vm10771 = vcmp.gt.f32.partialorder %v10752, 0.0
      %vm10772 = vcmp.gt.f32.partialorder %v10755, 0.0
      %v10773 = vmul.f32 %v10710, 0.01
      %v10774 = vmul.f32 %v10713, 0.01
      %v10775 = vmul.f32 %v10716, 0.01
      %v10776 = vmul.f32 %v10719, 0.01
      %v10777 = vmul.f32 %v10722, 0.01
      %v10778 = vmul.f32 %v10725, 0.01
      %v10779 = vmul.f32 %v10728, 0.01
      %v10780 = vmul.f32 %v10731, 0.01
      %v10781 = vmul.f32 %v10734, 0.01
      %v10782 = vmul.f32 %v10737, 0.01
      %v10783 = vmul.f32 %v10740, 0.01
      %v10784 = vmul.f32 %v10743, 0.01
      %v10785 = vmul.f32 %v10746, 0.01
      %v10786 = vmul.f32 %v10749, 0.01
      %v10787 = vmul.f32 %v10752, 0.01
      %v10788 = vmul.f32 %v10755, 0.01
      %v10789 = vsel %vm10757, %v10710, %v10773
      %v10790 = vsel %vm10758, %v10713, %v10774
      %v10791 = vsel %vm10759, %v10716, %v10775
      %v10792 = vsel %vm10760, %v10719, %v10776
      %v10793 = vsel %vm10761, %v10722, %v10777
      %v10794 = vsel %vm10762, %v10725, %v10778
      %v10795 = vsel %vm10763, %v10728, %v10779
      %v10796 = vsel %vm10764, %v10731, %v10780
      %v10797 = vsel %vm10765, %v10734, %v10781
      %v10798 = vsel %vm10766, %v10737, %v10782
      %v10799 = vsel %vm10767, %v10740, %v10783
      %v10800 = vsel %vm10768, %v10743, %v10784
      %v10801 = vsel %vm10769, %v10746, %v10785
      %v10802 = vsel %vm10770, %v10749, %v10786
      %v10803 = vsel %vm10771, %v10752, %v10787
      %v10804 = vsel %vm10772, %v10755, %v10788
      %v10805 = vperm.slane %v425, 0
      %v10807 = vsel %vm644, %v10789, 0
      %v10810 = vsel %vm644, %v10790, 0
      %v10813 = vsel %vm644, %v10791, 0
      %v10816 = vsel %vm644, %v10792, 0
      %v10819 = vsel %vm644, %v10793, 0
      %v10822 = vsel %vm644, %v10794, 0
      %v10825 = vsel %vm644, %v10795, 0
      %v10828 = vsel %vm644, %v10796, 0
      %v10831 = vsel %vm644, %v10797, 0
      %v10834 = vsel %vm644, %v10798, 0
      %v10837 = vsel %vm644, %v10799, 0
      %v10840 = vsel %vm644, %v10800, 0
      %v10843 = vsel %vm644, %v10801, 0
      %v10846 = vsel %vm644, %v10802, 0
      %v10849 = vsel %vm644, %v10803, 0
      %v10852 = vsel %vm644, %v10804, 0
      %10854 = vmatpush.msra.mxu0 0.0
      %10855 = vmatpush.msra.mxu0 0.0
      %10856 = vmatpush.msra.mxu0 0.0
      %10857 = vmatpush.msra.mxu0 0.0
      %10858 = vmatpush.msra.mxu0 0.0
      %10859 = vmatpush.msra.mxu0 0.0
      %10860 = vmatpush.msra.mxu0 0.0
      %10861 = vmatpush.msra.mxu0 0.0
      %10862 = vmatpush.msra.mxu0 0.0
      %10863 = vmatpush.msra.mxu0 0.0
      %10864 = vmatpush.msra.mxu0 0.0
      %10865 = vmatpush.msra.mxu0 0.0
      %10866 = vmatpush.msra.mxu0 %v474
      %10867 = vmatpush.msra.mxu0 %v473
      %10868 = vmatpush.msra.mxu0 %v472
      %10869 = vmatpush.msra.mxu0 %v471
      %10870 = vmatmul.f32.gmra.mxu0 %v10807
      %v10871 = vpop.f32.mrf.mxu0
      %v10872 = vadd.f32 %v10805, %v10871
      %10873 = vmatmul.f32.gmra.mxu0 %v10810
      %v10874 = vpop.f32.mrf.mxu0
      %v10875 = vadd.f32 %v10805, %v10874
      %10876 = vmatmul.f32.gmra.mxu0 %v10813
      %v10877 = vpop.f32.mrf.mxu0
      %v10878 = vadd.f32 %v10805, %v10877
      %10879 = vmatmul.f32.gmra.mxu0 %v10816
      %v10880 = vpop.f32.mrf.mxu0
      %v10881 = vadd.f32 %v10805, %v10880
      %10882 = vmatmul.f32.gmra.mxu0 %v10819
      %v10883 = vpop.f32.mrf.mxu0
      %v10884 = vadd.f32 %v10805, %v10883
      %10885 = vmatmul.f32.gmra.mxu0 %v10822
      %v10886 = vpop.f32.mrf.mxu0
      %v10887 = vadd.f32 %v10805, %v10886
      %10888 = vmatmul.f32.gmra.mxu0 %v10825
      %v10889 = vpop.f32.mrf.mxu0
      %v10890 = vadd.f32 %v10805, %v10889
      %10891 = vmatmul.f32.gmra.mxu0 %v10828
      %v10892 = vpop.f32.mrf.mxu0
      %v10893 = vadd.f32 %v10805, %v10892
      %10894 = vmatmul.f32.gmra.mxu0 %v10831
      %v10895 = vpop.f32.mrf.mxu0
      %v10896 = vadd.f32 %v10805, %v10895
      %10897 = vmatmul.f32.gmra.mxu0 %v10834
      %v10898 = vpop.f32.mrf.mxu0
      %v10899 = vadd.f32 %v10805, %v10898
      %10900 = vmatmul.f32.gmra.mxu0 %v10837
      %v10901 = vpop.f32.mrf.mxu0
      %v10902 = vadd.f32 %v10805, %v10901
      %10903 = vmatmul.f32.gmra.mxu0 %v10840
      %v10904 = vpop.f32.mrf.mxu0
      %v10905 = vadd.f32 %v10805, %v10904
      %10906 = vmatmul.f32.gmra.mxu0 %v10843
      %v10907 = vpop.f32.mrf.mxu0
      %v10908 = vadd.f32 %v10805, %v10907
      %10909 = vmatmul.f32.gmra.mxu0 %v10846
      %v10910 = vpop.f32.mrf.mxu0
      %v10911 = vadd.f32 %v10805, %v10910
      %10912 = vmatmul.f32.gmra.mxu0 %v10849
      %v10913 = vpop.f32.mrf.mxu0
      %v10914 = vadd.f32 %v10805, %v10913
      %10915 = vmatmul.f32.gmra.mxu0 %v10852
      %v10916 = vpop.f32.mrf.mxu0
      %v10917 = vadd.f32 %v10805, %v10916
      %10918 = vdwg.mxu0
      %v10919 = vmul.f32 %v10872, 0.5
      %v10920 = vmul.f32 %v10875, 0.5
      %v10921 = vmul.f32 %v10878, 0.5
      %v10922 = vmul.f32 %v10881, 0.5
      %v10923 = vmul.f32 %v10884, 0.5
      %v10924 = vmul.f32 %v10887, 0.5
      %v10925 = vmul.f32 %v10890, 0.5
      %v10926 = vmul.f32 %v10893, 0.5
      %v10927 = vmul.f32 %v10896, 0.5
      %v10928 = vmul.f32 %v10899, 0.5
      %v10929 = vmul.f32 %v10902, 0.5
      %v10930 = vmul.f32 %v10905, 0.5
      %v10931 = vmul.f32 %v10908, 0.5
      %v10932 = vmul.f32 %v10911, 0.5
      %v10933 = vmul.f32 %v10914, 0.5
      %v10934 = vmul.f32 %v10917, 0.5
      %v10935 = vtanh.pop %v10919
      %v10936 = vtanh.pop %v10920
      %v10937 = vtanh.pop %v10921
      %v10938 = vtanh.pop %v10922
      %v10939 = vtanh.pop %v10923
      %v10940 = vtanh.pop %v10924
      %v10941 = vtanh.pop %v10925
      %v10942 = vtanh.pop %v10926
      %v10943 = vtanh.pop %v10927
      %v10944 = vtanh.pop %v10928
      %v10945 = vtanh.pop %v10929
      %v10946 = vtanh.pop %v10930
      %v10947 = vtanh.pop %v10931
      %v10948 = vtanh.pop %v10932
      %v10949 = vtanh.pop %v10933
      %v10950 = vtanh.pop %v10934
      %v10951 = vmul.f32 %v10935, 0.5
      %v10952 = vmul.f32 %v10936, 0.5
      %v10953 = vmul.f32 %v10937, 0.5
      %v10954 = vmul.f32 %v10938, 0.5
      %v10955 = vmul.f32 %v10939, 0.5
      %v10956 = vmul.f32 %v10940, 0.5
      %v10957 = vmul.f32 %v10941, 0.5
      %v10958 = vmul.f32 %v10942, 0.5
      %v10959 = vmul.f32 %v10943, 0.5
      %v10960 = vmul.f32 %v10944, 0.5
      %v10961 = vmul.f32 %v10945, 0.5
      %v10962 = vmul.f32 %v10946, 0.5
      %v10963 = vmul.f32 %v10947, 0.5
      %v10964 = vmul.f32 %v10948, 0.5
      %v10965 = vmul.f32 %v10949, 0.5
      %v10966 = vmul.f32 %v10950, 0.5
      %v10967 = vadd.f32 %v10951, 0.5
      %v10968 = vadd.f32 %v10952, 0.5
      %v10969 = vadd.f32 %v10953, 0.5
      %v10970 = vadd.f32 %v10954, 0.5
      %v10971 = vadd.f32 %v10955, 0.5
      %v10972 = vadd.f32 %v10956, 0.5
      %v10973 = vadd.f32 %v10957, 0.5
      %v10974 = vadd.f32 %v10958, 0.5
      %v10975 = vadd.f32 %v10959, 0.5
      %v10976 = vadd.f32 %v10960, 0.5
      %v10977 = vadd.f32 %v10961, 0.5
      %v10978 = vadd.f32 %v10962, 0.5
      %v10979 = vadd.f32 %v10963, 0.5
      %v10980 = vadd.f32 %v10964, 0.5
      %v10981 = vadd.f32 %v10965, 0.5
      %v10982 = vadd.f32 %v10966, 0.5
      %10983 = vst [vmem:[%s372] sm:$0xff] %v10967
      %10984 = vst [vmem:[%s372 + $0x8] sm:$0xff] %v10968
      %10985 = vst [vmem:[%s372 + $0x10] sm:$0xff] %v10969
      %10986 = vst [vmem:[%s372 + $0x18] sm:$0xff] %v10970
      %10987 = vst [vmem:[%s372 + $0x20] sm:$0xff] %v10971
      %10988 = vst [vmem:[%s372 + $0x28] sm:$0xff] %v10972
      %10989 = vst [vmem:[%s372 + $0x30] sm:$0xff] %v10973
      %10990 = vst [vmem:[%s372 + $0x38] sm:$0xff] %v10974
      %10991 = vst [vmem:[%s372 + $0x40] sm:$0xff] %v10975
      %10992 = vst [vmem:[%s372 + $0x48] sm:$0xff] %v10976
      %10993 = vst [vmem:[%s372 + $0x50] sm:$0xff] %v10977
      %10994 = vst [vmem:[%s372 + $0x58] sm:$0xff] %v10978
      %10995 = vst [vmem:[%s372 + $0x60] sm:$0xff] %v10979
      %10996 = vst [vmem:[%s372 + $0x68] sm:$0xff] %v10980
      %10997 = vst [vmem:[%s372 + $0x70] sm:$0xff] %v10981
      %10998 = vst [vmem:[%s372 + $0x78] sm:$0xff] %v10982
      %p10999 = scmp.lt.s32.totalorder %s20, 1
      %s11000 = scalar_select %p10999, %s20, 1
      %s11001 = smul.addr %s11000, 16
      %s11002 = smul.addr %s11001, 8
      %s11003 = scalar_lea.vmem %s9, %s11002
      // Predicated region
      $region57: #{ggnn_forward.1} parent=55 // pred_check
        %p11004 = pneg %p242
      $region58: #{ggnn_forward.1} parent=55 // pred_check_branch
        %11006 = sbr.rel (%p11004) target = $region60
      $region59: #{ggnn_forward.1} parent=55 // pred_region
        _
      $region60: #{ggnn_forward.1} parent=55 // pred_fallthru
        _
    $region56: #{ggnn_forward.1} parent=5 // pred_fallthru
      _
    %p11007 = scmp.le.s32.totalorder 2, %s15
    // Predicated region
    $region61: #{ggnn_forward.1} parent=5 // pred_check
      %p11008 = pneg %p11007
    $region62: #{ggnn_forward.1} parent=5 // pred_check_branch
      %11010 = sbr.rel (%p11008) target = $region64
    $region63: #{ggnn_forward.1} parent=5 // pred_region
      %s11011 = ssub.s32 %s15, 2
      // Predicated region
      $region65: #{ggnn_forward.1} parent=63 // pred_check
        %p11012 = pneg %p248
      $region66: #{ggnn_forward.1} parent=63 // pred_check_branch
        %11014 = sbr.rel (%p11012) target = $region68
      $region67: #{ggnn_forward.1} parent=63 // pred_region
        %p11015 = scmp.lt.s32.totalorder %s21, 1
        %s11016 = scalar_select %p11015, %s21, 1
        %s11017 = smul.addr %s11016, 16
        %s11018 = smul.addr %s11017, 8
        %s11019 = scalar_lea.vmem %s9, %s11018
      $region68: #{ggnn_forward.1} parent=63 // pred_fallthru
        _
    $region64: #{ggnn_forward.1} parent=5 // pred_fallthru
      _
  $region6: #{ggnn_forward.1} parent=0 // loop_footer
    %s19 = sadd.s32 1, %s15
  $region7: #{ggnn_forward.1} parent=0 // loop_footer_branch
    %14 = sbr.rel target = $region3
  $region8: #{ggnn_forward.1} parent=0 // loop_exit
    _

</llo_original>
